<compile_context>
chip_gen: v6e
topology: v6e:2x2x1
jax: 0.10.0
libtpu: 0.0.40
codegen_flags: <defaults>
</compile_context>

<pallas_src>
import functools
import math

import jax
import jax.numpy as jnp
from jax.experimental import pallas as pl
from jax.experimental.pallas import tpu as pltpu

NEG_INF = -1e30      # additive key-padding mask value (exp underflows to 0)
LN_EPS = 1e-5        # PyTorch LayerNorm default eps
FFN_DIM = 2048       # hardcoded dim_feedforward in the module


# ----------------------------------------------------------------------------
# In-kernel helpers
# ----------------------------------------------------------------------------
def _layernorm(x, g, b):
    mean = jnp.mean(x, axis=-1, keepdims=True)
    xc = x - mean
    var = jnp.mean(xc * xc, axis=-1, keepdims=True)
    return xc * jax.lax.rsqrt(var + LN_EPS) * g + b


def _resident_spec(arr):
    """Full-array block with a constant index map: fetched once, lives in VMEM."""
    ndim = arr.ndim
    return pl.BlockSpec(arr.shape, lambda *_: (0,) * ndim)


# ----------------------------------------------------------------------------
# Fully fused kernel: embedding output -> N encoder layers -> Linear
# (one grid step == one batch element; all weights resident in VMEM)
# ----------------------------------------------------------------------------
def _transformer_stack_kernel(x_ref, mask_ref, *refs, nhead, num_layers, scale):
    o_ref = refs[-1]                                     # output (1, S, nhid)
    wproj_ref = refs[num_layers * 12]                    # (E, nhid) bf16
    bproj_ref = refs[num_layers * 12 + 1]                # (1, nhid) f32

    x = x_ref[0]                                         # (S, E) float32
    bias = mask_ref[0]                                   # (1, S) key-pad bias
    S, E = x.shape
    Dh = E // nhead

    for layer in range(num_layers):                      # statically unrolled
        (wqkv, bqkv, wo, bo, ln1g, ln1b,
         wf1, bf1, wf2, bf2, ln2g, ln2b) = refs[layer * 12:(layer + 1) * 12]

        # ---- fused QKV projection (bf16 MXU operands, f32 accumulate) ------
        qkv = jnp.dot(x.astype(jnp.bfloat16), wqkv[...],
                      preferred_element_type=jnp.float32) + bqkv[...]
        q = qkv[:, :E].astype(jnp.bfloat16)
        k = qkv[:, E:2 * E].astype(jnp.bfloat16)
        v = qkv[:, 2 * E:].astype(jnp.bfloat16)

        # ---- multi-head attention, heads statically unrolled ---------------
        heads = []
        for h in range(nhead):
            sl = slice(h * Dh, (h + 1) * Dh)
            s = jax.lax.dot_general(q[:, sl], k[:, sl],
                                    (((1,), (1,)), ((), ())),
                                    preferred_element_type=jnp.float32)
            s = s * scale + bias                          # (S, S)
            m = jnp.max(s, axis=-1, keepdims=True)
            p = jnp.exp(s - m)
            inv = pl.reciprocal(jnp.sum(p, axis=-1, keepdims=True), approx=True)
            p = (p * inv).astype(jnp.bfloat16)
            heads.append(jnp.dot(p, v[:, sl],
                                 preferred_element_type=jnp.float32))
        attn = jnp.concatenate(heads, axis=-1)            # (S, E)

        # ---- out_proj + residual + LayerNorm1 ------------------------------
        attn = jnp.dot(attn.astype(jnp.bfloat16), wo[...],
                       preferred_element_type=jnp.float32) + bo[...]
        h1 = _layernorm(attn + x, ln1g[...], ln1b[...])

        # ---- FFN (relu) + residual + LayerNorm2; (S, 2048) stays on-chip ---
        f = jnp.dot(h1.astype(jnp.bfloat16), wf1[...],
                    preferred_element_type=jnp.float32) + bf1[...]
        f = jnp.maximum(f, 0.0).astype(jnp.bfloat16)
        f = jnp.dot(f, wf2[...],
                    preferred_element_type=jnp.float32) + bf2[...]
        x = _layernorm(f + h1, ln2g[...], ln2b[...])

    # ---- final Linear projection (fused into the same kernel) --------------
    o_ref[0] = (jnp.dot(x.astype(jnp.bfloat16), wproj_ref[...],
                        preferred_element_type=jnp.float32) + bproj_ref[...])


# ----------------------------------------------------------------------------
# Full forward (wrapper glue: embedding gather + one-time layout transposes)
# ----------------------------------------------------------------------------
def transformer_forward(token_indices, params, *, nhead, nlayer_decoder,
                        pad_idx=0):
    S, N = token_indices.shape

    # Embedding gather kept in plain JAX (tiny table lookup, no Pallas win).
    tok = params["token_embed"][token_indices.T]                # (N, S, E)
    pos = params["position_embed"][jnp.arange(S)][None, :, :]   # (1, S, E)
    x = (tok + pos).astype(jnp.float32)                         # (N, S, E)
    E = x.shape[-1]

    # attn_mask = ~token_indices.ne(pad_idx).T  -> (N, S), True where padding
    pad_mask_NS = (token_indices == pad_idx).T
    mask_bias = jnp.where(pad_mask_NS, NEG_INF, 0.0).astype(
        jnp.float32)[:, None, :]                                # (N, 1, S)

    # Flatten per-layer weights into one argument list (all resident in VMEM).
    layer_weights = []
    for p in params["layers"]:
        layer_weights += [p["in_proj_w"], p["in_proj_b"],
                          p["out_proj_w"], p["out_proj_b"],
                          p["ln1_g"], p["ln1_b"],
                          p["ff1_w"], p["ff1_b"],
                          p["ff2_w"], p["ff2_b"],
                          p["ln2_g"], p["ln2_b"]]
    weights = tuple(layer_weights) + (params["proj_w"], params["proj_b"])

    num_layers = len(params["layers"])
    nhid = params["proj_w"].shape[1]
    scale = 1.0 / math.sqrt(E // nhead)

    proj = pl.pallas_call(
        functools.partial(_transformer_stack_kernel,
                          nhead=nhead, num_layers=num_layers, scale=scale),
        out_shape=jax.ShapeDtypeStruct((N, S, nhid), jnp.float32),
        grid=(N,),
        in_specs=[pl.BlockSpec((1, S, E), lambda i: (i, 0, 0)),   # activations
                  pl.BlockSpec((1, 1, S), lambda i: (i, 0, 0))]   # mask bias
                 + [_resident_spec(w) for w in weights],
        out_specs=pl.BlockSpec((1, S, nhid), lambda i: (i, 0, 0)),
        compiler_params=pltpu.CompilerParams(
            dimension_semantics=("parallel",)),
    )(x, mask_bias, *weights)                                   # (N, S, nhid)

    x_out = proj.transpose(1, 0, 2)                             # (S, N, nhid)
    x_topass = jnp.zeros((nlayer_decoder, S, nhid), jnp.float32)
    attn_mask_SN = pad_mask_NS.T                                # (S, N) bool
    return x_out, x_topass, attn_mask_SN


# ----------------------------------------------------------------------------
# Deterministic synthetic parameters (matmul weights stored bf16 as (in, out))
# ----------------------------------------------------------------------------
def init_params(key, vocab_size, max_len, nhid, dim, num_layers):
    keys = jax.random.split(key, 4 + num_layers)

    def w(k, shape, dtype=jnp.bfloat16, scale=0.02):
        return (scale * jax.random.normal(k, shape)).astype(dtype)

    params = {
        "token_embed": w(keys[0], (vocab_size, dim), jnp.float32),
        "position_embed": w(keys[1], (max_len, dim), jnp.float32),
        "proj_w": w(keys[2], (dim, nhid)),
        "proj_b": jnp.zeros((1, nhid), jnp.float32),
        "layers": [],
    }
    for layer in range(num_layers):
        lk = jax.random.split(keys[4 + layer], 4)
        params["layers"].append({
            "in_proj_w": w(lk[0], (dim, 3 * dim)),
            "in_proj_b": jnp.zeros((1, 3 * dim), jnp.float32),
            "out_proj_w": w(lk[1], (dim, dim)),
            "out_proj_b": jnp.zeros((1, dim), jnp.float32),
            "ff1_w": w(lk[2], (dim, FFN_DIM)),
            "ff1_b": jnp.zeros((1, FFN_DIM), jnp.float32),
            "ff2_w": w(lk[3], (FFN_DIM, dim)),
            "ff2_b": jnp.zeros((1, dim), jnp.float32),
            "ln1_g": jnp.ones((1, dim), jnp.float32),
            "ln1_b": jnp.zeros((1, dim), jnp.float32),
            "ln2_g": jnp.ones((1, dim), jnp.float32),
            "ln2_b": jnp.zeros((1, dim), jnp.float32),
        })
    return params


if __name__ == "__main__":
    vocab_size, max_len = 50, 16
    dim, nhead, num_layers = 32, 4, 2
    nhid, nlayer_decoder = 16, 2
    S, N = 8, 2                         # seq-first: token_indices is (S, N)

    key = jax.random.PRNGKey(0)
    pkey, tkey = jax.random.split(key)
    params = init_params(pkey, vocab_size, max_len, nhid, dim, num_layers)

    tokens = jax.random.randint(tkey, (S, N), 1, vocab_size, dtype=jnp.int32)
    tokens = tokens.at[-2:, :].set(0)   # trailing pad tokens -> exercises mask

    x, x_topass, attn_mask = transformer_forward(
        tokens, params, nhead=nhead, nlayer_decoder=nlayer_decoder, pad_idx=0)
    jax.block_until_ready((x, x_topass, attn_mask))

    assert x.shape == (S, N, nhid)
    assert x_topass.shape == (nlayer_decoder, S, nhid)
    assert attn_mask.shape == (S, N) and attn_mask.dtype == jnp.bool_
    assert bool(jnp.all(jnp.isfinite(x)))
    print("KERNEL_OK")
</pallas_src>

<mosaic_0001>
module attributes {stable_mosaic.version = 11 : i64} {
  func.func @_transformer_stack_kernel(%arg0: i32, %arg1: memref<1x8x32xf32, #tpu.memory_space<vmem>>, %arg2: memref<1x1x8xf32, #tpu.memory_space<vmem>>, %arg3: memref<32x96xbf16, #tpu.memory_space<vmem>>, %arg4: memref<1x96xf32, #tpu.memory_space<vmem>>, %arg5: memref<32x32xbf16, #tpu.memory_space<vmem>>, %arg6: memref<1x32xf32, #tpu.memory_space<vmem>>, %arg7: memref<1x32xf32, #tpu.memory_space<vmem>>, %arg8: memref<1x32xf32, #tpu.memory_space<vmem>>, %arg9: memref<32x2048xbf16, #tpu.memory_space<vmem>>, %arg10: memref<1x2048xf32, #tpu.memory_space<vmem>>, %arg11: memref<2048x32xbf16, #tpu.memory_space<vmem>>, %arg12: memref<1x32xf32, #tpu.memory_space<vmem>>, %arg13: memref<1x32xf32, #tpu.memory_space<vmem>>, %arg14: memref<1x32xf32, #tpu.memory_space<vmem>>, %arg15: memref<32x96xbf16, #tpu.memory_space<vmem>>, %arg16: memref<1x96xf32, #tpu.memory_space<vmem>>, %arg17: memref<32x32xbf16, #tpu.memory_space<vmem>>, %arg18: memref<1x32xf32, #tpu.memory_space<vmem>>, %arg19: memref<1x32xf32, #tpu.memory_space<vmem>>, %arg20: memref<1x32xf32, #tpu.memory_space<vmem>>, %arg21: memref<32x2048xbf16, #tpu.memory_space<vmem>>, %arg22: memref<1x2048xf32, #tpu.memory_space<vmem>>, %arg23: memref<2048x32xbf16, #tpu.memory_space<vmem>>, %arg24: memref<1x32xf32, #tpu.memory_space<vmem>>, %arg25: memref<1x32xf32, #tpu.memory_space<vmem>>, %arg26: memref<1x32xf32, #tpu.memory_space<vmem>>, %arg27: memref<32x16xbf16, #tpu.memory_space<vmem>>, %arg28: memref<1x16xf32, #tpu.memory_space<vmem>>, %arg29: memref<1x8x16xf32, #tpu.memory_space<vmem>>) attributes {dimension_semantics = [#tpu.dimension_semantics<parallel>], iteration_bounds = array<i64: 2>, scalar_prefetch = 0 : i64, scratch_operands = 0 : i64, tpu.core_type = #tpu.core_type<tc>, window_params = [{transform_indices = @transform_0, window_bounds = array<i64: 1, 8, 32>}, {transform_indices = @transform_1, window_bounds = array<i64: 1, 1, 8>}, {pipeline_mode = #tpu.pipeline_mode<synchronous>, transform_indices = @transform_2, window_bounds = array<i64: 32, 96>}, {pipeline_mode = #tpu.pipeline_mode<synchronous>, transform_indices = @transform_3, window_bounds = array<i64: 1, 96>}, {pipeline_mode = #tpu.pipeline_mode<synchronous>, transform_indices = @transform_4, window_bounds = array<i64: 32, 32>}, {pipeline_mode = #tpu.pipeline_mode<synchronous>, transform_indices = @transform_5, window_bounds = array<i64: 1, 32>}, {pipeline_mode = #tpu.pipeline_mode<synchronous>, transform_indices = @transform_6, window_bounds = array<i64: 1, 32>}, {pipeline_mode = #tpu.pipeline_mode<synchronous>, transform_indices = @transform_7, window_bounds = array<i64: 1, 32>}, {pipeline_mode = #tpu.pipeline_mode<synchronous>, transform_indices = @transform_8, window_bounds = array<i64: 32, 2048>}, {pipeline_mode = #tpu.pipeline_mode<synchronous>, transform_indices = @transform_9, window_bounds = array<i64: 1, 2048>}, {pipeline_mode = #tpu.pipeline_mode<synchronous>, transform_indices = @transform_10, window_bounds = array<i64: 2048, 32>}, {pipeline_mode = #tpu.pipeline_mode<synchronous>, transform_indices = @transform_11, window_bounds = array<i64: 1, 32>}, {pipeline_mode = #tpu.pipeline_mode<synchronous>, transform_indices = @transform_12, window_bounds = array<i64: 1, 32>}, {pipeline_mode = #tpu.pipeline_mode<synchronous>, transform_indices = @transform_13, window_bounds = array<i64: 1, 32>}, {pipeline_mode = #tpu.pipeline_mode<synchronous>, transform_indices = @transform_14, window_bounds = array<i64: 32, 96>}, {pipeline_mode = #tpu.pipeline_mode<synchronous>, transform_indices = @transform_15, window_bounds = array<i64: 1, 96>}, {pipeline_mode = #tpu.pipeline_mode<synchronous>, transform_indices = @transform_16, window_bounds = array<i64: 32, 32>}, {pipeline_mode = #tpu.pipeline_mode<synchronous>, transform_indices = @transform_17, window_bounds = array<i64: 1, 32>}, {pipeline_mode = #tpu.pipeline_mode<synchronous>, transform_indices = @transform_18, window_bounds = array<i64: 1, 32>}, {pipeline_mode = #tpu.pipeline_mode<synchronous>, transform_indices = @transform_19, window_bounds = array<i64: 1, 32>}, {pipeline_mode = #tpu.pipeline_mode<synchronous>, transform_indices = @transform_20, window_bounds = array<i64: 32, 2048>}, {pipeline_mode = #tpu.pipeline_mode<synchronous>, transform_indices = @transform_21, window_bounds = array<i64: 1, 2048>}, {pipeline_mode = #tpu.pipeline_mode<synchronous>, transform_indices = @transform_22, window_bounds = array<i64: 2048, 32>}, {pipeline_mode = #tpu.pipeline_mode<synchronous>, transform_indices = @transform_23, window_bounds = array<i64: 1, 32>}, {pipeline_mode = #tpu.pipeline_mode<synchronous>, transform_indices = @transform_24, window_bounds = array<i64: 1, 32>}, {pipeline_mode = #tpu.pipeline_mode<synchronous>, transform_indices = @transform_25, window_bounds = array<i64: 1, 32>}, {pipeline_mode = #tpu.pipeline_mode<synchronous>, transform_indices = @transform_26, window_bounds = array<i64: 32, 16>}, {pipeline_mode = #tpu.pipeline_mode<synchronous>, transform_indices = @transform_27, window_bounds = array<i64: 1, 16>}, {transform_indices = @transform_28, window_bounds = array<i64: 1, 8, 16>}]} {
    %c0 = arith.constant 0 : index
    %c0_0 = arith.constant 0 : index
    %c0_1 = arith.constant 0 : index
    %0 = vector.load %arg1[%c0, %c0_0, %c0_1] : memref<1x8x32xf32, #tpu.memory_space<vmem>>, vector<1x8x32xf32>
    %1 = vector.shape_cast %0 : vector<1x8x32xf32> to vector<8x32xf32>
    %c0_2 = arith.constant 0 : index
    %c0_3 = arith.constant 0 : index
    %c0_4 = arith.constant 0 : index
    %2 = vector.load %arg2[%c0_2, %c0_3, %c0_4] : memref<1x1x8xf32, #tpu.memory_space<vmem>>, vector<1x1x8xf32>
    %3 = vector.shape_cast %2 : vector<1x1x8xf32> to vector<1x8xf32>
    %4 = arith.truncf %1 : vector<8x32xf32> to vector<8x32xbf16>
    %c0_5 = arith.constant 0 : index
    %c0_6 = arith.constant 0 : index
    %5 = vector.load %arg3[%c0_5, %c0_6] : memref<32x96xbf16, #tpu.memory_space<vmem>>, vector<32x96xbf16>
    %cst = arith.constant dense<0.000000e+00> : vector<8x96xf32>
    %6 = tpu.matmul %4, %5, %cst {dimension_numbers = #tpu.dot_dimension_numbers<[1], [0], [0], [1], [0, 0, 1, 1], [], []>} : vector<8x32xbf16>, vector<32x96xbf16>, vector<8x96xf32> -> vector<8x96xf32>
    %c0_7 = arith.constant 0 : index
    %c0_8 = arith.constant 0 : index
    %7 = vector.load %arg4[%c0_7, %c0_8] : memref<1x96xf32, #tpu.memory_space<vmem>>, vector<1x96xf32>
    %8 = vector.broadcast %7 : vector<1x96xf32> to vector<8x96xf32>
    %9 = arith.addf %6, %8 : vector<8x96xf32>
    %10 = vector.extract_strided_slice %9 {offsets = [0, 0], sizes = [8, 32], strides = [1, 1]} : vector<8x96xf32> to vector<8x32xf32>
    %11 = arith.truncf %10 : vector<8x32xf32> to vector<8x32xbf16>
    %12 = vector.extract_strided_slice %9 {offsets = [0, 32], sizes = [8, 32], strides = [1, 1]} : vector<8x96xf32> to vector<8x32xf32>
    %13 = arith.truncf %12 : vector<8x32xf32> to vector<8x32xbf16>
    %14 = vector.extract_strided_slice %9 {offsets = [0, 64], sizes = [8, 32], strides = [1, 1]} : vector<8x96xf32> to vector<8x32xf32>
    %15 = arith.truncf %14 : vector<8x32xf32> to vector<8x32xbf16>
    %16 = vector.extract_strided_slice %11 {offsets = [0, 0], sizes = [8, 8], strides = [1, 1]} : vector<8x32xbf16> to vector<8x8xbf16>
    %17 = vector.extract_strided_slice %13 {offsets = [0, 0], sizes = [8, 8], strides = [1, 1]} : vector<8x32xbf16> to vector<8x8xbf16>
    %cst_9 = arith.constant dense<0.000000e+00> : vector<8x8xf32>
    %18 = tpu.matmul %16, %17, %cst_9 {dimension_numbers = #tpu.dot_dimension_numbers<[1], [1], [0], [0], [0, 0, 1, 0], [], []>} : vector<8x8xbf16>, vector<8x8xbf16>, vector<8x8xf32> -> vector<8x8xf32>
    %cst_10 = arith.constant 0.353553385 : f32
    %19 = vector.broadcast %cst_10 : f32 to vector<8x8xf32>
    %20 = arith.mulf %18, %19 : vector<8x8xf32>
    %21 = vector.broadcast %3 : vector<1x8xf32> to vector<8x8xf32>
    %22 = arith.addf %20, %21 : vector<8x8xf32>
    %cst_11 = arith.constant dense<0xFF800000> : vector<8xf32>
    %23 = vector.multi_reduction <maximumf>, %22, %cst_11 [1] : vector<8x8xf32> to vector<8xf32>
    %24 = vector.shape_cast %23 : vector<8xf32> to vector<8x1xf32>
    %25 = vector.broadcast %24 : vector<8x1xf32> to vector<8x8xf32>
    %26 = arith.subf %22, %25 : vector<8x8xf32>
    %27 = math.exp %26 : vector<8x8xf32>
    %cst_12 = arith.constant dense<0.000000e+00> : vector<8xf32>
    %28 = vector.multi_reduction <add>, %27, %cst_12 [1] : vector<8x8xf32> to vector<8xf32>
    %29 = vector.shape_cast %28 : vector<8xf32> to vector<8x1xf32>
    %30 = tpu.reciprocal %29 {approx = true} : vector<8x1xf32> -> vector<8x1xf32>
    %31 = vector.broadcast %30 : vector<8x1xf32> to vector<8x8xf32>
    %32 = arith.mulf %27, %31 : vector<8x8xf32>
    %33 = arith.truncf %32 : vector<8x8xf32> to vector<8x8xbf16>
    %34 = vector.extract_strided_slice %15 {offsets = [0, 0], sizes = [8, 8], strides = [1, 1]} : vector<8x32xbf16> to vector<8x8xbf16>
    %cst_13 = arith.constant dense<0.000000e+00> : vector<8x8xf32>
    %35 = tpu.matmul %33, %34, %cst_13 {dimension_numbers = #tpu.dot_dimension_numbers<[1], [0], [0], [1], [0, 0, 1, 1], [], []>} : vector<8x8xbf16>, vector<8x8xbf16>, vector<8x8xf32> -> vector<8x8xf32>
    %36 = vector.extract_strided_slice %11 {offsets = [0, 8], sizes = [8, 8], strides = [1, 1]} : vector<8x32xbf16> to vector<8x8xbf16>
    %37 = vector.extract_strided_slice %13 {offsets = [0, 8], sizes = [8, 8], strides = [1, 1]} : vector<8x32xbf16> to vector<8x8xbf16>
    %cst_14 = arith.constant dense<0.000000e+00> : vector<8x8xf32>
    %38 = tpu.matmul %36, %37, %cst_14 {dimension_numbers = #tpu.dot_dimension_numbers<[1], [1], [0], [0], [0, 0, 1, 0], [], []>} : vector<8x8xbf16>, vector<8x8xbf16>, vector<8x8xf32> -> vector<8x8xf32>
    %cst_15 = arith.constant 0.353553385 : f32
    %39 = vector.broadcast %cst_15 : f32 to vector<8x8xf32>
    %40 = arith.mulf %38, %39 : vector<8x8xf32>
    %41 = vector.broadcast %3 : vector<1x8xf32> to vector<8x8xf32>
    %42 = arith.addf %40, %41 : vector<8x8xf32>
    %cst_16 = arith.constant dense<0xFF800000> : vector<8xf32>
    %43 = vector.multi_reduction <maximumf>, %42, %cst_16 [1] : vector<8x8xf32> to vector<8xf32>
    %44 = vector.shape_cast %43 : vector<8xf32> to vector<8x1xf32>
    %45 = vector.broadcast %44 : vector<8x1xf32> to vector<8x8xf32>
    %46 = arith.subf %42, %45 : vector<8x8xf32>
    %47 = math.exp %46 : vector<8x8xf32>
    %cst_17 = arith.constant dense<0.000000e+00> : vector<8xf32>
    %48 = vector.multi_reduction <add>, %47, %cst_17 [1] : vector<8x8xf32> to vector<8xf32>
    %49 = vector.shape_cast %48 : vector<8xf32> to vector<8x1xf32>
    %50 = tpu.reciprocal %49 {approx = true} : vector<8x1xf32> -> vector<8x1xf32>
    %51 = vector.broadcast %50 : vector<8x1xf32> to vector<8x8xf32>
    %52 = arith.mulf %47, %51 : vector<8x8xf32>
    %53 = arith.truncf %52 : vector<8x8xf32> to vector<8x8xbf16>
    %54 = vector.extract_strided_slice %15 {offsets = [0, 8], sizes = [8, 8], strides = [1, 1]} : vector<8x32xbf16> to vector<8x8xbf16>
    %cst_18 = arith.constant dense<0.000000e+00> : vector<8x8xf32>
    %55 = tpu.matmul %53, %54, %cst_18 {dimension_numbers = #tpu.dot_dimension_numbers<[1], [0], [0], [1], [0, 0, 1, 1], [], []>} : vector<8x8xbf16>, vector<8x8xbf16>, vector<8x8xf32> -> vector<8x8xf32>
    %56 = vector.extract_strided_slice %11 {offsets = [0, 16], sizes = [8, 8], strides = [1, 1]} : vector<8x32xbf16> to vector<8x8xbf16>
    %57 = vector.extract_strided_slice %13 {offsets = [0, 16], sizes = [8, 8], strides = [1, 1]} : vector<8x32xbf16> to vector<8x8xbf16>
    %cst_19 = arith.constant dense<0.000000e+00> : vector<8x8xf32>
    %58 = tpu.matmul %56, %57, %cst_19 {dimension_numbers = #tpu.dot_dimension_numbers<[1], [1], [0], [0], [0, 0, 1, 0], [], []>} : vector<8x8xbf16>, vector<8x8xbf16>, vector<8x8xf32> -> vector<8x8xf32>
    %cst_20 = arith.constant 0.353553385 : f32
    %59 = vector.broadcast %cst_20 : f32 to vector<8x8xf32>
    %60 = arith.mulf %58, %59 : vector<8x8xf32>
    %61 = vector.broadcast %3 : vector<1x8xf32> to vector<8x8xf32>
    %62 = arith.addf %60, %61 : vector<8x8xf32>
    %cst_21 = arith.constant dense<0xFF800000> : vector<8xf32>
    %63 = vector.multi_reduction <maximumf>, %62, %cst_21 [1] : vector<8x8xf32> to vector<8xf32>
    %64 = vector.shape_cast %63 : vector<8xf32> to vector<8x1xf32>
    %65 = vector.broadcast %64 : vector<8x1xf32> to vector<8x8xf32>
    %66 = arith.subf %62, %65 : vector<8x8xf32>
    %67 = math.exp %66 : vector<8x8xf32>
    %cst_22 = arith.constant dense<0.000000e+00> : vector<8xf32>
    %68 = vector.multi_reduction <add>, %67, %cst_22 [1] : vector<8x8xf32> to vector<8xf32>
    %69 = vector.shape_cast %68 : vector<8xf32> to vector<8x1xf32>
    %70 = tpu.reciprocal %69 {approx = true} : vector<8x1xf32> -> vector<8x1xf32>
    %71 = vector.broadcast %70 : vector<8x1xf32> to vector<8x8xf32>
    %72 = arith.mulf %67, %71 : vector<8x8xf32>
    %73 = arith.truncf %72 : vector<8x8xf32> to vector<8x8xbf16>
    %74 = vector.extract_strided_slice %15 {offsets = [0, 16], sizes = [8, 8], strides = [1, 1]} : vector<8x32xbf16> to vector<8x8xbf16>
    %cst_23 = arith.constant dense<0.000000e+00> : vector<8x8xf32>
    %75 = tpu.matmul %73, %74, %cst_23 {dimension_numbers = #tpu.dot_dimension_numbers<[1], [0], [0], [1], [0, 0, 1, 1], [], []>} : vector<8x8xbf16>, vector<8x8xbf16>, vector<8x8xf32> -> vector<8x8xf32>
    %76 = vector.extract_strided_slice %11 {offsets = [0, 24], sizes = [8, 8], strides = [1, 1]} : vector<8x32xbf16> to vector<8x8xbf16>
    %77 = vector.extract_strided_slice %13 {offsets = [0, 24], sizes = [8, 8], strides = [1, 1]} : vector<8x32xbf16> to vector<8x8xbf16>
    %cst_24 = arith.constant dense<0.000000e+00> : vector<8x8xf32>
    %78 = tpu.matmul %76, %77, %cst_24 {dimension_numbers = #tpu.dot_dimension_numbers<[1], [1], [0], [0], [0, 0, 1, 0], [], []>} : vector<8x8xbf16>, vector<8x8xbf16>, vector<8x8xf32> -> vector<8x8xf32>
    %cst_25 = arith.constant 0.353553385 : f32
    %79 = vector.broadcast %cst_25 : f32 to vector<8x8xf32>
    %80 = arith.mulf %78, %79 : vector<8x8xf32>
    %81 = vector.broadcast %3 : vector<1x8xf32> to vector<8x8xf32>
    %82 = arith.addf %80, %81 : vector<8x8xf32>
    %cst_26 = arith.constant dense<0xFF800000> : vector<8xf32>
    %83 = vector.multi_reduction <maximumf>, %82, %cst_26 [1] : vector<8x8xf32> to vector<8xf32>
    %84 = vector.shape_cast %83 : vector<8xf32> to vector<8x1xf32>
    %85 = vector.broadcast %84 : vector<8x1xf32> to vector<8x8xf32>
    %86 = arith.subf %82, %85 : vector<8x8xf32>
    %87 = math.exp %86 : vector<8x8xf32>
    %cst_27 = arith.constant dense<0.000000e+00> : vector<8xf32>
    %88 = vector.multi_reduction <add>, %87, %cst_27 [1] : vector<8x8xf32> to vector<8xf32>
    %89 = vector.shape_cast %88 : vector<8xf32> to vector<8x1xf32>
    %90 = tpu.reciprocal %89 {approx = true} : vector<8x1xf32> -> vector<8x1xf32>
    %91 = vector.broadcast %90 : vector<8x1xf32> to vector<8x8xf32>
    %92 = arith.mulf %87, %91 : vector<8x8xf32>
    %93 = arith.truncf %92 : vector<8x8xf32> to vector<8x8xbf16>
    %94 = vector.extract_strided_slice %15 {offsets = [0, 24], sizes = [8, 8], strides = [1, 1]} : vector<8x32xbf16> to vector<8x8xbf16>
    %cst_28 = arith.constant dense<0.000000e+00> : vector<8x8xf32>
    %95 = tpu.matmul %93, %94, %cst_28 {dimension_numbers = #tpu.dot_dimension_numbers<[1], [0], [0], [1], [0, 0, 1, 1], [], []>} : vector<8x8xbf16>, vector<8x8xbf16>, vector<8x8xf32> -> vector<8x8xf32>
    %96 = tpu.concatenate %35, %55, %75, %95 in 1 : vector<8x8xf32>, vector<8x8xf32>, vector<8x8xf32>, vector<8x8xf32> -> vector<8x32xf32>
    %97 = arith.truncf %96 : vector<8x32xf32> to vector<8x32xbf16>
    %c0_29 = arith.constant 0 : index
    %c0_30 = arith.constant 0 : index
    %98 = vector.load %arg5[%c0_29, %c0_30] : memref<32x32xbf16, #tpu.memory_space<vmem>>, vector<32x32xbf16>
    %cst_31 = arith.constant dense<0.000000e+00> : vector<8x32xf32>
    %99 = tpu.matmul %97, %98, %cst_31 {dimension_numbers = #tpu.dot_dimension_numbers<[1], [0], [0], [1], [0, 0, 1, 1], [], []>} : vector<8x32xbf16>, vector<32x32xbf16>, vector<8x32xf32> -> vector<8x32xf32>
    %c0_32 = arith.constant 0 : index
    %c0_33 = arith.constant 0 : index
    %100 = vector.load %arg6[%c0_32, %c0_33] : memref<1x32xf32, #tpu.memory_space<vmem>>, vector<1x32xf32>
    %101 = vector.broadcast %100 : vector<1x32xf32> to vector<8x32xf32>
    %102 = arith.addf %99, %101 : vector<8x32xf32>
    %103 = arith.addf %102, %1 : vector<8x32xf32>
    %c0_34 = arith.constant 0 : index
    %c0_35 = arith.constant 0 : index
    %104 = vector.load %arg7[%c0_34, %c0_35] : memref<1x32xf32, #tpu.memory_space<vmem>>, vector<1x32xf32>
    %c0_36 = arith.constant 0 : index
    %c0_37 = arith.constant 0 : index
    %105 = vector.load %arg8[%c0_36, %c0_37] : memref<1x32xf32, #tpu.memory_space<vmem>>, vector<1x32xf32>
    %cst_38 = arith.constant dense<0.000000e+00> : vector<8xf32>
    %106 = vector.multi_reduction <add>, %103, %cst_38 [1] : vector<8x32xf32> to vector<8xf32>
    %107 = vector.shape_cast %106 : vector<8xf32> to vector<8x1xf32>
    %cst_39 = arith.constant 3.200000e+01 : f32
    %108 = vector.broadcast %cst_39 : f32 to vector<8x1xf32>
    %109 = arith.divf %107, %108 : vector<8x1xf32>
    %110 = vector.broadcast %109 : vector<8x1xf32> to vector<8x32xf32>
    %111 = arith.subf %103, %110 : vector<8x32xf32>
    %112 = arith.mulf %111, %111 : vector<8x32xf32>
    %cst_40 = arith.constant dense<0.000000e+00> : vector<8xf32>
    %113 = vector.multi_reduction <add>, %112, %cst_40 [1] : vector<8x32xf32> to vector<8xf32>
    %114 = vector.shape_cast %113 : vector<8xf32> to vector<8x1xf32>
    %cst_41 = arith.constant 3.200000e+01 : f32
    %115 = vector.broadcast %cst_41 : f32 to vector<8x1xf32>
    %116 = arith.divf %114, %115 : vector<8x1xf32>
    %cst_42 = arith.constant 9.99999974E-6 : f32
    %117 = vector.broadcast %cst_42 : f32 to vector<8x1xf32>
    %118 = arith.addf %116, %117 : vector<8x1xf32>
    %119 = math.rsqrt %118 : vector<8x1xf32>
    %120 = vector.broadcast %119 : vector<8x1xf32> to vector<8x32xf32>
    %121 = arith.mulf %111, %120 : vector<8x32xf32>
    %122 = vector.broadcast %104 : vector<1x32xf32> to vector<8x32xf32>
    %123 = arith.mulf %121, %122 : vector<8x32xf32>
    %124 = vector.broadcast %105 : vector<1x32xf32> to vector<8x32xf32>
    %125 = arith.addf %123, %124 : vector<8x32xf32>
    %126 = arith.truncf %125 : vector<8x32xf32> to vector<8x32xbf16>
    %c0_43 = arith.constant 0 : index
    %c0_44 = arith.constant 0 : index
    %127 = vector.load %arg9[%c0_43, %c0_44] : memref<32x2048xbf16, #tpu.memory_space<vmem>>, vector<32x2048xbf16>
    %cst_45 = arith.constant dense<0.000000e+00> : vector<8x2048xf32>
    %128 = tpu.matmul %126, %127, %cst_45 {dimension_numbers = #tpu.dot_dimension_numbers<[1], [0], [0], [1], [0, 0, 1, 1], [], []>} : vector<8x32xbf16>, vector<32x2048xbf16>, vector<8x2048xf32> -> vector<8x2048xf32>
    %c0_46 = arith.constant 0 : index
    %c0_47 = arith.constant 0 : index
    %129 = vector.load %arg10[%c0_46, %c0_47] : memref<1x2048xf32, #tpu.memory_space<vmem>>, vector<1x2048xf32>
    %130 = vector.broadcast %129 : vector<1x2048xf32> to vector<8x2048xf32>
    %131 = arith.addf %128, %130 : vector<8x2048xf32>
    %cst_48 = arith.constant 0.000000e+00 : f32
    %132 = vector.broadcast %cst_48 : f32 to vector<8x2048xf32>
    %133 = arith.maximumf %131, %132 : vector<8x2048xf32>
    %134 = arith.truncf %133 : vector<8x2048xf32> to vector<8x2048xbf16>
    %c0_49 = arith.constant 0 : index
    %c0_50 = arith.constant 0 : index
    %135 = vector.load %arg11[%c0_49, %c0_50] : memref<2048x32xbf16, #tpu.memory_space<vmem>>, vector<2048x32xbf16>
    %cst_51 = arith.constant dense<0.000000e+00> : vector<8x32xf32>
    %136 = tpu.matmul %134, %135, %cst_51 {dimension_numbers = #tpu.dot_dimension_numbers<[1], [0], [0], [1], [0, 0, 1, 1], [], []>} : vector<8x2048xbf16>, vector<2048x32xbf16>, vector<8x32xf32> -> vector<8x32xf32>
    %c0_52 = arith.constant 0 : index
    %c0_53 = arith.constant 0 : index
    %137 = vector.load %arg12[%c0_52, %c0_53] : memref<1x32xf32, #tpu.memory_space<vmem>>, vector<1x32xf32>
    %138 = vector.broadcast %137 : vector<1x32xf32> to vector<8x32xf32>
    %139 = arith.addf %136, %138 : vector<8x32xf32>
    %140 = arith.addf %139, %125 : vector<8x32xf32>
    %c0_54 = arith.constant 0 : index
    %c0_55 = arith.constant 0 : index
    %141 = vector.load %arg13[%c0_54, %c0_55] : memref<1x32xf32, #tpu.memory_space<vmem>>, vector<1x32xf32>
    %c0_56 = arith.constant 0 : index
    %c0_57 = arith.constant 0 : index
    %142 = vector.load %arg14[%c0_56, %c0_57] : memref<1x32xf32, #tpu.memory_space<vmem>>, vector<1x32xf32>
    %cst_58 = arith.constant dense<0.000000e+00> : vector<8xf32>
    %143 = vector.multi_reduction <add>, %140, %cst_58 [1] : vector<8x32xf32> to vector<8xf32>
    %144 = vector.shape_cast %143 : vector<8xf32> to vector<8x1xf32>
    %cst_59 = arith.constant 3.200000e+01 : f32
    %145 = vector.broadcast %cst_59 : f32 to vector<8x1xf32>
    %146 = arith.divf %144, %145 : vector<8x1xf32>
    %147 = vector.broadcast %146 : vector<8x1xf32> to vector<8x32xf32>
    %148 = arith.subf %140, %147 : vector<8x32xf32>
    %149 = arith.mulf %148, %148 : vector<8x32xf32>
    %cst_60 = arith.constant dense<0.000000e+00> : vector<8xf32>
    %150 = vector.multi_reduction <add>, %149, %cst_60 [1] : vector<8x32xf32> to vector<8xf32>
    %151 = vector.shape_cast %150 : vector<8xf32> to vector<8x1xf32>
    %cst_61 = arith.constant 3.200000e+01 : f32
    %152 = vector.broadcast %cst_61 : f32 to vector<8x1xf32>
    %153 = arith.divf %151, %152 : vector<8x1xf32>
    %cst_62 = arith.constant 9.99999974E-6 : f32
    %154 = vector.broadcast %cst_62 : f32 to vector<8x1xf32>
    %155 = arith.addf %153, %154 : vector<8x1xf32>
    %156 = math.rsqrt %155 : vector<8x1xf32>
    %157 = vector.broadcast %156 : vector<8x1xf32> to vector<8x32xf32>
    %158 = arith.mulf %148, %157 : vector<8x32xf32>
    %159 = vector.broadcast %141 : vector<1x32xf32> to vector<8x32xf32>
    %160 = arith.mulf %158, %159 : vector<8x32xf32>
    %161 = vector.broadcast %142 : vector<1x32xf32> to vector<8x32xf32>
    %162 = arith.addf %160, %161 : vector<8x32xf32>
    %163 = arith.truncf %162 : vector<8x32xf32> to vector<8x32xbf16>
    %c0_63 = arith.constant 0 : index
    %c0_64 = arith.constant 0 : index
    %164 = vector.load %arg15[%c0_63, %c0_64] : memref<32x96xbf16, #tpu.memory_space<vmem>>, vector<32x96xbf16>
    %cst_65 = arith.constant dense<0.000000e+00> : vector<8x96xf32>
    %165 = tpu.matmul %163, %164, %cst_65 {dimension_numbers = #tpu.dot_dimension_numbers<[1], [0], [0], [1], [0, 0, 1, 1], [], []>} : vector<8x32xbf16>, vector<32x96xbf16>, vector<8x96xf32> -> vector<8x96xf32>
    %c0_66 = arith.constant 0 : index
    %c0_67 = arith.constant 0 : index
    %166 = vector.load %arg16[%c0_66, %c0_67] : memref<1x96xf32, #tpu.memory_space<vmem>>, vector<1x96xf32>
    %167 = vector.broadcast %166 : vector<1x96xf32> to vector<8x96xf32>
    %168 = arith.addf %165, %167 : vector<8x96xf32>
    %169 = vector.extract_strided_slice %168 {offsets = [0, 0], sizes = [8, 32], strides = [1, 1]} : vector<8x96xf32> to vector<8x32xf32>
    %170 = arith.truncf %169 : vector<8x32xf32> to vector<8x32xbf16>
    %171 = vector.extract_strided_slice %168 {offsets = [0, 32], sizes = [8, 32], strides = [1, 1]} : vector<8x96xf32> to vector<8x32xf32>
    %172 = arith.truncf %171 : vector<8x32xf32> to vector<8x32xbf16>
    %173 = vector.extract_strided_slice %168 {offsets = [0, 64], sizes = [8, 32], strides = [1, 1]} : vector<8x96xf32> to vector<8x32xf32>
    %174 = arith.truncf %173 : vector<8x32xf32> to vector<8x32xbf16>
    %175 = vector.extract_strided_slice %170 {offsets = [0, 0], sizes = [8, 8], strides = [1, 1]} : vector<8x32xbf16> to vector<8x8xbf16>
    %176 = vector.extract_strided_slice %172 {offsets = [0, 0], sizes = [8, 8], strides = [1, 1]} : vector<8x32xbf16> to vector<8x8xbf16>
    %cst_68 = arith.constant dense<0.000000e+00> : vector<8x8xf32>
    %177 = tpu.matmul %175, %176, %cst_68 {dimension_numbers = #tpu.dot_dimension_numbers<[1], [1], [0], [0], [0, 0, 1, 0], [], []>} : vector<8x8xbf16>, vector<8x8xbf16>, vector<8x8xf32> -> vector<8x8xf32>
    %cst_69 = arith.constant 0.353553385 : f32
    %178 = vector.broadcast %cst_69 : f32 to vector<8x8xf32>
    %179 = arith.mulf %177, %178 : vector<8x8xf32>
    %180 = vector.broadcast %3 : vector<1x8xf32> to vector<8x8xf32>
    %181 = arith.addf %179, %180 : vector<8x8xf32>
    %cst_70 = arith.constant dense<0xFF800000> : vector<8xf32>
    %182 = vector.multi_reduction <maximumf>, %181, %cst_70 [1] : vector<8x8xf32> to vector<8xf32>
    %183 = vector.shape_cast %182 : vector<8xf32> to vector<8x1xf32>
    %184 = vector.broadcast %183 : vector<8x1xf32> to vector<8x8xf32>
    %185 = arith.subf %181, %184 : vector<8x8xf32>
    %186 = math.exp %185 : vector<8x8xf32>
    %cst_71 = arith.constant dense<0.000000e+00> : vector<8xf32>
    %187 = vector.multi_reduction <add>, %186, %cst_71 [1] : vector<8x8xf32> to vector<8xf32>
    %188 = vector.shape_cast %187 : vector<8xf32> to vector<8x1xf32>
    %189 = tpu.reciprocal %188 {approx = true} : vector<8x1xf32> -> vector<8x1xf32>
    %190 = vector.broadcast %189 : vector<8x1xf32> to vector<8x8xf32>
    %191 = arith.mulf %186, %190 : vector<8x8xf32>
    %192 = arith.truncf %191 : vector<8x8xf32> to vector<8x8xbf16>
    %193 = vector.extract_strided_slice %174 {offsets = [0, 0], sizes = [8, 8], strides = [1, 1]} : vector<8x32xbf16> to vector<8x8xbf16>
    %cst_72 = arith.constant dense<0.000000e+00> : vector<8x8xf32>
    %194 = tpu.matmul %192, %193, %cst_72 {dimension_numbers = #tpu.dot_dimension_numbers<[1], [0], [0], [1], [0, 0, 1, 1], [], []>} : vector<8x8xbf16>, vector<8x8xbf16>, vector<8x8xf32> -> vector<8x8xf32>
    %195 = vector.extract_strided_slice %170 {offsets = [0, 8], sizes = [8, 8], strides = [1, 1]} : vector<8x32xbf16> to vector<8x8xbf16>
    %196 = vector.extract_strided_slice %172 {offsets = [0, 8], sizes = [8, 8], strides = [1, 1]} : vector<8x32xbf16> to vector<8x8xbf16>
    %cst_73 = arith.constant dense<0.000000e+00> : vector<8x8xf32>
    %197 = tpu.matmul %195, %196, %cst_73 {dimension_numbers = #tpu.dot_dimension_numbers<[1], [1], [0], [0], [0, 0, 1, 0], [], []>} : vector<8x8xbf16>, vector<8x8xbf16>, vector<8x8xf32> -> vector<8x8xf32>
    %cst_74 = arith.constant 0.353553385 : f32
    %198 = vector.broadcast %cst_74 : f32 to vector<8x8xf32>
    %199 = arith.mulf %197, %198 : vector<8x8xf32>
    %200 = vector.broadcast %3 : vector<1x8xf32> to vector<8x8xf32>
    %201 = arith.addf %199, %200 : vector<8x8xf32>
    %cst_75 = arith.constant dense<0xFF800000> : vector<8xf32>
    %202 = vector.multi_reduction <maximumf>, %201, %cst_75 [1] : vector<8x8xf32> to vector<8xf32>
    %203 = vector.shape_cast %202 : vector<8xf32> to vector<8x1xf32>
    %204 = vector.broadcast %203 : vector<8x1xf32> to vector<8x8xf32>
    %205 = arith.subf %201, %204 : vector<8x8xf32>
    %206 = math.exp %205 : vector<8x8xf32>
    %cst_76 = arith.constant dense<0.000000e+00> : vector<8xf32>
    %207 = vector.multi_reduction <add>, %206, %cst_76 [1] : vector<8x8xf32> to vector<8xf32>
    %208 = vector.shape_cast %207 : vector<8xf32> to vector<8x1xf32>
    %209 = tpu.reciprocal %208 {approx = true} : vector<8x1xf32> -> vector<8x1xf32>
    %210 = vector.broadcast %209 : vector<8x1xf32> to vector<8x8xf32>
    %211 = arith.mulf %206, %210 : vector<8x8xf32>
    %212 = arith.truncf %211 : vector<8x8xf32> to vector<8x8xbf16>
    %213 = vector.extract_strided_slice %174 {offsets = [0, 8], sizes = [8, 8], strides = [1, 1]} : vector<8x32xbf16> to vector<8x8xbf16>
    %cst_77 = arith.constant dense<0.000000e+00> : vector<8x8xf32>
    %214 = tpu.matmul %212, %213, %cst_77 {dimension_numbers = #tpu.dot_dimension_numbers<[1], [0], [0], [1], [0, 0, 1, 1], [], []>} : vector<8x8xbf16>, vector<8x8xbf16>, vector<8x8xf32> -> vector<8x8xf32>
    %215 = vector.extract_strided_slice %170 {offsets = [0, 16], sizes = [8, 8], strides = [1, 1]} : vector<8x32xbf16> to vector<8x8xbf16>
    %216 = vector.extract_strided_slice %172 {offsets = [0, 16], sizes = [8, 8], strides = [1, 1]} : vector<8x32xbf16> to vector<8x8xbf16>
    %cst_78 = arith.constant dense<0.000000e+00> : vector<8x8xf32>
    %217 = tpu.matmul %215, %216, %cst_78 {dimension_numbers = #tpu.dot_dimension_numbers<[1], [1], [0], [0], [0, 0, 1, 0], [], []>} : vector<8x8xbf16>, vector<8x8xbf16>, vector<8x8xf32> -> vector<8x8xf32>
    %cst_79 = arith.constant 0.353553385 : f32
    %218 = vector.broadcast %cst_79 : f32 to vector<8x8xf32>
    %219 = arith.mulf %217, %218 : vector<8x8xf32>
    %220 = vector.broadcast %3 : vector<1x8xf32> to vector<8x8xf32>
    %221 = arith.addf %219, %220 : vector<8x8xf32>
    %cst_80 = arith.constant dense<0xFF800000> : vector<8xf32>
    %222 = vector.multi_reduction <maximumf>, %221, %cst_80 [1] : vector<8x8xf32> to vector<8xf32>
    %223 = vector.shape_cast %222 : vector<8xf32> to vector<8x1xf32>
    %224 = vector.broadcast %223 : vector<8x1xf32> to vector<8x8xf32>
    %225 = arith.subf %221, %224 : vector<8x8xf32>
    %226 = math.exp %225 : vector<8x8xf32>
    %cst_81 = arith.constant dense<0.000000e+00> : vector<8xf32>
    %227 = vector.multi_reduction <add>, %226, %cst_81 [1] : vector<8x8xf32> to vector<8xf32>
    %228 = vector.shape_cast %227 : vector<8xf32> to vector<8x1xf32>
    %229 = tpu.reciprocal %228 {approx = true} : vector<8x1xf32> -> vector<8x1xf32>
    %230 = vector.broadcast %229 : vector<8x1xf32> to vector<8x8xf32>
    %231 = arith.mulf %226, %230 : vector<8x8xf32>
    %232 = arith.truncf %231 : vector<8x8xf32> to vector<8x8xbf16>
    %233 = vector.extract_strided_slice %174 {offsets = [0, 16], sizes = [8, 8], strides = [1, 1]} : vector<8x32xbf16> to vector<8x8xbf16>
    %cst_82 = arith.constant dense<0.000000e+00> : vector<8x8xf32>
    %234 = tpu.matmul %232, %233, %cst_82 {dimension_numbers = #tpu.dot_dimension_numbers<[1], [0], [0], [1], [0, 0, 1, 1], [], []>} : vector<8x8xbf16>, vector<8x8xbf16>, vector<8x8xf32> -> vector<8x8xf32>
    %235 = vector.extract_strided_slice %170 {offsets = [0, 24], sizes = [8, 8], strides = [1, 1]} : vector<8x32xbf16> to vector<8x8xbf16>
    %236 = vector.extract_strided_slice %172 {offsets = [0, 24], sizes = [8, 8], strides = [1, 1]} : vector<8x32xbf16> to vector<8x8xbf16>
    %cst_83 = arith.constant dense<0.000000e+00> : vector<8x8xf32>
    %237 = tpu.matmul %235, %236, %cst_83 {dimension_numbers = #tpu.dot_dimension_numbers<[1], [1], [0], [0], [0, 0, 1, 0], [], []>} : vector<8x8xbf16>, vector<8x8xbf16>, vector<8x8xf32> -> vector<8x8xf32>
    %cst_84 = arith.constant 0.353553385 : f32
    %238 = vector.broadcast %cst_84 : f32 to vector<8x8xf32>
    %239 = arith.mulf %237, %238 : vector<8x8xf32>
    %240 = vector.broadcast %3 : vector<1x8xf32> to vector<8x8xf32>
    %241 = arith.addf %239, %240 : vector<8x8xf32>
    %cst_85 = arith.constant dense<0xFF800000> : vector<8xf32>
    %242 = vector.multi_reduction <maximumf>, %241, %cst_85 [1] : vector<8x8xf32> to vector<8xf32>
    %243 = vector.shape_cast %242 : vector<8xf32> to vector<8x1xf32>
    %244 = vector.broadcast %243 : vector<8x1xf32> to vector<8x8xf32>
    %245 = arith.subf %241, %244 : vector<8x8xf32>
    %246 = math.exp %245 : vector<8x8xf32>
    %cst_86 = arith.constant dense<0.000000e+00> : vector<8xf32>
    %247 = vector.multi_reduction <add>, %246, %cst_86 [1] : vector<8x8xf32> to vector<8xf32>
    %248 = vector.shape_cast %247 : vector<8xf32> to vector<8x1xf32>
    %249 = tpu.reciprocal %248 {approx = true} : vector<8x1xf32> -> vector<8x1xf32>
    %250 = vector.broadcast %249 : vector<8x1xf32> to vector<8x8xf32>
    %251 = arith.mulf %246, %250 : vector<8x8xf32>
    %252 = arith.truncf %251 : vector<8x8xf32> to vector<8x8xbf16>
    %253 = vector.extract_strided_slice %174 {offsets = [0, 24], sizes = [8, 8], strides = [1, 1]} : vector<8x32xbf16> to vector<8x8xbf16>
    %cst_87 = arith.constant dense<0.000000e+00> : vector<8x8xf32>
    %254 = tpu.matmul %252, %253, %cst_87 {dimension_numbers = #tpu.dot_dimension_numbers<[1], [0], [0], [1], [0, 0, 1, 1], [], []>} : vector<8x8xbf16>, vector<8x8xbf16>, vector<8x8xf32> -> vector<8x8xf32>
    %255 = tpu.concatenate %194, %214, %234, %254 in 1 : vector<8x8xf32>, vector<8x8xf32>, vector<8x8xf32>, vector<8x8xf32> -> vector<8x32xf32>
    %256 = arith.truncf %255 : vector<8x32xf32> to vector<8x32xbf16>
    %c0_88 = arith.constant 0 : index
    %c0_89 = arith.constant 0 : index
    %257 = vector.load %arg17[%c0_88, %c0_89] : memref<32x32xbf16, #tpu.memory_space<vmem>>, vector<32x32xbf16>
    %cst_90 = arith.constant dense<0.000000e+00> : vector<8x32xf32>
    %258 = tpu.matmul %256, %257, %cst_90 {dimension_numbers = #tpu.dot_dimension_numbers<[1], [0], [0], [1], [0, 0, 1, 1], [], []>} : vector<8x32xbf16>, vector<32x32xbf16>, vector<8x32xf32> -> vector<8x32xf32>
    %c0_91 = arith.constant 0 : index
    %c0_92 = arith.constant 0 : index
    %259 = vector.load %arg18[%c0_91, %c0_92] : memref<1x32xf32, #tpu.memory_space<vmem>>, vector<1x32xf32>
    %260 = vector.broadcast %259 : vector<1x32xf32> to vector<8x32xf32>
    %261 = arith.addf %258, %260 : vector<8x32xf32>
    %262 = arith.addf %261, %162 : vector<8x32xf32>
    %c0_93 = arith.constant 0 : index
    %c0_94 = arith.constant 0 : index
    %263 = vector.load %arg19[%c0_93, %c0_94] : memref<1x32xf32, #tpu.memory_space<vmem>>, vector<1x32xf32>
    %c0_95 = arith.constant 0 : index
    %c0_96 = arith.constant 0 : index
    %264 = vector.load %arg20[%c0_95, %c0_96] : memref<1x32xf32, #tpu.memory_space<vmem>>, vector<1x32xf32>
    %cst_97 = arith.constant dense<0.000000e+00> : vector<8xf32>
    %265 = vector.multi_reduction <add>, %262, %cst_97 [1] : vector<8x32xf32> to vector<8xf32>
    %266 = vector.shape_cast %265 : vector<8xf32> to vector<8x1xf32>
    %cst_98 = arith.constant 3.200000e+01 : f32
    %267 = vector.broadcast %cst_98 : f32 to vector<8x1xf32>
    %268 = arith.divf %266, %267 : vector<8x1xf32>
    %269 = vector.broadcast %268 : vector<8x1xf32> to vector<8x32xf32>
    %270 = arith.subf %262, %269 : vector<8x32xf32>
    %271 = arith.mulf %270, %270 : vector<8x32xf32>
    %cst_99 = arith.constant dense<0.000000e+00> : vector<8xf32>
    %272 = vector.multi_reduction <add>, %271, %cst_99 [1] : vector<8x32xf32> to vector<8xf32>
    %273 = vector.shape_cast %272 : vector<8xf32> to vector<8x1xf32>
    %cst_100 = arith.constant 3.200000e+01 : f32
    %274 = vector.broadcast %cst_100 : f32 to vector<8x1xf32>
    %275 = arith.divf %273, %274 : vector<8x1xf32>
    %cst_101 = arith.constant 9.99999974E-6 : f32
    %276 = vector.broadcast %cst_101 : f32 to vector<8x1xf32>
    %277 = arith.addf %275, %276 : vector<8x1xf32>
    %278 = math.rsqrt %277 : vector<8x1xf32>
    %279 = vector.broadcast %278 : vector<8x1xf32> to vector<8x32xf32>
    %280 = arith.mulf %270, %279 : vector<8x32xf32>
    %281 = vector.broadcast %263 : vector<1x32xf32> to vector<8x32xf32>
    %282 = arith.mulf %280, %281 : vector<8x32xf32>
    %283 = vector.broadcast %264 : vector<1x32xf32> to vector<8x32xf32>
    %284 = arith.addf %282, %283 : vector<8x32xf32>
    %285 = arith.truncf %284 : vector<8x32xf32> to vector<8x32xbf16>
    %c0_102 = arith.constant 0 : index
    %c0_103 = arith.constant 0 : index
    %286 = vector.load %arg21[%c0_102, %c0_103] : memref<32x2048xbf16, #tpu.memory_space<vmem>>, vector<32x2048xbf16>
    %cst_104 = arith.constant dense<0.000000e+00> : vector<8x2048xf32>
    %287 = tpu.matmul %285, %286, %cst_104 {dimension_numbers = #tpu.dot_dimension_numbers<[1], [0], [0], [1], [0, 0, 1, 1], [], []>} : vector<8x32xbf16>, vector<32x2048xbf16>, vector<8x2048xf32> -> vector<8x2048xf32>
    %c0_105 = arith.constant 0 : index
    %c0_106 = arith.constant 0 : index
    %288 = vector.load %arg22[%c0_105, %c0_106] : memref<1x2048xf32, #tpu.memory_space<vmem>>, vector<1x2048xf32>
    %289 = vector.broadcast %288 : vector<1x2048xf32> to vector<8x2048xf32>
    %290 = arith.addf %287, %289 : vector<8x2048xf32>
    %cst_107 = arith.constant 0.000000e+00 : f32
    %291 = vector.broadcast %cst_107 : f32 to vector<8x2048xf32>
    %292 = arith.maximumf %290, %291 : vector<8x2048xf32>
    %293 = arith.truncf %292 : vector<8x2048xf32> to vector<8x2048xbf16>
    %c0_108 = arith.constant 0 : index
    %c0_109 = arith.constant 0 : index
    %294 = vector.load %arg23[%c0_108, %c0_109] : memref<2048x32xbf16, #tpu.memory_space<vmem>>, vector<2048x32xbf16>
    %cst_110 = arith.constant dense<0.000000e+00> : vector<8x32xf32>
    %295 = tpu.matmul %293, %294, %cst_110 {dimension_numbers = #tpu.dot_dimension_numbers<[1], [0], [0], [1], [0, 0, 1, 1], [], []>} : vector<8x2048xbf16>, vector<2048x32xbf16>, vector<8x32xf32> -> vector<8x32xf32>
    %c0_111 = arith.constant 0 : index
    %c0_112 = arith.constant 0 : index
    %296 = vector.load %arg24[%c0_111, %c0_112] : memref<1x32xf32, #tpu.memory_space<vmem>>, vector<1x32xf32>
    %297 = vector.broadcast %296 : vector<1x32xf32> to vector<8x32xf32>
    %298 = arith.addf %295, %297 : vector<8x32xf32>
    %299 = arith.addf %298, %284 : vector<8x32xf32>
    %c0_113 = arith.constant 0 : index
    %c0_114 = arith.constant 0 : index
    %300 = vector.load %arg25[%c0_113, %c0_114] : memref<1x32xf32, #tpu.memory_space<vmem>>, vector<1x32xf32>
    %c0_115 = arith.constant 0 : index
    %c0_116 = arith.constant 0 : index
    %301 = vector.load %arg26[%c0_115, %c0_116] : memref<1x32xf32, #tpu.memory_space<vmem>>, vector<1x32xf32>
    %cst_117 = arith.constant dense<0.000000e+00> : vector<8xf32>
    %302 = vector.multi_reduction <add>, %299, %cst_117 [1] : vector<8x32xf32> to vector<8xf32>
    %303 = vector.shape_cast %302 : vector<8xf32> to vector<8x1xf32>
    %cst_118 = arith.constant 3.200000e+01 : f32
    %304 = vector.broadcast %cst_118 : f32 to vector<8x1xf32>
    %305 = arith.divf %303, %304 : vector<8x1xf32>
    %306 = vector.broadcast %305 : vector<8x1xf32> to vector<8x32xf32>
    %307 = arith.subf %299, %306 : vector<8x32xf32>
    %308 = arith.mulf %307, %307 : vector<8x32xf32>
    %cst_119 = arith.constant dense<0.000000e+00> : vector<8xf32>
    %309 = vector.multi_reduction <add>, %308, %cst_119 [1] : vector<8x32xf32> to vector<8xf32>
    %310 = vector.shape_cast %309 : vector<8xf32> to vector<8x1xf32>
    %cst_120 = arith.constant 3.200000e+01 : f32
    %311 = vector.broadcast %cst_120 : f32 to vector<8x1xf32>
    %312 = arith.divf %310, %311 : vector<8x1xf32>
    %cst_121 = arith.constant 9.99999974E-6 : f32
    %313 = vector.broadcast %cst_121 : f32 to vector<8x1xf32>
    %314 = arith.addf %312, %313 : vector<8x1xf32>
    %315 = math.rsqrt %314 : vector<8x1xf32>
    %316 = vector.broadcast %315 : vector<8x1xf32> to vector<8x32xf32>
    %317 = arith.mulf %307, %316 : vector<8x32xf32>
    %318 = vector.broadcast %300 : vector<1x32xf32> to vector<8x32xf32>
    %319 = arith.mulf %317, %318 : vector<8x32xf32>
    %320 = vector.broadcast %301 : vector<1x32xf32> to vector<8x32xf32>
    %321 = arith.addf %319, %320 : vector<8x32xf32>
    %322 = arith.truncf %321 : vector<8x32xf32> to vector<8x32xbf16>
    %c0_122 = arith.constant 0 : index
    %c0_123 = arith.constant 0 : index
    %323 = vector.load %arg27[%c0_122, %c0_123] : memref<32x16xbf16, #tpu.memory_space<vmem>>, vector<32x16xbf16>
    %cst_124 = arith.constant dense<0.000000e+00> : vector<8x16xf32>
    %324 = tpu.matmul %322, %323, %cst_124 {dimension_numbers = #tpu.dot_dimension_numbers<[1], [0], [0], [1], [0, 0, 1, 1], [], []>} : vector<8x32xbf16>, vector<32x16xbf16>, vector<8x16xf32> -> vector<8x16xf32>
    %c0_125 = arith.constant 0 : index
    %c0_126 = arith.constant 0 : index
    %325 = vector.load %arg28[%c0_125, %c0_126] : memref<1x16xf32, #tpu.memory_space<vmem>>, vector<1x16xf32>
    %326 = vector.broadcast %325 : vector<1x16xf32> to vector<8x16xf32>
    %327 = arith.addf %324, %326 : vector<8x16xf32>
    %c0_127 = arith.constant 0 : index
    %c0_128 = arith.constant 0 : index
    %c0_129 = arith.constant 0 : index
    %328 = vector.load %arg29[%c0_127, %c0_128, %c0_129] : memref<1x8x16xf32, #tpu.memory_space<vmem>>, vector<1x8x16xf32>
    %329 = vector.shape_cast %328 : vector<1x8x16xf32> to vector<8x16xf32>
    %330 = vector.shape_cast %327 : vector<8x16xf32> to vector<1x8x16xf32>
    tpu.vector_store %arg29[%c0_127, %c0_128, %c0_129], %330 {strides = array<i32>} : memref<1x8x16xf32, #tpu.memory_space<vmem>>, vector<1x8x16xf32>,
    return
  }
  func.func @transform_0(%arg0: i32) -> (i32, i32, i32) {
    %c0_i32 = arith.constant 0 : i32
    %c0_i32_0 = arith.constant 0 : i32
    %c0_i32_1 = arith.constant 0 : i32
    return %arg0, %c0_i32, %c0_i32_0 : i32, i32, i32
  }
  func.func @transform_1(%arg0: i32) -> (i32, i32, i32) {
    %c0_i32 = arith.constant 0 : i32
    %c0_i32_0 = arith.constant 0 : i32
    %c0_i32_1 = arith.constant 0 : i32
    return %arg0, %c0_i32, %c0_i32_0 : i32, i32, i32
  }
  func.func @transform_2(%arg0: i32) -> (i32, i32) {
    %c0_i32 = arith.constant 0 : i32
    %c0_i32_0 = arith.constant 0 : i32
    %c0_i32_1 = arith.constant 0 : i32
    return %c0_i32, %c0_i32_0 : i32, i32
  }
  func.func @transform_3(%arg0: i32) -> (i32, i32) {
    %c0_i32 = arith.constant 0 : i32
    %c0_i32_0 = arith.constant 0 : i32
    %c0_i32_1 = arith.constant 0 : i32
    return %c0_i32, %c0_i32_0 : i32, i32
  }
  func.func @transform_4(%arg0: i32) -> (i32, i32) {
    %c0_i32 = arith.constant 0 : i32
    %c0_i32_0 = arith.constant 0 : i32
    %c0_i32_1 = arith.constant 0 : i32
    return %c0_i32, %c0_i32_0 : i32, i32
  }
  func.func @transform_5(%arg0: i32) -> (i32, i32) {
    %c0_i32 = arith.constant 0 : i32
    %c0_i32_0 = arith.constant 0 : i32
    %c0_i32_1 = arith.constant 0 : i32
    return %c0_i32, %c0_i32_0 : i32, i32
  }
  func.func @transform_6(%arg0: i32) -> (i32, i32) {
    %c0_i32 = arith.constant 0 : i32
    %c0_i32_0 = arith.constant 0 : i32
    %c0_i32_1 = arith.constant 0 : i32
    return %c0_i32, %c0_i32_0 : i32, i32
  }
  func.func @transform_7(%arg0: i32) -> (i32, i32) {
    %c0_i32 = arith.constant 0 : i32
    %c0_i32_0 = arith.constant 0 : i32
    %c0_i32_1 = arith.constant 0 : i32
    return %c0_i32, %c0_i32_0 : i32, i32
  }
  func.func @transform_8(%arg0: i32) -> (i32, i32) {
    %c0_i32 = arith.constant 0 : i32
    %c0_i32_0 = arith.constant 0 : i32
    %c0_i32_1 = arith.constant 0 : i32
    return %c0_i32, %c0_i32_0 : i32, i32
  }
  func.func @transform_9(%arg0: i32) -> (i32, i32) {
    %c0_i32 = arith.constant 0 : i32
    %c0_i32_0 = arith.constant 0 : i32
    %c0_i32_1 = arith.constant 0 : i32
    return %c0_i32, %c0_i32_0 : i32, i32
  }
  func.func @transform_10(%arg0: i32) -> (i32, i32) {
    %c0_i32 = arith.constant 0 : i32
    %c0_i32_0 = arith.constant 0 : i32
    %c0_i32_1 = arith.constant 0 : i32
    return %c0_i32, %c0_i32_0 : i32, i32
  }
  func.func @transform_11(%arg0: i32) -> (i32, i32) {
    %c0_i32 = arith.constant 0 : i32
    %c0_i32_0 = arith.constant 0 : i32
    %c0_i32_1 = arith.constant 0 : i32
    return %c0_i32, %c0_i32_0 : i32, i32
  }
  func.func @transform_12(%arg0: i32) -> (i32, i32) {
    %c0_i32 = arith.constant 0 : i32
    %c0_i32_0 = arith.constant 0 : i32
    %c0_i32_1 = arith.constant 0 : i32
    return %c0_i32, %c0_i32_0 : i32, i32
  }
  func.func @transform_13(%arg0: i32) -> (i32, i32) {
    %c0_i32 = arith.constant 0 : i32
    %c0_i32_0 = arith.constant 0 : i32
    %c0_i32_1 = arith.constant 0 : i32
    return %c0_i32, %c0_i32_0 : i32, i32
  }
  func.func @transform_14(%arg0: i32) -> (i32, i32) {
    %c0_i32 = arith.constant 0 : i32
    %c0_i32_0 = arith.constant 0 : i32
    %c0_i32_1 = arith.constant 0 : i32
    return %c0_i32, %c0_i32_0 : i32, i32
  }
  func.func @transform_15(%arg0: i32) -> (i32, i32) {
    %c0_i32 = arith.constant 0 : i32
    %c0_i32_0 = arith.constant 0 : i32
    %c0_i32_1 = arith.constant 0 : i32
    return %c0_i32, %c0_i32_0 : i32, i32
  }
  func.func @transform_16(%arg0: i32) -> (i32, i32) {
    %c0_i32 = arith.constant 0 : i32
    %c0_i32_0 = arith.constant 0 : i32
    %c0_i32_1 = arith.constant 0 : i32
    return %c0_i32, %c0_i32_0 : i32, i32
  }
  func.func @transform_17(%arg0: i32) -> (i32, i32) {
    %c0_i32 = arith.constant 0 : i32
    %c0_i32_0 = arith.constant 0 : i32
    %c0_i32_1 = arith.constant 0 : i32
    return %c0_i32, %c0_i32_0 : i32, i32
  }
  func.func @transform_18(%arg0: i32) -> (i32, i32) {
    %c0_i32 = arith.constant 0 : i32
    %c0_i32_0 = arith.constant 0 : i32
    %c0_i32_1 = arith.constant 0 : i32
    return %c0_i32, %c0_i32_0 : i32, i32
  }
  func.func @transform_19(%arg0: i32) -> (i32, i32) {
    %c0_i32 = arith.constant 0 : i32
    %c0_i32_0 = arith.constant 0 : i32
    %c0_i32_1 = arith.constant 0 : i32
    return %c0_i32, %c0_i32_0 : i32, i32
  }
  func.func @transform_20(%arg0: i32) -> (i32, i32) {
    %c0_i32 = arith.constant 0 : i32
    %c0_i32_0 = arith.constant 0 : i32
    %c0_i32_1 = arith.constant 0 : i32
    return %c0_i32, %c0_i32_0 : i32, i32
  }
  func.func @transform_21(%arg0: i32) -> (i32, i32) {
    %c0_i32 = arith.constant 0 : i32
    %c0_i32_0 = arith.constant 0 : i32
    %c0_i32_1 = arith.constant 0 : i32
    return %c0_i32, %c0_i32_0 : i32, i32
  }
  func.func @transform_22(%arg0: i32) -> (i32, i32) {
    %c0_i32 = arith.constant 0 : i32
    %c0_i32_0 = arith.constant 0 : i32
    %c0_i32_1 = arith.constant 0 : i32
    return %c0_i32, %c0_i32_0 : i32, i32
  }
  func.func @transform_23(%arg0: i32) -> (i32, i32) {
    %c0_i32 = arith.constant 0 : i32
    %c0_i32_0 = arith.constant 0 : i32
    %c0_i32_1 = arith.constant 0 : i32
    return %c0_i32, %c0_i32_0 : i32, i32
  }
  func.func @transform_24(%arg0: i32) -> (i32, i32) {
    %c0_i32 = arith.constant 0 : i32
    %c0_i32_0 = arith.constant 0 : i32
    %c0_i32_1 = arith.constant 0 : i32
    return %c0_i32, %c0_i32_0 : i32, i32
  }
  func.func @transform_25(%arg0: i32) -> (i32, i32) {
    %c0_i32 = arith.constant 0 : i32
    %c0_i32_0 = arith.constant 0 : i32
    %c0_i32_1 = arith.constant 0 : i32
    return %c0_i32, %c0_i32_0 : i32, i32
  }
  func.func @transform_26(%arg0: i32) -> (i32, i32) {
    %c0_i32 = arith.constant 0 : i32
    %c0_i32_0 = arith.constant 0 : i32
    %c0_i32_1 = arith.constant 0 : i32
    return %c0_i32, %c0_i32_0 : i32, i32
  }
  func.func @transform_27(%arg0: i32) -> (i32, i32) {
    %c0_i32 = arith.constant 0 : i32
    %c0_i32_0 = arith.constant 0 : i32
    %c0_i32_1 = arith.constant 0 : i32
    return %c0_i32, %c0_i32_0 : i32, i32
  }
  func.func @transform_28(%arg0: i32) -> (i32, i32, i32) {
    %c0_i32 = arith.constant 0 : i32
    %c0_i32_0 = arith.constant 0 : i32
    %c0_i32_1 = arith.constant 0 : i32
    return %arg0, %c0_i32, %c0_i32_0 : i32, i32, i32
  }
}

</mosaic_0001>

<llo_original>
// kernel: tpu_custom_call.1
$region0: #{tpu_custom_call.1}
  #allocation0 [shape = 'u32[]', space=smem, size = 0x4, offset = 0x4, fixed_abs, tag = 'smem constant byte address 0x4 - core index']
  #allocation1 [shape = 'u32[144,128]{1,0:T(1,128)}', space=vmem, size = 0x12000, scoped, tag = 'internal scratch']
  %s0 = inlined_call_operand.vmem [shape: f32[2,8,32], index: 0, kind: input, shape index: {}]
  %s1 = inlined_call_operand.vmem [shape: f32[2,1,8], index: 1, kind: input, shape index: {}]
  %s2 = inlined_call_operand.vmem [shape: bf16[32,96], index: 2, kind: input, shape index: {}]
  %s3 = inlined_call_operand.vmem [shape: f32[1,96], index: 3, kind: input, shape index: {}]
  %s4 = inlined_call_operand.vmem [shape: bf16[32,32], index: 4, kind: input, shape index: {}]
  %s5 = inlined_call_operand.vmem [shape: f32[1,32], index: 5, kind: input, shape index: {}]
  %s6 = inlined_call_operand.vmem [shape: f32[1,32], index: 6, kind: input, shape index: {}]
  %s7 = inlined_call_operand.vmem [shape: f32[1,32], index: 7, kind: input, shape index: {}]
  %s8 = inlined_call_operand.vmem [shape: bf16[32,2048], index: 8, kind: input, shape index: {}]
  %s9 = inlined_call_operand.vmem [shape: f32[1,2048], index: 9, kind: input, shape index: {}]
  %s10 = inlined_call_operand.vmem [shape: bf16[2048,32], index: 10, kind: input, shape index: {}]
  %s11 = inlined_call_operand.vmem [shape: f32[1,32], index: 11, kind: input, shape index: {}]
  %s12 = inlined_call_operand.vmem [shape: f32[1,32], index: 12, kind: input, shape index: {}]
  %s13 = inlined_call_operand.vmem [shape: f32[1,32], index: 13, kind: input, shape index: {}]
  %s14 = inlined_call_operand.vmem [shape: bf16[32,96], index: 14, kind: input, shape index: {}]
  %s15 = inlined_call_operand.vmem [shape: f32[1,96], index: 15, kind: input, shape index: {}]
  %s16 = inlined_call_operand.vmem [shape: bf16[32,32], index: 16, kind: input, shape index: {}]
  %s17 = inlined_call_operand.vmem [shape: f32[1,32], index: 17, kind: input, shape index: {}]
  %s18 = inlined_call_operand.vmem [shape: f32[1,32], index: 18, kind: input, shape index: {}]
  %s19 = inlined_call_operand.vmem [shape: f32[1,32], index: 19, kind: input, shape index: {}]
  %s20 = inlined_call_operand.vmem [shape: bf16[32,2048], index: 20, kind: input, shape index: {}]
  %s21 = inlined_call_operand.vmem [shape: f32[1,2048], index: 21, kind: input, shape index: {}]
  %s22 = inlined_call_operand.vmem [shape: bf16[2048,32], index: 22, kind: input, shape index: {}]
  %s23 = inlined_call_operand.vmem [shape: f32[1,32], index: 23, kind: input, shape index: {}]
  %s24 = inlined_call_operand.vmem [shape: f32[1,32], index: 24, kind: input, shape index: {}]
  %s25 = inlined_call_operand.vmem [shape: f32[1,32], index: 25, kind: input, shape index: {}]
  %s26 = inlined_call_operand.vmem [shape: bf16[32,16], index: 26, kind: input, shape index: {}]
  %s27 = inlined_call_operand.vmem [shape: f32[1,16], index: 27, kind: input, shape index: {}]
  %s28 = inlined_call_operand.hbm [shape: f32[2,8,16], index: 28, kind: output, shape index: {}]
  %s29 = sld [smem:[#allocation0]]
  $region145: #{tpu_custom_call.1} parent=0
    _
  %s31 = ssub.s32 1, %s29
  %s32 = scalar_select 0, %s31, %s29
  $region1: #{tpu_custom_call.1} parent=0
    #allocation2 [shape = 'u8[8192]{0}', space=vmem, size = 0x2000, scoped, tag = 'output window, operand 0']
    #allocation3 [shape = 's32[2]{0}', space=sflag, size = 0x8, scoped, tag = 'scoped memory for tpu_custom_call.1']
    %33 = vsyncpa [#allocation3], 0
    %s34 = scalar_lea.sflag [#allocation3], 1
    %35 = vsyncpa %s34, 0
    loop: start=0, step=1, limit=4
    $region2: #{tpu_custom_call.1} parent=1 // loop_pre_header
      _
    $region3: #{tpu_custom_call.1} parent=1 // loop_header
      %s37 = sphi 0, %s41
      %p38 = scmp.ge.s32.totalorder %s37, 4
      %s47 = sphi 0, %s49
      %s50 = sphi 0, %s47
      %s51 = sphi 0, %s50
      %s67 = sphi 0, %s51
      %s73 = sphi 0, %s75
      %s76 = sphi 0, %s73
      %s77 = sphi 0, %s76
      %s93 = sphi 0, %s77
      %s97 = sphi 0, %s97
      %s99 = sphi 0, %s97
      %s100 = sphi 0, %s99
      %s114 = sphi 0, %s100
      %s118 = sphi 0, %s118
      %s120 = sphi 0, %s118
      %s121 = sphi 0, %s120
      %s135 = sphi 0, %s121
      %s139 = sphi 0, %s139
      %s141 = sphi 0, %s139
      %s142 = sphi 0, %s141
      %s156 = sphi 0, %s142
      %s160 = sphi 0, %s160
      %s162 = sphi 0, %s160
      %s163 = sphi 0, %s162
      %s177 = sphi 0, %s163
      %s181 = sphi 0, %s181
      %s183 = sphi 0, %s181
      %s184 = sphi 0, %s183
      %s198 = sphi 0, %s184
      %s202 = sphi 0, %s202
      %s204 = sphi 0, %s202
      %s205 = sphi 0, %s204
      %s219 = sphi 0, %s205
      %s223 = sphi 0, %s223
      %s225 = sphi 0, %s223
      %s226 = sphi 0, %s225
      %s240 = sphi 0, %s226
      %s244 = sphi 0, %s244
      %s246 = sphi 0, %s244
      %s247 = sphi 0, %s246
      %s261 = sphi 0, %s247
      %s265 = sphi 0, %s265
      %s267 = sphi 0, %s265
      %s268 = sphi 0, %s267
      %s282 = sphi 0, %s268
      %s286 = sphi 0, %s286
      %s288 = sphi 0, %s286
      %s289 = sphi 0, %s288
      %s303 = sphi 0, %s289
      %s307 = sphi 0, %s307
      %s309 = sphi 0, %s307
      %s310 = sphi 0, %s309
      %s324 = sphi 0, %s310
      %s328 = sphi 0, %s328
      %s330 = sphi 0, %s328
      %s331 = sphi 0, %s330
      %s345 = sphi 0, %s331
      %s349 = sphi 0, %s349
      %s351 = sphi 0, %s349
      %s352 = sphi 0, %s351
      %s366 = sphi 0, %s352
      %s370 = sphi 0, %s370
      %s372 = sphi 0, %s370
      %s373 = sphi 0, %s372
      %s387 = sphi 0, %s373
      %s391 = sphi 0, %s391
      %s393 = sphi 0, %s391
      %s394 = sphi 0, %s393
      %s408 = sphi 0, %s394
      %s412 = sphi 0, %s412
      %s414 = sphi 0, %s412
      %s415 = sphi 0, %s414
      %s429 = sphi 0, %s415
      %s433 = sphi 0, %s433
      %s435 = sphi 0, %s433
      %s436 = sphi 0, %s435
      %s450 = sphi 0, %s436
      %s454 = sphi 0, %s454
      %s456 = sphi 0, %s454
      %s457 = sphi 0, %s456
      %s471 = sphi 0, %s457
      %s475 = sphi 0, %s475
      %s477 = sphi 0, %s475
      %s478 = sphi 0, %s477
      %s492 = sphi 0, %s478
      %s496 = sphi 0, %s496
      %s498 = sphi 0, %s496
      %s499 = sphi 0, %s498
      %s513 = sphi 0, %s499
      %s517 = sphi 0, %s517
      %s519 = sphi 0, %s517
      %s520 = sphi 0, %s519
      %s534 = sphi 0, %s520
      %s538 = sphi 0, %s538
      %s540 = sphi 0, %s538
      %s541 = sphi 0, %s540
      %s555 = sphi 0, %s541
      %s559 = sphi 0, %s559
      %s561 = sphi 0, %s559
      %s562 = sphi 0, %s561
      %s576 = sphi 0, %s562
      %s580 = sphi 0, %s580
      %s582 = sphi 0, %s580
      %s583 = sphi 0, %s582
      %s597 = sphi 0, %s583
      %s601 = sphi 0, %s601
      %s603 = sphi 0, %s601
      %s604 = sphi 0, %s603
      %s618 = sphi 0, %s604
      %s622 = sphi 0, %s622
      %s624 = sphi 0, %s622
      %s625 = sphi 0, %s624
      %s639 = sphi 0, %s625
      %s645 = sphi 0, %s647
      %s648 = sphi 0, %s645
      %s649 = sphi 0, %s648
      %s665 = sphi 0, %s649
    $region4: #{tpu_custom_call.1} parent=1 // loop_header_branch
      %40 = sbr.rel (%p38) target = $region8
    $region5: #{tpu_custom_call.1} parent=1 // loop_body
      %s42 = ssub.s32 %s37, 1
      %s43 = ssub.s32 %s37, 2
      %s44 = sadd.s32 %s37, 1
      %s45 = ssub.s32 %s37, %s44
      %p46 = scmp.eq.s32.totalorder %s45, 0
      %s48 = sadd.s32 %s47, 1
      %s49 = scalar_select %p46, %s47, %s48
      %p52 = pneg %p46
      %p53 = scmp.eq.s32.totalorder %s37, 1
      %p54 = por %p52, %p53
      %p55 = scmp.ne.s32.totalorder %s47, %s50
      %p56 = scmp.eq.s32.totalorder %s37, 0
      %p57 = por %p55, %p56
      %p58 = scmp.ne.s32.totalorder %s47, %s50
      %p59 = scmp.eq.s32.totalorder %s42, 1
      %p60 = por %p58, %p59
      %p61 = scmp.ne.s32.totalorder %s50, %s51
      %p62 = scmp.eq.s32.totalorder %s42, 0
      %p63 = por %p61, %p62
      %p64 = scmp.ne.s32.totalorder %s50, %s51
      %p65 = scmp.eq.s32.totalorder %s43, 1
      %p66 = por %p64, %p65
      %p68 = scmp.ne.s32.totalorder %s51, %s67
      %p69 = scmp.eq.s32.totalorder %s43, 0
      %p70 = por %p68, %p69
      %s71 = ssub.s32 %s37, %s44
      %p72 = scmp.eq.s32.totalorder %s71, 0
      %s74 = sadd.s32 %s73, 1
      %s75 = scalar_select %p72, %s73, %s74
      %p78 = pneg %p72
      %p79 = scmp.eq.s32.totalorder %s37, 1
      %p80 = por %p78, %p79
      %p81 = scmp.ne.s32.totalorder %s73, %s76
      %p82 = scmp.eq.s32.totalorder %s37, 0
      %p83 = por %p81, %p82
      %p84 = scmp.ne.s32.totalorder %s73, %s76
      %p85 = scmp.eq.s32.totalorder %s42, 1
      %p86 = por %p84, %p85
      %p87 = scmp.ne.s32.totalorder %s76, %s77
      %p88 = scmp.eq.s32.totalorder %s42, 0
      %p89 = por %p87, %p88
      %p90 = scmp.ne.s32.totalorder %s76, %s77
      %p91 = scmp.eq.s32.totalorder %s43, 1
      %p92 = por %p90, %p91
      %p94 = scmp.ne.s32.totalorder %s77, %s93
      %p95 = scmp.eq.s32.totalorder %s43, 0
      %p96 = por %p94, %p95
      %s98 = sadd.s32 %s97, 1
      %p101 = scmp.eq.s32.totalorder %s37, 1
      %p102 = scmp.ne.s32.totalorder %s97, %s99
      %p103 = scmp.eq.s32.totalorder %s37, 0
      %p104 = por %p102, %p103
      %p105 = scmp.ne.s32.totalorder %s97, %s99
      %p106 = scmp.eq.s32.totalorder %s42, 1
      %p107 = por %p105, %p106
      %p108 = scmp.ne.s32.totalorder %s99, %s100
      %p109 = scmp.eq.s32.totalorder %s42, 0
      %p110 = por %p108, %p109
      %p111 = scmp.ne.s32.totalorder %s99, %s100
      %p112 = scmp.eq.s32.totalorder %s43, 1
      %p113 = por %p111, %p112
      %p115 = scmp.ne.s32.totalorder %s100, %s114
      %p116 = scmp.eq.s32.totalorder %s43, 0
      %p117 = por %p115, %p116
      %s119 = sadd.s32 %s118, 1
      %p122 = scmp.eq.s32.totalorder %s37, 1
      %p123 = scmp.ne.s32.totalorder %s118, %s120
      %p124 = scmp.eq.s32.totalorder %s37, 0
      %p125 = por %p123, %p124
      %p126 = scmp.ne.s32.totalorder %s118, %s120
      %p127 = scmp.eq.s32.totalorder %s42, 1
      %p128 = por %p126, %p127
      %p129 = scmp.ne.s32.totalorder %s120, %s121
      %p130 = scmp.eq.s32.totalorder %s42, 0
      %p131 = por %p129, %p130
      %p132 = scmp.ne.s32.totalorder %s120, %s121
      %p133 = scmp.eq.s32.totalorder %s43, 1
      %p134 = por %p132, %p133
      %p136 = scmp.ne.s32.totalorder %s121, %s135
      %p137 = scmp.eq.s32.totalorder %s43, 0
      %p138 = por %p136, %p137
      %s140 = sadd.s32 %s139, 1
      %p143 = scmp.eq.s32.totalorder %s37, 1
      %p144 = scmp.ne.s32.totalorder %s139, %s141
      %p145 = scmp.eq.s32.totalorder %s37, 0
      %p146 = por %p144, %p145
      %p147 = scmp.ne.s32.totalorder %s139, %s141
      %p148 = scmp.eq.s32.totalorder %s42, 1
      %p149 = por %p147, %p148
      %p150 = scmp.ne.s32.totalorder %s141, %s142
      %p151 = scmp.eq.s32.totalorder %s42, 0
      %p152 = por %p150, %p151
      %p153 = scmp.ne.s32.totalorder %s141, %s142
      %p154 = scmp.eq.s32.totalorder %s43, 1
      %p155 = por %p153, %p154
      %p157 = scmp.ne.s32.totalorder %s142, %s156
      %p158 = scmp.eq.s32.totalorder %s43, 0
      %p159 = por %p157, %p158
      %s161 = sadd.s32 %s160, 1
      %p164 = scmp.eq.s32.totalorder %s37, 1
      %p165 = scmp.ne.s32.totalorder %s160, %s162
      %p166 = scmp.eq.s32.totalorder %s37, 0
      %p167 = por %p165, %p166
      %p168 = scmp.ne.s32.totalorder %s160, %s162
      %p169 = scmp.eq.s32.totalorder %s42, 1
      %p170 = por %p168, %p169
      %p171 = scmp.ne.s32.totalorder %s162, %s163
      %p172 = scmp.eq.s32.totalorder %s42, 0
      %p173 = por %p171, %p172
      %p174 = scmp.ne.s32.totalorder %s162, %s163
      %p175 = scmp.eq.s32.totalorder %s43, 1
      %p176 = por %p174, %p175
      %p178 = scmp.ne.s32.totalorder %s163, %s177
      %p179 = scmp.eq.s32.totalorder %s43, 0
      %p180 = por %p178, %p179
      %s182 = sadd.s32 %s181, 1
      %p185 = scmp.eq.s32.totalorder %s37, 1
      %p186 = scmp.ne.s32.totalorder %s181, %s183
      %p187 = scmp.eq.s32.totalorder %s37, 0
      %p188 = por %p186, %p187
      %p189 = scmp.ne.s32.totalorder %s181, %s183
      %p190 = scmp.eq.s32.totalorder %s42, 1
      %p191 = por %p189, %p190
      %p192 = scmp.ne.s32.totalorder %s183, %s184
      %p193 = scmp.eq.s32.totalorder %s42, 0
      %p194 = por %p192, %p193
      %p195 = scmp.ne.s32.totalorder %s183, %s184
      %p196 = scmp.eq.s32.totalorder %s43, 1
      %p197 = por %p195, %p196
      %p199 = scmp.ne.s32.totalorder %s184, %s198
      %p200 = scmp.eq.s32.totalorder %s43, 0
      %p201 = por %p199, %p200
      %s203 = sadd.s32 %s202, 1
      %p206 = scmp.eq.s32.totalorder %s37, 1
      %p207 = scmp.ne.s32.totalorder %s202, %s204
      %p208 = scmp.eq.s32.totalorder %s37, 0
      %p209 = por %p207, %p208
      %p210 = scmp.ne.s32.totalorder %s202, %s204
      %p211 = scmp.eq.s32.totalorder %s42, 1
      %p212 = por %p210, %p211
      %p213 = scmp.ne.s32.totalorder %s204, %s205
      %p214 = scmp.eq.s32.totalorder %s42, 0
      %p215 = por %p213, %p214
      %p216 = scmp.ne.s32.totalorder %s204, %s205
      %p217 = scmp.eq.s32.totalorder %s43, 1
      %p218 = por %p216, %p217
      %p220 = scmp.ne.s32.totalorder %s205, %s219
      %p221 = scmp.eq.s32.totalorder %s43, 0
      %p222 = por %p220, %p221
      %s224 = sadd.s32 %s223, 1
      %p227 = scmp.eq.s32.totalorder %s37, 1
      %p228 = scmp.ne.s32.totalorder %s223, %s225
      %p229 = scmp.eq.s32.totalorder %s37, 0
      %p230 = por %p228, %p229
      %p231 = scmp.ne.s32.totalorder %s223, %s225
      %p232 = scmp.eq.s32.totalorder %s42, 1
      %p233 = por %p231, %p232
      %p234 = scmp.ne.s32.totalorder %s225, %s226
      %p235 = scmp.eq.s32.totalorder %s42, 0
      %p236 = por %p234, %p235
      %p237 = scmp.ne.s32.totalorder %s225, %s226
      %p238 = scmp.eq.s32.totalorder %s43, 1
      %p239 = por %p237, %p238
      %p241 = scmp.ne.s32.totalorder %s226, %s240
      %p242 = scmp.eq.s32.totalorder %s43, 0
      %p243 = por %p241, %p242
      %s245 = sadd.s32 %s244, 1
      %p248 = scmp.eq.s32.totalorder %s37, 1
      %p249 = scmp.ne.s32.totalorder %s244, %s246
      %p250 = scmp.eq.s32.totalorder %s37, 0
      %p251 = por %p249, %p250
      %p252 = scmp.ne.s32.totalorder %s244, %s246
      %p253 = scmp.eq.s32.totalorder %s42, 1
      %p254 = por %p252, %p253
      %p255 = scmp.ne.s32.totalorder %s246, %s247
      %p256 = scmp.eq.s32.totalorder %s42, 0
      %p257 = por %p255, %p256
      %p258 = scmp.ne.s32.totalorder %s246, %s247
      %p259 = scmp.eq.s32.totalorder %s43, 1
      %p260 = por %p258, %p259
      %p262 = scmp.ne.s32.totalorder %s247, %s261
      %p263 = scmp.eq.s32.totalorder %s43, 0
      %p264 = por %p262, %p263
      %s266 = sadd.s32 %s265, 1
      %p269 = scmp.eq.s32.totalorder %s37, 1
      %p270 = scmp.ne.s32.totalorder %s265, %s267
      %p271 = scmp.eq.s32.totalorder %s37, 0
      %p272 = por %p270, %p271
      %p273 = scmp.ne.s32.totalorder %s265, %s267
      %p274 = scmp.eq.s32.totalorder %s42, 1
      %p275 = por %p273, %p274
      %p276 = scmp.ne.s32.totalorder %s267, %s268
      %p277 = scmp.eq.s32.totalorder %s42, 0
      %p278 = por %p276, %p277
      %p279 = scmp.ne.s32.totalorder %s267, %s268
      %p280 = scmp.eq.s32.totalorder %s43, 1
      %p281 = por %p279, %p280
      %p283 = scmp.ne.s32.totalorder %s268, %s282
      %p284 = scmp.eq.s32.totalorder %s43, 0
      %p285 = por %p283, %p284
      %s287 = sadd.s32 %s286, 1
      %p290 = scmp.eq.s32.totalorder %s37, 1
      %p291 = scmp.ne.s32.totalorder %s286, %s288
      %p292 = scmp.eq.s32.totalorder %s37, 0
      %p293 = por %p291, %p292
      %p294 = scmp.ne.s32.totalorder %s286, %s288
      %p295 = scmp.eq.s32.totalorder %s42, 1
      %p296 = por %p294, %p295
      %p297 = scmp.ne.s32.totalorder %s288, %s289
      %p298 = scmp.eq.s32.totalorder %s42, 0
      %p299 = por %p297, %p298
      %p300 = scmp.ne.s32.totalorder %s288, %s289
      %p301 = scmp.eq.s32.totalorder %s43, 1
      %p302 = por %p300, %p301
      %p304 = scmp.ne.s32.totalorder %s289, %s303
      %p305 = scmp.eq.s32.totalorder %s43, 0
      %p306 = por %p304, %p305
      %s308 = sadd.s32 %s307, 1
      %p311 = scmp.eq.s32.totalorder %s37, 1
      %p312 = scmp.ne.s32.totalorder %s307, %s309
      %p313 = scmp.eq.s32.totalorder %s37, 0
      %p314 = por %p312, %p313
      %p315 = scmp.ne.s32.totalorder %s307, %s309
      %p316 = scmp.eq.s32.totalorder %s42, 1
      %p317 = por %p315, %p316
      %p318 = scmp.ne.s32.totalorder %s309, %s310
      %p319 = scmp.eq.s32.totalorder %s42, 0
      %p320 = por %p318, %p319
      %p321 = scmp.ne.s32.totalorder %s309, %s310
      %p322 = scmp.eq.s32.totalorder %s43, 1
      %p323 = por %p321, %p322
      %p325 = scmp.ne.s32.totalorder %s310, %s324
      %p326 = scmp.eq.s32.totalorder %s43, 0
      %p327 = por %p325, %p326
      %s329 = sadd.s32 %s328, 1
      %p332 = scmp.eq.s32.totalorder %s37, 1
      %p333 = scmp.ne.s32.totalorder %s328, %s330
      %p334 = scmp.eq.s32.totalorder %s37, 0
      %p335 = por %p333, %p334
      %p336 = scmp.ne.s32.totalorder %s328, %s330
      %p337 = scmp.eq.s32.totalorder %s42, 1
      %p338 = por %p336, %p337
      %p339 = scmp.ne.s32.totalorder %s330, %s331
      %p340 = scmp.eq.s32.totalorder %s42, 0
      %p341 = por %p339, %p340
      %p342 = scmp.ne.s32.totalorder %s330, %s331
      %p343 = scmp.eq.s32.totalorder %s43, 1
      %p344 = por %p342, %p343
      %p346 = scmp.ne.s32.totalorder %s331, %s345
      %p347 = scmp.eq.s32.totalorder %s43, 0
      %p348 = por %p346, %p347
      %s350 = sadd.s32 %s349, 1
      %p353 = scmp.eq.s32.totalorder %s37, 1
      %p354 = scmp.ne.s32.totalorder %s349, %s351
      %p355 = scmp.eq.s32.totalorder %s37, 0
      %p356 = por %p354, %p355
      %p357 = scmp.ne.s32.totalorder %s349, %s351
      %p358 = scmp.eq.s32.totalorder %s42, 1
      %p359 = por %p357, %p358
      %p360 = scmp.ne.s32.totalorder %s351, %s352
      %p361 = scmp.eq.s32.totalorder %s42, 0
      %p362 = por %p360, %p361
      %p363 = scmp.ne.s32.totalorder %s351, %s352
      %p364 = scmp.eq.s32.totalorder %s43, 1
      %p365 = por %p363, %p364
      %p367 = scmp.ne.s32.totalorder %s352, %s366
      %p368 = scmp.eq.s32.totalorder %s43, 0
      %p369 = por %p367, %p368
      %s371 = sadd.s32 %s370, 1
      %p374 = scmp.eq.s32.totalorder %s37, 1
      %p375 = scmp.ne.s32.totalorder %s370, %s372
      %p376 = scmp.eq.s32.totalorder %s37, 0
      %p377 = por %p375, %p376
      %p378 = scmp.ne.s32.totalorder %s370, %s372
      %p379 = scmp.eq.s32.totalorder %s42, 1
      %p380 = por %p378, %p379
      %p381 = scmp.ne.s32.totalorder %s372, %s373
      %p382 = scmp.eq.s32.totalorder %s42, 0
      %p383 = por %p381, %p382
      %p384 = scmp.ne.s32.totalorder %s372, %s373
      %p385 = scmp.eq.s32.totalorder %s43, 1
      %p386 = por %p384, %p385
      %p388 = scmp.ne.s32.totalorder %s373, %s387
      %p389 = scmp.eq.s32.totalorder %s43, 0
      %p390 = por %p388, %p389
      %s392 = sadd.s32 %s391, 1
      %p395 = scmp.eq.s32.totalorder %s37, 1
      %p396 = scmp.ne.s32.totalorder %s391, %s393
      %p397 = scmp.eq.s32.totalorder %s37, 0
      %p398 = por %p396, %p397
      %p399 = scmp.ne.s32.totalorder %s391, %s393
      %p400 = scmp.eq.s32.totalorder %s42, 1
      %p401 = por %p399, %p400
      %p402 = scmp.ne.s32.totalorder %s393, %s394
      %p403 = scmp.eq.s32.totalorder %s42, 0
      %p404 = por %p402, %p403
      %p405 = scmp.ne.s32.totalorder %s393, %s394
      %p406 = scmp.eq.s32.totalorder %s43, 1
      %p407 = por %p405, %p406
      %p409 = scmp.ne.s32.totalorder %s394, %s408
      %p410 = scmp.eq.s32.totalorder %s43, 0
      %p411 = por %p409, %p410
      %s413 = sadd.s32 %s412, 1
      %p416 = scmp.eq.s32.totalorder %s37, 1
      %p417 = scmp.ne.s32.totalorder %s412, %s414
      %p418 = scmp.eq.s32.totalorder %s37, 0
      %p419 = por %p417, %p418
      %p420 = scmp.ne.s32.totalorder %s412, %s414
      %p421 = scmp.eq.s32.totalorder %s42, 1
      %p422 = por %p420, %p421
      %p423 = scmp.ne.s32.totalorder %s414, %s415
      %p424 = scmp.eq.s32.totalorder %s42, 0
      %p425 = por %p423, %p424
      %p426 = scmp.ne.s32.totalorder %s414, %s415
      %p427 = scmp.eq.s32.totalorder %s43, 1
      %p428 = por %p426, %p427
      %p430 = scmp.ne.s32.totalorder %s415, %s429
      %p431 = scmp.eq.s32.totalorder %s43, 0
      %p432 = por %p430, %p431
      %s434 = sadd.s32 %s433, 1
      %p437 = scmp.eq.s32.totalorder %s37, 1
      %p438 = scmp.ne.s32.totalorder %s433, %s435
      %p439 = scmp.eq.s32.totalorder %s37, 0
      %p440 = por %p438, %p439
      %p441 = scmp.ne.s32.totalorder %s433, %s435
      %p442 = scmp.eq.s32.totalorder %s42, 1
      %p443 = por %p441, %p442
      %p444 = scmp.ne.s32.totalorder %s435, %s436
      %p445 = scmp.eq.s32.totalorder %s42, 0
      %p446 = por %p444, %p445
      %p447 = scmp.ne.s32.totalorder %s435, %s436
      %p448 = scmp.eq.s32.totalorder %s43, 1
      %p449 = por %p447, %p448
      %p451 = scmp.ne.s32.totalorder %s436, %s450
      %p452 = scmp.eq.s32.totalorder %s43, 0
      %p453 = por %p451, %p452
      %s455 = sadd.s32 %s454, 1
      %p458 = scmp.eq.s32.totalorder %s37, 1
      %p459 = scmp.ne.s32.totalorder %s454, %s456
      %p460 = scmp.eq.s32.totalorder %s37, 0
      %p461 = por %p459, %p460
      %p462 = scmp.ne.s32.totalorder %s454, %s456
      %p463 = scmp.eq.s32.totalorder %s42, 1
      %p464 = por %p462, %p463
      %p465 = scmp.ne.s32.totalorder %s456, %s457
      %p466 = scmp.eq.s32.totalorder %s42, 0
      %p467 = por %p465, %p466
      %p468 = scmp.ne.s32.totalorder %s456, %s457
      %p469 = scmp.eq.s32.totalorder %s43, 1
      %p470 = por %p468, %p469
      %p472 = scmp.ne.s32.totalorder %s457, %s471
      %p473 = scmp.eq.s32.totalorder %s43, 0
      %p474 = por %p472, %p473
      %s476 = sadd.s32 %s475, 1
      %p479 = scmp.eq.s32.totalorder %s37, 1
      %p480 = scmp.ne.s32.totalorder %s475, %s477
      %p481 = scmp.eq.s32.totalorder %s37, 0
      %p482 = por %p480, %p481
      %p483 = scmp.ne.s32.totalorder %s475, %s477
      %p484 = scmp.eq.s32.totalorder %s42, 1
      %p485 = por %p483, %p484
      %p486 = scmp.ne.s32.totalorder %s477, %s478
      %p487 = scmp.eq.s32.totalorder %s42, 0
      %p488 = por %p486, %p487
      %p489 = scmp.ne.s32.totalorder %s477, %s478
      %p490 = scmp.eq.s32.totalorder %s43, 1
      %p491 = por %p489, %p490
      %p493 = scmp.ne.s32.totalorder %s478, %s492
      %p494 = scmp.eq.s32.totalorder %s43, 0
      %p495 = por %p493, %p494
      %s497 = sadd.s32 %s496, 1
      %p500 = scmp.eq.s32.totalorder %s37, 1
      %p501 = scmp.ne.s32.totalorder %s496, %s498
      %p502 = scmp.eq.s32.totalorder %s37, 0
      %p503 = por %p501, %p502
      %p504 = scmp.ne.s32.totalorder %s496, %s498
      %p505 = scmp.eq.s32.totalorder %s42, 1
      %p506 = por %p504, %p505
      %p507 = scmp.ne.s32.totalorder %s498, %s499
      %p508 = scmp.eq.s32.totalorder %s42, 0
      %p509 = por %p507, %p508
      %p510 = scmp.ne.s32.totalorder %s498, %s499
      %p511 = scmp.eq.s32.totalorder %s43, 1
      %p512 = por %p510, %p511
      %p514 = scmp.ne.s32.totalorder %s499, %s513
      %p515 = scmp.eq.s32.totalorder %s43, 0
      %p516 = por %p514, %p515
      %s518 = sadd.s32 %s517, 1
      %p521 = scmp.eq.s32.totalorder %s37, 1
      %p522 = scmp.ne.s32.totalorder %s517, %s519
      %p523 = scmp.eq.s32.totalorder %s37, 0
      %p524 = por %p522, %p523
      %p525 = scmp.ne.s32.totalorder %s517, %s519
      %p526 = scmp.eq.s32.totalorder %s42, 1
      %p527 = por %p525, %p526
      %p528 = scmp.ne.s32.totalorder %s519, %s520
      %p529 = scmp.eq.s32.totalorder %s42, 0
      %p530 = por %p528, %p529
      %p531 = scmp.ne.s32.totalorder %s519, %s520
      %p532 = scmp.eq.s32.totalorder %s43, 1
      %p533 = por %p531, %p532
      %p535 = scmp.ne.s32.totalorder %s520, %s534
      %p536 = scmp.eq.s32.totalorder %s43, 0
      %p537 = por %p535, %p536
      %s539 = sadd.s32 %s538, 1
      %p542 = scmp.eq.s32.totalorder %s37, 1
      %p543 = scmp.ne.s32.totalorder %s538, %s540
      %p544 = scmp.eq.s32.totalorder %s37, 0
      %p545 = por %p543, %p544
      %p546 = scmp.ne.s32.totalorder %s538, %s540
      %p547 = scmp.eq.s32.totalorder %s42, 1
      %p548 = por %p546, %p547
      %p549 = scmp.ne.s32.totalorder %s540, %s541
      %p550 = scmp.eq.s32.totalorder %s42, 0
      %p551 = por %p549, %p550
      %p552 = scmp.ne.s32.totalorder %s540, %s541
      %p553 = scmp.eq.s32.totalorder %s43, 1
      %p554 = por %p552, %p553
      %p556 = scmp.ne.s32.totalorder %s541, %s555
      %p557 = scmp.eq.s32.totalorder %s43, 0
      %p558 = por %p556, %p557
      %s560 = sadd.s32 %s559, 1
      %p563 = scmp.eq.s32.totalorder %s37, 1
      %p564 = scmp.ne.s32.totalorder %s559, %s561
      %p565 = scmp.eq.s32.totalorder %s37, 0
      %p566 = por %p564, %p565
      %p567 = scmp.ne.s32.totalorder %s559, %s561
      %p568 = scmp.eq.s32.totalorder %s42, 1
      %p569 = por %p567, %p568
      %p570 = scmp.ne.s32.totalorder %s561, %s562
      %p571 = scmp.eq.s32.totalorder %s42, 0
      %p572 = por %p570, %p571
      %p573 = scmp.ne.s32.totalorder %s561, %s562
      %p574 = scmp.eq.s32.totalorder %s43, 1
      %p575 = por %p573, %p574
      %p577 = scmp.ne.s32.totalorder %s562, %s576
      %p578 = scmp.eq.s32.totalorder %s43, 0
      %p579 = por %p577, %p578
      %s581 = sadd.s32 %s580, 1
      %p584 = scmp.eq.s32.totalorder %s37, 1
      %p585 = scmp.ne.s32.totalorder %s580, %s582
      %p586 = scmp.eq.s32.totalorder %s37, 0
      %p587 = por %p585, %p586
      %p588 = scmp.ne.s32.totalorder %s580, %s582
      %p589 = scmp.eq.s32.totalorder %s42, 1
      %p590 = por %p588, %p589
      %p591 = scmp.ne.s32.totalorder %s582, %s583
      %p592 = scmp.eq.s32.totalorder %s42, 0
      %p593 = por %p591, %p592
      %p594 = scmp.ne.s32.totalorder %s582, %s583
      %p595 = scmp.eq.s32.totalorder %s43, 1
      %p596 = por %p594, %p595
      %p598 = scmp.ne.s32.totalorder %s583, %s597
      %p599 = scmp.eq.s32.totalorder %s43, 0
      %p600 = por %p598, %p599
      %s602 = sadd.s32 %s601, 1
      %p605 = scmp.eq.s32.totalorder %s37, 1
      %p606 = scmp.ne.s32.totalorder %s601, %s603
      %p607 = scmp.eq.s32.totalorder %s37, 0
      %p608 = por %p606, %p607
      %p609 = scmp.ne.s32.totalorder %s601, %s603
      %p610 = scmp.eq.s32.totalorder %s42, 1
      %p611 = por %p609, %p610
      %p612 = scmp.ne.s32.totalorder %s603, %s604
      %p613 = scmp.eq.s32.totalorder %s42, 0
      %p614 = por %p612, %p613
      %p615 = scmp.ne.s32.totalorder %s603, %s604
      %p616 = scmp.eq.s32.totalorder %s43, 1
      %p617 = por %p615, %p616
      %p619 = scmp.ne.s32.totalorder %s604, %s618
      %p620 = scmp.eq.s32.totalorder %s43, 0
      %p621 = por %p619, %p620
      %s623 = sadd.s32 %s622, 1
      %p626 = scmp.eq.s32.totalorder %s37, 1
      %p627 = scmp.ne.s32.totalorder %s622, %s624
      %p628 = scmp.eq.s32.totalorder %s37, 0
      %p629 = por %p627, %p628
      %p630 = scmp.ne.s32.totalorder %s622, %s624
      %p631 = scmp.eq.s32.totalorder %s42, 1
      %p632 = por %p630, %p631
      %p633 = scmp.ne.s32.totalorder %s624, %s625
      %p634 = scmp.eq.s32.totalorder %s42, 0
      %p635 = por %p633, %p634
      %p636 = scmp.ne.s32.totalorder %s624, %s625
      %p637 = scmp.eq.s32.totalorder %s43, 1
      %p638 = por %p636, %p637
      %p640 = scmp.ne.s32.totalorder %s625, %s639
      %p641 = scmp.eq.s32.totalorder %s43, 0
      %p642 = por %p640, %p641
      %s643 = ssub.s32 %s37, %s44
      %p644 = scmp.eq.s32.totalorder %s643, 0
      %s646 = sadd.s32 %s645, 1
      %s647 = scalar_select %p644, %s645, %s646
      %p650 = pneg %p644
      %p651 = scmp.eq.s32.totalorder %s37, 1
      %p652 = por %p650, %p651
      %p653 = scmp.ne.s32.totalorder %s645, %s648
      %p654 = scmp.eq.s32.totalorder %s37, 0
      %p655 = por %p653, %p654
      %p656 = scmp.ne.s32.totalorder %s645, %s648
      %p657 = scmp.eq.s32.totalorder %s42, 1
      %p658 = por %p656, %p657
      %p659 = scmp.ne.s32.totalorder %s648, %s649
      %p660 = scmp.eq.s32.totalorder %s42, 0
      %p661 = por %p659, %p660
      %p662 = scmp.ne.s32.totalorder %s648, %s649
      %p663 = scmp.eq.s32.totalorder %s43, 1
      %p664 = por %p662, %p663
      %p666 = scmp.ne.s32.totalorder %s649, %s665
      %p667 = scmp.eq.s32.totalorder %s43, 0
      %p668 = por %p666, %p667
      %p669 = scmp.le.s32.totalorder 1, %s37
      %p670 = scmp.lt.s32.totalorder %s37, 3
      %p671 = pnand %p669, %p670
      %p672 = pneg %p671
      // Predicated region
      $region9: #{tpu_custom_call.1} parent=5 // pred_check
        _
      $region10: #{tpu_custom_call.1} parent=5 // pred_check_branch
        %674 = sbr.rel (%p671) target = $region12
      $region11: #{tpu_custom_call.1} parent=5 // pred_region
        %s675 = ssub.s32 %s37, 1
        // Predicated region
        $region13: #{tpu_custom_call.1} parent=11 // pred_check
          %p676 = pneg %p110
        $region14: #{tpu_custom_call.1} parent=11 // pred_check_branch
          %678 = sbr.rel (%p676) target = $region16
        $region15: #{tpu_custom_call.1} parent=11 // pred_region
          _
        $region16: #{tpu_custom_call.1} parent=11 // pred_fallthru
          _
        // Predicated region
        $region17: #{tpu_custom_call.1} parent=11 // pred_check
          %p679 = pneg %p131
        $region18: #{tpu_custom_call.1} parent=11 // pred_check_branch
          %681 = sbr.rel (%p679) target = $region20
        $region19: #{tpu_custom_call.1} parent=11 // pred_region
          _
        $region20: #{tpu_custom_call.1} parent=11 // pred_fallthru
          _
        // Predicated region
        $region21: #{tpu_custom_call.1} parent=11 // pred_check
          %p682 = pneg %p152
        $region22: #{tpu_custom_call.1} parent=11 // pred_check_branch
          %684 = sbr.rel (%p682) target = $region24
        $region23: #{tpu_custom_call.1} parent=11 // pred_region
          _
        $region24: #{tpu_custom_call.1} parent=11 // pred_fallthru
          _
        // Predicated region
        $region25: #{tpu_custom_call.1} parent=11 // pred_check
          %p685 = pneg %p173
        $region26: #{tpu_custom_call.1} parent=11 // pred_check_branch
          %687 = sbr.rel (%p685) target = $region28
        $region27: #{tpu_custom_call.1} parent=11 // pred_region
          _
        $region28: #{tpu_custom_call.1} parent=11 // pred_fallthru
          _
        // Predicated region
        $region29: #{tpu_custom_call.1} parent=11 // pred_check
          %p688 = pneg %p194
        $region30: #{tpu_custom_call.1} parent=11 // pred_check_branch
          %690 = sbr.rel (%p688) target = $region32
        $region31: #{tpu_custom_call.1} parent=11 // pred_region
          _
        $region32: #{tpu_custom_call.1} parent=11 // pred_fallthru
          _
        // Predicated region
        $region33: #{tpu_custom_call.1} parent=11 // pred_check
          %p691 = pneg %p215
        $region34: #{tpu_custom_call.1} parent=11 // pred_check_branch
          %693 = sbr.rel (%p691) target = $region36
        $region35: #{tpu_custom_call.1} parent=11 // pred_region
          _
        $region36: #{tpu_custom_call.1} parent=11 // pred_fallthru
          _
        // Predicated region
        $region37: #{tpu_custom_call.1} parent=11 // pred_check
          %p694 = pneg %p236
        $region38: #{tpu_custom_call.1} parent=11 // pred_check_branch
          %696 = sbr.rel (%p694) target = $region40
        $region39: #{tpu_custom_call.1} parent=11 // pred_region
          _
        $region40: #{tpu_custom_call.1} parent=11 // pred_fallthru
          _
        // Predicated region
        $region41: #{tpu_custom_call.1} parent=11 // pred_check
          %p697 = pneg %p257
        $region42: #{tpu_custom_call.1} parent=11 // pred_check_branch
          %699 = sbr.rel (%p697) target = $region44
        $region43: #{tpu_custom_call.1} parent=11 // pred_region
          _
        $region44: #{tpu_custom_call.1} parent=11 // pred_fallthru
          _
        // Predicated region
        $region45: #{tpu_custom_call.1} parent=11 // pred_check
          %p700 = pneg %p278
        $region46: #{tpu_custom_call.1} parent=11 // pred_check_branch
          %702 = sbr.rel (%p700) target = $region48
        $region47: #{tpu_custom_call.1} parent=11 // pred_region
          _
        $region48: #{tpu_custom_call.1} parent=11 // pred_fallthru
          _
        // Predicated region
        $region49: #{tpu_custom_call.1} parent=11 // pred_check
          %p703 = pneg %p299
        $region50: #{tpu_custom_call.1} parent=11 // pred_check_branch
          %705 = sbr.rel (%p703) target = $region52
        $region51: #{tpu_custom_call.1} parent=11 // pred_region
          _
        $region52: #{tpu_custom_call.1} parent=11 // pred_fallthru
          _
        // Predicated region
        $region53: #{tpu_custom_call.1} parent=11 // pred_check
          %p706 = pneg %p320
        $region54: #{tpu_custom_call.1} parent=11 // pred_check_branch
          %708 = sbr.rel (%p706) target = $region56
        $region55: #{tpu_custom_call.1} parent=11 // pred_region
          _
        $region56: #{tpu_custom_call.1} parent=11 // pred_fallthru
          _
        // Predicated region
        $region57: #{tpu_custom_call.1} parent=11 // pred_check
          %p709 = pneg %p341
        $region58: #{tpu_custom_call.1} parent=11 // pred_check_branch
          %711 = sbr.rel (%p709) target = $region60
        $region59: #{tpu_custom_call.1} parent=11 // pred_region
          _
        $region60: #{tpu_custom_call.1} parent=11 // pred_fallthru
          _
        // Predicated region
        $region61: #{tpu_custom_call.1} parent=11 // pred_check
          %p712 = pneg %p362
        $region62: #{tpu_custom_call.1} parent=11 // pred_check_branch
          %714 = sbr.rel (%p712) target = $region64
        $region63: #{tpu_custom_call.1} parent=11 // pred_region
          _
        $region64: #{tpu_custom_call.1} parent=11 // pred_fallthru
          _
        // Predicated region
        $region65: #{tpu_custom_call.1} parent=11 // pred_check
          %p715 = pneg %p383
        $region66: #{tpu_custom_call.1} parent=11 // pred_check_branch
          %717 = sbr.rel (%p715) target = $region68
        $region67: #{tpu_custom_call.1} parent=11 // pred_region
          _
        $region68: #{tpu_custom_call.1} parent=11 // pred_fallthru
          _
        // Predicated region
        $region69: #{tpu_custom_call.1} parent=11 // pred_check
          %p718 = pneg %p404
        $region70: #{tpu_custom_call.1} parent=11 // pred_check_branch
          %720 = sbr.rel (%p718) target = $region72
        $region71: #{tpu_custom_call.1} parent=11 // pred_region
          _
        $region72: #{tpu_custom_call.1} parent=11 // pred_fallthru
          _
        // Predicated region
        $region73: #{tpu_custom_call.1} parent=11 // pred_check
          %p721 = pneg %p425
        $region74: #{tpu_custom_call.1} parent=11 // pred_check_branch
          %723 = sbr.rel (%p721) target = $region76
        $region75: #{tpu_custom_call.1} parent=11 // pred_region
          _
        $region76: #{tpu_custom_call.1} parent=11 // pred_fallthru
          _
        // Predicated region
        $region77: #{tpu_custom_call.1} parent=11 // pred_check
          %p724 = pneg %p446
        $region78: #{tpu_custom_call.1} parent=11 // pred_check_branch
          %726 = sbr.rel (%p724) target = $region80
        $region79: #{tpu_custom_call.1} parent=11 // pred_region
          _
        $region80: #{tpu_custom_call.1} parent=11 // pred_fallthru
          _
        // Predicated region
        $region81: #{tpu_custom_call.1} parent=11 // pred_check
          %p727 = pneg %p467
        $region82: #{tpu_custom_call.1} parent=11 // pred_check_branch
          %729 = sbr.rel (%p727) target = $region84
        $region83: #{tpu_custom_call.1} parent=11 // pred_region
          _
        $region84: #{tpu_custom_call.1} parent=11 // pred_fallthru
          _
        // Predicated region
        $region85: #{tpu_custom_call.1} parent=11 // pred_check
          %p730 = pneg %p488
        $region86: #{tpu_custom_call.1} parent=11 // pred_check_branch
          %732 = sbr.rel (%p730) target = $region88
        $region87: #{tpu_custom_call.1} parent=11 // pred_region
          _
        $region88: #{tpu_custom_call.1} parent=11 // pred_fallthru
          _
        // Predicated region
        $region89: #{tpu_custom_call.1} parent=11 // pred_check
          %p733 = pneg %p509
        $region90: #{tpu_custom_call.1} parent=11 // pred_check_branch
          %735 = sbr.rel (%p733) target = $region92
        $region91: #{tpu_custom_call.1} parent=11 // pred_region
          _
        $region92: #{tpu_custom_call.1} parent=11 // pred_fallthru
          _
        // Predicated region
        $region93: #{tpu_custom_call.1} parent=11 // pred_check
          %p736 = pneg %p530
        $region94: #{tpu_custom_call.1} parent=11 // pred_check_branch
          %738 = sbr.rel (%p736) target = $region96
        $region95: #{tpu_custom_call.1} parent=11 // pred_region
          _
        $region96: #{tpu_custom_call.1} parent=11 // pred_fallthru
          _
        // Predicated region
        $region97: #{tpu_custom_call.1} parent=11 // pred_check
          %p739 = pneg %p551
        $region98: #{tpu_custom_call.1} parent=11 // pred_check_branch
          %741 = sbr.rel (%p739) target = $region100
        $region99: #{tpu_custom_call.1} parent=11 // pred_region
          _
        $region100: #{tpu_custom_call.1} parent=11 // pred_fallthru
          _
        // Predicated region
        $region101: #{tpu_custom_call.1} parent=11 // pred_check
          %p742 = pneg %p572
        $region102: #{tpu_custom_call.1} parent=11 // pred_check_branch
          %744 = sbr.rel (%p742) target = $region104
        $region103: #{tpu_custom_call.1} parent=11 // pred_region
          _
        $region104: #{tpu_custom_call.1} parent=11 // pred_fallthru
          _
        // Predicated region
        $region105: #{tpu_custom_call.1} parent=11 // pred_check
          %p745 = pneg %p593
        $region106: #{tpu_custom_call.1} parent=11 // pred_check_branch
          %747 = sbr.rel (%p745) target = $region108
        $region107: #{tpu_custom_call.1} parent=11 // pred_region
          _
        $region108: #{tpu_custom_call.1} parent=11 // pred_fallthru
          _
        // Predicated region
        $region109: #{tpu_custom_call.1} parent=11 // pred_check
          %p748 = pneg %p614
        $region110: #{tpu_custom_call.1} parent=11 // pred_check_branch
          %750 = sbr.rel (%p748) target = $region112
        $region111: #{tpu_custom_call.1} parent=11 // pred_region
          _
        $region112: #{tpu_custom_call.1} parent=11 // pred_fallthru
          _
        // Predicated region
        $region113: #{tpu_custom_call.1} parent=11 // pred_check
          %p751 = pneg %p635
        $region114: #{tpu_custom_call.1} parent=11 // pred_check_branch
          %753 = sbr.rel (%p751) target = $region116
        $region115: #{tpu_custom_call.1} parent=11 // pred_region
          _
        $region116: #{tpu_custom_call.1} parent=11 // pred_fallthru
          _
      $region12: #{tpu_custom_call.1} parent=5 // pred_fallthru
        _
      %p754 = scmp.lt.s32.totalorder %s37, 2
      // Predicated region
      $region117: #{tpu_custom_call.1} parent=5 // pred_check
        %p755 = pneg %p754
      $region118: #{tpu_custom_call.1} parent=5 // pred_check_branch
        %757 = sbr.rel (%p755) target = $region120
      $region119: #{tpu_custom_call.1} parent=5 // pred_region
        // Predicated region
        $region121: #{tpu_custom_call.1} parent=119 // pred_check
          %p758 = pneg %p57
        $region122: #{tpu_custom_call.1} parent=119 // pred_check_branch
          %760 = sbr.rel (%p758) target = $region124
        $region123: #{tpu_custom_call.1} parent=119 // pred_region
          %p761 = scmp.lt.s32.totalorder %s37, 1
          %s762 = scalar_select %p761, %s37, 1
          %s763 = smul.addr %s762, 8
          %s764 = scalar_lea.vmem %s0, %s763
        $region124: #{tpu_custom_call.1} parent=119 // pred_fallthru
          _
        // Predicated region
        $region125: #{tpu_custom_call.1} parent=119 // pred_check
          %p765 = pneg %p83
        $region126: #{tpu_custom_call.1} parent=119 // pred_check_branch
          %767 = sbr.rel (%p765) target = $region128
        $region127: #{tpu_custom_call.1} parent=119 // pred_region
          %p768 = scmp.lt.s32.totalorder %s37, 1
          %s769 = scalar_select %p768, %s37, 1
          %s770 = scalar_lea.vmem %s1, %s769
        $region128: #{tpu_custom_call.1} parent=119 // pred_fallthru
          _
      $region120: #{tpu_custom_call.1} parent=5 // pred_fallthru
        _
      %p771 = scmp.le.s32.totalorder 1, %s37
      %p772 = scmp.lt.s32.totalorder %s37, 3
      %p773 = pnand %p771, %p772
      %p774 = pneg %p773
      // Predicated region
      $region129: #{tpu_custom_call.1} parent=5 // pred_check
        _
      $region130: #{tpu_custom_call.1} parent=5 // pred_check_branch
        %776 = sbr.rel (%p773) target = $region132
      $region131: #{tpu_custom_call.1} parent=5 // pred_region
        %s777 = ssub.s32 %s37, 1
        %p778 = scmp.lt.s32.totalorder %s42, 1
        %s779 = scalar_select %p778, %s42, 1
        %s780 = smul.addr %s779, 8
        %s781 = scalar_lea.vmem %s0, %s780
        %p782 = pneg %p63
        %p783 = pneg %p60
        %p784 = scmp.lt.s32.totalorder %s42, 1
        %s785 = scalar_select %p784, %s42, 1
        %s786 = scalar_lea.vmem %s1, %s785
        %p787 = pneg %p89
        %p788 = pneg %p86
        %p789 = pneg %p110
        %p790 = pneg %p107
        %p791 = pneg %p131
        %p792 = pneg %p128
        %p793 = pneg %p152
        %p794 = pneg %p149
        %p795 = pneg %p173
        %p796 = pneg %p170
        %p797 = pneg %p194
        %p798 = pneg %p191
        %p799 = pneg %p215
        %p800 = pneg %p212
        %p801 = pneg %p236
        %p802 = pneg %p233
        %p803 = pneg %p257
        %p804 = pneg %p254
        %p805 = pneg %p278
        %p806 = pneg %p275
        %p807 = pneg %p299
        %p808 = pneg %p296
        %p809 = pneg %p320
        %p810 = pneg %p317
        %p811 = pneg %p341
        %p812 = pneg %p338
        %p813 = pneg %p362
        %p814 = pneg %p359
        %p815 = pneg %p383
        %p816 = pneg %p380
        %p817 = pneg %p404
        %p818 = pneg %p401
        %p819 = pneg %p425
        %p820 = pneg %p422
        %p821 = pneg %p446
        %p822 = pneg %p443
        %p823 = pneg %p467
        %p824 = pneg %p464
        %p825 = pneg %p488
        %p826 = pneg %p485
        %p827 = pneg %p509
        %p828 = pneg %p506
        %p829 = pneg %p530
        %p830 = pneg %p527
        %p831 = pneg %p551
        %p832 = pneg %p548
        %p833 = pneg %p572
        %p834 = pneg %p569
        %p835 = pneg %p593
        %p836 = pneg %p590
        %p837 = pneg %p614
        %p838 = pneg %p611
        %p839 = pneg %p635
        %p840 = pneg %p632
        %p841 = pneg %p661
        %p842 = pneg %p658
        %s843 = sand.u32 %s648, 1
        %s844 = scalar_lea.sflag [#allocation3], %s843
        %s845 = sand.u32 %s648, 1
        %s846 = smul.addr %s845, 8
        %s847 = scalar_lea.vmem [#allocation2], %s846
        %p848 = scmp.lt.s32.totalorder %s42, 1
        %s849 = scalar_select %p848, %s42, 1
        %s850 = smul.addr %s849, 8
        %s851 = scalar_lea.vmem %s0, %s850
        %p852 = scmp.lt.s32.totalorder %s42, 1
        %s853 = scalar_select %p852, %s42, 1
        %s854 = scalar_lea.vmem %s1, %s853
        %v856 = vld [vmem:[%s851] sm:$0xff]
        %v857 = vld [vmem:[%s854] sm:$0x1]
        %v858 = vpack.c.bf16 %v856, %v856
        %v859 = vld [vmem:[%s2] sm:$0xf]
        %v860 = vld [vmem:[%s2 + $0x4] sm:$0xf]
        %v861 = vld [vmem:[%s2 + $0x8] sm:$0xf]
        %v862 = vld [vmem:[%s2 + $0xc] sm:$0xf]
        %v863 = vld [vmem:[%s3] sm:$0x1]
        %v865 = vlaneseq
        %v866 = vshrl.u32 %v865, 7
        %v867 = vsub.s32 0, %v866
        %v868 = vrot.slane %v863, %v867
        %v874 = vunpack.c.l.b16 %v859
        %v875 = vunpack.c.l.b16 %v860
        %v876 = vunpack.c.l.b16 %v861
        %v877 = vunpack.c.l.b16 %v862
        %v878 = vpack.c.b16 %v875, %v874
        %v879 = vpack.c.b16 %v877, %v876
        %vm882 = vcmask 261120
        %v884 = vsel %vm882, %v858, 0
        %886 = vmatprep.subr.bf16.mxu0 0
        %887 = vmatpush1.bf16.msra.mxu0 0
        %888 = vmatprep.subr.bf16.mxu0 0
        %889 = vmatpush1.bf16.msra.mxu0 0
        %890 = vmatprep.subr.bf16.mxu0 0
        %891 = vmatpush1.bf16.msra.mxu0 0
        %892 = vmatprep.subr.bf16.mxu0 0
        %893 = vmatpush1.bf16.msra.mxu0 0
        %894 = vmatprep.subr.bf16.mxu0 0
        %895 = vmatpush1.bf16.msra.mxu0 0
        %896 = vmatprep.subr.bf16.mxu0 0
        %897 = vmatpush1.bf16.msra.mxu0 0
        %898 = vmatprep.subr.bf16.mxu0 0
        %899 = vmatpush1.bf16.msra.mxu0 %v879
        %900 = vmatprep.subr.bf16.mxu0 0
        %901 = vmatpush1.bf16.msra.mxu0 %v878
        %902 = vmatprep.subr.bf16.mxu0 0
        %903 = vmatpush2.bf16.msra.mxu0 0
        %904 = vmatprep.subr.bf16.mxu0 0
        %905 = vmatpush2.bf16.msra.mxu0 0
        %906 = vmatprep.subr.bf16.mxu0 0
        %907 = vmatpush2.bf16.msra.mxu0 0
        %908 = vmatprep.subr.bf16.mxu0 0
        %909 = vmatpush2.bf16.msra.mxu0 0
        %910 = vmatprep.subr.bf16.mxu0 0
        %911 = vmatpush2.bf16.msra.mxu0 0
        %912 = vmatprep.subr.bf16.mxu0 0
        %913 = vmatpush2.bf16.msra.mxu0 0
        %914 = vmatprep.subr.bf16.mxu0 0
        %915 = vmatpush2.bf16.msra.mxu0 0
        %916 = vmatprep.subr.bf16.mxu0 0
        %917 = vmatpush2.bf16.msra.mxu0 0
        %918 = vmatprep.mubr.bf16.mxu0 0
        %919 = vmatmul.mubr.bf16.gmra.mxu0 %v884
        %v920 = vpop.f32.mrf.mxu0
        %v921 = vadd.f32 %v868, %v920
        %v922 = vpop.f32.mrf.mxu0
        %v923 = vpop.f32.mrf.mxu0
        %v924 = vpop.f32.mrf.mxu0
        %925 = vdwg.mxu0
        %v926 = vpack.c.bf16 %v921, %v921
        %928 = vrot.lane.b32.xlu0 %v926, 96
        %v929 = vpop.permute.xlu0 %928
        %vm930 = vcmask 64512
        %v932 = vsel %vm930, %v926, 0
        %v935 = vsel %vm930, %v929, 0
        %937 = vmatprep.subr.bf16.mxu0 0
        %938 = vmatpush1.bf16.xpose.msra.mxu0 0
        %939 = vmatprep.subr.bf16.mxu0 0
        %940 = vmatpush1.bf16.xpose.msra.mxu0 0
        %941 = vmatprep.subr.bf16.mxu0 0
        %942 = vmatpush1.bf16.xpose.msra.mxu0 0
        %943 = vmatprep.subr.bf16.mxu0 0
        %944 = vmatpush1.bf16.xpose.msra.mxu0 0
        %945 = vmatprep.subr.bf16.mxu0 0
        %946 = vmatpush1.bf16.xpose.msra.mxu0 0
        %947 = vmatprep.subr.bf16.mxu0 0
        %948 = vmatpush1.bf16.xpose.msra.mxu0 0
        %949 = vmatprep.subr.bf16.mxu0 0
        %950 = vmatpush1.bf16.xpose.msra.mxu0 0
        %951 = vmatprep.subr.bf16.mxu0 0
        %952 = vmatpush1.bf16.xpose.msra.mxu0 %v935
        %953 = vmatprep.subr.bf16.mxu0 0
        %954 = vmatpush2.bf16.xpose.msra.mxu0 0
        %955 = vmatprep.subr.bf16.mxu0 0
        %956 = vmatpush2.bf16.xpose.msra.mxu0 0
        %957 = vmatprep.subr.bf16.mxu0 0
        %958 = vmatpush2.bf16.xpose.msra.mxu0 0
        %959 = vmatprep.subr.bf16.mxu0 0
        %960 = vmatpush2.bf16.xpose.msra.mxu0 0
        %961 = vmatprep.subr.bf16.mxu0 0
        %962 = vmatpush2.bf16.xpose.msra.mxu0 0
        %963 = vmatprep.subr.bf16.mxu0 0
        %964 = vmatpush2.bf16.xpose.msra.mxu0 0
        %965 = vmatprep.subr.bf16.mxu0 0
        %966 = vmatpush2.bf16.xpose.msra.mxu0 0
        %967 = vmatprep.subr.bf16.mxu0 0
        %968 = vmatpush2.bf16.xpose.msra.mxu0 0
        %969 = vmatprep.mubr.bf16.mxu0 0
        %970 = vmatmul.mubr.bf16.gmra.mxu0 %v932
        %v971 = vpop.f32.mrf.mxu0
        %v972 = vadd.f32 0.0, %v971
        %v973 = vpop.f32.mrf.mxu0
        %v974 = vpop.f32.mrf.mxu0
        %v975 = vpop.f32.mrf.mxu0
        %976 = vdwg.mxu0
        %v977 = vmul.f32 %v972, 0.35355338
        %v979 = vlaneseq
        %v980 = vshrl.u32 %v979, 7
        %v981 = vsub.s32 0, %v980
        %v982 = vrot.slane %v857, %v981
        %v984 = vadd.f32 %v977, %v982
        %v985 = vsel %vm930, %v984, -inf
        %986 = vmax.xlane.f32.xlu0 %v985
        %v987 = vpop.xlane.xlu0 %986
        %v988 = vsub.f32 %v984, %v987
        %v989 = vmul.f32 %v988, 1.442695
        %v990 = vpow.pop %v989
        %v991 = vsel %vm930, %v990, 0.0
        %992 = vadd.xlane.f32.xlu0 %v991
        %v993 = vpop.xlane.xlu0 %992
        %v994 = vrcp.pop %v993
        %v995 = vmul.f32 %v990, %v994
        %v996 = vpack.c.bf16 %v995, %v995
        %997 = vrot.lane.b32.xlu0 %v926, 64
        %v998 = vpop.permute.xlu0 %997
        %v1000 = vsel %vm930, %v996, 0
        %vm1002 = vcmask 1043456
        %v1004 = vsel %vm1002, %v998, 0
        %1006 = vmatprep.subr.bf16.mxu0 0
        %1007 = vmatpush1.bf16.msra.mxu0 0
        %1008 = vmatprep.subr.bf16.mxu0 0
        %1009 = vmatpush1.bf16.msra.mxu0 0
        %1010 = vmatprep.subr.bf16.mxu0 0
        %1011 = vmatpush1.bf16.msra.mxu0 0
        %1012 = vmatprep.subr.bf16.mxu0 0
        %1013 = vmatpush1.bf16.msra.mxu0 0
        %1014 = vmatprep.subr.bf16.mxu0 0
        %1015 = vmatpush1.bf16.msra.mxu0 0
        %1016 = vmatprep.subr.bf16.mxu0 0
        %1017 = vmatpush1.bf16.msra.mxu0 0
        %1018 = vmatprep.subr.bf16.mxu0 0
        %1019 = vmatpush1.bf16.msra.mxu0 0
        %1020 = vmatprep.subr.bf16.mxu0 0
        %1021 = vmatpush1.bf16.msra.mxu0 %v1004
        %1022 = vmatprep.subr.bf16.mxu0 0
        %1023 = vmatpush2.bf16.msra.mxu0 0
        %1024 = vmatprep.subr.bf16.mxu0 0
        %1025 = vmatpush2.bf16.msra.mxu0 0
        %1026 = vmatprep.subr.bf16.mxu0 0
        %1027 = vmatpush2.bf16.msra.mxu0 0
        %1028 = vmatprep.subr.bf16.mxu0 0
        %1029 = vmatpush2.bf16.msra.mxu0 0
        %1030 = vmatprep.subr.bf16.mxu0 0
        %1031 = vmatpush2.bf16.msra.mxu0 0
        %1032 = vmatprep.subr.bf16.mxu0 0
        %1033 = vmatpush2.bf16.msra.mxu0 0
        %1034 = vmatprep.subr.bf16.mxu0 0
        %1035 = vmatpush2.bf16.msra.mxu0 0
        %1036 = vmatprep.subr.bf16.mxu0 0
        %1037 = vmatpush2.bf16.msra.mxu0 0
        %1038 = vmatprep.mubr.bf16.mxu0 0
        %1039 = vmatmul.mubr.bf16.gmra.mxu0 %v1000
        %v1040 = vpop.f32.mrf.mxu0
        %v1041 = vadd.f32 0.0, %v1040
        %v1042 = vpop.f32.mrf.mxu0
        %v1043 = vpop.f32.mrf.mxu0
        %v1044 = vpop.f32.mrf.mxu0
        %1045 = vdwg.mxu0
        %1046 = vrot.lane.b32.xlu0 %v926, 120
        %v1047 = vpop.permute.xlu0 %1046
        %1048 = vrot.lane.b32.xlu0 %v926, 88
        %v1049 = vpop.permute.xlu0 %1048
        %v1051 = vsel %vm930, %v1047, 0
        %v1054 = vsel %vm930, %v1049, 0
        %1056 = vmatprep.subr.bf16.mxu0 0
        %1057 = vmatpush1.bf16.xpose.msra.mxu0 0
        %1058 = vmatprep.subr.bf16.mxu0 0
        %1059 = vmatpush1.bf16.xpose.msra.mxu0 0
        %1060 = vmatprep.subr.bf16.mxu0 0
        %1061 = vmatpush1.bf16.xpose.msra.mxu0 0
        %1062 = vmatprep.subr.bf16.mxu0 0
        %1063 = vmatpush1.bf16.xpose.msra.mxu0 0
        %1064 = vmatprep.subr.bf16.mxu0 0
        %1065 = vmatpush1.bf16.xpose.msra.mxu0 0
        %1066 = vmatprep.subr.bf16.mxu0 0
        %1067 = vmatpush1.bf16.xpose.msra.mxu0 0
        %1068 = vmatprep.subr.bf16.mxu0 0
        %1069 = vmatpush1.bf16.xpose.msra.mxu0 0
        %1070 = vmatprep.subr.bf16.mxu0 0
        %1071 = vmatpush1.bf16.xpose.msra.mxu0 %v1054
        %1072 = vmatprep.subr.bf16.mxu0 0
        %1073 = vmatpush2.bf16.xpose.msra.mxu0 0
        %1074 = vmatprep.subr.bf16.mxu0 0
        %1075 = vmatpush2.bf16.xpose.msra.mxu0 0
        %1076 = vmatprep.subr.bf16.mxu0 0
        %1077 = vmatpush2.bf16.xpose.msra.mxu0 0
        %1078 = vmatprep.subr.bf16.mxu0 0
        %1079 = vmatpush2.bf16.xpose.msra.mxu0 0
        %1080 = vmatprep.subr.bf16.mxu0 0
        %1081 = vmatpush2.bf16.xpose.msra.mxu0 0
        %1082 = vmatprep.subr.bf16.mxu0 0
        %1083 = vmatpush2.bf16.xpose.msra.mxu0 0
        %1084 = vmatprep.subr.bf16.mxu0 0
        %1085 = vmatpush2.bf16.xpose.msra.mxu0 0
        %1086 = vmatprep.subr.bf16.mxu0 0
        %1087 = vmatpush2.bf16.xpose.msra.mxu0 0
        %1088 = vmatprep.mubr.bf16.mxu0 0
        %1089 = vmatmul.mubr.bf16.gmra.mxu0 %v1051
        %v1090 = vpop.f32.mrf.mxu0
        %v1091 = vadd.f32 0.0, %v1090
        %v1092 = vpop.f32.mrf.mxu0
        %v1093 = vpop.f32.mrf.mxu0
        %v1094 = vpop.f32.mrf.mxu0
        %1095 = vdwg.mxu0
        %v1096 = vmul.f32 %v1091, 0.35355338
        %v1097 = vadd.f32 %v1096, %v982
        %v1098 = vsel %vm930, %v1097, -inf
        %1099 = vmax.xlane.f32.xlu0 %v1098
        %v1100 = vpop.xlane.xlu0 %1099
        %v1101 = vsub.f32 %v1097, %v1100
        %v1102 = vmul.f32 %v1101, 1.442695
        %v1103 = vpow.pop %v1102
        %v1104 = vsel %vm930, %v1103, 0.0
        %1105 = vadd.xlane.f32.xlu0 %v1104
        %v1106 = vpop.xlane.xlu0 %1105
        %v1107 = vrcp.pop %v1106
        %v1108 = vmul.f32 %v1103, %v1107
        %v1109 = vpack.c.bf16 %v1108, %v1108
        %1110 = vrot.lane.b32.xlu0 %v926, 56
        %v1111 = vpop.permute.xlu0 %1110
        %v1113 = vsel %vm930, %v1109, 0
        %v1116 = vsel %vm1002, %v1111, 0
        %1118 = vmatprep.subr.bf16.mxu0 0
        %1119 = vmatpush1.bf16.msra.mxu0 0
        %1120 = vmatprep.subr.bf16.mxu0 0
        %1121 = vmatpush1.bf16.msra.mxu0 0
        %1122 = vmatprep.subr.bf16.mxu0 0
        %1123 = vmatpush1.bf16.msra.mxu0 0
        %1124 = vmatprep.subr.bf16.mxu0 0
        %1125 = vmatpush1.bf16.msra.mxu0 0
        %1126 = vmatprep.subr.bf16.mxu0 0
        %1127 = vmatpush1.bf16.msra.mxu0 0
        %1128 = vmatprep.subr.bf16.mxu0 0
        %1129 = vmatpush1.bf16.msra.mxu0 0
        %1130 = vmatprep.subr.bf16.mxu0 0
        %1131 = vmatpush1.bf16.msra.mxu0 0
        %1132 = vmatprep.subr.bf16.mxu0 0
        %1133 = vmatpush1.bf16.msra.mxu0 %v1116
        %1134 = vmatprep.subr.bf16.mxu0 0
        %1135 = vmatpush2.bf16.msra.mxu0 0
        %1136 = vmatprep.subr.bf16.mxu0 0
        %1137 = vmatpush2.bf16.msra.mxu0 0
        %1138 = vmatprep.subr.bf16.mxu0 0
        %1139 = vmatpush2.bf16.msra.mxu0 0
        %1140 = vmatprep.subr.bf16.mxu0 0
        %1141 = vmatpush2.bf16.msra.mxu0 0
        %1142 = vmatprep.subr.bf16.mxu0 0
        %1143 = vmatpush2.bf16.msra.mxu0 0
        %1144 = vmatprep.subr.bf16.mxu0 0
        %1145 = vmatpush2.bf16.msra.mxu0 0
        %1146 = vmatprep.subr.bf16.mxu0 0
        %1147 = vmatpush2.bf16.msra.mxu0 0
        %1148 = vmatprep.subr.bf16.mxu0 0
        %1149 = vmatpush2.bf16.msra.mxu0 0
        %1150 = vmatprep.mubr.bf16.mxu0 0
        %1151 = vmatmul.mubr.bf16.gmra.mxu0 %v1113
        %v1152 = vpop.f32.mrf.mxu0
        %v1153 = vadd.f32 0.0, %v1152
        %v1154 = vpop.f32.mrf.mxu0
        %v1155 = vpop.f32.mrf.mxu0
        %v1156 = vpop.f32.mrf.mxu0
        %1157 = vdwg.mxu0
        %1158 = vrot.lane.b32.xlu0 %v926, 112
        %v1159 = vpop.permute.xlu0 %1158
        %1160 = vrot.lane.b32.xlu0 %v926, 80
        %v1161 = vpop.permute.xlu0 %1160
        %v1163 = vsel %vm930, %v1159, 0
        %v1166 = vsel %vm930, %v1161, 0
        %1168 = vmatprep.subr.bf16.mxu0 0
        %1169 = vmatpush1.bf16.xpose.msra.mxu0 0
        %1170 = vmatprep.subr.bf16.mxu0 0
        %1171 = vmatpush1.bf16.xpose.msra.mxu0 0
        %1172 = vmatprep.subr.bf16.mxu0 0
        %1173 = vmatpush1.bf16.xpose.msra.mxu0 0
        %1174 = vmatprep.subr.bf16.mxu0 0
        %1175 = vmatpush1.bf16.xpose.msra.mxu0 0
        %1176 = vmatprep.subr.bf16.mxu0 0
        %1177 = vmatpush1.bf16.xpose.msra.mxu0 0
        %1178 = vmatprep.subr.bf16.mxu0 0
        %1179 = vmatpush1.bf16.xpose.msra.mxu0 0
        %1180 = vmatprep.subr.bf16.mxu0 0
        %1181 = vmatpush1.bf16.xpose.msra.mxu0 0
        %1182 = vmatprep.subr.bf16.mxu0 0
        %1183 = vmatpush1.bf16.xpose.msra.mxu0 %v1166
        %1184 = vmatprep.subr.bf16.mxu0 0
        %1185 = vmatpush2.bf16.xpose.msra.mxu0 0
        %1186 = vmatprep.subr.bf16.mxu0 0
        %1187 = vmatpush2.bf16.xpose.msra.mxu0 0
        %1188 = vmatprep.subr.bf16.mxu0 0
        %1189 = vmatpush2.bf16.xpose.msra.mxu0 0
        %1190 = vmatprep.subr.bf16.mxu0 0
        %1191 = vmatpush2.bf16.xpose.msra.mxu0 0
        %1192 = vmatprep.subr.bf16.mxu0 0
        %1193 = vmatpush2.bf16.xpose.msra.mxu0 0
        %1194 = vmatprep.subr.bf16.mxu0 0
        %1195 = vmatpush2.bf16.xpose.msra.mxu0 0
        %1196 = vmatprep.subr.bf16.mxu0 0
        %1197 = vmatpush2.bf16.xpose.msra.mxu0 0
        %1198 = vmatprep.subr.bf16.mxu0 0
        %1199 = vmatpush2.bf16.xpose.msra.mxu0 0
        %1200 = vmatprep.mubr.bf16.mxu0 0
        %1201 = vmatmul.mubr.bf16.gmra.mxu0 %v1163
        %v1202 = vpop.f32.mrf.mxu0
        %v1203 = vadd.f32 0.0, %v1202
        %v1204 = vpop.f32.mrf.mxu0
        %v1205 = vpop.f32.mrf.mxu0
        %v1206 = vpop.f32.mrf.mxu0
        %1207 = vdwg.mxu0
        %v1208 = vmul.f32 %v1203, 0.35355338
        %v1209 = vadd.f32 %v1208, %v982
        %v1210 = vsel %vm930, %v1209, -inf
        %1211 = vmax.xlane.f32.xlu0 %v1210
        %v1212 = vpop.xlane.xlu0 %1211
        %v1213 = vsub.f32 %v1209, %v1212
        %v1214 = vmul.f32 %v1213, 1.442695
        %v1215 = vpow.pop %v1214
        %v1216 = vsel %vm930, %v1215, 0.0
        %1217 = vadd.xlane.f32.xlu0 %v1216
        %v1218 = vpop.xlane.xlu0 %1217
        %v1219 = vrcp.pop %v1218
        %v1220 = vmul.f32 %v1215, %v1219
        %v1221 = vpack.c.bf16 %v1220, %v1220
        %1222 = vrot.lane.b32.xlu0 %v926, 48
        %v1223 = vpop.permute.xlu0 %1222
        %v1225 = vsel %vm930, %v1221, 0
        %v1228 = vsel %vm1002, %v1223, 0
        %1230 = vmatprep.subr.bf16.mxu0 0
        %1231 = vmatpush1.bf16.msra.mxu0 0
        %1232 = vmatprep.subr.bf16.mxu0 0
        %1233 = vmatpush1.bf16.msra.mxu0 0
        %1234 = vmatprep.subr.bf16.mxu0 0
        %1235 = vmatpush1.bf16.msra.mxu0 0
        %1236 = vmatprep.subr.bf16.mxu0 0
        %1237 = vmatpush1.bf16.msra.mxu0 0
        %1238 = vmatprep.subr.bf16.mxu0 0
        %1239 = vmatpush1.bf16.msra.mxu0 0
        %1240 = vmatprep.subr.bf16.mxu0 0
        %1241 = vmatpush1.bf16.msra.mxu0 0
        %1242 = vmatprep.subr.bf16.mxu0 0
        %1243 = vmatpush1.bf16.msra.mxu0 0
        %1244 = vmatprep.subr.bf16.mxu0 0
        %1245 = vmatpush1.bf16.msra.mxu0 %v1228
        %1246 = vmatprep.subr.bf16.mxu0 0
        %1247 = vmatpush2.bf16.msra.mxu0 0
        %1248 = vmatprep.subr.bf16.mxu0 0
        %1249 = vmatpush2.bf16.msra.mxu0 0
        %1250 = vmatprep.subr.bf16.mxu0 0
        %1251 = vmatpush2.bf16.msra.mxu0 0
        %1252 = vmatprep.subr.bf16.mxu0 0
        %1253 = vmatpush2.bf16.msra.mxu0 0
        %1254 = vmatprep.subr.bf16.mxu0 0
        %1255 = vmatpush2.bf16.msra.mxu0 0
        %1256 = vmatprep.subr.bf16.mxu0 0
        %1257 = vmatpush2.bf16.msra.mxu0 0
        %1258 = vmatprep.subr.bf16.mxu0 0
        %1259 = vmatpush2.bf16.msra.mxu0 0
        %1260 = vmatprep.subr.bf16.mxu0 0
        %1261 = vmatpush2.bf16.msra.mxu0 0
        %1262 = vmatprep.mubr.bf16.mxu0 0
        %1263 = vmatmul.mubr.bf16.gmra.mxu0 %v1225
        %v1264 = vpop.f32.mrf.mxu0
        %v1265 = vadd.f32 0.0, %v1264
        %v1266 = vpop.f32.mrf.mxu0
        %v1267 = vpop.f32.mrf.mxu0
        %v1268 = vpop.f32.mrf.mxu0
        %1269 = vdwg.mxu0
        %1270 = vrot.lane.b32.xlu0 %v926, 104
        %v1271 = vpop.permute.xlu0 %1270
        %1272 = vrot.lane.b32.xlu0 %v926, 72
        %v1273 = vpop.permute.xlu0 %1272
        %v1275 = vsel %vm930, %v1271, 0
        %v1278 = vsel %vm930, %v1273, 0
        %1280 = vmatprep.subr.bf16.mxu0 0
        %1281 = vmatpush1.bf16.xpose.msra.mxu0 0
        %1282 = vmatprep.subr.bf16.mxu0 0
        %1283 = vmatpush1.bf16.xpose.msra.mxu0 0
        %1284 = vmatprep.subr.bf16.mxu0 0
        %1285 = vmatpush1.bf16.xpose.msra.mxu0 0
        %1286 = vmatprep.subr.bf16.mxu0 0
        %1287 = vmatpush1.bf16.xpose.msra.mxu0 0
        %1288 = vmatprep.subr.bf16.mxu0 0
        %1289 = vmatpush1.bf16.xpose.msra.mxu0 0
        %1290 = vmatprep.subr.bf16.mxu0 0
        %1291 = vmatpush1.bf16.xpose.msra.mxu0 0
        %1292 = vmatprep.subr.bf16.mxu0 0
        %1293 = vmatpush1.bf16.xpose.msra.mxu0 0
        %1294 = vmatprep.subr.bf16.mxu0 0
        %1295 = vmatpush1.bf16.xpose.msra.mxu0 %v1278
        %1296 = vmatprep.subr.bf16.mxu0 0
        %1297 = vmatpush2.bf16.xpose.msra.mxu0 0
        %1298 = vmatprep.subr.bf16.mxu0 0
        %1299 = vmatpush2.bf16.xpose.msra.mxu0 0
        %1300 = vmatprep.subr.bf16.mxu0 0
        %1301 = vmatpush2.bf16.xpose.msra.mxu0 0
        %1302 = vmatprep.subr.bf16.mxu0 0
        %1303 = vmatpush2.bf16.xpose.msra.mxu0 0
        %1304 = vmatprep.subr.bf16.mxu0 0
        %1305 = vmatpush2.bf16.xpose.msra.mxu0 0
        %1306 = vmatprep.subr.bf16.mxu0 0
        %1307 = vmatpush2.bf16.xpose.msra.mxu0 0
        %1308 = vmatprep.subr.bf16.mxu0 0
        %1309 = vmatpush2.bf16.xpose.msra.mxu0 0
        %1310 = vmatprep.subr.bf16.mxu0 0
        %1311 = vmatpush2.bf16.xpose.msra.mxu0 0
        %1312 = vmatprep.mubr.bf16.mxu0 0
        %1313 = vmatmul.mubr.bf16.gmra.mxu0 %v1275
        %v1314 = vpop.f32.mrf.mxu0
        %v1315 = vadd.f32 0.0, %v1314
        %v1316 = vpop.f32.mrf.mxu0
        %v1317 = vpop.f32.mrf.mxu0
        %v1318 = vpop.f32.mrf.mxu0
        %1319 = vdwg.mxu0
        %v1320 = vmul.f32 %v1315, 0.35355338
        %v1321 = vadd.f32 %v1320, %v982
        %v1322 = vsel %vm930, %v1321, -inf
        %1323 = vmax.xlane.f32.xlu0 %v1322
        %v1324 = vpop.xlane.xlu0 %1323
        %v1325 = vsub.f32 %v1321, %v1324
        %v1326 = vmul.f32 %v1325, 1.442695
        %v1327 = vpow.pop %v1326
        %v1328 = vsel %vm930, %v1327, 0.0
        %1329 = vadd.xlane.f32.xlu0 %v1328
        %v1330 = vpop.xlane.xlu0 %1329
        %v1331 = vrcp.pop %v1330
        %v1332 = vmul.f32 %v1327, %v1331
        %v1333 = vpack.c.bf16 %v1332, %v1332
        %1334 = vrot.lane.b32.xlu0 %v926, 40
        %v1335 = vpop.permute.xlu0 %1334
        %v1337 = vsel %vm930, %v1333, 0
        %v1340 = vsel %vm1002, %v1335, 0
        %1342 = vmatprep.subr.bf16.mxu0 0
        %1343 = vmatpush1.bf16.msra.mxu0 0
        %1344 = vmatprep.subr.bf16.mxu0 0
        %1345 = vmatpush1.bf16.msra.mxu0 0
        %1346 = vmatprep.subr.bf16.mxu0 0
        %1347 = vmatpush1.bf16.msra.mxu0 0
        %1348 = vmatprep.subr.bf16.mxu0 0
        %1349 = vmatpush1.bf16.msra.mxu0 0
        %1350 = vmatprep.subr.bf16.mxu0 0
        %1351 = vmatpush1.bf16.msra.mxu0 0
        %1352 = vmatprep.subr.bf16.mxu0 0
        %1353 = vmatpush1.bf16.msra.mxu0 0
        %1354 = vmatprep.subr.bf16.mxu0 0
        %1355 = vmatpush1.bf16.msra.mxu0 0
        %1356 = vmatprep.subr.bf16.mxu0 0
        %1357 = vmatpush1.bf16.msra.mxu0 %v1340
        %1358 = vmatprep.subr.bf16.mxu0 0
        %1359 = vmatpush2.bf16.msra.mxu0 0
        %1360 = vmatprep.subr.bf16.mxu0 0
        %1361 = vmatpush2.bf16.msra.mxu0 0
        %1362 = vmatprep.subr.bf16.mxu0 0
        %1363 = vmatpush2.bf16.msra.mxu0 0
        %1364 = vmatprep.subr.bf16.mxu0 0
        %1365 = vmatpush2.bf16.msra.mxu0 0
        %1366 = vmatprep.subr.bf16.mxu0 0
        %1367 = vmatpush2.bf16.msra.mxu0 0
        %1368 = vmatprep.subr.bf16.mxu0 0
        %1369 = vmatpush2.bf16.msra.mxu0 0
        %1370 = vmatprep.subr.bf16.mxu0 0
        %1371 = vmatpush2.bf16.msra.mxu0 0
        %1372 = vmatprep.subr.bf16.mxu0 0
        %1373 = vmatpush2.bf16.msra.mxu0 0
        %1374 = vmatprep.mubr.bf16.mxu0 0
        %1375 = vmatmul.mubr.bf16.gmra.mxu0 %v1337
        %v1376 = vpop.f32.mrf.mxu0
        %v1377 = vadd.f32 0.0, %v1376
        %v1378 = vpop.f32.mrf.mxu0
        %v1379 = vpop.f32.mrf.mxu0
        %v1380 = vpop.f32.mrf.mxu0
        %1381 = vdwg.mxu0
        %1383 = vrot.lane.b32.xlu0 %v1153, 8
        %v1384 = vpop.permute.xlu0 %1383
        %1387 = vrot.lane.b32.xlu0 %v1265, 16
        %v1388 = vpop.permute.xlu0 %1387
        %1391 = vrot.lane.b32.xlu0 %v1377, 24
        %v1392 = vpop.permute.xlu0 %1391
        %v1394 = vsel %vm930, %v1041, %v1384
        %vm1395 = vcmask 130048
        %v1396 = vsel %vm1395, %v1394, %v1388
        %vm1397 = vcmask 195584
        %v1398 = vsel %vm1397, %v1396, %v1392
        %v1399 = vpack.c.bf16 %v1398, %v1398
        %v1400 = vld [vmem:[%s4] sm:$0xf]
        %v1401 = vld [vmem:[%s4 + $0x4] sm:$0xf]
        %v1402 = vld [vmem:[%s4 + $0x8] sm:$0xf]
        %v1403 = vld [vmem:[%s4 + $0xc] sm:$0xf]
        %v1404 = vld [vmem:[%s5] sm:$0x1]
        %v1406 = vlaneseq
        %v1407 = vshrl.u32 %v1406, 7
        %v1408 = vsub.s32 0, %v1407
        %v1409 = vrot.slane %v1404, %v1408
        %v1415 = vunpack.c.l.b16 %v1400
        %v1416 = vunpack.c.l.b16 %v1401
        %v1417 = vunpack.c.l.b16 %v1402
        %v1418 = vunpack.c.l.b16 %v1403
        %v1419 = vpack.c.b16 %v1416, %v1415
        %v1420 = vpack.c.b16 %v1418, %v1417
        %v1424 = vsel %vm882, %v1399, 0
        %1426 = vmatprep.subr.bf16.mxu0 0
        %1427 = vmatpush1.bf16.msra.mxu0 0
        %1428 = vmatprep.subr.bf16.mxu0 0
        %1429 = vmatpush1.bf16.msra.mxu0 0
        %1430 = vmatprep.subr.bf16.mxu0 0
        %1431 = vmatpush1.bf16.msra.mxu0 0
        %1432 = vmatprep.subr.bf16.mxu0 0
        %1433 = vmatpush1.bf16.msra.mxu0 0
        %1434 = vmatprep.subr.bf16.mxu0 0
        %1435 = vmatpush1.bf16.msra.mxu0 0
        %1436 = vmatprep.subr.bf16.mxu0 0
        %1437 = vmatpush1.bf16.msra.mxu0 0
        %1438 = vmatprep.subr.bf16.mxu0 0
        %1439 = vmatpush1.bf16.msra.mxu0 %v1420
        %1440 = vmatprep.subr.bf16.mxu0 0
        %1441 = vmatpush1.bf16.msra.mxu0 %v1419
        %1442 = vmatprep.subr.bf16.mxu0 0
        %1443 = vmatpush2.bf16.msra.mxu0 0
        %1444 = vmatprep.subr.bf16.mxu0 0
        %1445 = vmatpush2.bf16.msra.mxu0 0
        %1446 = vmatprep.subr.bf16.mxu0 0
        %1447 = vmatpush2.bf16.msra.mxu0 0
        %1448 = vmatprep.subr.bf16.mxu0 0
        %1449 = vmatpush2.bf16.msra.mxu0 0
        %1450 = vmatprep.subr.bf16.mxu0 0
        %1451 = vmatpush2.bf16.msra.mxu0 0
        %1452 = vmatprep.subr.bf16.mxu0 0
        %1453 = vmatpush2.bf16.msra.mxu0 0
        %1454 = vmatprep.subr.bf16.mxu0 0
        %1455 = vmatpush2.bf16.msra.mxu0 0
        %1456 = vmatprep.subr.bf16.mxu0 0
        %1457 = vmatpush2.bf16.msra.mxu0 0
        %1458 = vmatprep.mubr.bf16.mxu0 0
        %1459 = vmatmul.mubr.bf16.gmra.mxu0 %v1424
        %v1460 = vpop.f32.mrf.mxu0
        %v1461 = vadd.f32 %v1409, %v1460
        %v1462 = vpop.f32.mrf.mxu0
        %v1463 = vpop.f32.mrf.mxu0
        %v1464 = vpop.f32.mrf.mxu0
        %1465 = vdwg.mxu0
        %v1466 = vadd.f32 %v1461, %v856
        %v1467 = vld [vmem:[%s6] sm:$0x1]
        %v1468 = vld [vmem:[%s7] sm:$0x1]
        %v1469 = vsel %vm882, %v1466, 0.0
        %1470 = vadd.xlane.f32.xlu0 %v1469
        %v1471 = vpop.xlane.xlu0 %1470
        %v1472 = vrcp.pop 32.0
        %v1473 = vmul.f32 %v1471, %v1472
        %v1474 = vsub.f32 %v1466, %v1473
        %v1475 = vmul.f32 %v1474, %v1474
        %v1476 = vsel %vm882, %v1475, 0.0
        %1477 = vadd.xlane.f32.xlu0 %v1476
        %v1478 = vpop.xlane.xlu0 %1477
        %v1479 = vmul.f32 %v1478, %v1472
        %v1480 = vadd.f32 %v1479, 1e-05
        %v1481 = vrsqrt.pop %v1480
        %v1482 = vmul.f32 %v1474, %v1481
        %v1484 = vlaneseq
        %v1485 = vshrl.u32 %v1484, 7
        %v1486 = vsub.s32 0, %v1485
        %v1487 = vrot.slane %v1467, %v1486
        %v1489 = vmul.f32 %v1482, %v1487
        %v1491 = vlaneseq
        %v1492 = vshrl.u32 %v1491, 7
        %v1493 = vsub.s32 0, %v1492
        %v1494 = vrot.slane %v1468, %v1493
        %v1496 = vadd.f32 %v1489, %v1494
        %v1497 = vpack.c.bf16 %v1496, %v1496
        %v1498 = vld [vmem:[%s8] sm:$0xff]
        %v1499 = vld [vmem:[%s8 + $0x8] sm:$0xff]
        %v1500 = vld [vmem:[%s8 + $0x10] sm:$0xff]
        %v1501 = vld [vmem:[%s8 + $0x18] sm:$0xff]
        %v1502 = vld [vmem:[%s8 + $0x20] sm:$0xff]
        %v1503 = vld [vmem:[%s8 + $0x28] sm:$0xff]
        %v1504 = vld [vmem:[%s8 + $0x30] sm:$0xff]
        %v1505 = vld [vmem:[%s8 + $0x38] sm:$0xff]
        %v1506 = vld [vmem:[%s8 + $0x40] sm:$0xff]
        %v1507 = vld [vmem:[%s8 + $0x48] sm:$0xff]
        %v1508 = vld [vmem:[%s8 + $0x50] sm:$0xff]
        %v1509 = vld [vmem:[%s8 + $0x58] sm:$0xff]
        %v1510 = vld [vmem:[%s8 + $0x60] sm:$0xff]
        %v1511 = vld [vmem:[%s8 + $0x68] sm:$0xff]
        %v1512 = vld [vmem:[%s8 + $0x70] sm:$0xff]
        %v1513 = vld [vmem:[%s8 + $0x78] sm:$0xff]
        %v1514 = vld [vmem:[%s8 + $0x80] sm:$0xff]
        %v1515 = vld [vmem:[%s8 + $0x88] sm:$0xff]
        %v1516 = vld [vmem:[%s8 + $0x90] sm:$0xff]
        %v1517 = vld [vmem:[%s8 + $0x98] sm:$0xff]
        %v1518 = vld [vmem:[%s8 + $0xa0] sm:$0xff]
        %v1519 = vld [vmem:[%s8 + $0xa8] sm:$0xff]
        %v1520 = vld [vmem:[%s8 + $0xb0] sm:$0xff]
        %v1521 = vld [vmem:[%s8 + $0xb8] sm:$0xff]
        %v1522 = vld [vmem:[%s8 + $0xc0] sm:$0xff]
        %v1523 = vld [vmem:[%s8 + $0xc8] sm:$0xff]
        %v1524 = vld [vmem:[%s8 + $0xd0] sm:$0xff]
        %v1525 = vld [vmem:[%s8 + $0xd8] sm:$0xff]
        %v1526 = vld [vmem:[%s8 + $0xe0] sm:$0xff]
        %v1527 = vld [vmem:[%s8 + $0xe8] sm:$0xff]
        %v1528 = vld [vmem:[%s8 + $0xf0] sm:$0xff]
        %v1529 = vld [vmem:[%s8 + $0xf8] sm:$0xff]
        %v1530 = vld [vmem:[%s9] sm:$0xff]
        %v1531 = vld [vmem:[%s9 + $0x8] sm:$0xff]
        %v1534 = vlaneseq
        %v1535 = vshrl.u32 %v1534, 7
        %v1536 = vsub.s32 0, %v1535
        %v1537 = vrot.slane %v1530, %v1536
        %v1538 = vlaneseq
        %v1539 = vshrl.u32 %v1538, 7
        %v1540 = vsub.s32 1, %v1539
        %v1541 = vrot.slane %v1530, %v1540
        %v1542 = vlaneseq
        %v1543 = vshrl.u32 %v1542, 7
        %v1544 = vsub.s32 2, %v1543
        %v1545 = vrot.slane %v1530, %v1544
        %v1546 = vlaneseq
        %v1547 = vshrl.u32 %v1546, 7
        %v1548 = vsub.s32 3, %v1547
        %v1549 = vrot.slane %v1530, %v1548
        %v1550 = vlaneseq
        %v1551 = vshrl.u32 %v1550, 7
        %v1552 = vsub.s32 4, %v1551
        %v1553 = vrot.slane %v1530, %v1552
        %v1554 = vlaneseq
        %v1555 = vshrl.u32 %v1554, 7
        %v1556 = vsub.s32 5, %v1555
        %v1557 = vrot.slane %v1530, %v1556
        %v1558 = vlaneseq
        %v1559 = vshrl.u32 %v1558, 7
        %v1560 = vsub.s32 6, %v1559
        %v1561 = vrot.slane %v1530, %v1560
        %v1562 = vlaneseq
        %v1563 = vshrl.u32 %v1562, 7
        %v1564 = vsub.s32 7, %v1563
        %v1565 = vrot.slane %v1530, %v1564
        %v1566 = vlaneseq
        %v1567 = vshrl.u32 %v1566, 7
        %v1568 = vsub.s32 0, %v1567
        %v1569 = vrot.slane %v1531, %v1568
        %v1570 = vlaneseq
        %v1571 = vshrl.u32 %v1570, 7
        %v1572 = vsub.s32 1, %v1571
        %v1573 = vrot.slane %v1531, %v1572
        %v1574 = vlaneseq
        %v1575 = vshrl.u32 %v1574, 7
        %v1576 = vsub.s32 2, %v1575
        %v1577 = vrot.slane %v1531, %v1576
        %v1578 = vlaneseq
        %v1579 = vshrl.u32 %v1578, 7
        %v1580 = vsub.s32 3, %v1579
        %v1581 = vrot.slane %v1531, %v1580
        %v1582 = vlaneseq
        %v1583 = vshrl.u32 %v1582, 7
        %v1584 = vsub.s32 4, %v1583
        %v1585 = vrot.slane %v1531, %v1584
        %v1586 = vlaneseq
        %v1587 = vshrl.u32 %v1586, 7
        %v1588 = vsub.s32 5, %v1587
        %v1589 = vrot.slane %v1531, %v1588
        %v1590 = vlaneseq
        %v1591 = vshrl.u32 %v1590, 7
        %v1592 = vsub.s32 6, %v1591
        %v1593 = vrot.slane %v1531, %v1592
        %v1594 = vlaneseq
        %v1595 = vshrl.u32 %v1594, 7
        %v1596 = vsub.s32 7, %v1595
        %v1597 = vrot.slane %v1531, %v1596
        %v1646 = vunpack.c.l.b16 %v1498
        %v1647 = vunpack.c.h.b16 %v1498
        %v1648 = vunpack.c.l.b16 %v1499
        %v1649 = vunpack.c.h.b16 %v1499
        %v1650 = vunpack.c.l.b16 %v1500
        %v1651 = vunpack.c.h.b16 %v1500
        %v1652 = vunpack.c.l.b16 %v1501
        %v1653 = vunpack.c.h.b16 %v1501
        %v1654 = vunpack.c.l.b16 %v1502
        %v1655 = vunpack.c.h.b16 %v1502
        %v1656 = vunpack.c.l.b16 %v1503
        %v1657 = vunpack.c.h.b16 %v1503
        %v1658 = vunpack.c.l.b16 %v1504
        %v1659 = vunpack.c.h.b16 %v1504
        %v1660 = vunpack.c.l.b16 %v1505
        %v1661 = vunpack.c.h.b16 %v1505
        %v1662 = vunpack.c.l.b16 %v1506
        %v1663 = vunpack.c.h.b16 %v1506
        %v1664 = vunpack.c.l.b16 %v1507
        %v1665 = vunpack.c.h.b16 %v1507
        %v1666 = vunpack.c.l.b16 %v1508
        %v1667 = vunpack.c.h.b16 %v1508
        %v1668 = vunpack.c.l.b16 %v1509
        %v1669 = vunpack.c.h.b16 %v1509
        %v1670 = vunpack.c.l.b16 %v1510
        %v1671 = vunpack.c.h.b16 %v1510
        %v1672 = vunpack.c.l.b16 %v1511
        %v1673 = vunpack.c.h.b16 %v1511
        %v1674 = vunpack.c.l.b16 %v1512
        %v1675 = vunpack.c.h.b16 %v1512
        %v1676 = vunpack.c.l.b16 %v1513
        %v1677 = vunpack.c.h.b16 %v1513
        %v1678 = vunpack.c.l.b16 %v1514
        %v1679 = vunpack.c.h.b16 %v1514
        %v1680 = vunpack.c.l.b16 %v1515
        %v1681 = vunpack.c.h.b16 %v1515
        %v1682 = vunpack.c.l.b16 %v1516
        %v1683 = vunpack.c.h.b16 %v1516
        %v1684 = vunpack.c.l.b16 %v1517
        %v1685 = vunpack.c.h.b16 %v1517
        %v1686 = vunpack.c.l.b16 %v1518
        %v1687 = vunpack.c.h.b16 %v1518
        %v1688 = vunpack.c.l.b16 %v1519
        %v1689 = vunpack.c.h.b16 %v1519
        %v1690 = vunpack.c.l.b16 %v1520
        %v1691 = vunpack.c.h.b16 %v1520
        %v1692 = vunpack.c.l.b16 %v1521
        %v1693 = vunpack.c.h.b16 %v1521
        %v1694 = vunpack.c.l.b16 %v1522
        %v1695 = vunpack.c.h.b16 %v1522
        %v1696 = vunpack.c.l.b16 %v1523
        %v1697 = vunpack.c.h.b16 %v1523
        %v1698 = vunpack.c.l.b16 %v1524
        %v1699 = vunpack.c.h.b16 %v1524
        %v1700 = vunpack.c.l.b16 %v1525
        %v1701 = vunpack.c.h.b16 %v1525
        %v1702 = vunpack.c.l.b16 %v1526
        %v1703 = vunpack.c.h.b16 %v1526
        %v1704 = vunpack.c.l.b16 %v1527
        %v1705 = vunpack.c.h.b16 %v1527
        %v1706 = vunpack.c.l.b16 %v1528
        %v1707 = vunpack.c.h.b16 %v1528
        %v1708 = vunpack.c.l.b16 %v1529
        %v1709 = vunpack.c.h.b16 %v1529
        %v1710 = vpack.c.b16 %v1662, %v1646
        %v1711 = vpack.c.b16 %v1663, %v1647
        %v1712 = vpack.c.b16 %v1664, %v1648
        %v1713 = vpack.c.b16 %v1665, %v1649
        %v1714 = vpack.c.b16 %v1666, %v1650
        %v1715 = vpack.c.b16 %v1667, %v1651
        %v1716 = vpack.c.b16 %v1668, %v1652
        %v1717 = vpack.c.b16 %v1669, %v1653
        %v1718 = vpack.c.b16 %v1670, %v1654
        %v1719 = vpack.c.b16 %v1671, %v1655
        %v1720 = vpack.c.b16 %v1672, %v1656
        %v1721 = vpack.c.b16 %v1673, %v1657
        %v1722 = vpack.c.b16 %v1674, %v1658
        %v1723 = vpack.c.b16 %v1675, %v1659
        %v1724 = vpack.c.b16 %v1676, %v1660
        %v1725 = vpack.c.b16 %v1677, %v1661
        %v1726 = vpack.c.b16 %v1694, %v1678
        %v1727 = vpack.c.b16 %v1695, %v1679
        %v1728 = vpack.c.b16 %v1696, %v1680
        %v1729 = vpack.c.b16 %v1697, %v1681
        %v1730 = vpack.c.b16 %v1698, %v1682
        %v1731 = vpack.c.b16 %v1699, %v1683
        %v1732 = vpack.c.b16 %v1700, %v1684
        %v1733 = vpack.c.b16 %v1701, %v1685
        %v1734 = vpack.c.b16 %v1702, %v1686
        %v1735 = vpack.c.b16 %v1703, %v1687
        %v1736 = vpack.c.b16 %v1704, %v1688
        %v1737 = vpack.c.b16 %v1705, %v1689
        %v1738 = vpack.c.b16 %v1706, %v1690
        %v1739 = vpack.c.b16 %v1707, %v1691
        %v1740 = vpack.c.b16 %v1708, %v1692
        %v1741 = vpack.c.b16 %v1709, %v1693
        %v1775 = vsel %vm882, %v1497, 0
        %1777 = vmatprep.subr.bf16.mxu0 0
        %1778 = vmatpush1.bf16.msra.mxu0 0
        %1779 = vmatprep.subr.bf16.mxu0 0
        %1780 = vmatpush1.bf16.msra.mxu0 0
        %1781 = vmatprep.subr.bf16.mxu0 0
        %1782 = vmatpush1.bf16.msra.mxu0 0
        %1783 = vmatprep.subr.bf16.mxu0 0
        %1784 = vmatpush1.bf16.msra.mxu0 0
        %1785 = vmatprep.subr.bf16.mxu0 0
        %1786 = vmatpush1.bf16.msra.mxu0 0
        %1787 = vmatprep.subr.bf16.mxu0 0
        %1788 = vmatpush1.bf16.msra.mxu0 0
        %1789 = vmatprep.subr.bf16.mxu0 %v1727
        %1790 = vmatpush1.bf16.msra.mxu0 %v1726
        %1791 = vmatprep.subr.bf16.mxu0 %v1711
        %1792 = vmatpush1.bf16.msra.mxu0 %v1710
        %1793 = vmatprep.subr.bf16.mxu0 0
        %1794 = vmatpush2.bf16.msra.mxu0 0
        %1795 = vmatprep.subr.bf16.mxu0 0
        %1796 = vmatpush2.bf16.msra.mxu0 0
        %1797 = vmatprep.subr.bf16.mxu0 0
        %1798 = vmatpush2.bf16.msra.mxu0 0
        %1799 = vmatprep.subr.bf16.mxu0 0
        %1800 = vmatpush2.bf16.msra.mxu0 0
        %1801 = vmatprep.subr.bf16.mxu0 0
        %1802 = vmatpush2.bf16.msra.mxu0 0
        %1803 = vmatprep.subr.bf16.mxu0 0
        %1804 = vmatpush2.bf16.msra.mxu0 0
        %1805 = vmatprep.subr.bf16.mxu0 0
        %1806 = vmatpush2.bf16.msra.mxu0 0
        %1807 = vmatprep.subr.bf16.mxu0 0
        %1808 = vmatpush2.bf16.msra.mxu0 0
        %1809 = vmatprep.mubr.bf16.mxu0 0
        %1810 = vmatmul.mubr.bf16.gmra.mxu0 %v1775
        %v1811 = vpop.f32.mrf.mxu0
        %v1812 = vadd.f32 %v1537, %v1811
        %v1813 = vpop.f32.mrf.mxu0
        %v1814 = vadd.f32 %v1541, %v1813
        %v1815 = vpop.f32.mrf.mxu0
        %v1816 = vpop.f32.mrf.mxu0
        %1817 = vdwg.mxu0
        %1818 = vmatprep.subr.bf16.mxu0 0
        %1819 = vmatpush1.bf16.msra.mxu0 0
        %1820 = vmatprep.subr.bf16.mxu0 0
        %1821 = vmatpush1.bf16.msra.mxu0 0
        %1822 = vmatprep.subr.bf16.mxu0 0
        %1823 = vmatpush1.bf16.msra.mxu0 0
        %1824 = vmatprep.subr.bf16.mxu0 0
        %1825 = vmatpush1.bf16.msra.mxu0 0
        %1826 = vmatprep.subr.bf16.mxu0 0
        %1827 = vmatpush1.bf16.msra.mxu0 0
        %1828 = vmatprep.subr.bf16.mxu0 0
        %1829 = vmatpush1.bf16.msra.mxu0 0
        %1830 = vmatprep.subr.bf16.mxu0 %v1729
        %1831 = vmatpush1.bf16.msra.mxu0 %v1728
        %1832 = vmatprep.subr.bf16.mxu0 %v1713
        %1833 = vmatpush1.bf16.msra.mxu0 %v1712
        %1834 = vmatprep.subr.bf16.mxu0 0
        %1835 = vmatpush2.bf16.msra.mxu0 0
        %1836 = vmatprep.subr.bf16.mxu0 0
        %1837 = vmatpush2.bf16.msra.mxu0 0
        %1838 = vmatprep.subr.bf16.mxu0 0
        %1839 = vmatpush2.bf16.msra.mxu0 0
        %1840 = vmatprep.subr.bf16.mxu0 0
        %1841 = vmatpush2.bf16.msra.mxu0 0
        %1842 = vmatprep.subr.bf16.mxu0 0
        %1843 = vmatpush2.bf16.msra.mxu0 0
        %1844 = vmatprep.subr.bf16.mxu0 0
        %1845 = vmatpush2.bf16.msra.mxu0 0
        %1846 = vmatprep.subr.bf16.mxu0 0
        %1847 = vmatpush2.bf16.msra.mxu0 0
        %1848 = vmatprep.subr.bf16.mxu0 0
        %1849 = vmatpush2.bf16.msra.mxu0 0
        %1850 = vmatprep.mubr.bf16.mxu0 0
        %1851 = vmatmul.mubr.bf16.gmra.mxu0 %v1775
        %v1852 = vpop.f32.mrf.mxu0
        %v1853 = vadd.f32 %v1545, %v1852
        %v1854 = vpop.f32.mrf.mxu0
        %v1855 = vadd.f32 %v1549, %v1854
        %v1856 = vpop.f32.mrf.mxu0
        %v1857 = vpop.f32.mrf.mxu0
        %1858 = vdwg.mxu0
        %1859 = vmatprep.subr.bf16.mxu0 0
        %1860 = vmatpush1.bf16.msra.mxu0 0
        %1861 = vmatprep.subr.bf16.mxu0 0
        %1862 = vmatpush1.bf16.msra.mxu0 0
        %1863 = vmatprep.subr.bf16.mxu0 0
        %1864 = vmatpush1.bf16.msra.mxu0 0
        %1865 = vmatprep.subr.bf16.mxu0 0
        %1866 = vmatpush1.bf16.msra.mxu0 0
        %1867 = vmatprep.subr.bf16.mxu0 0
        %1868 = vmatpush1.bf16.msra.mxu0 0
        %1869 = vmatprep.subr.bf16.mxu0 0
        %1870 = vmatpush1.bf16.msra.mxu0 0
        %1871 = vmatprep.subr.bf16.mxu0 %v1731
        %1872 = vmatpush1.bf16.msra.mxu0 %v1730
        %1873 = vmatprep.subr.bf16.mxu0 %v1715
        %1874 = vmatpush1.bf16.msra.mxu0 %v1714
        %1875 = vmatprep.subr.bf16.mxu0 0
        %1876 = vmatpush2.bf16.msra.mxu0 0
        %1877 = vmatprep.subr.bf16.mxu0 0
        %1878 = vmatpush2.bf16.msra.mxu0 0
        %1879 = vmatprep.subr.bf16.mxu0 0
        %1880 = vmatpush2.bf16.msra.mxu0 0
        %1881 = vmatprep.subr.bf16.mxu0 0
        %1882 = vmatpush2.bf16.msra.mxu0 0
        %1883 = vmatprep.subr.bf16.mxu0 0
        %1884 = vmatpush2.bf16.msra.mxu0 0
        %1885 = vmatprep.subr.bf16.mxu0 0
        %1886 = vmatpush2.bf16.msra.mxu0 0
        %1887 = vmatprep.subr.bf16.mxu0 0
        %1888 = vmatpush2.bf16.msra.mxu0 0
        %1889 = vmatprep.subr.bf16.mxu0 0
        %1890 = vmatpush2.bf16.msra.mxu0 0
        %1891 = vmatprep.mubr.bf16.mxu0 0
        %1892 = vmatmul.mubr.bf16.gmra.mxu0 %v1775
        %v1893 = vpop.f32.mrf.mxu0
        %v1894 = vadd.f32 %v1553, %v1893
        %v1895 = vpop.f32.mrf.mxu0
        %v1896 = vadd.f32 %v1557, %v1895
        %v1897 = vpop.f32.mrf.mxu0
        %v1898 = vpop.f32.mrf.mxu0
        %1899 = vdwg.mxu0
        %1900 = vmatprep.subr.bf16.mxu0 0
        %1901 = vmatpush1.bf16.msra.mxu0 0
        %1902 = vmatprep.subr.bf16.mxu0 0
        %1903 = vmatpush1.bf16.msra.mxu0 0
        %1904 = vmatprep.subr.bf16.mxu0 0
        %1905 = vmatpush1.bf16.msra.mxu0 0
        %1906 = vmatprep.subr.bf16.mxu0 0
        %1907 = vmatpush1.bf16.msra.mxu0 0
        %1908 = vmatprep.subr.bf16.mxu0 0
        %1909 = vmatpush1.bf16.msra.mxu0 0
        %1910 = vmatprep.subr.bf16.mxu0 0
        %1911 = vmatpush1.bf16.msra.mxu0 0
        %1912 = vmatprep.subr.bf16.mxu0 %v1733
        %1913 = vmatpush1.bf16.msra.mxu0 %v1732
        %1914 = vmatprep.subr.bf16.mxu0 %v1717
        %1915 = vmatpush1.bf16.msra.mxu0 %v1716
        %1916 = vmatprep.subr.bf16.mxu0 0
        %1917 = vmatpush2.bf16.msra.mxu0 0
        %1918 = vmatprep.subr.bf16.mxu0 0
        %1919 = vmatpush2.bf16.msra.mxu0 0
        %1920 = vmatprep.subr.bf16.mxu0 0
        %1921 = vmatpush2.bf16.msra.mxu0 0
        %1922 = vmatprep.subr.bf16.mxu0 0
        %1923 = vmatpush2.bf16.msra.mxu0 0
        %1924 = vmatprep.subr.bf16.mxu0 0
        %1925 = vmatpush2.bf16.msra.mxu0 0
        %1926 = vmatprep.subr.bf16.mxu0 0
        %1927 = vmatpush2.bf16.msra.mxu0 0
        %1928 = vmatprep.subr.bf16.mxu0 0
        %1929 = vmatpush2.bf16.msra.mxu0 0
        %1930 = vmatprep.subr.bf16.mxu0 0
        %1931 = vmatpush2.bf16.msra.mxu0 0
        %1932 = vmatprep.mubr.bf16.mxu0 0
        %1933 = vmatmul.mubr.bf16.gmra.mxu0 %v1775
        %v1934 = vpop.f32.mrf.mxu0
        %v1935 = vadd.f32 %v1561, %v1934
        %v1936 = vpop.f32.mrf.mxu0
        %v1937 = vadd.f32 %v1565, %v1936
        %v1938 = vpop.f32.mrf.mxu0
        %v1939 = vpop.f32.mrf.mxu0
        %1940 = vdwg.mxu0
        %1941 = vmatprep.subr.bf16.mxu0 0
        %1942 = vmatpush1.bf16.msra.mxu0 0
        %1943 = vmatprep.subr.bf16.mxu0 0
        %1944 = vmatpush1.bf16.msra.mxu0 0
        %1945 = vmatprep.subr.bf16.mxu0 0
        %1946 = vmatpush1.bf16.msra.mxu0 0
        %1947 = vmatprep.subr.bf16.mxu0 0
        %1948 = vmatpush1.bf16.msra.mxu0 0
        %1949 = vmatprep.subr.bf16.mxu0 0
        %1950 = vmatpush1.bf16.msra.mxu0 0
        %1951 = vmatprep.subr.bf16.mxu0 0
        %1952 = vmatpush1.bf16.msra.mxu0 0
        %1953 = vmatprep.subr.bf16.mxu0 %v1735
        %1954 = vmatpush1.bf16.msra.mxu0 %v1734
        %1955 = vmatprep.subr.bf16.mxu0 %v1719
        %1956 = vmatpush1.bf16.msra.mxu0 %v1718
        %1957 = vmatprep.subr.bf16.mxu0 0
        %1958 = vmatpush2.bf16.msra.mxu0 0
        %1959 = vmatprep.subr.bf16.mxu0 0
        %1960 = vmatpush2.bf16.msra.mxu0 0
        %1961 = vmatprep.subr.bf16.mxu0 0
        %1962 = vmatpush2.bf16.msra.mxu0 0
        %1963 = vmatprep.subr.bf16.mxu0 0
        %1964 = vmatpush2.bf16.msra.mxu0 0
        %1965 = vmatprep.subr.bf16.mxu0 0
        %1966 = vmatpush2.bf16.msra.mxu0 0
        %1967 = vmatprep.subr.bf16.mxu0 0
        %1968 = vmatpush2.bf16.msra.mxu0 0
        %1969 = vmatprep.subr.bf16.mxu0 0
        %1970 = vmatpush2.bf16.msra.mxu0 0
        %1971 = vmatprep.subr.bf16.mxu0 0
        %1972 = vmatpush2.bf16.msra.mxu0 0
        %1973 = vmatprep.mubr.bf16.mxu0 0
        %1974 = vmatmul.mubr.bf16.gmra.mxu0 %v1775
        %v1975 = vpop.f32.mrf.mxu0
        %v1976 = vadd.f32 %v1569, %v1975
        %v1977 = vpop.f32.mrf.mxu0
        %v1978 = vadd.f32 %v1573, %v1977
        %v1979 = vpop.f32.mrf.mxu0
        %v1980 = vpop.f32.mrf.mxu0
        %1981 = vdwg.mxu0
        %1982 = vmatprep.subr.bf16.mxu0 0
        %1983 = vmatpush1.bf16.msra.mxu0 0
        %1984 = vmatprep.subr.bf16.mxu0 0
        %1985 = vmatpush1.bf16.msra.mxu0 0
        %1986 = vmatprep.subr.bf16.mxu0 0
        %1987 = vmatpush1.bf16.msra.mxu0 0
        %1988 = vmatprep.subr.bf16.mxu0 0
        %1989 = vmatpush1.bf16.msra.mxu0 0
        %1990 = vmatprep.subr.bf16.mxu0 0
        %1991 = vmatpush1.bf16.msra.mxu0 0
        %1992 = vmatprep.subr.bf16.mxu0 0
        %1993 = vmatpush1.bf16.msra.mxu0 0
        %1994 = vmatprep.subr.bf16.mxu0 %v1737
        %1995 = vmatpush1.bf16.msra.mxu0 %v1736
        %1996 = vmatprep.subr.bf16.mxu0 %v1721
        %1997 = vmatpush1.bf16.msra.mxu0 %v1720
        %1998 = vmatprep.subr.bf16.mxu0 0
        %1999 = vmatpush2.bf16.msra.mxu0 0
        %2000 = vmatprep.subr.bf16.mxu0 0
        %2001 = vmatpush2.bf16.msra.mxu0 0
        %2002 = vmatprep.subr.bf16.mxu0 0
        %2003 = vmatpush2.bf16.msra.mxu0 0
        %2004 = vmatprep.subr.bf16.mxu0 0
        %2005 = vmatpush2.bf16.msra.mxu0 0
        %2006 = vmatprep.subr.bf16.mxu0 0
        %2007 = vmatpush2.bf16.msra.mxu0 0
        %2008 = vmatprep.subr.bf16.mxu0 0
        %2009 = vmatpush2.bf16.msra.mxu0 0
        %2010 = vmatprep.subr.bf16.mxu0 0
        %2011 = vmatpush2.bf16.msra.mxu0 0
        %2012 = vmatprep.subr.bf16.mxu0 0
        %2013 = vmatpush2.bf16.msra.mxu0 0
        %2014 = vmatprep.mubr.bf16.mxu0 0
        %2015 = vmatmul.mubr.bf16.gmra.mxu0 %v1775
        %v2016 = vpop.f32.mrf.mxu0
        %v2017 = vadd.f32 %v1577, %v2016
        %v2018 = vpop.f32.mrf.mxu0
        %v2019 = vadd.f32 %v1581, %v2018
        %v2020 = vpop.f32.mrf.mxu0
        %v2021 = vpop.f32.mrf.mxu0
        %2022 = vdwg.mxu0
        %2023 = vmatprep.subr.bf16.mxu0 0
        %2024 = vmatpush1.bf16.msra.mxu0 0
        %2025 = vmatprep.subr.bf16.mxu0 0
        %2026 = vmatpush1.bf16.msra.mxu0 0
        %2027 = vmatprep.subr.bf16.mxu0 0
        %2028 = vmatpush1.bf16.msra.mxu0 0
        %2029 = vmatprep.subr.bf16.mxu0 0
        %2030 = vmatpush1.bf16.msra.mxu0 0
        %2031 = vmatprep.subr.bf16.mxu0 0
        %2032 = vmatpush1.bf16.msra.mxu0 0
        %2033 = vmatprep.subr.bf16.mxu0 0
        %2034 = vmatpush1.bf16.msra.mxu0 0
        %2035 = vmatprep.subr.bf16.mxu0 %v1739
        %2036 = vmatpush1.bf16.msra.mxu0 %v1738
        %2037 = vmatprep.subr.bf16.mxu0 %v1723
        %2038 = vmatpush1.bf16.msra.mxu0 %v1722
        %2039 = vmatprep.subr.bf16.mxu0 0
        %2040 = vmatpush2.bf16.msra.mxu0 0
        %2041 = vmatprep.subr.bf16.mxu0 0
        %2042 = vmatpush2.bf16.msra.mxu0 0
        %2043 = vmatprep.subr.bf16.mxu0 0
        %2044 = vmatpush2.bf16.msra.mxu0 0
        %2045 = vmatprep.subr.bf16.mxu0 0
        %2046 = vmatpush2.bf16.msra.mxu0 0
        %2047 = vmatprep.subr.bf16.mxu0 0
        %2048 = vmatpush2.bf16.msra.mxu0 0
        %2049 = vmatprep.subr.bf16.mxu0 0
        %2050 = vmatpush2.bf16.msra.mxu0 0
        %2051 = vmatprep.subr.bf16.mxu0 0
        %2052 = vmatpush2.bf16.msra.mxu0 0
        %2053 = vmatprep.subr.bf16.mxu0 0
        %2054 = vmatpush2.bf16.msra.mxu0 0
        %2055 = vmatprep.mubr.bf16.mxu0 0
        %2056 = vmatmul.mubr.bf16.gmra.mxu0 %v1775
        %v2057 = vpop.f32.mrf.mxu0
        %v2058 = vadd.f32 %v1585, %v2057
        %v2059 = vpop.f32.mrf.mxu0
        %v2060 = vadd.f32 %v1589, %v2059
        %v2061 = vpop.f32.mrf.mxu0
        %v2062 = vpop.f32.mrf.mxu0
        %2063 = vdwg.mxu0
        %2064 = vmatprep.subr.bf16.mxu0 0
        %2065 = vmatpush1.bf16.msra.mxu0 0
        %2066 = vmatprep.subr.bf16.mxu0 0
        %2067 = vmatpush1.bf16.msra.mxu0 0
        %2068 = vmatprep.subr.bf16.mxu0 0
        %2069 = vmatpush1.bf16.msra.mxu0 0
        %2070 = vmatprep.subr.bf16.mxu0 0
        %2071 = vmatpush1.bf16.msra.mxu0 0
        %2072 = vmatprep.subr.bf16.mxu0 0
        %2073 = vmatpush1.bf16.msra.mxu0 0
        %2074 = vmatprep.subr.bf16.mxu0 0
        %2075 = vmatpush1.bf16.msra.mxu0 0
        %2076 = vmatprep.subr.bf16.mxu0 %v1741
        %2077 = vmatpush1.bf16.msra.mxu0 %v1740
        %2078 = vmatprep.subr.bf16.mxu0 %v1725
        %2079 = vmatpush1.bf16.msra.mxu0 %v1724
        %2080 = vmatprep.subr.bf16.mxu0 0
        %2081 = vmatpush2.bf16.msra.mxu0 0
        %2082 = vmatprep.subr.bf16.mxu0 0
        %2083 = vmatpush2.bf16.msra.mxu0 0
        %2084 = vmatprep.subr.bf16.mxu0 0
        %2085 = vmatpush2.bf16.msra.mxu0 0
        %2086 = vmatprep.subr.bf16.mxu0 0
        %2087 = vmatpush2.bf16.msra.mxu0 0
        %2088 = vmatprep.subr.bf16.mxu0 0
        %2089 = vmatpush2.bf16.msra.mxu0 0
        %2090 = vmatprep.subr.bf16.mxu0 0
        %2091 = vmatpush2.bf16.msra.mxu0 0
        %2092 = vmatprep.subr.bf16.mxu0 0
        %2093 = vmatpush2.bf16.msra.mxu0 0
        %2094 = vmatprep.subr.bf16.mxu0 0
        %2095 = vmatpush2.bf16.msra.mxu0 0
        %2096 = vmatprep.mubr.bf16.mxu0 0
        %2097 = vmatmul.mubr.bf16.gmra.mxu0 %v1775
        %v2098 = vpop.f32.mrf.mxu0
        %v2099 = vadd.f32 %v1593, %v2098
        %v2100 = vpop.f32.mrf.mxu0
        %v2101 = vadd.f32 %v1597, %v2100
        %v2102 = vpop.f32.mrf.mxu0
        %v2103 = vpop.f32.mrf.mxu0
        %2104 = vdwg.mxu0
        %v2105 = vmax.f32 %v1812, 0.0
        %v2106 = vmax.f32 %v1814, 0.0
        %v2107 = vmax.f32 %v1853, 0.0
        %v2108 = vmax.f32 %v1855, 0.0
        %v2109 = vmax.f32 %v1894, 0.0
        %v2110 = vmax.f32 %v1896, 0.0
        %v2111 = vmax.f32 %v1935, 0.0
        %v2112 = vmax.f32 %v1937, 0.0
        %v2113 = vmax.f32 %v1976, 0.0
        %v2114 = vmax.f32 %v1978, 0.0
        %v2115 = vmax.f32 %v2017, 0.0
        %v2116 = vmax.f32 %v2019, 0.0
        %v2117 = vmax.f32 %v2058, 0.0
        %v2118 = vmax.f32 %v2060, 0.0
        %v2119 = vmax.f32 %v2099, 0.0
        %v2120 = vmax.f32 %v2101, 0.0
        %v2121 = vpack.c.bf16 %v2105, %v2105
        %v2122 = vpack.c.bf16 %v2106, %v2106
        %v2123 = vpack.c.bf16 %v2107, %v2107
        %v2124 = vpack.c.bf16 %v2108, %v2108
        %v2125 = vpack.c.bf16 %v2109, %v2109
        %v2126 = vpack.c.bf16 %v2110, %v2110
        %v2127 = vpack.c.bf16 %v2111, %v2111
        %v2128 = vpack.c.bf16 %v2112, %v2112
        %v2129 = vpack.c.bf16 %v2113, %v2113
        %v2130 = vpack.c.bf16 %v2114, %v2114
        %v2131 = vpack.c.bf16 %v2115, %v2115
        %v2132 = vpack.c.bf16 %v2116, %v2116
        %v2133 = vpack.c.bf16 %v2117, %v2117
        %v2134 = vpack.c.bf16 %v2118, %v2118
        %v2135 = vpack.c.bf16 %v2119, %v2119
        %v2136 = vpack.c.bf16 %v2120, %v2120
        %v2137 = vld [vmem:[%s10] sm:$0xf]
        %v2138 = vld [vmem:[%s10 + $0x4] sm:$0xf]
        %v2139 = vld [vmem:[%s10 + $0x8] sm:$0xf]
        %v2140 = vld [vmem:[%s10 + $0xc] sm:$0xf]
        %v2141 = vld [vmem:[%s10 + $0x10] sm:$0xf]
        %v2142 = vld [vmem:[%s10 + $0x14] sm:$0xf]
        %v2143 = vld [vmem:[%s10 + $0x18] sm:$0xf]
        %v2144 = vld [vmem:[%s10 + $0x1c] sm:$0xf]
        %v2145 = vld [vmem:[%s10 + $0x20] sm:$0xf]
        %v2146 = vld [vmem:[%s10 + $0x24] sm:$0xf]
        %v2147 = vld [vmem:[%s10 + $0x28] sm:$0xf]
        %v2148 = vld [vmem:[%s10 + $0x2c] sm:$0xf]
        %v2149 = vld [vmem:[%s10 + $0x30] sm:$0xf]
        %v2150 = vld [vmem:[%s10 + $0x34] sm:$0xf]
        %v2151 = vld [vmem:[%s10 + $0x38] sm:$0xf]
        %v2152 = vld [vmem:[%s10 + $0x3c] sm:$0xf]
        %v2153 = vld [vmem:[%s10 + $0x40] sm:$0xf]
        %v2154 = vld [vmem:[%s10 + $0x44] sm:$0xf]
        %v2155 = vld [vmem:[%s10 + $0x48] sm:$0xf]
        %v2156 = vld [vmem:[%s10 + $0x4c] sm:$0xf]
        %v2157 = vld [vmem:[%s10 + $0x50] sm:$0xf]
        %v2158 = vld [vmem:[%s10 + $0x54] sm:$0xf]
        %v2159 = vld [vmem:[%s10 + $0x58] sm:$0xf]
        %v2160 = vld [vmem:[%s10 + $0x5c] sm:$0xf]
        %v2161 = vld [vmem:[%s10 + $0x60] sm:$0xf]
        %v2162 = vld [vmem:[%s10 + $0x64] sm:$0xf]
        %v2163 = vld [vmem:[%s10 + $0x68] sm:$0xf]
        %v2164 = vld [vmem:[%s10 + $0x6c] sm:$0xf]
        %v2165 = vld [vmem:[%s10 + $0x70] sm:$0xf]
        %v2166 = vld [vmem:[%s10 + $0x74] sm:$0xf]
        %v2167 = vld [vmem:[%s10 + $0x78] sm:$0xf]
        %v2168 = vld [vmem:[%s10 + $0x7c] sm:$0xf]
        %v2169 = vld [vmem:[%s10 + $0x80] sm:$0xf]
        %v2170 = vld [vmem:[%s10 + $0x84] sm:$0xf]
        %v2171 = vld [vmem:[%s10 + $0x88] sm:$0xf]
        %v2172 = vld [vmem:[%s10 + $0x8c] sm:$0xf]
        %v2173 = vld [vmem:[%s10 + $0x90] sm:$0xf]
        %v2174 = vld [vmem:[%s10 + $0x94] sm:$0xf]
        %v2175 = vld [vmem:[%s10 + $0x98] sm:$0xf]
        %v2176 = vld [vmem:[%s10 + $0x9c] sm:$0xf]
        %v2177 = vld [vmem:[%s10 + $0xa0] sm:$0xf]
        %v2178 = vld [vmem:[%s10 + $0xa4] sm:$0xf]
        %v2179 = vld [vmem:[%s10 + $0xa8] sm:$0xf]
        %v2180 = vld [vmem:[%s10 + $0xac] sm:$0xf]
        %v2181 = vld [vmem:[%s10 + $0xb0] sm:$0xf]
        %v2182 = vld [vmem:[%s10 + $0xb4] sm:$0xf]
        %v2183 = vld [vmem:[%s10 + $0xb8] sm:$0xf]
        %v2184 = vld [vmem:[%s10 + $0xbc] sm:$0xf]
        %v2185 = vld [vmem:[%s10 + $0xc0] sm:$0xf]
        %v2186 = vld [vmem:[%s10 + $0xc4] sm:$0xf]
        %v2187 = vld [vmem:[%s10 + $0xc8] sm:$0xf]
        %v2188 = vld [vmem:[%s10 + $0xcc] sm:$0xf]
        %v2189 = vld [vmem:[%s10 + $0xd0] sm:$0xf]
        %v2190 = vld [vmem:[%s10 + $0xd4] sm:$0xf]
        %v2191 = vld [vmem:[%s10 + $0xd8] sm:$0xf]
        %v2192 = vld [vmem:[%s10 + $0xdc] sm:$0xf]
        %v2193 = vld [vmem:[%s10 + $0xe0] sm:$0xf]
        %v2194 = vld [vmem:[%s10 + $0xe4] sm:$0xf]
        %v2195 = vld [vmem:[%s10 + $0xe8] sm:$0xf]
        %v2196 = vld [vmem:[%s10 + $0xec] sm:$0xf]
        %v2197 = vld [vmem:[%s10 + $0xf0] sm:$0xf]
        %v2198 = vld [vmem:[%s10 + $0xf4] sm:$0xf]
        %v2199 = vld [vmem:[%s10 + $0xf8] sm:$0xf]
        %v2200 = vld [vmem:[%s10 + $0xfc] sm:$0xf]
        %v2201 = vld [vmem:[%s10 + $0x100] sm:$0xf]
        %v2202 = vld [vmem:[%s10 + $0x104] sm:$0xf]
        %v2203 = vld [vmem:[%s10 + $0x108] sm:$0xf]
        %v2204 = vld [vmem:[%s10 + $0x10c] sm:$0xf]
        %v2205 = vld [vmem:[%s10 + $0x110] sm:$0xf]
        %v2206 = vld [vmem:[%s10 + $0x114] sm:$0xf]
        %v2207 = vld [vmem:[%s10 + $0x118] sm:$0xf]
        %v2208 = vld [vmem:[%s10 + $0x11c] sm:$0xf]
        %v2209 = vld [vmem:[%s10 + $0x120] sm:$0xf]
        %v2210 = vld [vmem:[%s10 + $0x124] sm:$0xf]
        %v2211 = vld [vmem:[%s10 + $0x128] sm:$0xf]
        %v2212 = vld [vmem:[%s10 + $0x12c] sm:$0xf]
        %v2213 = vld [vmem:[%s10 + $0x130] sm:$0xf]
        %v2214 = vld [vmem:[%s10 + $0x134] sm:$0xf]
        %v2215 = vld [vmem:[%s10 + $0x138] sm:$0xf]
        %v2216 = vld [vmem:[%s10 + $0x13c] sm:$0xf]
        %v2217 = vld [vmem:[%s10 + $0x140] sm:$0xf]
        %v2218 = vld [vmem:[%s10 + $0x144] sm:$0xf]
        %v2219 = vld [vmem:[%s10 + $0x148] sm:$0xf]
        %v2220 = vld [vmem:[%s10 + $0x14c] sm:$0xf]
        %v2221 = vld [vmem:[%s10 + $0x150] sm:$0xf]
        %v2222 = vld [vmem:[%s10 + $0x154] sm:$0xf]
        %v2223 = vld [vmem:[%s10 + $0x158] sm:$0xf]
        %v2224 = vld [vmem:[%s10 + $0x15c] sm:$0xf]
        %v2225 = vld [vmem:[%s10 + $0x160] sm:$0xf]
        %v2226 = vld [vmem:[%s10 + $0x164] sm:$0xf]
        %v2227 = vld [vmem:[%s10 + $0x168] sm:$0xf]
        %v2228 = vld [vmem:[%s10 + $0x16c] sm:$0xf]
        %v2229 = vld [vmem:[%s10 + $0x170] sm:$0xf]
        %v2230 = vld [vmem:[%s10 + $0x174] sm:$0xf]
        %v2231 = vld [vmem:[%s10 + $0x178] sm:$0xf]
        %v2232 = vld [vmem:[%s10 + $0x17c] sm:$0xf]
        %v2233 = vld [vmem:[%s10 + $0x180] sm:$0xf]
        %v2234 = vld [vmem:[%s10 + $0x184] sm:$0xf]
        %v2235 = vld [vmem:[%s10 + $0x188] sm:$0xf]
        %v2236 = vld [vmem:[%s10 + $0x18c] sm:$0xf]
        %v2237 = vld [vmem:[%s10 + $0x190] sm:$0xf]
        %v2238 = vld [vmem:[%s10 + $0x194] sm:$0xf]
        %v2239 = vld [vmem:[%s10 + $0x198] sm:$0xf]
        %v2240 = vld [vmem:[%s10 + $0x19c] sm:$0xf]
        %v2241 = vld [vmem:[%s10 + $0x1a0] sm:$0xf]
        %v2242 = vld [vmem:[%s10 + $0x1a4] sm:$0xf]
        %v2243 = vld [vmem:[%s10 + $0x1a8] sm:$0xf]
        %v2244 = vld [vmem:[%s10 + $0x1ac] sm:$0xf]
        %v2245 = vld [vmem:[%s10 + $0x1b0] sm:$0xf]
        %v2246 = vld [vmem:[%s10 + $0x1b4] sm:$0xf]
        %v2247 = vld [vmem:[%s10 + $0x1b8] sm:$0xf]
        %v2248 = vld [vmem:[%s10 + $0x1bc] sm:$0xf]
        %v2249 = vld [vmem:[%s10 + $0x1c0] sm:$0xf]
        %v2250 = vld [vmem:[%s10 + $0x1c4] sm:$0xf]
        %v2251 = vld [vmem:[%s10 + $0x1c8] sm:$0xf]
        %v2252 = vld [vmem:[%s10 + $0x1cc] sm:$0xf]
        %v2253 = vld [vmem:[%s10 + $0x1d0] sm:$0xf]
        %v2254 = vld [vmem:[%s10 + $0x1d4] sm:$0xf]
        %v2255 = vld [vmem:[%s10 + $0x1d8] sm:$0xf]
        %v2256 = vld [vmem:[%s10 + $0x1dc] sm:$0xf]
        %v2257 = vld [vmem:[%s10 + $0x1e0] sm:$0xf]
        %v2258 = vld [vmem:[%s10 + $0x1e4] sm:$0xf]
        %v2259 = vld [vmem:[%s10 + $0x1e8] sm:$0xf]
        %v2260 = vld [vmem:[%s10 + $0x1ec] sm:$0xf]
        %v2261 = vld [vmem:[%s10 + $0x1f0] sm:$0xf]
        %v2262 = vld [vmem:[%s10 + $0x1f4] sm:$0xf]
        %v2263 = vld [vmem:[%s10 + $0x1f8] sm:$0xf]
        %v2264 = vld [vmem:[%s10 + $0x1fc] sm:$0xf]
        %v2265 = vld [vmem:[%s10 + $0x200] sm:$0xf]
        %v2266 = vld [vmem:[%s10 + $0x204] sm:$0xf]
        %v2267 = vld [vmem:[%s10 + $0x208] sm:$0xf]
        %v2268 = vld [vmem:[%s10 + $0x20c] sm:$0xf]
        %v2269 = vld [vmem:[%s10 + $0x210] sm:$0xf]
        %v2270 = vld [vmem:[%s10 + $0x214] sm:$0xf]
        %v2271 = vld [vmem:[%s10 + $0x218] sm:$0xf]
        %v2272 = vld [vmem:[%s10 + $0x21c] sm:$0xf]
        %v2273 = vld [vmem:[%s10 + $0x220] sm:$0xf]
        %v2274 = vld [vmem:[%s10 + $0x224] sm:$0xf]
        %v2275 = vld [vmem:[%s10 + $0x228] sm:$0xf]
        %v2276 = vld [vmem:[%s10 + $0x22c] sm:$0xf]
        %v2277 = vld [vmem:[%s10 + $0x230] sm:$0xf]
        %v2278 = vld [vmem:[%s10 + $0x234] sm:$0xf]
        %v2279 = vld [vmem:[%s10 + $0x238] sm:$0xf]
        %v2280 = vld [vmem:[%s10 + $0x23c] sm:$0xf]
        %v2281 = vld [vmem:[%s10 + $0x240] sm:$0xf]
        %v2282 = vld [vmem:[%s10 + $0x244] sm:$0xf]
        %v2283 = vld [vmem:[%s10 + $0x248] sm:$0xf]
        %v2284 = vld [vmem:[%s10 + $0x24c] sm:$0xf]
        %v2285 = vld [vmem:[%s10 + $0x250] sm:$0xf]
        %v2286 = vld [vmem:[%s10 + $0x254] sm:$0xf]
        %v2287 = vld [vmem:[%s10 + $0x258] sm:$0xf]
        %v2288 = vld [vmem:[%s10 + $0x25c] sm:$0xf]
        %v2289 = vld [vmem:[%s10 + $0x260] sm:$0xf]
        %v2290 = vld [vmem:[%s10 + $0x264] sm:$0xf]
        %v2291 = vld [vmem:[%s10 + $0x268] sm:$0xf]
        %v2292 = vld [vmem:[%s10 + $0x26c] sm:$0xf]
        %v2293 = vld [vmem:[%s10 + $0x270] sm:$0xf]
        %v2294 = vld [vmem:[%s10 + $0x274] sm:$0xf]
        %v2295 = vld [vmem:[%s10 + $0x278] sm:$0xf]
        %v2296 = vld [vmem:[%s10 + $0x27c] sm:$0xf]
        %v2297 = vld [vmem:[%s10 + $0x280] sm:$0xf]
        %v2298 = vld [vmem:[%s10 + $0x284] sm:$0xf]
        %v2299 = vld [vmem:[%s10 + $0x288] sm:$0xf]
        %v2300 = vld [vmem:[%s10 + $0x28c] sm:$0xf]
        %v2301 = vld [vmem:[%s10 + $0x290] sm:$0xf]
        %v2302 = vld [vmem:[%s10 + $0x294] sm:$0xf]
        %v2303 = vld [vmem:[%s10 + $0x298] sm:$0xf]
        %v2304 = vld [vmem:[%s10 + $0x29c] sm:$0xf]
        %v2305 = vld [vmem:[%s10 + $0x2a0] sm:$0xf]
        %v2306 = vld [vmem:[%s10 + $0x2a4] sm:$0xf]
        %v2307 = vld [vmem:[%s10 + $0x2a8] sm:$0xf]
        %v2308 = vld [vmem:[%s10 + $0x2ac] sm:$0xf]
        %v2309 = vld [vmem:[%s10 + $0x2b0] sm:$0xf]
        %v2310 = vld [vmem:[%s10 + $0x2b4] sm:$0xf]
        %v2311 = vld [vmem:[%s10 + $0x2b8] sm:$0xf]
        %v2312 = vld [vmem:[%s10 + $0x2bc] sm:$0xf]
        %v2313 = vld [vmem:[%s10 + $0x2c0] sm:$0xf]
        %v2314 = vld [vmem:[%s10 + $0x2c4] sm:$0xf]
        %v2315 = vld [vmem:[%s10 + $0x2c8] sm:$0xf]
        %v2316 = vld [vmem:[%s10 + $0x2cc] sm:$0xf]
        %v2317 = vld [vmem:[%s10 + $0x2d0] sm:$0xf]
        %v2318 = vld [vmem:[%s10 + $0x2d4] sm:$0xf]
        %v2319 = vld [vmem:[%s10 + $0x2d8] sm:$0xf]
        %v2320 = vld [vmem:[%s10 + $0x2dc] sm:$0xf]
        %v2321 = vld [vmem:[%s10 + $0x2e0] sm:$0xf]
        %v2322 = vld [vmem:[%s10 + $0x2e4] sm:$0xf]
        %v2323 = vld [vmem:[%s10 + $0x2e8] sm:$0xf]
        %v2324 = vld [vmem:[%s10 + $0x2ec] sm:$0xf]
        %v2325 = vld [vmem:[%s10 + $0x2f0] sm:$0xf]
        %v2326 = vld [vmem:[%s10 + $0x2f4] sm:$0xf]
        %v2327 = vld [vmem:[%s10 + $0x2f8] sm:$0xf]
        %v2328 = vld [vmem:[%s10 + $0x2fc] sm:$0xf]
        %v2329 = vld [vmem:[%s10 + $0x300] sm:$0xf]
        %v2330 = vld [vmem:[%s10 + $0x304] sm:$0xf]
        %v2331 = vld [vmem:[%s10 + $0x308] sm:$0xf]
        %v2332 = vld [vmem:[%s10 + $0x30c] sm:$0xf]
        %v2333 = vld [vmem:[%s10 + $0x310] sm:$0xf]
        %v2334 = vld [vmem:[%s10 + $0x314] sm:$0xf]
        %v2335 = vld [vmem:[%s10 + $0x318] sm:$0xf]
        %v2336 = vld [vmem:[%s10 + $0x31c] sm:$0xf]
        %v2337 = vld [vmem:[%s10 + $0x320] sm:$0xf]
        %v2338 = vld [vmem:[%s10 + $0x324] sm:$0xf]
        %v2339 = vld [vmem:[%s10 + $0x328] sm:$0xf]
        %v2340 = vld [vmem:[%s10 + $0x32c] sm:$0xf]
        %v2341 = vld [vmem:[%s10 + $0x330] sm:$0xf]
        %v2342 = vld [vmem:[%s10 + $0x334] sm:$0xf]
        %v2343 = vld [vmem:[%s10 + $0x338] sm:$0xf]
        %v2344 = vld [vmem:[%s10 + $0x33c] sm:$0xf]
        %v2345 = vld [vmem:[%s10 + $0x340] sm:$0xf]
        %v2346 = vld [vmem:[%s10 + $0x344] sm:$0xf]
        %v2347 = vld [vmem:[%s10 + $0x348] sm:$0xf]
        %v2348 = vld [vmem:[%s10 + $0x34c] sm:$0xf]
        %v2349 = vld [vmem:[%s10 + $0x350] sm:$0xf]
        %v2350 = vld [vmem:[%s10 + $0x354] sm:$0xf]
        %v2351 = vld [vmem:[%s10 + $0x358] sm:$0xf]
        %v2352 = vld [vmem:[%s10 + $0x35c] sm:$0xf]
        %v2353 = vld [vmem:[%s10 + $0x360] sm:$0xf]
        %v2354 = vld [vmem:[%s10 + $0x364] sm:$0xf]
        %v2355 = vld [vmem:[%s10 + $0x368] sm:$0xf]
        %v2356 = vld [vmem:[%s10 + $0x36c] sm:$0xf]
        %v2357 = vld [vmem:[%s10 + $0x370] sm:$0xf]
        %v2358 = vld [vmem:[%s10 + $0x374] sm:$0xf]
        %v2359 = vld [vmem:[%s10 + $0x378] sm:$0xf]
        %v2360 = vld [vmem:[%s10 + $0x37c] sm:$0xf]
        %v2361 = vld [vmem:[%s10 + $0x380] sm:$0xf]
        %v2362 = vld [vmem:[%s10 + $0x384] sm:$0xf]
        %v2363 = vld [vmem:[%s10 + $0x388] sm:$0xf]
        %v2364 = vld [vmem:[%s10 + $0x38c] sm:$0xf]
        %v2365 = vld [vmem:[%s10 + $0x390] sm:$0xf]
        %v2366 = vld [vmem:[%s10 + $0x394] sm:$0xf]
        %v2367 = vld [vmem:[%s10 + $0x398] sm:$0xf]
        %v2368 = vld [vmem:[%s10 + $0x39c] sm:$0xf]
        %v2369 = vld [vmem:[%s10 + $0x3a0] sm:$0xf]
        %v2370 = vld [vmem:[%s10 + $0x3a4] sm:$0xf]
        %v2371 = vld [vmem:[%s10 + $0x3a8] sm:$0xf]
        %v2372 = vld [vmem:[%s10 + $0x3ac] sm:$0xf]
        %v2373 = vld [vmem:[%s10 + $0x3b0] sm:$0xf]
        %v2374 = vld [vmem:[%s10 + $0x3b4] sm:$0xf]
        %v2375 = vld [vmem:[%s10 + $0x3b8] sm:$0xf]
        %v2376 = vld [vmem:[%s10 + $0x3bc] sm:$0xf]
        %v2377 = vld [vmem:[%s10 + $0x3c0] sm:$0xf]
        %v2378 = vld [vmem:[%s10 + $0x3c4] sm:$0xf]
        %v2379 = vld [vmem:[%s10 + $0x3c8] sm:$0xf]
        %v2380 = vld [vmem:[%s10 + $0x3cc] sm:$0xf]
        %v2381 = vld [vmem:[%s10 + $0x3d0] sm:$0xf]
        %v2382 = vld [vmem:[%s10 + $0x3d4] sm:$0xf]
        %v2383 = vld [vmem:[%s10 + $0x3d8] sm:$0xf]
        %v2384 = vld [vmem:[%s10 + $0x3dc] sm:$0xf]
        %v2385 = vld [vmem:[%s10 + $0x3e0] sm:$0xf]
        %v2386 = vld [vmem:[%s10 + $0x3e4] sm:$0xf]
        %v2387 = vld [vmem:[%s10 + $0x3e8] sm:$0xf]
        %v2388 = vld [vmem:[%s10 + $0x3ec] sm:$0xf]
        %v2389 = vld [vmem:[%s10 + $0x3f0] sm:$0xf]
        %v2390 = vld [vmem:[%s10 + $0x3f4] sm:$0xf]
        %v2391 = vld [vmem:[%s10 + $0x3f8] sm:$0xf]
        %v2392 = vld [vmem:[%s10 + $0x3fc] sm:$0xf]
        %v2393 = vld [vmem:[%s11] sm:$0x1]
        %v2395 = vlaneseq
        %v2396 = vshrl.u32 %v2395, 7
        %v2397 = vsub.s32 0, %v2396
        %v2398 = vrot.slane %v2393, %v2397
        %v2656 = vunpack.c.l.b16 %v2137
        %v2657 = vunpack.c.l.b16 %v2138
        %v2658 = vunpack.c.l.b16 %v2139
        %v2659 = vunpack.c.l.b16 %v2140
        %v2660 = vunpack.c.l.b16 %v2141
        %v2661 = vunpack.c.l.b16 %v2142
        %v2662 = vunpack.c.l.b16 %v2143
        %v2663 = vunpack.c.l.b16 %v2144
        %v2664 = vunpack.c.l.b16 %v2145
        %v2665 = vunpack.c.l.b16 %v2146
        %v2666 = vunpack.c.l.b16 %v2147
        %v2667 = vunpack.c.l.b16 %v2148
        %v2668 = vunpack.c.l.b16 %v2149
        %v2669 = vunpack.c.l.b16 %v2150
        %v2670 = vunpack.c.l.b16 %v2151
        %v2671 = vunpack.c.l.b16 %v2152
        %v2672 = vunpack.c.l.b16 %v2153
        %v2673 = vunpack.c.l.b16 %v2154
        %v2674 = vunpack.c.l.b16 %v2155
        %v2675 = vunpack.c.l.b16 %v2156
        %v2676 = vunpack.c.l.b16 %v2157
        %v2677 = vunpack.c.l.b16 %v2158
        %v2678 = vunpack.c.l.b16 %v2159
        %v2679 = vunpack.c.l.b16 %v2160
        %v2680 = vunpack.c.l.b16 %v2161
        %v2681 = vunpack.c.l.b16 %v2162
        %v2682 = vunpack.c.l.b16 %v2163
        %v2683 = vunpack.c.l.b16 %v2164
        %v2684 = vunpack.c.l.b16 %v2165
        %v2685 = vunpack.c.l.b16 %v2166
        %v2686 = vunpack.c.l.b16 %v2167
        %v2687 = vunpack.c.l.b16 %v2168
        %v2688 = vunpack.c.l.b16 %v2169
        %v2689 = vunpack.c.l.b16 %v2170
        %v2690 = vunpack.c.l.b16 %v2171
        %v2691 = vunpack.c.l.b16 %v2172
        %v2692 = vunpack.c.l.b16 %v2173
        %v2693 = vunpack.c.l.b16 %v2174
        %v2694 = vunpack.c.l.b16 %v2175
        %v2695 = vunpack.c.l.b16 %v2176
        %v2696 = vunpack.c.l.b16 %v2177
        %v2697 = vunpack.c.l.b16 %v2178
        %v2698 = vunpack.c.l.b16 %v2179
        %v2699 = vunpack.c.l.b16 %v2180
        %v2700 = vunpack.c.l.b16 %v2181
        %v2701 = vunpack.c.l.b16 %v2182
        %v2702 = vunpack.c.l.b16 %v2183
        %v2703 = vunpack.c.l.b16 %v2184
        %v2704 = vunpack.c.l.b16 %v2185
        %v2705 = vunpack.c.l.b16 %v2186
        %v2706 = vunpack.c.l.b16 %v2187
        %v2707 = vunpack.c.l.b16 %v2188
        %v2708 = vunpack.c.l.b16 %v2189
        %v2709 = vunpack.c.l.b16 %v2190
        %v2710 = vunpack.c.l.b16 %v2191
        %v2711 = vunpack.c.l.b16 %v2192
        %v2712 = vunpack.c.l.b16 %v2193
        %v2713 = vunpack.c.l.b16 %v2194
        %v2714 = vunpack.c.l.b16 %v2195
        %v2715 = vunpack.c.l.b16 %v2196
        %v2716 = vunpack.c.l.b16 %v2197
        %v2717 = vunpack.c.l.b16 %v2198
        %v2718 = vunpack.c.l.b16 %v2199
        %v2719 = vunpack.c.l.b16 %v2200
        %v2720 = vunpack.c.l.b16 %v2201
        %v2721 = vunpack.c.l.b16 %v2202
        %v2722 = vunpack.c.l.b16 %v2203
        %v2723 = vunpack.c.l.b16 %v2204
        %v2724 = vunpack.c.l.b16 %v2205
        %v2725 = vunpack.c.l.b16 %v2206
        %v2726 = vunpack.c.l.b16 %v2207
        %v2727 = vunpack.c.l.b16 %v2208
        %v2728 = vunpack.c.l.b16 %v2209
        %v2729 = vunpack.c.l.b16 %v2210
        %v2730 = vunpack.c.l.b16 %v2211
        %v2731 = vunpack.c.l.b16 %v2212
        %v2732 = vunpack.c.l.b16 %v2213
        %v2733 = vunpack.c.l.b16 %v2214
        %v2734 = vunpack.c.l.b16 %v2215
        %v2735 = vunpack.c.l.b16 %v2216
        %v2736 = vunpack.c.l.b16 %v2217
        %v2737 = vunpack.c.l.b16 %v2218
        %v2738 = vunpack.c.l.b16 %v2219
        %v2739 = vunpack.c.l.b16 %v2220
        %v2740 = vunpack.c.l.b16 %v2221
        %v2741 = vunpack.c.l.b16 %v2222
        %v2742 = vunpack.c.l.b16 %v2223
        %v2743 = vunpack.c.l.b16 %v2224
        %v2744 = vunpack.c.l.b16 %v2225
        %v2745 = vunpack.c.l.b16 %v2226
        %v2746 = vunpack.c.l.b16 %v2227
        %v2747 = vunpack.c.l.b16 %v2228
        %v2748 = vunpack.c.l.b16 %v2229
        %v2749 = vunpack.c.l.b16 %v2230
        %v2750 = vunpack.c.l.b16 %v2231
        %v2751 = vunpack.c.l.b16 %v2232
        %v2752 = vunpack.c.l.b16 %v2233
        %v2753 = vunpack.c.l.b16 %v2234
        %v2754 = vunpack.c.l.b16 %v2235
        %v2755 = vunpack.c.l.b16 %v2236
        %v2756 = vunpack.c.l.b16 %v2237
        %v2757 = vunpack.c.l.b16 %v2238
        %v2758 = vunpack.c.l.b16 %v2239
        %v2759 = vunpack.c.l.b16 %v2240
        %v2760 = vunpack.c.l.b16 %v2241
        %v2761 = vunpack.c.l.b16 %v2242
        %v2762 = vunpack.c.l.b16 %v2243
        %v2763 = vunpack.c.l.b16 %v2244
        %v2764 = vunpack.c.l.b16 %v2245
        %v2765 = vunpack.c.l.b16 %v2246
        %v2766 = vunpack.c.l.b16 %v2247
        %v2767 = vunpack.c.l.b16 %v2248
        %v2768 = vunpack.c.l.b16 %v2249
        %v2769 = vunpack.c.l.b16 %v2250
        %v2770 = vunpack.c.l.b16 %v2251
        %v2771 = vunpack.c.l.b16 %v2252
        %v2772 = vunpack.c.l.b16 %v2253
        %v2773 = vunpack.c.l.b16 %v2254
        %v2774 = vunpack.c.l.b16 %v2255
        %v2775 = vunpack.c.l.b16 %v2256
        %v2776 = vunpack.c.l.b16 %v2257
        %v2777 = vunpack.c.l.b16 %v2258
        %v2778 = vunpack.c.l.b16 %v2259
        %v2779 = vunpack.c.l.b16 %v2260
        %v2780 = vunpack.c.l.b16 %v2261
        %v2781 = vunpack.c.l.b16 %v2262
        %v2782 = vunpack.c.l.b16 %v2263
        %v2783 = vunpack.c.l.b16 %v2264
        %v2784 = vunpack.c.l.b16 %v2265
        %v2785 = vunpack.c.l.b16 %v2266
        %v2786 = vunpack.c.l.b16 %v2267
        %v2787 = vunpack.c.l.b16 %v2268
        %v2788 = vunpack.c.l.b16 %v2269
        %v2789 = vunpack.c.l.b16 %v2270
        %v2790 = vunpack.c.l.b16 %v2271
        %v2791 = vunpack.c.l.b16 %v2272
        %v2792 = vunpack.c.l.b16 %v2273
        %v2793 = vunpack.c.l.b16 %v2274
        %v2794 = vunpack.c.l.b16 %v2275
        %v2795 = vunpack.c.l.b16 %v2276
        %v2796 = vunpack.c.l.b16 %v2277
        %v2797 = vunpack.c.l.b16 %v2278
        %v2798 = vunpack.c.l.b16 %v2279
        %v2799 = vunpack.c.l.b16 %v2280
        %v2800 = vunpack.c.l.b16 %v2281
        %v2801 = vunpack.c.l.b16 %v2282
        %v2802 = vunpack.c.l.b16 %v2283
        %v2803 = vunpack.c.l.b16 %v2284
        %v2804 = vunpack.c.l.b16 %v2285
        %v2805 = vunpack.c.l.b16 %v2286
        %v2806 = vunpack.c.l.b16 %v2287
        %v2807 = vunpack.c.l.b16 %v2288
        %v2808 = vunpack.c.l.b16 %v2289
        %v2809 = vunpack.c.l.b16 %v2290
        %v2810 = vunpack.c.l.b16 %v2291
        %v2811 = vunpack.c.l.b16 %v2292
        %v2812 = vunpack.c.l.b16 %v2293
        %v2813 = vunpack.c.l.b16 %v2294
        %v2814 = vunpack.c.l.b16 %v2295
        %v2815 = vunpack.c.l.b16 %v2296
        %v2816 = vunpack.c.l.b16 %v2297
        %v2817 = vunpack.c.l.b16 %v2298
        %v2818 = vunpack.c.l.b16 %v2299
        %v2819 = vunpack.c.l.b16 %v2300
        %v2820 = vunpack.c.l.b16 %v2301
        %v2821 = vunpack.c.l.b16 %v2302
        %v2822 = vunpack.c.l.b16 %v2303
        %v2823 = vunpack.c.l.b16 %v2304
        %v2824 = vunpack.c.l.b16 %v2305
        %v2825 = vunpack.c.l.b16 %v2306
        %v2826 = vunpack.c.l.b16 %v2307
        %v2827 = vunpack.c.l.b16 %v2308
        %v2828 = vunpack.c.l.b16 %v2309
        %v2829 = vunpack.c.l.b16 %v2310
        %v2830 = vunpack.c.l.b16 %v2311
        %v2831 = vunpack.c.l.b16 %v2312
        %v2832 = vunpack.c.l.b16 %v2313
        %v2833 = vunpack.c.l.b16 %v2314
        %v2834 = vunpack.c.l.b16 %v2315
        %v2835 = vunpack.c.l.b16 %v2316
        %v2836 = vunpack.c.l.b16 %v2317
        %v2837 = vunpack.c.l.b16 %v2318
        %v2838 = vunpack.c.l.b16 %v2319
        %v2839 = vunpack.c.l.b16 %v2320
        %v2840 = vunpack.c.l.b16 %v2321
        %v2841 = vunpack.c.l.b16 %v2322
        %v2842 = vunpack.c.l.b16 %v2323
        %v2843 = vunpack.c.l.b16 %v2324
        %v2844 = vunpack.c.l.b16 %v2325
        %v2845 = vunpack.c.l.b16 %v2326
        %v2846 = vunpack.c.l.b16 %v2327
        %v2847 = vunpack.c.l.b16 %v2328
        %v2848 = vunpack.c.l.b16 %v2329
        %v2849 = vunpack.c.l.b16 %v2330
        %v2850 = vunpack.c.l.b16 %v2331
        %v2851 = vunpack.c.l.b16 %v2332
        %v2852 = vunpack.c.l.b16 %v2333
        %v2853 = vunpack.c.l.b16 %v2334
        %v2854 = vunpack.c.l.b16 %v2335
        %v2855 = vunpack.c.l.b16 %v2336
        %v2856 = vunpack.c.l.b16 %v2337
        %v2857 = vunpack.c.l.b16 %v2338
        %v2858 = vunpack.c.l.b16 %v2339
        %v2859 = vunpack.c.l.b16 %v2340
        %v2860 = vunpack.c.l.b16 %v2341
        %v2861 = vunpack.c.l.b16 %v2342
        %v2862 = vunpack.c.l.b16 %v2343
        %v2863 = vunpack.c.l.b16 %v2344
        %v2864 = vunpack.c.l.b16 %v2345
        %v2865 = vunpack.c.l.b16 %v2346
        %v2866 = vunpack.c.l.b16 %v2347
        %v2867 = vunpack.c.l.b16 %v2348
        %v2868 = vunpack.c.l.b16 %v2349
        %v2869 = vunpack.c.l.b16 %v2350
        %v2870 = vunpack.c.l.b16 %v2351
        %v2871 = vunpack.c.l.b16 %v2352
        %v2872 = vunpack.c.l.b16 %v2353
        %v2873 = vunpack.c.l.b16 %v2354
        %v2874 = vunpack.c.l.b16 %v2355
        %v2875 = vunpack.c.l.b16 %v2356
        %v2876 = vunpack.c.l.b16 %v2357
        %v2877 = vunpack.c.l.b16 %v2358
        %v2878 = vunpack.c.l.b16 %v2359
        %v2879 = vunpack.c.l.b16 %v2360
        %v2880 = vunpack.c.l.b16 %v2361
        %v2881 = vunpack.c.l.b16 %v2362
        %v2882 = vunpack.c.l.b16 %v2363
        %v2883 = vunpack.c.l.b16 %v2364
        %v2884 = vunpack.c.l.b16 %v2365
        %v2885 = vunpack.c.l.b16 %v2366
        %v2886 = vunpack.c.l.b16 %v2367
        %v2887 = vunpack.c.l.b16 %v2368
        %v2888 = vunpack.c.l.b16 %v2369
        %v2889 = vunpack.c.l.b16 %v2370
        %v2890 = vunpack.c.l.b16 %v2371
        %v2891 = vunpack.c.l.b16 %v2372
        %v2892 = vunpack.c.l.b16 %v2373
        %v2893 = vunpack.c.l.b16 %v2374
        %v2894 = vunpack.c.l.b16 %v2375
        %v2895 = vunpack.c.l.b16 %v2376
        %v2896 = vunpack.c.l.b16 %v2377
        %v2897 = vunpack.c.l.b16 %v2378
        %v2898 = vunpack.c.l.b16 %v2379
        %v2899 = vunpack.c.l.b16 %v2380
        %v2900 = vunpack.c.l.b16 %v2381
        %v2901 = vunpack.c.l.b16 %v2382
        %v2902 = vunpack.c.l.b16 %v2383
        %v2903 = vunpack.c.l.b16 %v2384
        %v2904 = vunpack.c.l.b16 %v2385
        %v2905 = vunpack.c.l.b16 %v2386
        %v2906 = vunpack.c.l.b16 %v2387
        %v2907 = vunpack.c.l.b16 %v2388
        %v2908 = vunpack.c.l.b16 %v2389
        %v2909 = vunpack.c.l.b16 %v2390
        %v2910 = vunpack.c.l.b16 %v2391
        %v2911 = vunpack.c.l.b16 %v2392
        %v2912 = vpack.c.b16 %v2657, %v2656
        %v2913 = vpack.c.b16 %v2659, %v2658
        %v2914 = vpack.c.b16 %v2661, %v2660
        %v2915 = vpack.c.b16 %v2663, %v2662
        %v2916 = vpack.c.b16 %v2665, %v2664
        %v2917 = vpack.c.b16 %v2667, %v2666
        %v2918 = vpack.c.b16 %v2669, %v2668
        %v2919 = vpack.c.b16 %v2671, %v2670
        %v2920 = vpack.c.b16 %v2673, %v2672
        %v2921 = vpack.c.b16 %v2675, %v2674
        %v2922 = vpack.c.b16 %v2677, %v2676
        %v2923 = vpack.c.b16 %v2679, %v2678
        %v2924 = vpack.c.b16 %v2681, %v2680
        %v2925 = vpack.c.b16 %v2683, %v2682
        %v2926 = vpack.c.b16 %v2685, %v2684
        %v2927 = vpack.c.b16 %v2687, %v2686
        %v2928 = vpack.c.b16 %v2689, %v2688
        %v2929 = vpack.c.b16 %v2691, %v2690
        %v2930 = vpack.c.b16 %v2693, %v2692
        %v2931 = vpack.c.b16 %v2695, %v2694
        %v2932 = vpack.c.b16 %v2697, %v2696
        %v2933 = vpack.c.b16 %v2699, %v2698
        %v2934 = vpack.c.b16 %v2701, %v2700
        %v2935 = vpack.c.b16 %v2703, %v2702
        %v2936 = vpack.c.b16 %v2705, %v2704
        %v2937 = vpack.c.b16 %v2707, %v2706
        %v2938 = vpack.c.b16 %v2709, %v2708
        %v2939 = vpack.c.b16 %v2711, %v2710
        %v2940 = vpack.c.b16 %v2713, %v2712
        %v2941 = vpack.c.b16 %v2715, %v2714
        %v2942 = vpack.c.b16 %v2717, %v2716
        %v2943 = vpack.c.b16 %v2719, %v2718
        %v2944 = vpack.c.b16 %v2721, %v2720
        %v2945 = vpack.c.b16 %v2723, %v2722
        %v2946 = vpack.c.b16 %v2725, %v2724
        %v2947 = vpack.c.b16 %v2727, %v2726
        %v2948 = vpack.c.b16 %v2729, %v2728
        %v2949 = vpack.c.b16 %v2731, %v2730
        %v2950 = vpack.c.b16 %v2733, %v2732
        %v2951 = vpack.c.b16 %v2735, %v2734
        %v2952 = vpack.c.b16 %v2737, %v2736
        %v2953 = vpack.c.b16 %v2739, %v2738
        %v2954 = vpack.c.b16 %v2741, %v2740
        %v2955 = vpack.c.b16 %v2743, %v2742
        %v2956 = vpack.c.b16 %v2745, %v2744
        %v2957 = vpack.c.b16 %v2747, %v2746
        %v2958 = vpack.c.b16 %v2749, %v2748
        %v2959 = vpack.c.b16 %v2751, %v2750
        %v2960 = vpack.c.b16 %v2753, %v2752
        %v2961 = vpack.c.b16 %v2755, %v2754
        %v2962 = vpack.c.b16 %v2757, %v2756
        %v2963 = vpack.c.b16 %v2759, %v2758
        %v2964 = vpack.c.b16 %v2761, %v2760
        %v2965 = vpack.c.b16 %v2763, %v2762
        %v2966 = vpack.c.b16 %v2765, %v2764
        %v2967 = vpack.c.b16 %v2767, %v2766
        %v2968 = vpack.c.b16 %v2769, %v2768
        %v2969 = vpack.c.b16 %v2771, %v2770
        %v2970 = vpack.c.b16 %v2773, %v2772
        %v2971 = vpack.c.b16 %v2775, %v2774
        %v2972 = vpack.c.b16 %v2777, %v2776
        %v2973 = vpack.c.b16 %v2779, %v2778
        %v2974 = vpack.c.b16 %v2781, %v2780
        %v2975 = vpack.c.b16 %v2783, %v2782
        %v2976 = vpack.c.b16 %v2785, %v2784
        %v2977 = vpack.c.b16 %v2787, %v2786
        %v2978 = vpack.c.b16 %v2789, %v2788
        %v2979 = vpack.c.b16 %v2791, %v2790
        %v2980 = vpack.c.b16 %v2793, %v2792
        %v2981 = vpack.c.b16 %v2795, %v2794
        %v2982 = vpack.c.b16 %v2797, %v2796
        %v2983 = vpack.c.b16 %v2799, %v2798
        %v2984 = vpack.c.b16 %v2801, %v2800
        %v2985 = vpack.c.b16 %v2803, %v2802
        %v2986 = vpack.c.b16 %v2805, %v2804
        %v2987 = vpack.c.b16 %v2807, %v2806
        %v2988 = vpack.c.b16 %v2809, %v2808
        %v2989 = vpack.c.b16 %v2811, %v2810
        %v2990 = vpack.c.b16 %v2813, %v2812
        %v2991 = vpack.c.b16 %v2815, %v2814
        %v2992 = vpack.c.b16 %v2817, %v2816
        %v2993 = vpack.c.b16 %v2819, %v2818
        %v2994 = vpack.c.b16 %v2821, %v2820
        %v2995 = vpack.c.b16 %v2823, %v2822
        %v2996 = vpack.c.b16 %v2825, %v2824
        %v2997 = vpack.c.b16 %v2827, %v2826
        %v2998 = vpack.c.b16 %v2829, %v2828
        %v2999 = vpack.c.b16 %v2831, %v2830
        %v3000 = vpack.c.b16 %v2833, %v2832
        %v3001 = vpack.c.b16 %v2835, %v2834
        %v3002 = vpack.c.b16 %v2837, %v2836
        %v3003 = vpack.c.b16 %v2839, %v2838
        %v3004 = vpack.c.b16 %v2841, %v2840
        %v3005 = vpack.c.b16 %v2843, %v2842
        %v3006 = vpack.c.b16 %v2845, %v2844
        %v3007 = vpack.c.b16 %v2847, %v2846
        %v3008 = vpack.c.b16 %v2849, %v2848
        %v3009 = vpack.c.b16 %v2851, %v2850
        %v3010 = vpack.c.b16 %v2853, %v2852
        %v3011 = vpack.c.b16 %v2855, %v2854
        %v3012 = vpack.c.b16 %v2857, %v2856
        %v3013 = vpack.c.b16 %v2859, %v2858
        %v3014 = vpack.c.b16 %v2861, %v2860
        %v3015 = vpack.c.b16 %v2863, %v2862
        %v3016 = vpack.c.b16 %v2865, %v2864
        %v3017 = vpack.c.b16 %v2867, %v2866
        %v3018 = vpack.c.b16 %v2869, %v2868
        %v3019 = vpack.c.b16 %v2871, %v2870
        %v3020 = vpack.c.b16 %v2873, %v2872
        %v3021 = vpack.c.b16 %v2875, %v2874
        %v3022 = vpack.c.b16 %v2877, %v2876
        %v3023 = vpack.c.b16 %v2879, %v2878
        %v3024 = vpack.c.b16 %v2881, %v2880
        %v3025 = vpack.c.b16 %v2883, %v2882
        %v3026 = vpack.c.b16 %v2885, %v2884
        %v3027 = vpack.c.b16 %v2887, %v2886
        %v3028 = vpack.c.b16 %v2889, %v2888
        %v3029 = vpack.c.b16 %v2891, %v2890
        %v3030 = vpack.c.b16 %v2893, %v2892
        %v3031 = vpack.c.b16 %v2895, %v2894
        %v3032 = vpack.c.b16 %v2897, %v2896
        %v3033 = vpack.c.b16 %v2899, %v2898
        %v3034 = vpack.c.b16 %v2901, %v2900
        %v3035 = vpack.c.b16 %v2903, %v2902
        %v3036 = vpack.c.b16 %v2905, %v2904
        %v3037 = vpack.c.b16 %v2907, %v2906
        %v3038 = vpack.c.b16 %v2909, %v2908
        %v3039 = vpack.c.b16 %v2911, %v2910
        %3168 = vmatprep.subr.bf16.mxu0 0
        %3169 = vmatpush1.bf16.msra.mxu0 %v2919
        %3170 = vmatprep.subr.bf16.mxu0 0
        %3171 = vmatpush1.bf16.msra.mxu0 %v2918
        %3172 = vmatprep.subr.bf16.mxu0 0
        %3173 = vmatpush1.bf16.msra.mxu0 %v2917
        %3174 = vmatprep.subr.bf16.mxu0 0
        %3175 = vmatpush1.bf16.msra.mxu0 %v2916
        %3176 = vmatprep.subr.bf16.mxu0 0
        %3177 = vmatpush1.bf16.msra.mxu0 %v2915
        %3178 = vmatprep.subr.bf16.mxu0 0
        %3179 = vmatpush1.bf16.msra.mxu0 %v2914
        %3180 = vmatprep.subr.bf16.mxu0 0
        %3181 = vmatpush1.bf16.msra.mxu0 %v2913
        %3182 = vmatprep.subr.bf16.mxu0 0
        %3183 = vmatpush1.bf16.msra.mxu0 %v2912
        %3184 = vmatprep.subr.bf16.mxu0 0
        %3185 = vmatpush2.bf16.msra.mxu0 %v2927
        %3186 = vmatprep.subr.bf16.mxu0 0
        %3187 = vmatpush2.bf16.msra.mxu0 %v2926
        %3188 = vmatprep.subr.bf16.mxu0 0
        %3189 = vmatpush2.bf16.msra.mxu0 %v2925
        %3190 = vmatprep.subr.bf16.mxu0 0
        %3191 = vmatpush2.bf16.msra.mxu0 %v2924
        %3192 = vmatprep.subr.bf16.mxu0 0
        %3193 = vmatpush2.bf16.msra.mxu0 %v2923
        %3194 = vmatprep.subr.bf16.mxu0 0
        %3195 = vmatpush2.bf16.msra.mxu0 %v2922
        %3196 = vmatprep.subr.bf16.mxu0 0
        %3197 = vmatpush2.bf16.msra.mxu0 %v2921
        %3198 = vmatprep.subr.bf16.mxu0 0
        %3199 = vmatpush2.bf16.msra.mxu0 %v2920
        %3200 = vmatprep.mubr.bf16.mxu0 %v2122
        %3201 = vmatmul.mubr.bf16.gmra.mxu0 %v2121
        %v3202 = vpop.f32.mrf.mxu0
        %v3203 = vadd.f32 %v2398, %v3202
        %v3204 = vpop.f32.mrf.mxu0
        %v3205 = vpop.f32.mrf.mxu0
        %v3206 = vpop.f32.mrf.mxu0
        %3207 = vdwg.mxu0
        %3208 = vmatprep.subr.bf16.mxu0 0
        %3209 = vmatpush1.bf16.msra.mxu0 %v2935
        %3210 = vmatprep.subr.bf16.mxu0 0
        %3211 = vmatpush1.bf16.msra.mxu0 %v2934
        %3212 = vmatprep.subr.bf16.mxu0 0
        %3213 = vmatpush1.bf16.msra.mxu0 %v2933
        %3214 = vmatprep.subr.bf16.mxu0 0
        %3215 = vmatpush1.bf16.msra.mxu0 %v2932
        %3216 = vmatprep.subr.bf16.mxu0 0
        %3217 = vmatpush1.bf16.msra.mxu0 %v2931
        %3218 = vmatprep.subr.bf16.mxu0 0
        %3219 = vmatpush1.bf16.msra.mxu0 %v2930
        %3220 = vmatprep.subr.bf16.mxu0 0
        %3221 = vmatpush1.bf16.msra.mxu0 %v2929
        %3222 = vmatprep.subr.bf16.mxu0 0
        %3223 = vmatpush1.bf16.msra.mxu0 %v2928
        %3224 = vmatprep.subr.bf16.mxu0 0
        %3225 = vmatpush2.bf16.msra.mxu0 %v2943
        %3226 = vmatprep.subr.bf16.mxu0 0
        %3227 = vmatpush2.bf16.msra.mxu0 %v2942
        %3228 = vmatprep.subr.bf16.mxu0 0
        %3229 = vmatpush2.bf16.msra.mxu0 %v2941
        %3230 = vmatprep.subr.bf16.mxu0 0
        %3231 = vmatpush2.bf16.msra.mxu0 %v2940
        %3232 = vmatprep.subr.bf16.mxu0 0
        %3233 = vmatpush2.bf16.msra.mxu0 %v2939
        %3234 = vmatprep.subr.bf16.mxu0 0
        %3235 = vmatpush2.bf16.msra.mxu0 %v2938
        %3236 = vmatprep.subr.bf16.mxu0 0
        %3237 = vmatpush2.bf16.msra.mxu0 %v2937
        %3238 = vmatprep.subr.bf16.mxu0 0
        %3239 = vmatpush2.bf16.msra.mxu0 %v2936
        %3240 = vmatprep.mubr.bf16.mxu0 %v2124
        %3241 = vmatmul.mubr.bf16.gmra.mxu0 %v2123
        %v3242 = vpop.f32.mrf.mxu0
        %v3243 = vadd.f32 %v3203, %v3242
        %v3244 = vpop.f32.mrf.mxu0
        %v3245 = vpop.f32.mrf.mxu0
        %v3246 = vpop.f32.mrf.mxu0
        %3247 = vdwg.mxu0
        %3248 = vmatprep.subr.bf16.mxu0 0
        %3249 = vmatpush1.bf16.msra.mxu0 %v2951
        %3250 = vmatprep.subr.bf16.mxu0 0
        %3251 = vmatpush1.bf16.msra.mxu0 %v2950
        %3252 = vmatprep.subr.bf16.mxu0 0
        %3253 = vmatpush1.bf16.msra.mxu0 %v2949
        %3254 = vmatprep.subr.bf16.mxu0 0
        %3255 = vmatpush1.bf16.msra.mxu0 %v2948
        %3256 = vmatprep.subr.bf16.mxu0 0
        %3257 = vmatpush1.bf16.msra.mxu0 %v2947
        %3258 = vmatprep.subr.bf16.mxu0 0
        %3259 = vmatpush1.bf16.msra.mxu0 %v2946
        %3260 = vmatprep.subr.bf16.mxu0 0
        %3261 = vmatpush1.bf16.msra.mxu0 %v2945
        %3262 = vmatprep.subr.bf16.mxu0 0
        %3263 = vmatpush1.bf16.msra.mxu0 %v2944
        %3264 = vmatprep.subr.bf16.mxu0 0
        %3265 = vmatpush2.bf16.msra.mxu0 %v2959
        %3266 = vmatprep.subr.bf16.mxu0 0
        %3267 = vmatpush2.bf16.msra.mxu0 %v2958
        %3268 = vmatprep.subr.bf16.mxu0 0
        %3269 = vmatpush2.bf16.msra.mxu0 %v2957
        %3270 = vmatprep.subr.bf16.mxu0 0
        %3271 = vmatpush2.bf16.msra.mxu0 %v2956
        %3272 = vmatprep.subr.bf16.mxu0 0
        %3273 = vmatpush2.bf16.msra.mxu0 %v2955
        %3274 = vmatprep.subr.bf16.mxu0 0
        %3275 = vmatpush2.bf16.msra.mxu0 %v2954
        %3276 = vmatprep.subr.bf16.mxu0 0
        %3277 = vmatpush2.bf16.msra.mxu0 %v2953
        %3278 = vmatprep.subr.bf16.mxu0 0
        %3279 = vmatpush2.bf16.msra.mxu0 %v2952
        %3280 = vmatprep.mubr.bf16.mxu0 %v2126
        %3281 = vmatmul.mubr.bf16.gmra.mxu0 %v2125
        %v3282 = vpop.f32.mrf.mxu0
        %v3283 = vadd.f32 %v3243, %v3282
        %v3284 = vpop.f32.mrf.mxu0
        %v3285 = vpop.f32.mrf.mxu0
        %v3286 = vpop.f32.mrf.mxu0
        %3287 = vdwg.mxu0
        %3288 = vmatprep.subr.bf16.mxu0 0
        %3289 = vmatpush1.bf16.msra.mxu0 %v2967
        %3290 = vmatprep.subr.bf16.mxu0 0
        %3291 = vmatpush1.bf16.msra.mxu0 %v2966
        %3292 = vmatprep.subr.bf16.mxu0 0
        %3293 = vmatpush1.bf16.msra.mxu0 %v2965
        %3294 = vmatprep.subr.bf16.mxu0 0
        %3295 = vmatpush1.bf16.msra.mxu0 %v2964
        %3296 = vmatprep.subr.bf16.mxu0 0
        %3297 = vmatpush1.bf16.msra.mxu0 %v2963
        %3298 = vmatprep.subr.bf16.mxu0 0
        %3299 = vmatpush1.bf16.msra.mxu0 %v2962
        %3300 = vmatprep.subr.bf16.mxu0 0
        %3301 = vmatpush1.bf16.msra.mxu0 %v2961
        %3302 = vmatprep.subr.bf16.mxu0 0
        %3303 = vmatpush1.bf16.msra.mxu0 %v2960
        %3304 = vmatprep.subr.bf16.mxu0 0
        %3305 = vmatpush2.bf16.msra.mxu0 %v2975
        %3306 = vmatprep.subr.bf16.mxu0 0
        %3307 = vmatpush2.bf16.msra.mxu0 %v2974
        %3308 = vmatprep.subr.bf16.mxu0 0
        %3309 = vmatpush2.bf16.msra.mxu0 %v2973
        %3310 = vmatprep.subr.bf16.mxu0 0
        %3311 = vmatpush2.bf16.msra.mxu0 %v2972
        %3312 = vmatprep.subr.bf16.mxu0 0
        %3313 = vmatpush2.bf16.msra.mxu0 %v2971
        %3314 = vmatprep.subr.bf16.mxu0 0
        %3315 = vmatpush2.bf16.msra.mxu0 %v2970
        %3316 = vmatprep.subr.bf16.mxu0 0
        %3317 = vmatpush2.bf16.msra.mxu0 %v2969
        %3318 = vmatprep.subr.bf16.mxu0 0
        %3319 = vmatpush2.bf16.msra.mxu0 %v2968
        %3320 = vmatprep.mubr.bf16.mxu0 %v2128
        %3321 = vmatmul.mubr.bf16.gmra.mxu0 %v2127
        %v3322 = vpop.f32.mrf.mxu0
        %v3323 = vadd.f32 %v3283, %v3322
        %v3324 = vpop.f32.mrf.mxu0
        %v3325 = vpop.f32.mrf.mxu0
        %v3326 = vpop.f32.mrf.mxu0
        %3327 = vdwg.mxu0
        %3328 = vmatprep.subr.bf16.mxu0 0
        %3329 = vmatpush1.bf16.msra.mxu0 %v2983
        %3330 = vmatprep.subr.bf16.mxu0 0
        %3331 = vmatpush1.bf16.msra.mxu0 %v2982
        %3332 = vmatprep.subr.bf16.mxu0 0
        %3333 = vmatpush1.bf16.msra.mxu0 %v2981
        %3334 = vmatprep.subr.bf16.mxu0 0
        %3335 = vmatpush1.bf16.msra.mxu0 %v2980
        %3336 = vmatprep.subr.bf16.mxu0 0
        %3337 = vmatpush1.bf16.msra.mxu0 %v2979
        %3338 = vmatprep.subr.bf16.mxu0 0
        %3339 = vmatpush1.bf16.msra.mxu0 %v2978
        %3340 = vmatprep.subr.bf16.mxu0 0
        %3341 = vmatpush1.bf16.msra.mxu0 %v2977
        %3342 = vmatprep.subr.bf16.mxu0 0
        %3343 = vmatpush1.bf16.msra.mxu0 %v2976
        %3344 = vmatprep.subr.bf16.mxu0 0
        %3345 = vmatpush2.bf16.msra.mxu0 %v2991
        %3346 = vmatprep.subr.bf16.mxu0 0
        %3347 = vmatpush2.bf16.msra.mxu0 %v2990
        %3348 = vmatprep.subr.bf16.mxu0 0
        %3349 = vmatpush2.bf16.msra.mxu0 %v2989
        %3350 = vmatprep.subr.bf16.mxu0 0
        %3351 = vmatpush2.bf16.msra.mxu0 %v2988
        %3352 = vmatprep.subr.bf16.mxu0 0
        %3353 = vmatpush2.bf16.msra.mxu0 %v2987
        %3354 = vmatprep.subr.bf16.mxu0 0
        %3355 = vmatpush2.bf16.msra.mxu0 %v2986
        %3356 = vmatprep.subr.bf16.mxu0 0
        %3357 = vmatpush2.bf16.msra.mxu0 %v2985
        %3358 = vmatprep.subr.bf16.mxu0 0
        %3359 = vmatpush2.bf16.msra.mxu0 %v2984
        %3360 = vmatprep.mubr.bf16.mxu0 %v2130
        %3361 = vmatmul.mubr.bf16.gmra.mxu0 %v2129
        %v3362 = vpop.f32.mrf.mxu0
        %v3363 = vadd.f32 %v3323, %v3362
        %v3364 = vpop.f32.mrf.mxu0
        %v3365 = vpop.f32.mrf.mxu0
        %v3366 = vpop.f32.mrf.mxu0
        %3367 = vdwg.mxu0
        %3368 = vmatprep.subr.bf16.mxu0 0
        %3369 = vmatpush1.bf16.msra.mxu0 %v2999
        %3370 = vmatprep.subr.bf16.mxu0 0
        %3371 = vmatpush1.bf16.msra.mxu0 %v2998
        %3372 = vmatprep.subr.bf16.mxu0 0
        %3373 = vmatpush1.bf16.msra.mxu0 %v2997
        %3374 = vmatprep.subr.bf16.mxu0 0
        %3375 = vmatpush1.bf16.msra.mxu0 %v2996
        %3376 = vmatprep.subr.bf16.mxu0 0
        %3377 = vmatpush1.bf16.msra.mxu0 %v2995
        %3378 = vmatprep.subr.bf16.mxu0 0
        %3379 = vmatpush1.bf16.msra.mxu0 %v2994
        %3380 = vmatprep.subr.bf16.mxu0 0
        %3381 = vmatpush1.bf16.msra.mxu0 %v2993
        %3382 = vmatprep.subr.bf16.mxu0 0
        %3383 = vmatpush1.bf16.msra.mxu0 %v2992
        %3384 = vmatprep.subr.bf16.mxu0 0
        %3385 = vmatpush2.bf16.msra.mxu0 %v3007
        %3386 = vmatprep.subr.bf16.mxu0 0
        %3387 = vmatpush2.bf16.msra.mxu0 %v3006
        %3388 = vmatprep.subr.bf16.mxu0 0
        %3389 = vmatpush2.bf16.msra.mxu0 %v3005
        %3390 = vmatprep.subr.bf16.mxu0 0
        %3391 = vmatpush2.bf16.msra.mxu0 %v3004
        %3392 = vmatprep.subr.bf16.mxu0 0
        %3393 = vmatpush2.bf16.msra.mxu0 %v3003
        %3394 = vmatprep.subr.bf16.mxu0 0
        %3395 = vmatpush2.bf16.msra.mxu0 %v3002
        %3396 = vmatprep.subr.bf16.mxu0 0
        %3397 = vmatpush2.bf16.msra.mxu0 %v3001
        %3398 = vmatprep.subr.bf16.mxu0 0
        %3399 = vmatpush2.bf16.msra.mxu0 %v3000
        %3400 = vmatprep.mubr.bf16.mxu0 %v2132
        %3401 = vmatmul.mubr.bf16.gmra.mxu0 %v2131
        %v3402 = vpop.f32.mrf.mxu0
        %v3403 = vadd.f32 %v3363, %v3402
        %v3404 = vpop.f32.mrf.mxu0
        %v3405 = vpop.f32.mrf.mxu0
        %v3406 = vpop.f32.mrf.mxu0
        %3407 = vdwg.mxu0
        %3408 = vmatprep.subr.bf16.mxu0 0
        %3409 = vmatpush1.bf16.msra.mxu0 %v3015
        %3410 = vmatprep.subr.bf16.mxu0 0
        %3411 = vmatpush1.bf16.msra.mxu0 %v3014
        %3412 = vmatprep.subr.bf16.mxu0 0
        %3413 = vmatpush1.bf16.msra.mxu0 %v3013
        %3414 = vmatprep.subr.bf16.mxu0 0
        %3415 = vmatpush1.bf16.msra.mxu0 %v3012
        %3416 = vmatprep.subr.bf16.mxu0 0
        %3417 = vmatpush1.bf16.msra.mxu0 %v3011
        %3418 = vmatprep.subr.bf16.mxu0 0
        %3419 = vmatpush1.bf16.msra.mxu0 %v3010
        %3420 = vmatprep.subr.bf16.mxu0 0
        %3421 = vmatpush1.bf16.msra.mxu0 %v3009
        %3422 = vmatprep.subr.bf16.mxu0 0
        %3423 = vmatpush1.bf16.msra.mxu0 %v3008
        %3424 = vmatprep.subr.bf16.mxu0 0
        %3425 = vmatpush2.bf16.msra.mxu0 %v3023
        %3426 = vmatprep.subr.bf16.mxu0 0
        %3427 = vmatpush2.bf16.msra.mxu0 %v3022
        %3428 = vmatprep.subr.bf16.mxu0 0
        %3429 = vmatpush2.bf16.msra.mxu0 %v3021
        %3430 = vmatprep.subr.bf16.mxu0 0
        %3431 = vmatpush2.bf16.msra.mxu0 %v3020
        %3432 = vmatprep.subr.bf16.mxu0 0
        %3433 = vmatpush2.bf16.msra.mxu0 %v3019
        %3434 = vmatprep.subr.bf16.mxu0 0
        %3435 = vmatpush2.bf16.msra.mxu0 %v3018
        %3436 = vmatprep.subr.bf16.mxu0 0
        %3437 = vmatpush2.bf16.msra.mxu0 %v3017
        %3438 = vmatprep.subr.bf16.mxu0 0
        %3439 = vmatpush2.bf16.msra.mxu0 %v3016
        %3440 = vmatprep.mubr.bf16.mxu0 %v2134
        %3441 = vmatmul.mubr.bf16.gmra.mxu0 %v2133
        %v3442 = vpop.f32.mrf.mxu0
        %v3443 = vadd.f32 %v3403, %v3442
        %v3444 = vpop.f32.mrf.mxu0
        %v3445 = vpop.f32.mrf.mxu0
        %v3446 = vpop.f32.mrf.mxu0
        %3447 = vdwg.mxu0
        %3448 = vmatprep.subr.bf16.mxu0 0
        %3449 = vmatpush1.bf16.msra.mxu0 %v3031
        %3450 = vmatprep.subr.bf16.mxu0 0
        %3451 = vmatpush1.bf16.msra.mxu0 %v3030
        %3452 = vmatprep.subr.bf16.mxu0 0
        %3453 = vmatpush1.bf16.msra.mxu0 %v3029
        %3454 = vmatprep.subr.bf16.mxu0 0
        %3455 = vmatpush1.bf16.msra.mxu0 %v3028
        %3456 = vmatprep.subr.bf16.mxu0 0
        %3457 = vmatpush1.bf16.msra.mxu0 %v3027
        %3458 = vmatprep.subr.bf16.mxu0 0
        %3459 = vmatpush1.bf16.msra.mxu0 %v3026
        %3460 = vmatprep.subr.bf16.mxu0 0
        %3461 = vmatpush1.bf16.msra.mxu0 %v3025
        %3462 = vmatprep.subr.bf16.mxu0 0
        %3463 = vmatpush1.bf16.msra.mxu0 %v3024
        %3464 = vmatprep.subr.bf16.mxu0 0
        %3465 = vmatpush2.bf16.msra.mxu0 %v3039
        %3466 = vmatprep.subr.bf16.mxu0 0
        %3467 = vmatpush2.bf16.msra.mxu0 %v3038
        %3468 = vmatprep.subr.bf16.mxu0 0
        %3469 = vmatpush2.bf16.msra.mxu0 %v3037
        %3470 = vmatprep.subr.bf16.mxu0 0
        %3471 = vmatpush2.bf16.msra.mxu0 %v3036
        %3472 = vmatprep.subr.bf16.mxu0 0
        %3473 = vmatpush2.bf16.msra.mxu0 %v3035
        %3474 = vmatprep.subr.bf16.mxu0 0
        %3475 = vmatpush2.bf16.msra.mxu0 %v3034
        %3476 = vmatprep.subr.bf16.mxu0 0
        %3477 = vmatpush2.bf16.msra.mxu0 %v3033
        %3478 = vmatprep.subr.bf16.mxu0 0
        %3479 = vmatpush2.bf16.msra.mxu0 %v3032
        %3480 = vmatprep.mubr.bf16.mxu0 %v2136
        %3481 = vmatmul.mubr.bf16.gmra.mxu0 %v2135
        %v3482 = vpop.f32.mrf.mxu0
        %v3483 = vadd.f32 %v3443, %v3482
        %v3484 = vpop.f32.mrf.mxu0
        %v3485 = vpop.f32.mrf.mxu0
        %v3486 = vpop.f32.mrf.mxu0
        %3487 = vdwg.mxu0
        %v3488 = vadd.f32 %v3483, %v1496
        %v3489 = vld [vmem:[%s12] sm:$0x1]
        %v3490 = vld [vmem:[%s13] sm:$0x1]
        %v3491 = vsel %vm882, %v3488, 0.0
        %3492 = vadd.xlane.f32.xlu0 %v3491
        %v3493 = vpop.xlane.xlu0 %3492
        %v3494 = vmul.f32 %v3493, %v1472
        %v3495 = vsub.f32 %v3488, %v3494
        %v3496 = vmul.f32 %v3495, %v3495
        %v3497 = vsel %vm882, %v3496, 0.0
        %3498 = vadd.xlane.f32.xlu0 %v3497
        %v3499 = vpop.xlane.xlu0 %3498
        %v3500 = vmul.f32 %v3499, %v1472
        %v3501 = vadd.f32 %v3500, 1e-05
        %v3502 = vrsqrt.pop %v3501
        %v3503 = vmul.f32 %v3495, %v3502
        %v3505 = vlaneseq
        %v3506 = vshrl.u32 %v3505, 7
        %v3507 = vsub.s32 0, %v3506
        %v3508 = vrot.slane %v3489, %v3507
        %v3510 = vmul.f32 %v3503, %v3508
        %v3512 = vlaneseq
        %v3513 = vshrl.u32 %v3512, 7
        %v3514 = vsub.s32 0, %v3513
        %v3515 = vrot.slane %v3490, %v3514
        %v3517 = vadd.f32 %v3510, %v3515
        %v3518 = vpack.c.bf16 %v3517, %v3517
        %v3519 = vld [vmem:[%s14] sm:$0xf]
        %v3520 = vld [vmem:[%s14 + $0x4] sm:$0xf]
        %v3521 = vld [vmem:[%s14 + $0x8] sm:$0xf]
        %v3522 = vld [vmem:[%s14 + $0xc] sm:$0xf]
        %v3523 = vld [vmem:[%s15] sm:$0x1]
        %v3525 = vlaneseq
        %v3526 = vshrl.u32 %v3525, 7
        %v3527 = vsub.s32 0, %v3526
        %v3528 = vrot.slane %v3523, %v3527
        %v3534 = vunpack.c.l.b16 %v3519
        %v3535 = vunpack.c.l.b16 %v3520
        %v3536 = vunpack.c.l.b16 %v3521
        %v3537 = vunpack.c.l.b16 %v3522
        %v3538 = vpack.c.b16 %v3535, %v3534
        %v3539 = vpack.c.b16 %v3537, %v3536
        %v3543 = vsel %vm882, %v3518, 0
        %3545 = vmatprep.subr.bf16.mxu0 0
        %3546 = vmatpush1.bf16.msra.mxu0 0
        %3547 = vmatprep.subr.bf16.mxu0 0
        %3548 = vmatpush1.bf16.msra.mxu0 0
        %3549 = vmatprep.subr.bf16.mxu0 0
        %3550 = vmatpush1.bf16.msra.mxu0 0
        %3551 = vmatprep.subr.bf16.mxu0 0
        %3552 = vmatpush1.bf16.msra.mxu0 0
        %3553 = vmatprep.subr.bf16.mxu0 0
        %3554 = vmatpush1.bf16.msra.mxu0 0
        %3555 = vmatprep.subr.bf16.mxu0 0
        %3556 = vmatpush1.bf16.msra.mxu0 0
        %3557 = vmatprep.subr.bf16.mxu0 0
        %3558 = vmatpush1.bf16.msra.mxu0 %v3539
        %3559 = vmatprep.subr.bf16.mxu0 0
        %3560 = vmatpush1.bf16.msra.mxu0 %v3538
        %3561 = vmatprep.subr.bf16.mxu0 0
        %3562 = vmatpush2.bf16.msra.mxu0 0
        %3563 = vmatprep.subr.bf16.mxu0 0
        %3564 = vmatpush2.bf16.msra.mxu0 0
        %3565 = vmatprep.subr.bf16.mxu0 0
        %3566 = vmatpush2.bf16.msra.mxu0 0
        %3567 = vmatprep.subr.bf16.mxu0 0
        %3568 = vmatpush2.bf16.msra.mxu0 0
        %3569 = vmatprep.subr.bf16.mxu0 0
        %3570 = vmatpush2.bf16.msra.mxu0 0
        %3571 = vmatprep.subr.bf16.mxu0 0
        %3572 = vmatpush2.bf16.msra.mxu0 0
        %3573 = vmatprep.subr.bf16.mxu0 0
        %3574 = vmatpush2.bf16.msra.mxu0 0
        %3575 = vmatprep.subr.bf16.mxu0 0
        %3576 = vmatpush2.bf16.msra.mxu0 0
        %3577 = vmatprep.mubr.bf16.mxu0 0
        %3578 = vmatmul.mubr.bf16.gmra.mxu0 %v3543
        %v3579 = vpop.f32.mrf.mxu0
        %v3580 = vadd.f32 %v3528, %v3579
        %v3581 = vpop.f32.mrf.mxu0
        %v3582 = vpop.f32.mrf.mxu0
        %v3583 = vpop.f32.mrf.mxu0
        %3584 = vdwg.mxu0
        %v3585 = vpack.c.bf16 %v3580, %v3580
        %3587 = vrot.lane.b32.xlu0 %v3585, 96
        %v3588 = vpop.permute.xlu0 %3587
        %v3590 = vsel %vm930, %v3585, 0
        %v3593 = vsel %vm930, %v3588, 0
        %3595 = vmatprep.subr.bf16.mxu0 0
        %3596 = vmatpush1.bf16.xpose.msra.mxu0 0
        %3597 = vmatprep.subr.bf16.mxu0 0
        %3598 = vmatpush1.bf16.xpose.msra.mxu0 0
        %3599 = vmatprep.subr.bf16.mxu0 0
        %3600 = vmatpush1.bf16.xpose.msra.mxu0 0
        %3601 = vmatprep.subr.bf16.mxu0 0
        %3602 = vmatpush1.bf16.xpose.msra.mxu0 0
        %3603 = vmatprep.subr.bf16.mxu0 0
        %3604 = vmatpush1.bf16.xpose.msra.mxu0 0
        %3605 = vmatprep.subr.bf16.mxu0 0
        %3606 = vmatpush1.bf16.xpose.msra.mxu0 0
        %3607 = vmatprep.subr.bf16.mxu0 0
        %3608 = vmatpush1.bf16.xpose.msra.mxu0 0
        %3609 = vmatprep.subr.bf16.mxu0 0
        %3610 = vmatpush1.bf16.xpose.msra.mxu0 %v3593
        %3611 = vmatprep.subr.bf16.mxu0 0
        %3612 = vmatpush2.bf16.xpose.msra.mxu0 0
        %3613 = vmatprep.subr.bf16.mxu0 0
        %3614 = vmatpush2.bf16.xpose.msra.mxu0 0
        %3615 = vmatprep.subr.bf16.mxu0 0
        %3616 = vmatpush2.bf16.xpose.msra.mxu0 0
        %3617 = vmatprep.subr.bf16.mxu0 0
        %3618 = vmatpush2.bf16.xpose.msra.mxu0 0
        %3619 = vmatprep.subr.bf16.mxu0 0
        %3620 = vmatpush2.bf16.xpose.msra.mxu0 0
        %3621 = vmatprep.subr.bf16.mxu0 0
        %3622 = vmatpush2.bf16.xpose.msra.mxu0 0
        %3623 = vmatprep.subr.bf16.mxu0 0
        %3624 = vmatpush2.bf16.xpose.msra.mxu0 0
        %3625 = vmatprep.subr.bf16.mxu0 0
        %3626 = vmatpush2.bf16.xpose.msra.mxu0 0
        %3627 = vmatprep.mubr.bf16.mxu0 0
        %3628 = vmatmul.mubr.bf16.gmra.mxu0 %v3590
        %v3629 = vpop.f32.mrf.mxu0
        %v3630 = vadd.f32 0.0, %v3629
        %v3631 = vpop.f32.mrf.mxu0
        %v3632 = vpop.f32.mrf.mxu0
        %v3633 = vpop.f32.mrf.mxu0
        %3634 = vdwg.mxu0
        %v3635 = vmul.f32 %v3630, 0.35355338
        %v3636 = vadd.f32 %v3635, %v982
        %v3637 = vsel %vm930, %v3636, -inf
        %3638 = vmax.xlane.f32.xlu0 %v3637
        %v3639 = vpop.xlane.xlu0 %3638
        %v3640 = vsub.f32 %v3636, %v3639
        %v3641 = vmul.f32 %v3640, 1.442695
        %v3642 = vpow.pop %v3641
        %v3643 = vsel %vm930, %v3642, 0.0
        %3644 = vadd.xlane.f32.xlu0 %v3643
        %v3645 = vpop.xlane.xlu0 %3644
        %v3646 = vrcp.pop %v3645
        %v3647 = vmul.f32 %v3642, %v3646
        %v3648 = vpack.c.bf16 %v3647, %v3647
        %3649 = vrot.lane.b32.xlu0 %v3585, 64
        %v3650 = vpop.permute.xlu0 %3649
        %v3652 = vsel %vm930, %v3648, 0
        %v3655 = vsel %vm1002, %v3650, 0
        %3657 = vmatprep.subr.bf16.mxu0 0
        %3658 = vmatpush1.bf16.msra.mxu0 0
        %3659 = vmatprep.subr.bf16.mxu0 0
        %3660 = vmatpush1.bf16.msra.mxu0 0
        %3661 = vmatprep.subr.bf16.mxu0 0
        %3662 = vmatpush1.bf16.msra.mxu0 0
        %3663 = vmatprep.subr.bf16.mxu0 0
        %3664 = vmatpush1.bf16.msra.mxu0 0
        %3665 = vmatprep.subr.bf16.mxu0 0
        %3666 = vmatpush1.bf16.msra.mxu0 0
        %3667 = vmatprep.subr.bf16.mxu0 0
        %3668 = vmatpush1.bf16.msra.mxu0 0
        %3669 = vmatprep.subr.bf16.mxu0 0
        %3670 = vmatpush1.bf16.msra.mxu0 0
        %3671 = vmatprep.subr.bf16.mxu0 0
        %3672 = vmatpush1.bf16.msra.mxu0 %v3655
        %3673 = vmatprep.subr.bf16.mxu0 0
        %3674 = vmatpush2.bf16.msra.mxu0 0
        %3675 = vmatprep.subr.bf16.mxu0 0
        %3676 = vmatpush2.bf16.msra.mxu0 0
        %3677 = vmatprep.subr.bf16.mxu0 0
        %3678 = vmatpush2.bf16.msra.mxu0 0
        %3679 = vmatprep.subr.bf16.mxu0 0
        %3680 = vmatpush2.bf16.msra.mxu0 0
        %3681 = vmatprep.subr.bf16.mxu0 0
        %3682 = vmatpush2.bf16.msra.mxu0 0
        %3683 = vmatprep.subr.bf16.mxu0 0
        %3684 = vmatpush2.bf16.msra.mxu0 0
        %3685 = vmatprep.subr.bf16.mxu0 0
        %3686 = vmatpush2.bf16.msra.mxu0 0
        %3687 = vmatprep.subr.bf16.mxu0 0
        %3688 = vmatpush2.bf16.msra.mxu0 0
        %3689 = vmatprep.mubr.bf16.mxu0 0
        %3690 = vmatmul.mubr.bf16.gmra.mxu0 %v3652
        %v3691 = vpop.f32.mrf.mxu0
        %v3692 = vadd.f32 0.0, %v3691
        %v3693 = vpop.f32.mrf.mxu0
        %v3694 = vpop.f32.mrf.mxu0
        %v3695 = vpop.f32.mrf.mxu0
        %3696 = vdwg.mxu0
        %3697 = vrot.lane.b32.xlu0 %v3585, 120
        %v3698 = vpop.permute.xlu0 %3697
        %3699 = vrot.lane.b32.xlu0 %v3585, 88
        %v3700 = vpop.permute.xlu0 %3699
        %v3702 = vsel %vm930, %v3698, 0
        %v3705 = vsel %vm930, %v3700, 0
        %3707 = vmatprep.subr.bf16.mxu0 0
        %3708 = vmatpush1.bf16.xpose.msra.mxu0 0
        %3709 = vmatprep.subr.bf16.mxu0 0
        %3710 = vmatpush1.bf16.xpose.msra.mxu0 0
        %3711 = vmatprep.subr.bf16.mxu0 0
        %3712 = vmatpush1.bf16.xpose.msra.mxu0 0
        %3713 = vmatprep.subr.bf16.mxu0 0
        %3714 = vmatpush1.bf16.xpose.msra.mxu0 0
        %3715 = vmatprep.subr.bf16.mxu0 0
        %3716 = vmatpush1.bf16.xpose.msra.mxu0 0
        %3717 = vmatprep.subr.bf16.mxu0 0
        %3718 = vmatpush1.bf16.xpose.msra.mxu0 0
        %3719 = vmatprep.subr.bf16.mxu0 0
        %3720 = vmatpush1.bf16.xpose.msra.mxu0 0
        %3721 = vmatprep.subr.bf16.mxu0 0
        %3722 = vmatpush1.bf16.xpose.msra.mxu0 %v3705
        %3723 = vmatprep.subr.bf16.mxu0 0
        %3724 = vmatpush2.bf16.xpose.msra.mxu0 0
        %3725 = vmatprep.subr.bf16.mxu0 0
        %3726 = vmatpush2.bf16.xpose.msra.mxu0 0
        %3727 = vmatprep.subr.bf16.mxu0 0
        %3728 = vmatpush2.bf16.xpose.msra.mxu0 0
        %3729 = vmatprep.subr.bf16.mxu0 0
        %3730 = vmatpush2.bf16.xpose.msra.mxu0 0
        %3731 = vmatprep.subr.bf16.mxu0 0
        %3732 = vmatpush2.bf16.xpose.msra.mxu0 0
        %3733 = vmatprep.subr.bf16.mxu0 0
        %3734 = vmatpush2.bf16.xpose.msra.mxu0 0
        %3735 = vmatprep.subr.bf16.mxu0 0
        %3736 = vmatpush2.bf16.xpose.msra.mxu0 0
        %3737 = vmatprep.subr.bf16.mxu0 0
        %3738 = vmatpush2.bf16.xpose.msra.mxu0 0
        %3739 = vmatprep.mubr.bf16.mxu0 0
        %3740 = vmatmul.mubr.bf16.gmra.mxu0 %v3702
        %v3741 = vpop.f32.mrf.mxu0
        %v3742 = vadd.f32 0.0, %v3741
        %v3743 = vpop.f32.mrf.mxu0
        %v3744 = vpop.f32.mrf.mxu0
        %v3745 = vpop.f32.mrf.mxu0
        %3746 = vdwg.mxu0
        %v3747 = vmul.f32 %v3742, 0.35355338
        %v3748 = vadd.f32 %v3747, %v982
        %v3749 = vsel %vm930, %v3748, -inf
        %3750 = vmax.xlane.f32.xlu0 %v3749
        %v3751 = vpop.xlane.xlu0 %3750
        %v3752 = vsub.f32 %v3748, %v3751
        %v3753 = vmul.f32 %v3752, 1.442695
        %v3754 = vpow.pop %v3753
        %v3755 = vsel %vm930, %v3754, 0.0
        %3756 = vadd.xlane.f32.xlu0 %v3755
        %v3757 = vpop.xlane.xlu0 %3756
        %v3758 = vrcp.pop %v3757
        %v3759 = vmul.f32 %v3754, %v3758
        %v3760 = vpack.c.bf16 %v3759, %v3759
        %3761 = vrot.lane.b32.xlu0 %v3585, 56
        %v3762 = vpop.permute.xlu0 %3761
        %v3764 = vsel %vm930, %v3760, 0
        %v3767 = vsel %vm1002, %v3762, 0
        %3769 = vmatprep.subr.bf16.mxu0 0
        %3770 = vmatpush1.bf16.msra.mxu0 0
        %3771 = vmatprep.subr.bf16.mxu0 0
        %3772 = vmatpush1.bf16.msra.mxu0 0
        %3773 = vmatprep.subr.bf16.mxu0 0
        %3774 = vmatpush1.bf16.msra.mxu0 0
        %3775 = vmatprep.subr.bf16.mxu0 0
        %3776 = vmatpush1.bf16.msra.mxu0 0
        %3777 = vmatprep.subr.bf16.mxu0 0
        %3778 = vmatpush1.bf16.msra.mxu0 0
        %3779 = vmatprep.subr.bf16.mxu0 0
        %3780 = vmatpush1.bf16.msra.mxu0 0
        %3781 = vmatprep.subr.bf16.mxu0 0
        %3782 = vmatpush1.bf16.msra.mxu0 0
        %3783 = vmatprep.subr.bf16.mxu0 0
        %3784 = vmatpush1.bf16.msra.mxu0 %v3767
        %3785 = vmatprep.subr.bf16.mxu0 0
        %3786 = vmatpush2.bf16.msra.mxu0 0
        %3787 = vmatprep.subr.bf16.mxu0 0
        %3788 = vmatpush2.bf16.msra.mxu0 0
        %3789 = vmatprep.subr.bf16.mxu0 0
        %3790 = vmatpush2.bf16.msra.mxu0 0
        %3791 = vmatprep.subr.bf16.mxu0 0
        %3792 = vmatpush2.bf16.msra.mxu0 0
        %3793 = vmatprep.subr.bf16.mxu0 0
        %3794 = vmatpush2.bf16.msra.mxu0 0
        %3795 = vmatprep.subr.bf16.mxu0 0
        %3796 = vmatpush2.bf16.msra.mxu0 0
        %3797 = vmatprep.subr.bf16.mxu0 0
        %3798 = vmatpush2.bf16.msra.mxu0 0
        %3799 = vmatprep.subr.bf16.mxu0 0
        %3800 = vmatpush2.bf16.msra.mxu0 0
        %3801 = vmatprep.mubr.bf16.mxu0 0
        %3802 = vmatmul.mubr.bf16.gmra.mxu0 %v3764
        %v3803 = vpop.f32.mrf.mxu0
        %v3804 = vadd.f32 0.0, %v3803
        %v3805 = vpop.f32.mrf.mxu0
        %v3806 = vpop.f32.mrf.mxu0
        %v3807 = vpop.f32.mrf.mxu0
        %3808 = vdwg.mxu0
        %3809 = vrot.lane.b32.xlu0 %v3585, 112
        %v3810 = vpop.permute.xlu0 %3809
        %3811 = vrot.lane.b32.xlu0 %v3585, 80
        %v3812 = vpop.permute.xlu0 %3811
        %v3814 = vsel %vm930, %v3810, 0
        %v3817 = vsel %vm930, %v3812, 0
        %3819 = vmatprep.subr.bf16.mxu0 0
        %3820 = vmatpush1.bf16.xpose.msra.mxu0 0
        %3821 = vmatprep.subr.bf16.mxu0 0
        %3822 = vmatpush1.bf16.xpose.msra.mxu0 0
        %3823 = vmatprep.subr.bf16.mxu0 0
        %3824 = vmatpush1.bf16.xpose.msra.mxu0 0
        %3825 = vmatprep.subr.bf16.mxu0 0
        %3826 = vmatpush1.bf16.xpose.msra.mxu0 0
        %3827 = vmatprep.subr.bf16.mxu0 0
        %3828 = vmatpush1.bf16.xpose.msra.mxu0 0
        %3829 = vmatprep.subr.bf16.mxu0 0
        %3830 = vmatpush1.bf16.xpose.msra.mxu0 0
        %3831 = vmatprep.subr.bf16.mxu0 0
        %3832 = vmatpush1.bf16.xpose.msra.mxu0 0
        %3833 = vmatprep.subr.bf16.mxu0 0
        %3834 = vmatpush1.bf16.xpose.msra.mxu0 %v3817
        %3835 = vmatprep.subr.bf16.mxu0 0
        %3836 = vmatpush2.bf16.xpose.msra.mxu0 0
        %3837 = vmatprep.subr.bf16.mxu0 0
        %3838 = vmatpush2.bf16.xpose.msra.mxu0 0
        %3839 = vmatprep.subr.bf16.mxu0 0
        %3840 = vmatpush2.bf16.xpose.msra.mxu0 0
        %3841 = vmatprep.subr.bf16.mxu0 0
        %3842 = vmatpush2.bf16.xpose.msra.mxu0 0
        %3843 = vmatprep.subr.bf16.mxu0 0
        %3844 = vmatpush2.bf16.xpose.msra.mxu0 0
        %3845 = vmatprep.subr.bf16.mxu0 0
        %3846 = vmatpush2.bf16.xpose.msra.mxu0 0
        %3847 = vmatprep.subr.bf16.mxu0 0
        %3848 = vmatpush2.bf16.xpose.msra.mxu0 0
        %3849 = vmatprep.subr.bf16.mxu0 0
        %3850 = vmatpush2.bf16.xpose.msra.mxu0 0
        %3851 = vmatprep.mubr.bf16.mxu0 0
        %3852 = vmatmul.mubr.bf16.gmra.mxu0 %v3814
        %v3853 = vpop.f32.mrf.mxu0
        %v3854 = vadd.f32 0.0, %v3853
        %v3855 = vpop.f32.mrf.mxu0
        %v3856 = vpop.f32.mrf.mxu0
        %v3857 = vpop.f32.mrf.mxu0
        %3858 = vdwg.mxu0
        %v3859 = vmul.f32 %v3854, 0.35355338
        %v3860 = vadd.f32 %v3859, %v982
        %v3861 = vsel %vm930, %v3860, -inf
        %3862 = vmax.xlane.f32.xlu0 %v3861
        %v3863 = vpop.xlane.xlu0 %3862
        %v3864 = vsub.f32 %v3860, %v3863
        %v3865 = vmul.f32 %v3864, 1.442695
        %v3866 = vpow.pop %v3865
        %v3867 = vsel %vm930, %v3866, 0.0
        %3868 = vadd.xlane.f32.xlu0 %v3867
        %v3869 = vpop.xlane.xlu0 %3868
        %v3870 = vrcp.pop %v3869
        %v3871 = vmul.f32 %v3866, %v3870
        %v3872 = vpack.c.bf16 %v3871, %v3871
        %3873 = vrot.lane.b32.xlu0 %v3585, 48
        %v3874 = vpop.permute.xlu0 %3873
        %v3876 = vsel %vm930, %v3872, 0
        %v3879 = vsel %vm1002, %v3874, 0
        %3881 = vmatprep.subr.bf16.mxu0 0
        %3882 = vmatpush1.bf16.msra.mxu0 0
        %3883 = vmatprep.subr.bf16.mxu0 0
        %3884 = vmatpush1.bf16.msra.mxu0 0
        %3885 = vmatprep.subr.bf16.mxu0 0
        %3886 = vmatpush1.bf16.msra.mxu0 0
        %3887 = vmatprep.subr.bf16.mxu0 0
        %3888 = vmatpush1.bf16.msra.mxu0 0
        %3889 = vmatprep.subr.bf16.mxu0 0
        %3890 = vmatpush1.bf16.msra.mxu0 0
        %3891 = vmatprep.subr.bf16.mxu0 0
        %3892 = vmatpush1.bf16.msra.mxu0 0
        %3893 = vmatprep.subr.bf16.mxu0 0
        %3894 = vmatpush1.bf16.msra.mxu0 0
        %3895 = vmatprep.subr.bf16.mxu0 0
        %3896 = vmatpush1.bf16.msra.mxu0 %v3879
        %3897 = vmatprep.subr.bf16.mxu0 0
        %3898 = vmatpush2.bf16.msra.mxu0 0
        %3899 = vmatprep.subr.bf16.mxu0 0
        %3900 = vmatpush2.bf16.msra.mxu0 0
        %3901 = vmatprep.subr.bf16.mxu0 0
        %3902 = vmatpush2.bf16.msra.mxu0 0
        %3903 = vmatprep.subr.bf16.mxu0 0
        %3904 = vmatpush2.bf16.msra.mxu0 0
        %3905 = vmatprep.subr.bf16.mxu0 0
        %3906 = vmatpush2.bf16.msra.mxu0 0
        %3907 = vmatprep.subr.bf16.mxu0 0
        %3908 = vmatpush2.bf16.msra.mxu0 0
        %3909 = vmatprep.subr.bf16.mxu0 0
        %3910 = vmatpush2.bf16.msra.mxu0 0
        %3911 = vmatprep.subr.bf16.mxu0 0
        %3912 = vmatpush2.bf16.msra.mxu0 0
        %3913 = vmatprep.mubr.bf16.mxu0 0
        %3914 = vmatmul.mubr.bf16.gmra.mxu0 %v3876
        %v3915 = vpop.f32.mrf.mxu0
        %v3916 = vadd.f32 0.0, %v3915
        %v3917 = vpop.f32.mrf.mxu0
        %v3918 = vpop.f32.mrf.mxu0
        %v3919 = vpop.f32.mrf.mxu0
        %3920 = vdwg.mxu0
        %3921 = vrot.lane.b32.xlu0 %v3585, 104
        %v3922 = vpop.permute.xlu0 %3921
        %3923 = vrot.lane.b32.xlu0 %v3585, 72
        %v3924 = vpop.permute.xlu0 %3923
        %v3926 = vsel %vm930, %v3922, 0
        %v3929 = vsel %vm930, %v3924, 0
        %3931 = vmatprep.subr.bf16.mxu0 0
        %3932 = vmatpush1.bf16.xpose.msra.mxu0 0
        %3933 = vmatprep.subr.bf16.mxu0 0
        %3934 = vmatpush1.bf16.xpose.msra.mxu0 0
        %3935 = vmatprep.subr.bf16.mxu0 0
        %3936 = vmatpush1.bf16.xpose.msra.mxu0 0
        %3937 = vmatprep.subr.bf16.mxu0 0
        %3938 = vmatpush1.bf16.xpose.msra.mxu0 0
        %3939 = vmatprep.subr.bf16.mxu0 0
        %3940 = vmatpush1.bf16.xpose.msra.mxu0 0
        %3941 = vmatprep.subr.bf16.mxu0 0
        %3942 = vmatpush1.bf16.xpose.msra.mxu0 0
        %3943 = vmatprep.subr.bf16.mxu0 0
        %3944 = vmatpush1.bf16.xpose.msra.mxu0 0
        %3945 = vmatprep.subr.bf16.mxu0 0
        %3946 = vmatpush1.bf16.xpose.msra.mxu0 %v3929
        %3947 = vmatprep.subr.bf16.mxu0 0
        %3948 = vmatpush2.bf16.xpose.msra.mxu0 0
        %3949 = vmatprep.subr.bf16.mxu0 0
        %3950 = vmatpush2.bf16.xpose.msra.mxu0 0
        %3951 = vmatprep.subr.bf16.mxu0 0
        %3952 = vmatpush2.bf16.xpose.msra.mxu0 0
        %3953 = vmatprep.subr.bf16.mxu0 0
        %3954 = vmatpush2.bf16.xpose.msra.mxu0 0
        %3955 = vmatprep.subr.bf16.mxu0 0
        %3956 = vmatpush2.bf16.xpose.msra.mxu0 0
        %3957 = vmatprep.subr.bf16.mxu0 0
        %3958 = vmatpush2.bf16.xpose.msra.mxu0 0
        %3959 = vmatprep.subr.bf16.mxu0 0
        %3960 = vmatpush2.bf16.xpose.msra.mxu0 0
        %3961 = vmatprep.subr.bf16.mxu0 0
        %3962 = vmatpush2.bf16.xpose.msra.mxu0 0
        %3963 = vmatprep.mubr.bf16.mxu0 0
        %3964 = vmatmul.mubr.bf16.gmra.mxu0 %v3926
        %v3965 = vpop.f32.mrf.mxu0
        %v3966 = vadd.f32 0.0, %v3965
        %v3967 = vpop.f32.mrf.mxu0
        %v3968 = vpop.f32.mrf.mxu0
        %v3969 = vpop.f32.mrf.mxu0
        %3970 = vdwg.mxu0
        %v3971 = vmul.f32 %v3966, 0.35355338
        %v3972 = vadd.f32 %v3971, %v982
        %v3973 = vsel %vm930, %v3972, -inf
        %3974 = vmax.xlane.f32.xlu0 %v3973
        %v3975 = vpop.xlane.xlu0 %3974
        %v3976 = vsub.f32 %v3972, %v3975
        %v3977 = vmul.f32 %v3976, 1.442695
        %v3978 = vpow.pop %v3977
        %v3979 = vsel %vm930, %v3978, 0.0
        %3980 = vadd.xlane.f32.xlu0 %v3979
        %v3981 = vpop.xlane.xlu0 %3980
        %v3982 = vrcp.pop %v3981
        %v3983 = vmul.f32 %v3978, %v3982
        %v3984 = vpack.c.bf16 %v3983, %v3983
        %3985 = vrot.lane.b32.xlu0 %v3585, 40
        %v3986 = vpop.permute.xlu0 %3985
        %v3988 = vsel %vm930, %v3984, 0
        %v3991 = vsel %vm1002, %v3986, 0
        %3993 = vmatprep.subr.bf16.mxu0 0
        %3994 = vmatpush1.bf16.msra.mxu0 0
        %3995 = vmatprep.subr.bf16.mxu0 0
        %3996 = vmatpush1.bf16.msra.mxu0 0
        %3997 = vmatprep.subr.bf16.mxu0 0
        %3998 = vmatpush1.bf16.msra.mxu0 0
        %3999 = vmatprep.subr.bf16.mxu0 0
        %4000 = vmatpush1.bf16.msra.mxu0 0
        %4001 = vmatprep.subr.bf16.mxu0 0
        %4002 = vmatpush1.bf16.msra.mxu0 0
        %4003 = vmatprep.subr.bf16.mxu0 0
        %4004 = vmatpush1.bf16.msra.mxu0 0
        %4005 = vmatprep.subr.bf16.mxu0 0
        %4006 = vmatpush1.bf16.msra.mxu0 0
        %4007 = vmatprep.subr.bf16.mxu0 0
        %4008 = vmatpush1.bf16.msra.mxu0 %v3991
        %4009 = vmatprep.subr.bf16.mxu0 0
        %4010 = vmatpush2.bf16.msra.mxu0 0
        %4011 = vmatprep.subr.bf16.mxu0 0
        %4012 = vmatpush2.bf16.msra.mxu0 0
        %4013 = vmatprep.subr.bf16.mxu0 0
        %4014 = vmatpush2.bf16.msra.mxu0 0
        %4015 = vmatprep.subr.bf16.mxu0 0
        %4016 = vmatpush2.bf16.msra.mxu0 0
        %4017 = vmatprep.subr.bf16.mxu0 0
        %4018 = vmatpush2.bf16.msra.mxu0 0
        %4019 = vmatprep.subr.bf16.mxu0 0
        %4020 = vmatpush2.bf16.msra.mxu0 0
        %4021 = vmatprep.subr.bf16.mxu0 0
        %4022 = vmatpush2.bf16.msra.mxu0 0
        %4023 = vmatprep.subr.bf16.mxu0 0
        %4024 = vmatpush2.bf16.msra.mxu0 0
        %4025 = vmatprep.mubr.bf16.mxu0 0
        %4026 = vmatmul.mubr.bf16.gmra.mxu0 %v3988
        %v4027 = vpop.f32.mrf.mxu0
        %v4028 = vadd.f32 0.0, %v4027
        %v4029 = vpop.f32.mrf.mxu0
        %v4030 = vpop.f32.mrf.mxu0
        %v4031 = vpop.f32.mrf.mxu0
        %4032 = vdwg.mxu0
        %4034 = vrot.lane.b32.xlu0 %v3804, 8
        %v4035 = vpop.permute.xlu0 %4034
        %4038 = vrot.lane.b32.xlu0 %v3916, 16
        %v4039 = vpop.permute.xlu0 %4038
        %4042 = vrot.lane.b32.xlu0 %v4028, 24
        %v4043 = vpop.permute.xlu0 %4042
        %v4045 = vsel %vm930, %v3692, %v4035
        %v4046 = vsel %vm1395, %v4045, %v4039
        %v4047 = vsel %vm1397, %v4046, %v4043
        %v4048 = vpack.c.bf16 %v4047, %v4047
        %v4049 = vld [vmem:[%s16] sm:$0xf]
        %v4050 = vld [vmem:[%s16 + $0x4] sm:$0xf]
        %v4051 = vld [vmem:[%s16 + $0x8] sm:$0xf]
        %v4052 = vld [vmem:[%s16 + $0xc] sm:$0xf]
        %v4053 = vld [vmem:[%s17] sm:$0x1]
        %v4055 = vlaneseq
        %v4056 = vshrl.u32 %v4055, 7
        %v4057 = vsub.s32 0, %v4056
        %v4058 = vrot.slane %v4053, %v4057
        %v4064 = vunpack.c.l.b16 %v4049
        %v4065 = vunpack.c.l.b16 %v4050
        %v4066 = vunpack.c.l.b16 %v4051
        %v4067 = vunpack.c.l.b16 %v4052
        %v4068 = vpack.c.b16 %v4065, %v4064
        %v4069 = vpack.c.b16 %v4067, %v4066
        %v4073 = vsel %vm882, %v4048, 0
        %4075 = vmatprep.subr.bf16.mxu0 0
        %4076 = vmatpush1.bf16.msra.mxu0 0
        %4077 = vmatprep.subr.bf16.mxu0 0
        %4078 = vmatpush1.bf16.msra.mxu0 0
        %4079 = vmatprep.subr.bf16.mxu0 0
        %4080 = vmatpush1.bf16.msra.mxu0 0
        %4081 = vmatprep.subr.bf16.mxu0 0
        %4082 = vmatpush1.bf16.msra.mxu0 0
        %4083 = vmatprep.subr.bf16.mxu0 0
        %4084 = vmatpush1.bf16.msra.mxu0 0
        %4085 = vmatprep.subr.bf16.mxu0 0
        %4086 = vmatpush1.bf16.msra.mxu0 0
        %4087 = vmatprep.subr.bf16.mxu0 0
        %4088 = vmatpush1.bf16.msra.mxu0 %v4069
        %4089 = vmatprep.subr.bf16.mxu0 0
        %4090 = vmatpush1.bf16.msra.mxu0 %v4068
        %4091 = vmatprep.subr.bf16.mxu0 0
        %4092 = vmatpush2.bf16.msra.mxu0 0
        %4093 = vmatprep.subr.bf16.mxu0 0
        %4094 = vmatpush2.bf16.msra.mxu0 0
        %4095 = vmatprep.subr.bf16.mxu0 0
        %4096 = vmatpush2.bf16.msra.mxu0 0
        %4097 = vmatprep.subr.bf16.mxu0 0
        %4098 = vmatpush2.bf16.msra.mxu0 0
        %4099 = vmatprep.subr.bf16.mxu0 0
        %4100 = vmatpush2.bf16.msra.mxu0 0
        %4101 = vmatprep.subr.bf16.mxu0 0
        %4102 = vmatpush2.bf16.msra.mxu0 0
        %4103 = vmatprep.subr.bf16.mxu0 0
        %4104 = vmatpush2.bf16.msra.mxu0 0
        %4105 = vmatprep.subr.bf16.mxu0 0
        %4106 = vmatpush2.bf16.msra.mxu0 0
        %4107 = vmatprep.mubr.bf16.mxu0 0
        %4108 = vmatmul.mubr.bf16.gmra.mxu0 %v4073
        %v4109 = vpop.f32.mrf.mxu0
        %v4110 = vadd.f32 %v4058, %v4109
        %v4111 = vpop.f32.mrf.mxu0
        %v4112 = vpop.f32.mrf.mxu0
        %v4113 = vpop.f32.mrf.mxu0
        %4114 = vdwg.mxu0
        %v4115 = vadd.f32 %v4110, %v3517
        %v4116 = vld [vmem:[%s18] sm:$0x1]
        %v4117 = vld [vmem:[%s19] sm:$0x1]
        %v4118 = vsel %vm882, %v4115, 0.0
        %4119 = vadd.xlane.f32.xlu0 %v4118
        %v4120 = vpop.xlane.xlu0 %4119
        %v4121 = vmul.f32 %v4120, %v1472
        %v4122 = vsub.f32 %v4115, %v4121
        %v4123 = vmul.f32 %v4122, %v4122
        %v4124 = vsel %vm882, %v4123, 0.0
        %4125 = vadd.xlane.f32.xlu0 %v4124
        %v4126 = vpop.xlane.xlu0 %4125
        %v4127 = vmul.f32 %v4126, %v1472
        %v4128 = vadd.f32 %v4127, 1e-05
        %v4129 = vrsqrt.pop %v4128
        %v4130 = vmul.f32 %v4122, %v4129
        %v4132 = vlaneseq
        %v4133 = vshrl.u32 %v4132, 7
        %v4134 = vsub.s32 0, %v4133
        %v4135 = vrot.slane %v4116, %v4134
        %v4137 = vmul.f32 %v4130, %v4135
        %v4139 = vlaneseq
        %v4140 = vshrl.u32 %v4139, 7
        %v4141 = vsub.s32 0, %v4140
        %v4142 = vrot.slane %v4117, %v4141
        %v4144 = vadd.f32 %v4137, %v4142
        %v4145 = vpack.c.bf16 %v4144, %v4144
        %v4146 = vld [vmem:[%s20] sm:$0xff]
        %v4147 = vld [vmem:[%s20 + $0x8] sm:$0xff]
        %v4148 = vld [vmem:[%s20 + $0x10] sm:$0xff]
        %v4149 = vld [vmem:[%s20 + $0x18] sm:$0xff]
        %v4150 = vld [vmem:[%s20 + $0x20] sm:$0xff]
        %v4151 = vld [vmem:[%s20 + $0x28] sm:$0xff]
        %v4152 = vld [vmem:[%s20 + $0x30] sm:$0xff]
        %v4153 = vld [vmem:[%s20 + $0x38] sm:$0xff]
        %v4154 = vld [vmem:[%s20 + $0x40] sm:$0xff]
        %v4155 = vld [vmem:[%s20 + $0x48] sm:$0xff]
        %v4156 = vld [vmem:[%s20 + $0x50] sm:$0xff]
        %v4157 = vld [vmem:[%s20 + $0x58] sm:$0xff]
        %v4158 = vld [vmem:[%s20 + $0x60] sm:$0xff]
        %v4159 = vld [vmem:[%s20 + $0x68] sm:$0xff]
        %v4160 = vld [vmem:[%s20 + $0x70] sm:$0xff]
        %v4161 = vld [vmem:[%s20 + $0x78] sm:$0xff]
        %v4162 = vld [vmem:[%s20 + $0x80] sm:$0xff]
        %v4163 = vld [vmem:[%s20 + $0x88] sm:$0xff]
        %v4164 = vld [vmem:[%s20 + $0x90] sm:$0xff]
        %v4165 = vld [vmem:[%s20 + $0x98] sm:$0xff]
        %v4166 = vld [vmem:[%s20 + $0xa0] sm:$0xff]
        %v4167 = vld [vmem:[%s20 + $0xa8] sm:$0xff]
        %v4168 = vld [vmem:[%s20 + $0xb0] sm:$0xff]
        %v4169 = vld [vmem:[%s20 + $0xb8] sm:$0xff]
        %v4170 = vld [vmem:[%s20 + $0xc0] sm:$0xff]
        %v4171 = vld [vmem:[%s20 + $0xc8] sm:$0xff]
        %v4172 = vld [vmem:[%s20 + $0xd0] sm:$0xff]
        %v4173 = vld [vmem:[%s20 + $0xd8] sm:$0xff]
        %v4174 = vld [vmem:[%s20 + $0xe0] sm:$0xff]
        %v4175 = vld [vmem:[%s20 + $0xe8] sm:$0xff]
        %v4176 = vld [vmem:[%s20 + $0xf0] sm:$0xff]
        %v4177 = vld [vmem:[%s20 + $0xf8] sm:$0xff]
        %v4178 = vld [vmem:[%s21] sm:$0xff]
        %v4179 = vld [vmem:[%s21 + $0x8] sm:$0xff]
        %v4182 = vlaneseq
        %v4183 = vshrl.u32 %v4182, 7
        %v4184 = vsub.s32 0, %v4183
        %v4185 = vrot.slane %v4178, %v4184
        %v4186 = vlaneseq
        %v4187 = vshrl.u32 %v4186, 7
        %v4188 = vsub.s32 1, %v4187
        %v4189 = vrot.slane %v4178, %v4188
        %v4190 = vlaneseq
        %v4191 = vshrl.u32 %v4190, 7
        %v4192 = vsub.s32 2, %v4191
        %v4193 = vrot.slane %v4178, %v4192
        %v4194 = vlaneseq
        %v4195 = vshrl.u32 %v4194, 7
        %v4196 = vsub.s32 3, %v4195
        %v4197 = vrot.slane %v4178, %v4196
        %v4198 = vlaneseq
        %v4199 = vshrl.u32 %v4198, 7
        %v4200 = vsub.s32 4, %v4199
        %v4201 = vrot.slane %v4178, %v4200
        %v4202 = vlaneseq
        %v4203 = vshrl.u32 %v4202, 7
        %v4204 = vsub.s32 5, %v4203
        %v4205 = vrot.slane %v4178, %v4204
        %v4206 = vlaneseq
        %v4207 = vshrl.u32 %v4206, 7
        %v4208 = vsub.s32 6, %v4207
        %v4209 = vrot.slane %v4178, %v4208
        %v4210 = vlaneseq
        %v4211 = vshrl.u32 %v4210, 7
        %v4212 = vsub.s32 7, %v4211
        %v4213 = vrot.slane %v4178, %v4212
        %v4214 = vlaneseq
        %v4215 = vshrl.u32 %v4214, 7
        %v4216 = vsub.s32 0, %v4215
        %v4217 = vrot.slane %v4179, %v4216
        %v4218 = vlaneseq
        %v4219 = vshrl.u32 %v4218, 7
        %v4220 = vsub.s32 1, %v4219
        %v4221 = vrot.slane %v4179, %v4220
        %v4222 = vlaneseq
        %v4223 = vshrl.u32 %v4222, 7
        %v4224 = vsub.s32 2, %v4223
        %v4225 = vrot.slane %v4179, %v4224
        %v4226 = vlaneseq
        %v4227 = vshrl.u32 %v4226, 7
        %v4228 = vsub.s32 3, %v4227
        %v4229 = vrot.slane %v4179, %v4228
        %v4230 = vlaneseq
        %v4231 = vshrl.u32 %v4230, 7
        %v4232 = vsub.s32 4, %v4231
        %v4233 = vrot.slane %v4179, %v4232
        %v4234 = vlaneseq
        %v4235 = vshrl.u32 %v4234, 7
        %v4236 = vsub.s32 5, %v4235
        %v4237 = vrot.slane %v4179, %v4236
        %v4238 = vlaneseq
        %v4239 = vshrl.u32 %v4238, 7
        %v4240 = vsub.s32 6, %v4239
        %v4241 = vrot.slane %v4179, %v4240
        %v4242 = vlaneseq
        %v4243 = vshrl.u32 %v4242, 7
        %v4244 = vsub.s32 7, %v4243
        %v4245 = vrot.slane %v4179, %v4244
        %v4294 = vunpack.c.l.b16 %v4146
        %v4295 = vunpack.c.h.b16 %v4146
        %v4296 = vunpack.c.l.b16 %v4147
        %v4297 = vunpack.c.h.b16 %v4147
        %v4298 = vunpack.c.l.b16 %v4148
        %v4299 = vunpack.c.h.b16 %v4148
        %v4300 = vunpack.c.l.b16 %v4149
        %v4301 = vunpack.c.h.b16 %v4149
        %v4302 = vunpack.c.l.b16 %v4150
        %v4303 = vunpack.c.h.b16 %v4150
        %v4304 = vunpack.c.l.b16 %v4151
        %v4305 = vunpack.c.h.b16 %v4151
        %v4306 = vunpack.c.l.b16 %v4152
        %v4307 = vunpack.c.h.b16 %v4152
        %v4308 = vunpack.c.l.b16 %v4153
        %v4309 = vunpack.c.h.b16 %v4153
        %v4310 = vunpack.c.l.b16 %v4154
        %v4311 = vunpack.c.h.b16 %v4154
        %v4312 = vunpack.c.l.b16 %v4155
        %v4313 = vunpack.c.h.b16 %v4155
        %v4314 = vunpack.c.l.b16 %v4156
        %v4315 = vunpack.c.h.b16 %v4156
        %v4316 = vunpack.c.l.b16 %v4157
        %v4317 = vunpack.c.h.b16 %v4157
        %v4318 = vunpack.c.l.b16 %v4158
        %v4319 = vunpack.c.h.b16 %v4158
        %v4320 = vunpack.c.l.b16 %v4159
        %v4321 = vunpack.c.h.b16 %v4159
        %v4322 = vunpack.c.l.b16 %v4160
        %v4323 = vunpack.c.h.b16 %v4160
        %v4324 = vunpack.c.l.b16 %v4161
        %v4325 = vunpack.c.h.b16 %v4161
        %v4326 = vunpack.c.l.b16 %v4162
        %v4327 = vunpack.c.h.b16 %v4162
        %v4328 = vunpack.c.l.b16 %v4163
        %v4329 = vunpack.c.h.b16 %v4163
        %v4330 = vunpack.c.l.b16 %v4164
        %v4331 = vunpack.c.h.b16 %v4164
        %v4332 = vunpack.c.l.b16 %v4165
        %v4333 = vunpack.c.h.b16 %v4165
        %v4334 = vunpack.c.l.b16 %v4166
        %v4335 = vunpack.c.h.b16 %v4166
        %v4336 = vunpack.c.l.b16 %v4167
        %v4337 = vunpack.c.h.b16 %v4167
        %v4338 = vunpack.c.l.b16 %v4168
        %v4339 = vunpack.c.h.b16 %v4168
        %v4340 = vunpack.c.l.b16 %v4169
        %v4341 = vunpack.c.h.b16 %v4169
        %v4342 = vunpack.c.l.b16 %v4170
        %v4343 = vunpack.c.h.b16 %v4170
        %v4344 = vunpack.c.l.b16 %v4171
        %v4345 = vunpack.c.h.b16 %v4171
        %v4346 = vunpack.c.l.b16 %v4172
        %v4347 = vunpack.c.h.b16 %v4172
        %v4348 = vunpack.c.l.b16 %v4173
        %v4349 = vunpack.c.h.b16 %v4173
        %v4350 = vunpack.c.l.b16 %v4174
        %v4351 = vunpack.c.h.b16 %v4174
        %v4352 = vunpack.c.l.b16 %v4175
        %v4353 = vunpack.c.h.b16 %v4175
        %v4354 = vunpack.c.l.b16 %v4176
        %v4355 = vunpack.c.h.b16 %v4176
        %v4356 = vunpack.c.l.b16 %v4177
        %v4357 = vunpack.c.h.b16 %v4177
        %v4358 = vpack.c.b16 %v4310, %v4294
        %v4359 = vpack.c.b16 %v4311, %v4295
        %v4360 = vpack.c.b16 %v4312, %v4296
        %v4361 = vpack.c.b16 %v4313, %v4297
        %v4362 = vpack.c.b16 %v4314, %v4298
        %v4363 = vpack.c.b16 %v4315, %v4299
        %v4364 = vpack.c.b16 %v4316, %v4300
        %v4365 = vpack.c.b16 %v4317, %v4301
        %v4366 = vpack.c.b16 %v4318, %v4302
        %v4367 = vpack.c.b16 %v4319, %v4303
        %v4368 = vpack.c.b16 %v4320, %v4304
        %v4369 = vpack.c.b16 %v4321, %v4305
        %v4370 = vpack.c.b16 %v4322, %v4306
        %v4371 = vpack.c.b16 %v4323, %v4307
        %v4372 = vpack.c.b16 %v4324, %v4308
        %v4373 = vpack.c.b16 %v4325, %v4309
        %v4374 = vpack.c.b16 %v4342, %v4326
        %v4375 = vpack.c.b16 %v4343, %v4327
        %v4376 = vpack.c.b16 %v4344, %v4328
        %v4377 = vpack.c.b16 %v4345, %v4329
        %v4378 = vpack.c.b16 %v4346, %v4330
        %v4379 = vpack.c.b16 %v4347, %v4331
        %v4380 = vpack.c.b16 %v4348, %v4332
        %v4381 = vpack.c.b16 %v4349, %v4333
        %v4382 = vpack.c.b16 %v4350, %v4334
        %v4383 = vpack.c.b16 %v4351, %v4335
        %v4384 = vpack.c.b16 %v4352, %v4336
        %v4385 = vpack.c.b16 %v4353, %v4337
        %v4386 = vpack.c.b16 %v4354, %v4338
        %v4387 = vpack.c.b16 %v4355, %v4339
        %v4388 = vpack.c.b16 %v4356, %v4340
        %v4389 = vpack.c.b16 %v4357, %v4341
        %v4423 = vsel %vm882, %v4145, 0
        %4425 = vmatprep.subr.bf16.mxu0 0
        %4426 = vmatpush1.bf16.msra.mxu0 0
        %4427 = vmatprep.subr.bf16.mxu0 0
        %4428 = vmatpush1.bf16.msra.mxu0 0
        %4429 = vmatprep.subr.bf16.mxu0 0
        %4430 = vmatpush1.bf16.msra.mxu0 0
        %4431 = vmatprep.subr.bf16.mxu0 0
        %4432 = vmatpush1.bf16.msra.mxu0 0
        %4433 = vmatprep.subr.bf16.mxu0 0
        %4434 = vmatpush1.bf16.msra.mxu0 0
        %4435 = vmatprep.subr.bf16.mxu0 0
        %4436 = vmatpush1.bf16.msra.mxu0 0
        %4437 = vmatprep.subr.bf16.mxu0 %v4375
        %4438 = vmatpush1.bf16.msra.mxu0 %v4374
        %4439 = vmatprep.subr.bf16.mxu0 %v4359
        %4440 = vmatpush1.bf16.msra.mxu0 %v4358
        %4441 = vmatprep.subr.bf16.mxu0 0
        %4442 = vmatpush2.bf16.msra.mxu0 0
        %4443 = vmatprep.subr.bf16.mxu0 0
        %4444 = vmatpush2.bf16.msra.mxu0 0
        %4445 = vmatprep.subr.bf16.mxu0 0
        %4446 = vmatpush2.bf16.msra.mxu0 0
        %4447 = vmatprep.subr.bf16.mxu0 0
        %4448 = vmatpush2.bf16.msra.mxu0 0
        %4449 = vmatprep.subr.bf16.mxu0 0
        %4450 = vmatpush2.bf16.msra.mxu0 0
        %4451 = vmatprep.subr.bf16.mxu0 0
        %4452 = vmatpush2.bf16.msra.mxu0 0
        %4453 = vmatprep.subr.bf16.mxu0 0
        %4454 = vmatpush2.bf16.msra.mxu0 0
        %4455 = vmatprep.subr.bf16.mxu0 0
        %4456 = vmatpush2.bf16.msra.mxu0 0
        %4457 = vmatprep.mubr.bf16.mxu0 0
        %4458 = vmatmul.mubr.bf16.gmra.mxu0 %v4423
        %v4459 = vpop.f32.mrf.mxu0
        %v4460 = vadd.f32 %v4185, %v4459
        %v4461 = vpop.f32.mrf.mxu0
        %v4462 = vadd.f32 %v4189, %v4461
        %v4463 = vpop.f32.mrf.mxu0
        %v4464 = vpop.f32.mrf.mxu0
        %4465 = vdwg.mxu0
        %4466 = vmatprep.subr.bf16.mxu0 0
        %4467 = vmatpush1.bf16.msra.mxu0 0
        %4468 = vmatprep.subr.bf16.mxu0 0
        %4469 = vmatpush1.bf16.msra.mxu0 0
        %4470 = vmatprep.subr.bf16.mxu0 0
        %4471 = vmatpush1.bf16.msra.mxu0 0
        %4472 = vmatprep.subr.bf16.mxu0 0
        %4473 = vmatpush1.bf16.msra.mxu0 0
        %4474 = vmatprep.subr.bf16.mxu0 0
        %4475 = vmatpush1.bf16.msra.mxu0 0
        %4476 = vmatprep.subr.bf16.mxu0 0
        %4477 = vmatpush1.bf16.msra.mxu0 0
        %4478 = vmatprep.subr.bf16.mxu0 %v4377
        %4479 = vmatpush1.bf16.msra.mxu0 %v4376
        %4480 = vmatprep.subr.bf16.mxu0 %v4361
        %4481 = vmatpush1.bf16.msra.mxu0 %v4360
        %4482 = vmatprep.subr.bf16.mxu0 0
        %4483 = vmatpush2.bf16.msra.mxu0 0
        %4484 = vmatprep.subr.bf16.mxu0 0
        %4485 = vmatpush2.bf16.msra.mxu0 0
        %4486 = vmatprep.subr.bf16.mxu0 0
        %4487 = vmatpush2.bf16.msra.mxu0 0
        %4488 = vmatprep.subr.bf16.mxu0 0
        %4489 = vmatpush2.bf16.msra.mxu0 0
        %4490 = vmatprep.subr.bf16.mxu0 0
        %4491 = vmatpush2.bf16.msra.mxu0 0
        %4492 = vmatprep.subr.bf16.mxu0 0
        %4493 = vmatpush2.bf16.msra.mxu0 0
        %4494 = vmatprep.subr.bf16.mxu0 0
        %4495 = vmatpush2.bf16.msra.mxu0 0
        %4496 = vmatprep.subr.bf16.mxu0 0
        %4497 = vmatpush2.bf16.msra.mxu0 0
        %4498 = vmatprep.mubr.bf16.mxu0 0
        %4499 = vmatmul.mubr.bf16.gmra.mxu0 %v4423
        %v4500 = vpop.f32.mrf.mxu0
        %v4501 = vadd.f32 %v4193, %v4500
        %v4502 = vpop.f32.mrf.mxu0
        %v4503 = vadd.f32 %v4197, %v4502
        %v4504 = vpop.f32.mrf.mxu0
        %v4505 = vpop.f32.mrf.mxu0
        %4506 = vdwg.mxu0
        %4507 = vmatprep.subr.bf16.mxu0 0
        %4508 = vmatpush1.bf16.msra.mxu0 0
        %4509 = vmatprep.subr.bf16.mxu0 0
        %4510 = vmatpush1.bf16.msra.mxu0 0
        %4511 = vmatprep.subr.bf16.mxu0 0
        %4512 = vmatpush1.bf16.msra.mxu0 0
        %4513 = vmatprep.subr.bf16.mxu0 0
        %4514 = vmatpush1.bf16.msra.mxu0 0
        %4515 = vmatprep.subr.bf16.mxu0 0
        %4516 = vmatpush1.bf16.msra.mxu0 0
        %4517 = vmatprep.subr.bf16.mxu0 0
        %4518 = vmatpush1.bf16.msra.mxu0 0
        %4519 = vmatprep.subr.bf16.mxu0 %v4379
        %4520 = vmatpush1.bf16.msra.mxu0 %v4378
        %4521 = vmatprep.subr.bf16.mxu0 %v4363
        %4522 = vmatpush1.bf16.msra.mxu0 %v4362
        %4523 = vmatprep.subr.bf16.mxu0 0
        %4524 = vmatpush2.bf16.msra.mxu0 0
        %4525 = vmatprep.subr.bf16.mxu0 0
        %4526 = vmatpush2.bf16.msra.mxu0 0
        %4527 = vmatprep.subr.bf16.mxu0 0
        %4528 = vmatpush2.bf16.msra.mxu0 0
        %4529 = vmatprep.subr.bf16.mxu0 0
        %4530 = vmatpush2.bf16.msra.mxu0 0
        %4531 = vmatprep.subr.bf16.mxu0 0
        %4532 = vmatpush2.bf16.msra.mxu0 0
        %4533 = vmatprep.subr.bf16.mxu0 0
        %4534 = vmatpush2.bf16.msra.mxu0 0
        %4535 = vmatprep.subr.bf16.mxu0 0
        %4536 = vmatpush2.bf16.msra.mxu0 0
        %4537 = vmatprep.subr.bf16.mxu0 0
        %4538 = vmatpush2.bf16.msra.mxu0 0
        %4539 = vmatprep.mubr.bf16.mxu0 0
        %4540 = vmatmul.mubr.bf16.gmra.mxu0 %v4423
        %v4541 = vpop.f32.mrf.mxu0
        %v4542 = vadd.f32 %v4201, %v4541
        %v4543 = vpop.f32.mrf.mxu0
        %v4544 = vadd.f32 %v4205, %v4543
        %v4545 = vpop.f32.mrf.mxu0
        %v4546 = vpop.f32.mrf.mxu0
        %4547 = vdwg.mxu0
        %4548 = vmatprep.subr.bf16.mxu0 0
        %4549 = vmatpush1.bf16.msra.mxu0 0
        %4550 = vmatprep.subr.bf16.mxu0 0
        %4551 = vmatpush1.bf16.msra.mxu0 0
        %4552 = vmatprep.subr.bf16.mxu0 0
        %4553 = vmatpush1.bf16.msra.mxu0 0
        %4554 = vmatprep.subr.bf16.mxu0 0
        %4555 = vmatpush1.bf16.msra.mxu0 0
        %4556 = vmatprep.subr.bf16.mxu0 0
        %4557 = vmatpush1.bf16.msra.mxu0 0
        %4558 = vmatprep.subr.bf16.mxu0 0
        %4559 = vmatpush1.bf16.msra.mxu0 0
        %4560 = vmatprep.subr.bf16.mxu0 %v4381
        %4561 = vmatpush1.bf16.msra.mxu0 %v4380
        %4562 = vmatprep.subr.bf16.mxu0 %v4365
        %4563 = vmatpush1.bf16.msra.mxu0 %v4364
        %4564 = vmatprep.subr.bf16.mxu0 0
        %4565 = vmatpush2.bf16.msra.mxu0 0
        %4566 = vmatprep.subr.bf16.mxu0 0
        %4567 = vmatpush2.bf16.msra.mxu0 0
        %4568 = vmatprep.subr.bf16.mxu0 0
        %4569 = vmatpush2.bf16.msra.mxu0 0
        %4570 = vmatprep.subr.bf16.mxu0 0
        %4571 = vmatpush2.bf16.msra.mxu0 0
        %4572 = vmatprep.subr.bf16.mxu0 0
        %4573 = vmatpush2.bf16.msra.mxu0 0
        %4574 = vmatprep.subr.bf16.mxu0 0
        %4575 = vmatpush2.bf16.msra.mxu0 0
        %4576 = vmatprep.subr.bf16.mxu0 0
        %4577 = vmatpush2.bf16.msra.mxu0 0
        %4578 = vmatprep.subr.bf16.mxu0 0
        %4579 = vmatpush2.bf16.msra.mxu0 0
        %4580 = vmatprep.mubr.bf16.mxu0 0
        %4581 = vmatmul.mubr.bf16.gmra.mxu0 %v4423
        %v4582 = vpop.f32.mrf.mxu0
        %v4583 = vadd.f32 %v4209, %v4582
        %v4584 = vpop.f32.mrf.mxu0
        %v4585 = vadd.f32 %v4213, %v4584
        %v4586 = vpop.f32.mrf.mxu0
        %v4587 = vpop.f32.mrf.mxu0
        %4588 = vdwg.mxu0
        %4589 = vmatprep.subr.bf16.mxu0 0
        %4590 = vmatpush1.bf16.msra.mxu0 0
        %4591 = vmatprep.subr.bf16.mxu0 0
        %4592 = vmatpush1.bf16.msra.mxu0 0
        %4593 = vmatprep.subr.bf16.mxu0 0
        %4594 = vmatpush1.bf16.msra.mxu0 0
        %4595 = vmatprep.subr.bf16.mxu0 0
        %4596 = vmatpush1.bf16.msra.mxu0 0
        %4597 = vmatprep.subr.bf16.mxu0 0
        %4598 = vmatpush1.bf16.msra.mxu0 0
        %4599 = vmatprep.subr.bf16.mxu0 0
        %4600 = vmatpush1.bf16.msra.mxu0 0
        %4601 = vmatprep.subr.bf16.mxu0 %v4383
        %4602 = vmatpush1.bf16.msra.mxu0 %v4382
        %4603 = vmatprep.subr.bf16.mxu0 %v4367
        %4604 = vmatpush1.bf16.msra.mxu0 %v4366
        %4605 = vmatprep.subr.bf16.mxu0 0
        %4606 = vmatpush2.bf16.msra.mxu0 0
        %4607 = vmatprep.subr.bf16.mxu0 0
        %4608 = vmatpush2.bf16.msra.mxu0 0
        %4609 = vmatprep.subr.bf16.mxu0 0
        %4610 = vmatpush2.bf16.msra.mxu0 0
        %4611 = vmatprep.subr.bf16.mxu0 0
        %4612 = vmatpush2.bf16.msra.mxu0 0
        %4613 = vmatprep.subr.bf16.mxu0 0
        %4614 = vmatpush2.bf16.msra.mxu0 0
        %4615 = vmatprep.subr.bf16.mxu0 0
        %4616 = vmatpush2.bf16.msra.mxu0 0
        %4617 = vmatprep.subr.bf16.mxu0 0
        %4618 = vmatpush2.bf16.msra.mxu0 0
        %4619 = vmatprep.subr.bf16.mxu0 0
        %4620 = vmatpush2.bf16.msra.mxu0 0
        %4621 = vmatprep.mubr.bf16.mxu0 0
        %4622 = vmatmul.mubr.bf16.gmra.mxu0 %v4423
        %v4623 = vpop.f32.mrf.mxu0
        %v4624 = vadd.f32 %v4217, %v4623
        %v4625 = vpop.f32.mrf.mxu0
        %v4626 = vadd.f32 %v4221, %v4625
        %v4627 = vpop.f32.mrf.mxu0
        %v4628 = vpop.f32.mrf.mxu0
        %4629 = vdwg.mxu0
        %4630 = vmatprep.subr.bf16.mxu0 0
        %4631 = vmatpush1.bf16.msra.mxu0 0
        %4632 = vmatprep.subr.bf16.mxu0 0
        %4633 = vmatpush1.bf16.msra.mxu0 0
        %4634 = vmatprep.subr.bf16.mxu0 0
        %4635 = vmatpush1.bf16.msra.mxu0 0
        %4636 = vmatprep.subr.bf16.mxu0 0
        %4637 = vmatpush1.bf16.msra.mxu0 0
        %4638 = vmatprep.subr.bf16.mxu0 0
        %4639 = vmatpush1.bf16.msra.mxu0 0
        %4640 = vmatprep.subr.bf16.mxu0 0
        %4641 = vmatpush1.bf16.msra.mxu0 0
        %4642 = vmatprep.subr.bf16.mxu0 %v4385
        %4643 = vmatpush1.bf16.msra.mxu0 %v4384
        %4644 = vmatprep.subr.bf16.mxu0 %v4369
        %4645 = vmatpush1.bf16.msra.mxu0 %v4368
        %4646 = vmatprep.subr.bf16.mxu0 0
        %4647 = vmatpush2.bf16.msra.mxu0 0
        %4648 = vmatprep.subr.bf16.mxu0 0
        %4649 = vmatpush2.bf16.msra.mxu0 0
        %4650 = vmatprep.subr.bf16.mxu0 0
        %4651 = vmatpush2.bf16.msra.mxu0 0
        %4652 = vmatprep.subr.bf16.mxu0 0
        %4653 = vmatpush2.bf16.msra.mxu0 0
        %4654 = vmatprep.subr.bf16.mxu0 0
        %4655 = vmatpush2.bf16.msra.mxu0 0
        %4656 = vmatprep.subr.bf16.mxu0 0
        %4657 = vmatpush2.bf16.msra.mxu0 0
        %4658 = vmatprep.subr.bf16.mxu0 0
        %4659 = vmatpush2.bf16.msra.mxu0 0
        %4660 = vmatprep.subr.bf16.mxu0 0
        %4661 = vmatpush2.bf16.msra.mxu0 0
        %4662 = vmatprep.mubr.bf16.mxu0 0
        %4663 = vmatmul.mubr.bf16.gmra.mxu0 %v4423
        %v4664 = vpop.f32.mrf.mxu0
        %v4665 = vadd.f32 %v4225, %v4664
        %v4666 = vpop.f32.mrf.mxu0
        %v4667 = vadd.f32 %v4229, %v4666
        %v4668 = vpop.f32.mrf.mxu0
        %v4669 = vpop.f32.mrf.mxu0
        %4670 = vdwg.mxu0
        %4671 = vmatprep.subr.bf16.mxu0 0
        %4672 = vmatpush1.bf16.msra.mxu0 0
        %4673 = vmatprep.subr.bf16.mxu0 0
        %4674 = vmatpush1.bf16.msra.mxu0 0
        %4675 = vmatprep.subr.bf16.mxu0 0
        %4676 = vmatpush1.bf16.msra.mxu0 0
        %4677 = vmatprep.subr.bf16.mxu0 0
        %4678 = vmatpush1.bf16.msra.mxu0 0
        %4679 = vmatprep.subr.bf16.mxu0 0
        %4680 = vmatpush1.bf16.msra.mxu0 0
        %4681 = vmatprep.subr.bf16.mxu0 0
        %4682 = vmatpush1.bf16.msra.mxu0 0
        %4683 = vmatprep.subr.bf16.mxu0 %v4387
        %4684 = vmatpush1.bf16.msra.mxu0 %v4386
        %4685 = vmatprep.subr.bf16.mxu0 %v4371
        %4686 = vmatpush1.bf16.msra.mxu0 %v4370
        %4687 = vmatprep.subr.bf16.mxu0 0
        %4688 = vmatpush2.bf16.msra.mxu0 0
        %4689 = vmatprep.subr.bf16.mxu0 0
        %4690 = vmatpush2.bf16.msra.mxu0 0
        %4691 = vmatprep.subr.bf16.mxu0 0
        %4692 = vmatpush2.bf16.msra.mxu0 0
        %4693 = vmatprep.subr.bf16.mxu0 0
        %4694 = vmatpush2.bf16.msra.mxu0 0
        %4695 = vmatprep.subr.bf16.mxu0 0
        %4696 = vmatpush2.bf16.msra.mxu0 0
        %4697 = vmatprep.subr.bf16.mxu0 0
        %4698 = vmatpush2.bf16.msra.mxu0 0
        %4699 = vmatprep.subr.bf16.mxu0 0
        %4700 = vmatpush2.bf16.msra.mxu0 0
        %4701 = vmatprep.subr.bf16.mxu0 0
        %4702 = vmatpush2.bf16.msra.mxu0 0
        %4703 = vmatprep.mubr.bf16.mxu0 0
        %4704 = vmatmul.mubr.bf16.gmra.mxu0 %v4423
        %v4705 = vpop.f32.mrf.mxu0
        %v4706 = vadd.f32 %v4233, %v4705
        %v4707 = vpop.f32.mrf.mxu0
        %v4708 = vadd.f32 %v4237, %v4707
        %v4709 = vpop.f32.mrf.mxu0
        %v4710 = vpop.f32.mrf.mxu0
        %4711 = vdwg.mxu0
        %4712 = vmatprep.subr.bf16.mxu0 0
        %4713 = vmatpush1.bf16.msra.mxu0 0
        %4714 = vmatprep.subr.bf16.mxu0 0
        %4715 = vmatpush1.bf16.msra.mxu0 0
        %4716 = vmatprep.subr.bf16.mxu0 0
        %4717 = vmatpush1.bf16.msra.mxu0 0
        %4718 = vmatprep.subr.bf16.mxu0 0
        %4719 = vmatpush1.bf16.msra.mxu0 0
        %4720 = vmatprep.subr.bf16.mxu0 0
        %4721 = vmatpush1.bf16.msra.mxu0 0
        %4722 = vmatprep.subr.bf16.mxu0 0
        %4723 = vmatpush1.bf16.msra.mxu0 0
        %4724 = vmatprep.subr.bf16.mxu0 %v4389
        %4725 = vmatpush1.bf16.msra.mxu0 %v4388
        %4726 = vmatprep.subr.bf16.mxu0 %v4373
        %4727 = vmatpush1.bf16.msra.mxu0 %v4372
        %4728 = vmatprep.subr.bf16.mxu0 0
        %4729 = vmatpush2.bf16.msra.mxu0 0
        %4730 = vmatprep.subr.bf16.mxu0 0
        %4731 = vmatpush2.bf16.msra.mxu0 0
        %4732 = vmatprep.subr.bf16.mxu0 0
        %4733 = vmatpush2.bf16.msra.mxu0 0
        %4734 = vmatprep.subr.bf16.mxu0 0
        %4735 = vmatpush2.bf16.msra.mxu0 0
        %4736 = vmatprep.subr.bf16.mxu0 0
        %4737 = vmatpush2.bf16.msra.mxu0 0
        %4738 = vmatprep.subr.bf16.mxu0 0
        %4739 = vmatpush2.bf16.msra.mxu0 0
        %4740 = vmatprep.subr.bf16.mxu0 0
        %4741 = vmatpush2.bf16.msra.mxu0 0
        %4742 = vmatprep.subr.bf16.mxu0 0
        %4743 = vmatpush2.bf16.msra.mxu0 0
        %4744 = vmatprep.mubr.bf16.mxu0 0
        %4745 = vmatmul.mubr.bf16.gmra.mxu0 %v4423
        %v4746 = vpop.f32.mrf.mxu0
        %v4747 = vadd.f32 %v4241, %v4746
        %v4748 = vpop.f32.mrf.mxu0
        %v4749 = vadd.f32 %v4245, %v4748
        %v4750 = vpop.f32.mrf.mxu0
        %v4751 = vpop.f32.mrf.mxu0
        %4752 = vdwg.mxu0
        %v4753 = vmax.f32 %v4460, 0.0
        %v4754 = vmax.f32 %v4462, 0.0
        %v4755 = vmax.f32 %v4501, 0.0
        %v4756 = vmax.f32 %v4503, 0.0
        %v4757 = vmax.f32 %v4542, 0.0
        %v4758 = vmax.f32 %v4544, 0.0
        %v4759 = vmax.f32 %v4583, 0.0
        %v4760 = vmax.f32 %v4585, 0.0
        %v4761 = vmax.f32 %v4624, 0.0
        %v4762 = vmax.f32 %v4626, 0.0
        %v4763 = vmax.f32 %v4665, 0.0
        %v4764 = vmax.f32 %v4667, 0.0
        %v4765 = vmax.f32 %v4706, 0.0
        %v4766 = vmax.f32 %v4708, 0.0
        %v4767 = vmax.f32 %v4747, 0.0
        %v4768 = vmax.f32 %v4749, 0.0
        %v4769 = vpack.c.bf16 %v4753, %v4753
        %v4770 = vpack.c.bf16 %v4754, %v4754
        %v4771 = vpack.c.bf16 %v4755, %v4755
        %v4772 = vpack.c.bf16 %v4756, %v4756
        %v4773 = vpack.c.bf16 %v4757, %v4757
        %v4774 = vpack.c.bf16 %v4758, %v4758
        %v4775 = vpack.c.bf16 %v4759, %v4759
        %v4776 = vpack.c.bf16 %v4760, %v4760
        %v4777 = vpack.c.bf16 %v4761, %v4761
        %v4778 = vpack.c.bf16 %v4762, %v4762
        %v4779 = vpack.c.bf16 %v4763, %v4763
        %v4780 = vpack.c.bf16 %v4764, %v4764
        %v4781 = vpack.c.bf16 %v4765, %v4765
        %v4782 = vpack.c.bf16 %v4766, %v4766
        %v4783 = vpack.c.bf16 %v4767, %v4767
        %v4784 = vpack.c.bf16 %v4768, %v4768
        %v4785 = vld [vmem:[%s22] sm:$0xf]
        %v4786 = vld [vmem:[%s22 + $0x4] sm:$0xf]
        %v4787 = vld [vmem:[%s22 + $0x8] sm:$0xf]
        %v4788 = vld [vmem:[%s22 + $0xc] sm:$0xf]
        %v4789 = vld [vmem:[%s22 + $0x10] sm:$0xf]
        %v4790 = vld [vmem:[%s22 + $0x14] sm:$0xf]
        %v4791 = vld [vmem:[%s22 + $0x18] sm:$0xf]
        %v4792 = vld [vmem:[%s22 + $0x1c] sm:$0xf]
        %v4793 = vld [vmem:[%s22 + $0x20] sm:$0xf]
        %v4794 = vld [vmem:[%s22 + $0x24] sm:$0xf]
        %v4795 = vld [vmem:[%s22 + $0x28] sm:$0xf]
        %v4796 = vld [vmem:[%s22 + $0x2c] sm:$0xf]
        %v4797 = vld [vmem:[%s22 + $0x30] sm:$0xf]
        %v4798 = vld [vmem:[%s22 + $0x34] sm:$0xf]
        %v4799 = vld [vmem:[%s22 + $0x38] sm:$0xf]
        %v4800 = vld [vmem:[%s22 + $0x3c] sm:$0xf]
        %v4801 = vld [vmem:[%s22 + $0x40] sm:$0xf]
        %v4802 = vld [vmem:[%s22 + $0x44] sm:$0xf]
        %v4803 = vld [vmem:[%s22 + $0x48] sm:$0xf]
        %v4804 = vld [vmem:[%s22 + $0x4c] sm:$0xf]
        %v4805 = vld [vmem:[%s22 + $0x50] sm:$0xf]
        %v4806 = vld [vmem:[%s22 + $0x54] sm:$0xf]
        %v4807 = vld [vmem:[%s22 + $0x58] sm:$0xf]
        %v4808 = vld [vmem:[%s22 + $0x5c] sm:$0xf]
        %v4809 = vld [vmem:[%s22 + $0x60] sm:$0xf]
        %v4810 = vld [vmem:[%s22 + $0x64] sm:$0xf]
        %v4811 = vld [vmem:[%s22 + $0x68] sm:$0xf]
        %v4812 = vld [vmem:[%s22 + $0x6c] sm:$0xf]
        %v4813 = vld [vmem:[%s22 + $0x70] sm:$0xf]
        %v4814 = vld [vmem:[%s22 + $0x74] sm:$0xf]
        %v4815 = vld [vmem:[%s22 + $0x78] sm:$0xf]
        %v4816 = vld [vmem:[%s22 + $0x7c] sm:$0xf]
        %v4817 = vld [vmem:[%s22 + $0x80] sm:$0xf]
        %v4818 = vld [vmem:[%s22 + $0x84] sm:$0xf]
        %v4819 = vld [vmem:[%s22 + $0x88] sm:$0xf]
        %v4820 = vld [vmem:[%s22 + $0x8c] sm:$0xf]
        %v4821 = vld [vmem:[%s22 + $0x90] sm:$0xf]
        %v4822 = vld [vmem:[%s22 + $0x94] sm:$0xf]
        %v4823 = vld [vmem:[%s22 + $0x98] sm:$0xf]
        %v4824 = vld [vmem:[%s22 + $0x9c] sm:$0xf]
        %v4825 = vld [vmem:[%s22 + $0xa0] sm:$0xf]
        %v4826 = vld [vmem:[%s22 + $0xa4] sm:$0xf]
        %v4827 = vld [vmem:[%s22 + $0xa8] sm:$0xf]
        %v4828 = vld [vmem:[%s22 + $0xac] sm:$0xf]
        %v4829 = vld [vmem:[%s22 + $0xb0] sm:$0xf]
        %v4830 = vld [vmem:[%s22 + $0xb4] sm:$0xf]
        %v4831 = vld [vmem:[%s22 + $0xb8] sm:$0xf]
        %v4832 = vld [vmem:[%s22 + $0xbc] sm:$0xf]
        %v4833 = vld [vmem:[%s22 + $0xc0] sm:$0xf]
        %v4834 = vld [vmem:[%s22 + $0xc4] sm:$0xf]
        %v4835 = vld [vmem:[%s22 + $0xc8] sm:$0xf]
        %v4836 = vld [vmem:[%s22 + $0xcc] sm:$0xf]
        %v4837 = vld [vmem:[%s22 + $0xd0] sm:$0xf]
        %v4838 = vld [vmem:[%s22 + $0xd4] sm:$0xf]
        %v4839 = vld [vmem:[%s22 + $0xd8] sm:$0xf]
        %v4840 = vld [vmem:[%s22 + $0xdc] sm:$0xf]
        %v4841 = vld [vmem:[%s22 + $0xe0] sm:$0xf]
        %v4842 = vld [vmem:[%s22 + $0xe4] sm:$0xf]
        %v4843 = vld [vmem:[%s22 + $0xe8] sm:$0xf]
        %v4844 = vld [vmem:[%s22 + $0xec] sm:$0xf]
        %v4845 = vld [vmem:[%s22 + $0xf0] sm:$0xf]
        %v4846 = vld [vmem:[%s22 + $0xf4] sm:$0xf]
        %v4847 = vld [vmem:[%s22 + $0xf8] sm:$0xf]
        %v4848 = vld [vmem:[%s22 + $0xfc] sm:$0xf]
        %v4849 = vld [vmem:[%s22 + $0x100] sm:$0xf]
        %v4850 = vld [vmem:[%s22 + $0x104] sm:$0xf]
        %v4851 = vld [vmem:[%s22 + $0x108] sm:$0xf]
        %v4852 = vld [vmem:[%s22 + $0x10c] sm:$0xf]
        %v4853 = vld [vmem:[%s22 + $0x110] sm:$0xf]
        %v4854 = vld [vmem:[%s22 + $0x114] sm:$0xf]
        %v4855 = vld [vmem:[%s22 + $0x118] sm:$0xf]
        %v4856 = vld [vmem:[%s22 + $0x11c] sm:$0xf]
        %v4857 = vld [vmem:[%s22 + $0x120] sm:$0xf]
        %v4858 = vld [vmem:[%s22 + $0x124] sm:$0xf]
        %v4859 = vld [vmem:[%s22 + $0x128] sm:$0xf]
        %v4860 = vld [vmem:[%s22 + $0x12c] sm:$0xf]
        %v4861 = vld [vmem:[%s22 + $0x130] sm:$0xf]
        %v4862 = vld [vmem:[%s22 + $0x134] sm:$0xf]
        %v4863 = vld [vmem:[%s22 + $0x138] sm:$0xf]
        %v4864 = vld [vmem:[%s22 + $0x13c] sm:$0xf]
        %v4865 = vld [vmem:[%s22 + $0x140] sm:$0xf]
        %v4866 = vld [vmem:[%s22 + $0x144] sm:$0xf]
        %v4867 = vld [vmem:[%s22 + $0x148] sm:$0xf]
        %v4868 = vld [vmem:[%s22 + $0x14c] sm:$0xf]
        %v4869 = vld [vmem:[%s22 + $0x150] sm:$0xf]
        %v4870 = vld [vmem:[%s22 + $0x154] sm:$0xf]
        %v4871 = vld [vmem:[%s22 + $0x158] sm:$0xf]
        %v4872 = vld [vmem:[%s22 + $0x15c] sm:$0xf]
        %v4873 = vld [vmem:[%s22 + $0x160] sm:$0xf]
        %v4874 = vld [vmem:[%s22 + $0x164] sm:$0xf]
        %v4875 = vld [vmem:[%s22 + $0x168] sm:$0xf]
        %v4876 = vld [vmem:[%s22 + $0x16c] sm:$0xf]
        %v4877 = vld [vmem:[%s22 + $0x170] sm:$0xf]
        %v4878 = vld [vmem:[%s22 + $0x174] sm:$0xf]
        %v4879 = vld [vmem:[%s22 + $0x178] sm:$0xf]
        %v4880 = vld [vmem:[%s22 + $0x17c] sm:$0xf]
        %v4881 = vld [vmem:[%s22 + $0x180] sm:$0xf]
        %v4882 = vld [vmem:[%s22 + $0x184] sm:$0xf]
        %v4883 = vld [vmem:[%s22 + $0x188] sm:$0xf]
        %v4884 = vld [vmem:[%s22 + $0x18c] sm:$0xf]
        %v4885 = vld [vmem:[%s22 + $0x190] sm:$0xf]
        %v4886 = vld [vmem:[%s22 + $0x194] sm:$0xf]
        %v4887 = vld [vmem:[%s22 + $0x198] sm:$0xf]
        %v4888 = vld [vmem:[%s22 + $0x19c] sm:$0xf]
        %v4889 = vld [vmem:[%s22 + $0x1a0] sm:$0xf]
        %v4890 = vld [vmem:[%s22 + $0x1a4] sm:$0xf]
        %v4891 = vld [vmem:[%s22 + $0x1a8] sm:$0xf]
        %v4892 = vld [vmem:[%s22 + $0x1ac] sm:$0xf]
        %v4893 = vld [vmem:[%s22 + $0x1b0] sm:$0xf]
        %v4894 = vld [vmem:[%s22 + $0x1b4] sm:$0xf]
        %v4895 = vld [vmem:[%s22 + $0x1b8] sm:$0xf]
        %v4896 = vld [vmem:[%s22 + $0x1bc] sm:$0xf]
        %v4897 = vld [vmem:[%s22 + $0x1c0] sm:$0xf]
        %v4898 = vld [vmem:[%s22 + $0x1c4] sm:$0xf]
        %v4899 = vld [vmem:[%s22 + $0x1c8] sm:$0xf]
        %v4900 = vld [vmem:[%s22 + $0x1cc] sm:$0xf]
        %v4901 = vld [vmem:[%s22 + $0x1d0] sm:$0xf]
        %v4902 = vld [vmem:[%s22 + $0x1d4] sm:$0xf]
        %v4903 = vld [vmem:[%s22 + $0x1d8] sm:$0xf]
        %v4904 = vld [vmem:[%s22 + $0x1dc] sm:$0xf]
        %v4905 = vld [vmem:[%s22 + $0x1e0] sm:$0xf]
        %v4906 = vld [vmem:[%s22 + $0x1e4] sm:$0xf]
        %v4907 = vld [vmem:[%s22 + $0x1e8] sm:$0xf]
        %v4908 = vld [vmem:[%s22 + $0x1ec] sm:$0xf]
        %v4909 = vld [vmem:[%s22 + $0x1f0] sm:$0xf]
        %v4910 = vld [vmem:[%s22 + $0x1f4] sm:$0xf]
        %v4911 = vld [vmem:[%s22 + $0x1f8] sm:$0xf]
        %v4912 = vld [vmem:[%s22 + $0x1fc] sm:$0xf]
        %v4913 = vld [vmem:[%s22 + $0x200] sm:$0xf]
        %v4914 = vld [vmem:[%s22 + $0x204] sm:$0xf]
        %v4915 = vld [vmem:[%s22 + $0x208] sm:$0xf]
        %v4916 = vld [vmem:[%s22 + $0x20c] sm:$0xf]
        %v4917 = vld [vmem:[%s22 + $0x210] sm:$0xf]
        %v4918 = vld [vmem:[%s22 + $0x214] sm:$0xf]
        %v4919 = vld [vmem:[%s22 + $0x218] sm:$0xf]
        %v4920 = vld [vmem:[%s22 + $0x21c] sm:$0xf]
        %v4921 = vld [vmem:[%s22 + $0x220] sm:$0xf]
        %v4922 = vld [vmem:[%s22 + $0x224] sm:$0xf]
        %v4923 = vld [vmem:[%s22 + $0x228] sm:$0xf]
        %v4924 = vld [vmem:[%s22 + $0x22c] sm:$0xf]
        %v4925 = vld [vmem:[%s22 + $0x230] sm:$0xf]
        %v4926 = vld [vmem:[%s22 + $0x234] sm:$0xf]
        %v4927 = vld [vmem:[%s22 + $0x238] sm:$0xf]
        %v4928 = vld [vmem:[%s22 + $0x23c] sm:$0xf]
        %v4929 = vld [vmem:[%s22 + $0x240] sm:$0xf]
        %v4930 = vld [vmem:[%s22 + $0x244] sm:$0xf]
        %v4931 = vld [vmem:[%s22 + $0x248] sm:$0xf]
        %v4932 = vld [vmem:[%s22 + $0x24c] sm:$0xf]
        %v4933 = vld [vmem:[%s22 + $0x250] sm:$0xf]
        %v4934 = vld [vmem:[%s22 + $0x254] sm:$0xf]
        %v4935 = vld [vmem:[%s22 + $0x258] sm:$0xf]
        %v4936 = vld [vmem:[%s22 + $0x25c] sm:$0xf]
        %v4937 = vld [vmem:[%s22 + $0x260] sm:$0xf]
        %v4938 = vld [vmem:[%s22 + $0x264] sm:$0xf]
        %v4939 = vld [vmem:[%s22 + $0x268] sm:$0xf]
        %v4940 = vld [vmem:[%s22 + $0x26c] sm:$0xf]
        %v4941 = vld [vmem:[%s22 + $0x270] sm:$0xf]
        %v4942 = vld [vmem:[%s22 + $0x274] sm:$0xf]
        %v4943 = vld [vmem:[%s22 + $0x278] sm:$0xf]
        %v4944 = vld [vmem:[%s22 + $0x27c] sm:$0xf]
        %v4945 = vld [vmem:[%s22 + $0x280] sm:$0xf]
        %v4946 = vld [vmem:[%s22 + $0x284] sm:$0xf]
        %v4947 = vld [vmem:[%s22 + $0x288] sm:$0xf]
        %v4948 = vld [vmem:[%s22 + $0x28c] sm:$0xf]
        %v4949 = vld [vmem:[%s22 + $0x290] sm:$0xf]
        %v4950 = vld [vmem:[%s22 + $0x294] sm:$0xf]
        %v4951 = vld [vmem:[%s22 + $0x298] sm:$0xf]
        %v4952 = vld [vmem:[%s22 + $0x29c] sm:$0xf]
        %v4953 = vld [vmem:[%s22 + $0x2a0] sm:$0xf]
        %v4954 = vld [vmem:[%s22 + $0x2a4] sm:$0xf]
        %v4955 = vld [vmem:[%s22 + $0x2a8] sm:$0xf]
        %v4956 = vld [vmem:[%s22 + $0x2ac] sm:$0xf]
        %v4957 = vld [vmem:[%s22 + $0x2b0] sm:$0xf]
        %v4958 = vld [vmem:[%s22 + $0x2b4] sm:$0xf]
        %v4959 = vld [vmem:[%s22 + $0x2b8] sm:$0xf]
        %v4960 = vld [vmem:[%s22 + $0x2bc] sm:$0xf]
        %v4961 = vld [vmem:[%s22 + $0x2c0] sm:$0xf]
        %v4962 = vld [vmem:[%s22 + $0x2c4] sm:$0xf]
        %v4963 = vld [vmem:[%s22 + $0x2c8] sm:$0xf]
        %v4964 = vld [vmem:[%s22 + $0x2cc] sm:$0xf]
        %v4965 = vld [vmem:[%s22 + $0x2d0] sm:$0xf]
        %v4966 = vld [vmem:[%s22 + $0x2d4] sm:$0xf]
        %v4967 = vld [vmem:[%s22 + $0x2d8] sm:$0xf]
        %v4968 = vld [vmem:[%s22 + $0x2dc] sm:$0xf]
        %v4969 = vld [vmem:[%s22 + $0x2e0] sm:$0xf]
        %v4970 = vld [vmem:[%s22 + $0x2e4] sm:$0xf]
        %v4971 = vld [vmem:[%s22 + $0x2e8] sm:$0xf]
        %v4972 = vld [vmem:[%s22 + $0x2ec] sm:$0xf]
        %v4973 = vld [vmem:[%s22 + $0x2f0] sm:$0xf]
        %v4974 = vld [vmem:[%s22 + $0x2f4] sm:$0xf]
        %v4975 = vld [vmem:[%s22 + $0x2f8] sm:$0xf]
        %v4976 = vld [vmem:[%s22 + $0x2fc] sm:$0xf]
        %v4977 = vld [vmem:[%s22 + $0x300] sm:$0xf]
        %v4978 = vld [vmem:[%s22 + $0x304] sm:$0xf]
        %v4979 = vld [vmem:[%s22 + $0x308] sm:$0xf]
        %v4980 = vld [vmem:[%s22 + $0x30c] sm:$0xf]
        %v4981 = vld [vmem:[%s22 + $0x310] sm:$0xf]
        %v4982 = vld [vmem:[%s22 + $0x314] sm:$0xf]
        %v4983 = vld [vmem:[%s22 + $0x318] sm:$0xf]
        %v4984 = vld [vmem:[%s22 + $0x31c] sm:$0xf]
        %v4985 = vld [vmem:[%s22 + $0x320] sm:$0xf]
        %v4986 = vld [vmem:[%s22 + $0x324] sm:$0xf]
        %v4987 = vld [vmem:[%s22 + $0x328] sm:$0xf]
        %v4988 = vld [vmem:[%s22 + $0x32c] sm:$0xf]
        %v4989 = vld [vmem:[%s22 + $0x330] sm:$0xf]
        %v4990 = vld [vmem:[%s22 + $0x334] sm:$0xf]
        %v4991 = vld [vmem:[%s22 + $0x338] sm:$0xf]
        %v4992 = vld [vmem:[%s22 + $0x33c] sm:$0xf]
        %v4993 = vld [vmem:[%s22 + $0x340] sm:$0xf]
        %v4994 = vld [vmem:[%s22 + $0x344] sm:$0xf]
        %v4995 = vld [vmem:[%s22 + $0x348] sm:$0xf]
        %v4996 = vld [vmem:[%s22 + $0x34c] sm:$0xf]
        %v4997 = vld [vmem:[%s22 + $0x350] sm:$0xf]
        %v4998 = vld [vmem:[%s22 + $0x354] sm:$0xf]
        %v4999 = vld [vmem:[%s22 + $0x358] sm:$0xf]
        %v5000 = vld [vmem:[%s22 + $0x35c] sm:$0xf]
        %v5001 = vld [vmem:[%s22 + $0x360] sm:$0xf]
        %v5002 = vld [vmem:[%s22 + $0x364] sm:$0xf]
        %v5003 = vld [vmem:[%s22 + $0x368] sm:$0xf]
        %v5004 = vld [vmem:[%s22 + $0x36c] sm:$0xf]
        %v5005 = vld [vmem:[%s22 + $0x370] sm:$0xf]
        %v5006 = vld [vmem:[%s22 + $0x374] sm:$0xf]
        %v5007 = vld [vmem:[%s22 + $0x378] sm:$0xf]
        %v5008 = vld [vmem:[%s22 + $0x37c] sm:$0xf]
        %v5009 = vld [vmem:[%s22 + $0x380] sm:$0xf]
        %v5010 = vld [vmem:[%s22 + $0x384] sm:$0xf]
        %v5011 = vld [vmem:[%s22 + $0x388] sm:$0xf]
        %v5012 = vld [vmem:[%s22 + $0x38c] sm:$0xf]
        %v5013 = vld [vmem:[%s22 + $0x390] sm:$0xf]
        %v5014 = vld [vmem:[%s22 + $0x394] sm:$0xf]
        %v5015 = vld [vmem:[%s22 + $0x398] sm:$0xf]
        %v5016 = vld [vmem:[%s22 + $0x39c] sm:$0xf]
        %v5017 = vld [vmem:[%s22 + $0x3a0] sm:$0xf]
        %v5018 = vld [vmem:[%s22 + $0x3a4] sm:$0xf]
        %v5019 = vld [vmem:[%s22 + $0x3a8] sm:$0xf]
        %v5020 = vld [vmem:[%s22 + $0x3ac] sm:$0xf]
        %v5021 = vld [vmem:[%s22 + $0x3b0] sm:$0xf]
        %v5022 = vld [vmem:[%s22 + $0x3b4] sm:$0xf]
        %v5023 = vld [vmem:[%s22 + $0x3b8] sm:$0xf]
        %v5024 = vld [vmem:[%s22 + $0x3bc] sm:$0xf]
        %v5025 = vld [vmem:[%s22 + $0x3c0] sm:$0xf]
        %v5026 = vld [vmem:[%s22 + $0x3c4] sm:$0xf]
        %v5027 = vld [vmem:[%s22 + $0x3c8] sm:$0xf]
        %v5028 = vld [vmem:[%s22 + $0x3cc] sm:$0xf]
        %v5029 = vld [vmem:[%s22 + $0x3d0] sm:$0xf]
        %v5030 = vld [vmem:[%s22 + $0x3d4] sm:$0xf]
        %v5031 = vld [vmem:[%s22 + $0x3d8] sm:$0xf]
        %v5032 = vld [vmem:[%s22 + $0x3dc] sm:$0xf]
        %v5033 = vld [vmem:[%s22 + $0x3e0] sm:$0xf]
        %v5034 = vld [vmem:[%s22 + $0x3e4] sm:$0xf]
        %v5035 = vld [vmem:[%s22 + $0x3e8] sm:$0xf]
        %v5036 = vld [vmem:[%s22 + $0x3ec] sm:$0xf]
        %v5037 = vld [vmem:[%s22 + $0x3f0] sm:$0xf]
        %v5038 = vld [vmem:[%s22 + $0x3f4] sm:$0xf]
        %v5039 = vld [vmem:[%s22 + $0x3f8] sm:$0xf]
        %v5040 = vld [vmem:[%s22 + $0x3fc] sm:$0xf]
        %v5041 = vld [vmem:[%s23] sm:$0x1]
        %v5043 = vlaneseq
        %v5044 = vshrl.u32 %v5043, 7
        %v5045 = vsub.s32 0, %v5044
        %v5046 = vrot.slane %v5041, %v5045
        %v5304 = vunpack.c.l.b16 %v4785
        %v5305 = vunpack.c.l.b16 %v4786
        %v5306 = vunpack.c.l.b16 %v4787
        %v5307 = vunpack.c.l.b16 %v4788
        %v5308 = vunpack.c.l.b16 %v4789
        %v5309 = vunpack.c.l.b16 %v4790
        %v5310 = vunpack.c.l.b16 %v4791
        %v5311 = vunpack.c.l.b16 %v4792
        %v5312 = vunpack.c.l.b16 %v4793
        %v5313 = vunpack.c.l.b16 %v4794
        %v5314 = vunpack.c.l.b16 %v4795
        %v5315 = vunpack.c.l.b16 %v4796
        %v5316 = vunpack.c.l.b16 %v4797
        %v5317 = vunpack.c.l.b16 %v4798
        %v5318 = vunpack.c.l.b16 %v4799
        %v5319 = vunpack.c.l.b16 %v4800
        %v5320 = vunpack.c.l.b16 %v4801
        %v5321 = vunpack.c.l.b16 %v4802
        %v5322 = vunpack.c.l.b16 %v4803
        %v5323 = vunpack.c.l.b16 %v4804
        %v5324 = vunpack.c.l.b16 %v4805
        %v5325 = vunpack.c.l.b16 %v4806
        %v5326 = vunpack.c.l.b16 %v4807
        %v5327 = vunpack.c.l.b16 %v4808
        %v5328 = vunpack.c.l.b16 %v4809
        %v5329 = vunpack.c.l.b16 %v4810
        %v5330 = vunpack.c.l.b16 %v4811
        %v5331 = vunpack.c.l.b16 %v4812
        %v5332 = vunpack.c.l.b16 %v4813
        %v5333 = vunpack.c.l.b16 %v4814
        %v5334 = vunpack.c.l.b16 %v4815
        %v5335 = vunpack.c.l.b16 %v4816
        %v5336 = vunpack.c.l.b16 %v4817
        %v5337 = vunpack.c.l.b16 %v4818
        %v5338 = vunpack.c.l.b16 %v4819
        %v5339 = vunpack.c.l.b16 %v4820
        %v5340 = vunpack.c.l.b16 %v4821
        %v5341 = vunpack.c.l.b16 %v4822
        %v5342 = vunpack.c.l.b16 %v4823
        %v5343 = vunpack.c.l.b16 %v4824
        %v5344 = vunpack.c.l.b16 %v4825
        %v5345 = vunpack.c.l.b16 %v4826
        %v5346 = vunpack.c.l.b16 %v4827
        %v5347 = vunpack.c.l.b16 %v4828
        %v5348 = vunpack.c.l.b16 %v4829
        %v5349 = vunpack.c.l.b16 %v4830
        %v5350 = vunpack.c.l.b16 %v4831
        %v5351 = vunpack.c.l.b16 %v4832
        %v5352 = vunpack.c.l.b16 %v4833
        %v5353 = vunpack.c.l.b16 %v4834
        %v5354 = vunpack.c.l.b16 %v4835
        %v5355 = vunpack.c.l.b16 %v4836
        %v5356 = vunpack.c.l.b16 %v4837
        %v5357 = vunpack.c.l.b16 %v4838
        %v5358 = vunpack.c.l.b16 %v4839
        %v5359 = vunpack.c.l.b16 %v4840
        %v5360 = vunpack.c.l.b16 %v4841
        %v5361 = vunpack.c.l.b16 %v4842
        %v5362 = vunpack.c.l.b16 %v4843
        %v5363 = vunpack.c.l.b16 %v4844
        %v5364 = vunpack.c.l.b16 %v4845
        %v5365 = vunpack.c.l.b16 %v4846
        %v5366 = vunpack.c.l.b16 %v4847
        %v5367 = vunpack.c.l.b16 %v4848
        %v5368 = vunpack.c.l.b16 %v4849
        %v5369 = vunpack.c.l.b16 %v4850
        %v5370 = vunpack.c.l.b16 %v4851
        %v5371 = vunpack.c.l.b16 %v4852
        %v5372 = vunpack.c.l.b16 %v4853
        %v5373 = vunpack.c.l.b16 %v4854
        %v5374 = vunpack.c.l.b16 %v4855
        %v5375 = vunpack.c.l.b16 %v4856
        %v5376 = vunpack.c.l.b16 %v4857
        %v5377 = vunpack.c.l.b16 %v4858
        %v5378 = vunpack.c.l.b16 %v4859
        %v5379 = vunpack.c.l.b16 %v4860
        %v5380 = vunpack.c.l.b16 %v4861
        %v5381 = vunpack.c.l.b16 %v4862
        %v5382 = vunpack.c.l.b16 %v4863
        %v5383 = vunpack.c.l.b16 %v4864
        %v5384 = vunpack.c.l.b16 %v4865
        %v5385 = vunpack.c.l.b16 %v4866
        %v5386 = vunpack.c.l.b16 %v4867
        %v5387 = vunpack.c.l.b16 %v4868
        %v5388 = vunpack.c.l.b16 %v4869
        %v5389 = vunpack.c.l.b16 %v4870
        %v5390 = vunpack.c.l.b16 %v4871
        %v5391 = vunpack.c.l.b16 %v4872
        %v5392 = vunpack.c.l.b16 %v4873
        %v5393 = vunpack.c.l.b16 %v4874
        %v5394 = vunpack.c.l.b16 %v4875
        %v5395 = vunpack.c.l.b16 %v4876
        %v5396 = vunpack.c.l.b16 %v4877
        %v5397 = vunpack.c.l.b16 %v4878
        %v5398 = vunpack.c.l.b16 %v4879
        %v5399 = vunpack.c.l.b16 %v4880
        %v5400 = vunpack.c.l.b16 %v4881
        %v5401 = vunpack.c.l.b16 %v4882
        %v5402 = vunpack.c.l.b16 %v4883
        %v5403 = vunpack.c.l.b16 %v4884
        %v5404 = vunpack.c.l.b16 %v4885
        %v5405 = vunpack.c.l.b16 %v4886
        %v5406 = vunpack.c.l.b16 %v4887
        %v5407 = vunpack.c.l.b16 %v4888
        %v5408 = vunpack.c.l.b16 %v4889
        %v5409 = vunpack.c.l.b16 %v4890
        %v5410 = vunpack.c.l.b16 %v4891
        %v5411 = vunpack.c.l.b16 %v4892
        %v5412 = vunpack.c.l.b16 %v4893
        %v5413 = vunpack.c.l.b16 %v4894
        %v5414 = vunpack.c.l.b16 %v4895
        %v5415 = vunpack.c.l.b16 %v4896
        %v5416 = vunpack.c.l.b16 %v4897
        %v5417 = vunpack.c.l.b16 %v4898
        %v5418 = vunpack.c.l.b16 %v4899
        %v5419 = vunpack.c.l.b16 %v4900
        %v5420 = vunpack.c.l.b16 %v4901
        %v5421 = vunpack.c.l.b16 %v4902
        %v5422 = vunpack.c.l.b16 %v4903
        %v5423 = vunpack.c.l.b16 %v4904
        %v5424 = vunpack.c.l.b16 %v4905
        %v5425 = vunpack.c.l.b16 %v4906
        %v5426 = vunpack.c.l.b16 %v4907
        %v5427 = vunpack.c.l.b16 %v4908
        %v5428 = vunpack.c.l.b16 %v4909
        %v5429 = vunpack.c.l.b16 %v4910
        %v5430 = vunpack.c.l.b16 %v4911
        %v5431 = vunpack.c.l.b16 %v4912
        %v5432 = vunpack.c.l.b16 %v4913
        %v5433 = vunpack.c.l.b16 %v4914
        %v5434 = vunpack.c.l.b16 %v4915
        %v5435 = vunpack.c.l.b16 %v4916
        %v5436 = vunpack.c.l.b16 %v4917
        %v5437 = vunpack.c.l.b16 %v4918
        %v5438 = vunpack.c.l.b16 %v4919
        %v5439 = vunpack.c.l.b16 %v4920
        %v5440 = vunpack.c.l.b16 %v4921
        %v5441 = vunpack.c.l.b16 %v4922
        %v5442 = vunpack.c.l.b16 %v4923
        %v5443 = vunpack.c.l.b16 %v4924
        %v5444 = vunpack.c.l.b16 %v4925
        %v5445 = vunpack.c.l.b16 %v4926
        %v5446 = vunpack.c.l.b16 %v4927
        %v5447 = vunpack.c.l.b16 %v4928
        %v5448 = vunpack.c.l.b16 %v4929
        %v5449 = vunpack.c.l.b16 %v4930
        %v5450 = vunpack.c.l.b16 %v4931
        %v5451 = vunpack.c.l.b16 %v4932
        %v5452 = vunpack.c.l.b16 %v4933
        %v5453 = vunpack.c.l.b16 %v4934
        %v5454 = vunpack.c.l.b16 %v4935
        %v5455 = vunpack.c.l.b16 %v4936
        %v5456 = vunpack.c.l.b16 %v4937
        %v5457 = vunpack.c.l.b16 %v4938
        %v5458 = vunpack.c.l.b16 %v4939
        %v5459 = vunpack.c.l.b16 %v4940
        %v5460 = vunpack.c.l.b16 %v4941
        %v5461 = vunpack.c.l.b16 %v4942
        %v5462 = vunpack.c.l.b16 %v4943
        %v5463 = vunpack.c.l.b16 %v4944
        %v5464 = vunpack.c.l.b16 %v4945
        %v5465 = vunpack.c.l.b16 %v4946
        %v5466 = vunpack.c.l.b16 %v4947
        %v5467 = vunpack.c.l.b16 %v4948
        %v5468 = vunpack.c.l.b16 %v4949
        %v5469 = vunpack.c.l.b16 %v4950
        %v5470 = vunpack.c.l.b16 %v4951
        %v5471 = vunpack.c.l.b16 %v4952
        %v5472 = vunpack.c.l.b16 %v4953
        %v5473 = vunpack.c.l.b16 %v4954
        %v5474 = vunpack.c.l.b16 %v4955
        %v5475 = vunpack.c.l.b16 %v4956
        %v5476 = vunpack.c.l.b16 %v4957
        %v5477 = vunpack.c.l.b16 %v4958
        %v5478 = vunpack.c.l.b16 %v4959
        %v5479 = vunpack.c.l.b16 %v4960
        %v5480 = vunpack.c.l.b16 %v4961
        %v5481 = vunpack.c.l.b16 %v4962
        %v5482 = vunpack.c.l.b16 %v4963
        %v5483 = vunpack.c.l.b16 %v4964
        %v5484 = vunpack.c.l.b16 %v4965
        %v5485 = vunpack.c.l.b16 %v4966
        %v5486 = vunpack.c.l.b16 %v4967
        %v5487 = vunpack.c.l.b16 %v4968
        %v5488 = vunpack.c.l.b16 %v4969
        %v5489 = vunpack.c.l.b16 %v4970
        %v5490 = vunpack.c.l.b16 %v4971
        %v5491 = vunpack.c.l.b16 %v4972
        %v5492 = vunpack.c.l.b16 %v4973
        %v5493 = vunpack.c.l.b16 %v4974
        %v5494 = vunpack.c.l.b16 %v4975
        %v5495 = vunpack.c.l.b16 %v4976
        %v5496 = vunpack.c.l.b16 %v4977
        %v5497 = vunpack.c.l.b16 %v4978
        %v5498 = vunpack.c.l.b16 %v4979
        %v5499 = vunpack.c.l.b16 %v4980
        %v5500 = vunpack.c.l.b16 %v4981
        %v5501 = vunpack.c.l.b16 %v4982
        %v5502 = vunpack.c.l.b16 %v4983
        %v5503 = vunpack.c.l.b16 %v4984
        %v5504 = vunpack.c.l.b16 %v4985
        %v5505 = vunpack.c.l.b16 %v4986
        %v5506 = vunpack.c.l.b16 %v4987
        %v5507 = vunpack.c.l.b16 %v4988
        %v5508 = vunpack.c.l.b16 %v4989
        %v5509 = vunpack.c.l.b16 %v4990
        %v5510 = vunpack.c.l.b16 %v4991
        %v5511 = vunpack.c.l.b16 %v4992
        %v5512 = vunpack.c.l.b16 %v4993
        %v5513 = vunpack.c.l.b16 %v4994
        %v5514 = vunpack.c.l.b16 %v4995
        %v5515 = vunpack.c.l.b16 %v4996
        %v5516 = vunpack.c.l.b16 %v4997
        %v5517 = vunpack.c.l.b16 %v4998
        %v5518 = vunpack.c.l.b16 %v4999
        %v5519 = vunpack.c.l.b16 %v5000
        %v5520 = vunpack.c.l.b16 %v5001
        %v5521 = vunpack.c.l.b16 %v5002
        %v5522 = vunpack.c.l.b16 %v5003
        %v5523 = vunpack.c.l.b16 %v5004
        %v5524 = vunpack.c.l.b16 %v5005
        %v5525 = vunpack.c.l.b16 %v5006
        %v5526 = vunpack.c.l.b16 %v5007
        %v5527 = vunpack.c.l.b16 %v5008
        %v5528 = vunpack.c.l.b16 %v5009
        %v5529 = vunpack.c.l.b16 %v5010
        %v5530 = vunpack.c.l.b16 %v5011
        %v5531 = vunpack.c.l.b16 %v5012
        %v5532 = vunpack.c.l.b16 %v5013
        %v5533 = vunpack.c.l.b16 %v5014
        %v5534 = vunpack.c.l.b16 %v5015
        %v5535 = vunpack.c.l.b16 %v5016
        %v5536 = vunpack.c.l.b16 %v5017
        %v5537 = vunpack.c.l.b16 %v5018
        %v5538 = vunpack.c.l.b16 %v5019
        %v5539 = vunpack.c.l.b16 %v5020
        %v5540 = vunpack.c.l.b16 %v5021
        %v5541 = vunpack.c.l.b16 %v5022
        %v5542 = vunpack.c.l.b16 %v5023
        %v5543 = vunpack.c.l.b16 %v5024
        %v5544 = vunpack.c.l.b16 %v5025
        %v5545 = vunpack.c.l.b16 %v5026
        %v5546 = vunpack.c.l.b16 %v5027
        %v5547 = vunpack.c.l.b16 %v5028
        %v5548 = vunpack.c.l.b16 %v5029
        %v5549 = vunpack.c.l.b16 %v5030
        %v5550 = vunpack.c.l.b16 %v5031
        %v5551 = vunpack.c.l.b16 %v5032
        %v5552 = vunpack.c.l.b16 %v5033
        %v5553 = vunpack.c.l.b16 %v5034
        %v5554 = vunpack.c.l.b16 %v5035
        %v5555 = vunpack.c.l.b16 %v5036
        %v5556 = vunpack.c.l.b16 %v5037
        %v5557 = vunpack.c.l.b16 %v5038
        %v5558 = vunpack.c.l.b16 %v5039
        %v5559 = vunpack.c.l.b16 %v5040
        %v5560 = vpack.c.b16 %v5305, %v5304
        %v5561 = vpack.c.b16 %v5307, %v5306
        %v5562 = vpack.c.b16 %v5309, %v5308
        %v5563 = vpack.c.b16 %v5311, %v5310
        %v5564 = vpack.c.b16 %v5313, %v5312
        %v5565 = vpack.c.b16 %v5315, %v5314
        %v5566 = vpack.c.b16 %v5317, %v5316
        %v5567 = vpack.c.b16 %v5319, %v5318
        %v5568 = vpack.c.b16 %v5321, %v5320
        %v5569 = vpack.c.b16 %v5323, %v5322
        %v5570 = vpack.c.b16 %v5325, %v5324
        %v5571 = vpack.c.b16 %v5327, %v5326
        %v5572 = vpack.c.b16 %v5329, %v5328
        %v5573 = vpack.c.b16 %v5331, %v5330
        %v5574 = vpack.c.b16 %v5333, %v5332
        %v5575 = vpack.c.b16 %v5335, %v5334
        %v5576 = vpack.c.b16 %v5337, %v5336
        %v5577 = vpack.c.b16 %v5339, %v5338
        %v5578 = vpack.c.b16 %v5341, %v5340
        %v5579 = vpack.c.b16 %v5343, %v5342
        %v5580 = vpack.c.b16 %v5345, %v5344
        %v5581 = vpack.c.b16 %v5347, %v5346
        %v5582 = vpack.c.b16 %v5349, %v5348
        %v5583 = vpack.c.b16 %v5351, %v5350
        %v5584 = vpack.c.b16 %v5353, %v5352
        %v5585 = vpack.c.b16 %v5355, %v5354
        %v5586 = vpack.c.b16 %v5357, %v5356
        %v5587 = vpack.c.b16 %v5359, %v5358
        %v5588 = vpack.c.b16 %v5361, %v5360
        %v5589 = vpack.c.b16 %v5363, %v5362
        %v5590 = vpack.c.b16 %v5365, %v5364
        %v5591 = vpack.c.b16 %v5367, %v5366
        %v5592 = vpack.c.b16 %v5369, %v5368
        %v5593 = vpack.c.b16 %v5371, %v5370
        %v5594 = vpack.c.b16 %v5373, %v5372
        %v5595 = vpack.c.b16 %v5375, %v5374
        %v5596 = vpack.c.b16 %v5377, %v5376
        %v5597 = vpack.c.b16 %v5379, %v5378
        %v5598 = vpack.c.b16 %v5381, %v5380
        %v5599 = vpack.c.b16 %v5383, %v5382
        %v5600 = vpack.c.b16 %v5385, %v5384
        %v5601 = vpack.c.b16 %v5387, %v5386
        %v5602 = vpack.c.b16 %v5389, %v5388
        %v5603 = vpack.c.b16 %v5391, %v5390
        %v5604 = vpack.c.b16 %v5393, %v5392
        %v5605 = vpack.c.b16 %v5395, %v5394
        %v5606 = vpack.c.b16 %v5397, %v5396
        %v5607 = vpack.c.b16 %v5399, %v5398
        %v5608 = vpack.c.b16 %v5401, %v5400
        %v5609 = vpack.c.b16 %v5403, %v5402
        %v5610 = vpack.c.b16 %v5405, %v5404
        %v5611 = vpack.c.b16 %v5407, %v5406
        %v5612 = vpack.c.b16 %v5409, %v5408
        %v5613 = vpack.c.b16 %v5411, %v5410
        %v5614 = vpack.c.b16 %v5413, %v5412
        %v5615 = vpack.c.b16 %v5415, %v5414
        %v5616 = vpack.c.b16 %v5417, %v5416
        %v5617 = vpack.c.b16 %v5419, %v5418
        %v5618 = vpack.c.b16 %v5421, %v5420
        %v5619 = vpack.c.b16 %v5423, %v5422
        %v5620 = vpack.c.b16 %v5425, %v5424
        %v5621 = vpack.c.b16 %v5427, %v5426
        %v5622 = vpack.c.b16 %v5429, %v5428
        %v5623 = vpack.c.b16 %v5431, %v5430
        %v5624 = vpack.c.b16 %v5433, %v5432
        %v5625 = vpack.c.b16 %v5435, %v5434
        %v5626 = vpack.c.b16 %v5437, %v5436
        %v5627 = vpack.c.b16 %v5439, %v5438
        %v5628 = vpack.c.b16 %v5441, %v5440
        %v5629 = vpack.c.b16 %v5443, %v5442
        %v5630 = vpack.c.b16 %v5445, %v5444
        %v5631 = vpack.c.b16 %v5447, %v5446
        %v5632 = vpack.c.b16 %v5449, %v5448
        %v5633 = vpack.c.b16 %v5451, %v5450
        %v5634 = vpack.c.b16 %v5453, %v5452
        %v5635 = vpack.c.b16 %v5455, %v5454
        %v5636 = vpack.c.b16 %v5457, %v5456
        %v5637 = vpack.c.b16 %v5459, %v5458
        %v5638 = vpack.c.b16 %v5461, %v5460
        %v5639 = vpack.c.b16 %v5463, %v5462
        %v5640 = vpack.c.b16 %v5465, %v5464
        %v5641 = vpack.c.b16 %v5467, %v5466
        %v5642 = vpack.c.b16 %v5469, %v5468
        %v5643 = vpack.c.b16 %v5471, %v5470
        %v5644 = vpack.c.b16 %v5473, %v5472
        %v5645 = vpack.c.b16 %v5475, %v5474
        %v5646 = vpack.c.b16 %v5477, %v5476
        %v5647 = vpack.c.b16 %v5479, %v5478
        %v5648 = vpack.c.b16 %v5481, %v5480
        %v5649 = vpack.c.b16 %v5483, %v5482
        %v5650 = vpack.c.b16 %v5485, %v5484
        %v5651 = vpack.c.b16 %v5487, %v5486
        %v5652 = vpack.c.b16 %v5489, %v5488
        %v5653 = vpack.c.b16 %v5491, %v5490
        %v5654 = vpack.c.b16 %v5493, %v5492
        %v5655 = vpack.c.b16 %v5495, %v5494
        %v5656 = vpack.c.b16 %v5497, %v5496
        %v5657 = vpack.c.b16 %v5499, %v5498
        %v5658 = vpack.c.b16 %v5501, %v5500
        %v5659 = vpack.c.b16 %v5503, %v5502
        %v5660 = vpack.c.b16 %v5505, %v5504
        %v5661 = vpack.c.b16 %v5507, %v5506
        %v5662 = vpack.c.b16 %v5509, %v5508
        %v5663 = vpack.c.b16 %v5511, %v5510
        %v5664 = vpack.c.b16 %v5513, %v5512
        %v5665 = vpack.c.b16 %v5515, %v5514
        %v5666 = vpack.c.b16 %v5517, %v5516
        %v5667 = vpack.c.b16 %v5519, %v5518
        %v5668 = vpack.c.b16 %v5521, %v5520
        %v5669 = vpack.c.b16 %v5523, %v5522
        %v5670 = vpack.c.b16 %v5525, %v5524
        %v5671 = vpack.c.b16 %v5527, %v5526
        %v5672 = vpack.c.b16 %v5529, %v5528
        %v5673 = vpack.c.b16 %v5531, %v5530
        %v5674 = vpack.c.b16 %v5533, %v5532
        %v5675 = vpack.c.b16 %v5535, %v5534
        %v5676 = vpack.c.b16 %v5537, %v5536
        %v5677 = vpack.c.b16 %v5539, %v5538
        %v5678 = vpack.c.b16 %v5541, %v5540
        %v5679 = vpack.c.b16 %v5543, %v5542
        %v5680 = vpack.c.b16 %v5545, %v5544
        %v5681 = vpack.c.b16 %v5547, %v5546
        %v5682 = vpack.c.b16 %v5549, %v5548
        %v5683 = vpack.c.b16 %v5551, %v5550
        %v5684 = vpack.c.b16 %v5553, %v5552
        %v5685 = vpack.c.b16 %v5555, %v5554
        %v5686 = vpack.c.b16 %v5557, %v5556
        %v5687 = vpack.c.b16 %v5559, %v5558
        %5816 = vmatprep.subr.bf16.mxu0 0
        %5817 = vmatpush1.bf16.msra.mxu0 %v5567
        %5818 = vmatprep.subr.bf16.mxu0 0
        %5819 = vmatpush1.bf16.msra.mxu0 %v5566
        %5820 = vmatprep.subr.bf16.mxu0 0
        %5821 = vmatpush1.bf16.msra.mxu0 %v5565
        %5822 = vmatprep.subr.bf16.mxu0 0
        %5823 = vmatpush1.bf16.msra.mxu0 %v5564
        %5824 = vmatprep.subr.bf16.mxu0 0
        %5825 = vmatpush1.bf16.msra.mxu0 %v5563
        %5826 = vmatprep.subr.bf16.mxu0 0
        %5827 = vmatpush1.bf16.msra.mxu0 %v5562
        %5828 = vmatprep.subr.bf16.mxu0 0
        %5829 = vmatpush1.bf16.msra.mxu0 %v5561
        %5830 = vmatprep.subr.bf16.mxu0 0
        %5831 = vmatpush1.bf16.msra.mxu0 %v5560
        %5832 = vmatprep.subr.bf16.mxu0 0
        %5833 = vmatpush2.bf16.msra.mxu0 %v5575
        %5834 = vmatprep.subr.bf16.mxu0 0
        %5835 = vmatpush2.bf16.msra.mxu0 %v5574
        %5836 = vmatprep.subr.bf16.mxu0 0
        %5837 = vmatpush2.bf16.msra.mxu0 %v5573
        %5838 = vmatprep.subr.bf16.mxu0 0
        %5839 = vmatpush2.bf16.msra.mxu0 %v5572
        %5840 = vmatprep.subr.bf16.mxu0 0
        %5841 = vmatpush2.bf16.msra.mxu0 %v5571
        %5842 = vmatprep.subr.bf16.mxu0 0
        %5843 = vmatpush2.bf16.msra.mxu0 %v5570
        %5844 = vmatprep.subr.bf16.mxu0 0
        %5845 = vmatpush2.bf16.msra.mxu0 %v5569
        %5846 = vmatprep.subr.bf16.mxu0 0
        %5847 = vmatpush2.bf16.msra.mxu0 %v5568
        %5848 = vmatprep.mubr.bf16.mxu0 %v4770
        %5849 = vmatmul.mubr.bf16.gmra.mxu0 %v4769
        %v5850 = vpop.f32.mrf.mxu0
        %v5851 = vadd.f32 %v5046, %v5850
        %v5852 = vpop.f32.mrf.mxu0
        %v5853 = vpop.f32.mrf.mxu0
        %v5854 = vpop.f32.mrf.mxu0
        %5855 = vdwg.mxu0
        %5856 = vmatprep.subr.bf16.mxu0 0
        %5857 = vmatpush1.bf16.msra.mxu0 %v5583
        %5858 = vmatprep.subr.bf16.mxu0 0
        %5859 = vmatpush1.bf16.msra.mxu0 %v5582
        %5860 = vmatprep.subr.bf16.mxu0 0
        %5861 = vmatpush1.bf16.msra.mxu0 %v5581
        %5862 = vmatprep.subr.bf16.mxu0 0
        %5863 = vmatpush1.bf16.msra.mxu0 %v5580
        %5864 = vmatprep.subr.bf16.mxu0 0
        %5865 = vmatpush1.bf16.msra.mxu0 %v5579
        %5866 = vmatprep.subr.bf16.mxu0 0
        %5867 = vmatpush1.bf16.msra.mxu0 %v5578
        %5868 = vmatprep.subr.bf16.mxu0 0
        %5869 = vmatpush1.bf16.msra.mxu0 %v5577
        %5870 = vmatprep.subr.bf16.mxu0 0
        %5871 = vmatpush1.bf16.msra.mxu0 %v5576
        %5872 = vmatprep.subr.bf16.mxu0 0
        %5873 = vmatpush2.bf16.msra.mxu0 %v5591
        %5874 = vmatprep.subr.bf16.mxu0 0
        %5875 = vmatpush2.bf16.msra.mxu0 %v5590
        %5876 = vmatprep.subr.bf16.mxu0 0
        %5877 = vmatpush2.bf16.msra.mxu0 %v5589
        %5878 = vmatprep.subr.bf16.mxu0 0
        %5879 = vmatpush2.bf16.msra.mxu0 %v5588
        %5880 = vmatprep.subr.bf16.mxu0 0
        %5881 = vmatpush2.bf16.msra.mxu0 %v5587
        %5882 = vmatprep.subr.bf16.mxu0 0
        %5883 = vmatpush2.bf16.msra.mxu0 %v5586
        %5884 = vmatprep.subr.bf16.mxu0 0
        %5885 = vmatpush2.bf16.msra.mxu0 %v5585
        %5886 = vmatprep.subr.bf16.mxu0 0
        %5887 = vmatpush2.bf16.msra.mxu0 %v5584
        %5888 = vmatprep.mubr.bf16.mxu0 %v4772
        %5889 = vmatmul.mubr.bf16.gmra.mxu0 %v4771
        %v5890 = vpop.f32.mrf.mxu0
        %v5891 = vadd.f32 %v5851, %v5890
        %v5892 = vpop.f32.mrf.mxu0
        %v5893 = vpop.f32.mrf.mxu0
        %v5894 = vpop.f32.mrf.mxu0
        %5895 = vdwg.mxu0
        %5896 = vmatprep.subr.bf16.mxu0 0
        %5897 = vmatpush1.bf16.msra.mxu0 %v5599
        %5898 = vmatprep.subr.bf16.mxu0 0
        %5899 = vmatpush1.bf16.msra.mxu0 %v5598
        %5900 = vmatprep.subr.bf16.mxu0 0
        %5901 = vmatpush1.bf16.msra.mxu0 %v5597
        %5902 = vmatprep.subr.bf16.mxu0 0
        %5903 = vmatpush1.bf16.msra.mxu0 %v5596
        %5904 = vmatprep.subr.bf16.mxu0 0
        %5905 = vmatpush1.bf16.msra.mxu0 %v5595
        %5906 = vmatprep.subr.bf16.mxu0 0
        %5907 = vmatpush1.bf16.msra.mxu0 %v5594
        %5908 = vmatprep.subr.bf16.mxu0 0
        %5909 = vmatpush1.bf16.msra.mxu0 %v5593
        %5910 = vmatprep.subr.bf16.mxu0 0
        %5911 = vmatpush1.bf16.msra.mxu0 %v5592
        %5912 = vmatprep.subr.bf16.mxu0 0
        %5913 = vmatpush2.bf16.msra.mxu0 %v5607
        %5914 = vmatprep.subr.bf16.mxu0 0
        %5915 = vmatpush2.bf16.msra.mxu0 %v5606
        %5916 = vmatprep.subr.bf16.mxu0 0
        %5917 = vmatpush2.bf16.msra.mxu0 %v5605
        %5918 = vmatprep.subr.bf16.mxu0 0
        %5919 = vmatpush2.bf16.msra.mxu0 %v5604
        %5920 = vmatprep.subr.bf16.mxu0 0
        %5921 = vmatpush2.bf16.msra.mxu0 %v5603
        %5922 = vmatprep.subr.bf16.mxu0 0
        %5923 = vmatpush2.bf16.msra.mxu0 %v5602
        %5924 = vmatprep.subr.bf16.mxu0 0
        %5925 = vmatpush2.bf16.msra.mxu0 %v5601
        %5926 = vmatprep.subr.bf16.mxu0 0
        %5927 = vmatpush2.bf16.msra.mxu0 %v5600
        %5928 = vmatprep.mubr.bf16.mxu0 %v4774
        %5929 = vmatmul.mubr.bf16.gmra.mxu0 %v4773
        %v5930 = vpop.f32.mrf.mxu0
        %v5931 = vadd.f32 %v5891, %v5930
        %v5932 = vpop.f32.mrf.mxu0
        %v5933 = vpop.f32.mrf.mxu0
        %v5934 = vpop.f32.mrf.mxu0
        %5935 = vdwg.mxu0
        %5936 = vmatprep.subr.bf16.mxu0 0
        %5937 = vmatpush1.bf16.msra.mxu0 %v5615
        %5938 = vmatprep.subr.bf16.mxu0 0
        %5939 = vmatpush1.bf16.msra.mxu0 %v5614
        %5940 = vmatprep.subr.bf16.mxu0 0
        %5941 = vmatpush1.bf16.msra.mxu0 %v5613
        %5942 = vmatprep.subr.bf16.mxu0 0
        %5943 = vmatpush1.bf16.msra.mxu0 %v5612
        %5944 = vmatprep.subr.bf16.mxu0 0
        %5945 = vmatpush1.bf16.msra.mxu0 %v5611
        %5946 = vmatprep.subr.bf16.mxu0 0
        %5947 = vmatpush1.bf16.msra.mxu0 %v5610
        %5948 = vmatprep.subr.bf16.mxu0 0
        %5949 = vmatpush1.bf16.msra.mxu0 %v5609
        %5950 = vmatprep.subr.bf16.mxu0 0
        %5951 = vmatpush1.bf16.msra.mxu0 %v5608
        %5952 = vmatprep.subr.bf16.mxu0 0
        %5953 = vmatpush2.bf16.msra.mxu0 %v5623
        %5954 = vmatprep.subr.bf16.mxu0 0
        %5955 = vmatpush2.bf16.msra.mxu0 %v5622
        %5956 = vmatprep.subr.bf16.mxu0 0
        %5957 = vmatpush2.bf16.msra.mxu0 %v5621
        %5958 = vmatprep.subr.bf16.mxu0 0
        %5959 = vmatpush2.bf16.msra.mxu0 %v5620
        %5960 = vmatprep.subr.bf16.mxu0 0
        %5961 = vmatpush2.bf16.msra.mxu0 %v5619
        %5962 = vmatprep.subr.bf16.mxu0 0
        %5963 = vmatpush2.bf16.msra.mxu0 %v5618
        %5964 = vmatprep.subr.bf16.mxu0 0
        %5965 = vmatpush2.bf16.msra.mxu0 %v5617
        %5966 = vmatprep.subr.bf16.mxu0 0
        %5967 = vmatpush2.bf16.msra.mxu0 %v5616
        %5968 = vmatprep.mubr.bf16.mxu0 %v4776
        %5969 = vmatmul.mubr.bf16.gmra.mxu0 %v4775
        %v5970 = vpop.f32.mrf.mxu0
        %v5971 = vadd.f32 %v5931, %v5970
        %v5972 = vpop.f32.mrf.mxu0
        %v5973 = vpop.f32.mrf.mxu0
        %v5974 = vpop.f32.mrf.mxu0
        %5975 = vdwg.mxu0
        %5976 = vmatprep.subr.bf16.mxu0 0
        %5977 = vmatpush1.bf16.msra.mxu0 %v5631
        %5978 = vmatprep.subr.bf16.mxu0 0
        %5979 = vmatpush1.bf16.msra.mxu0 %v5630
        %5980 = vmatprep.subr.bf16.mxu0 0
        %5981 = vmatpush1.bf16.msra.mxu0 %v5629
        %5982 = vmatprep.subr.bf16.mxu0 0
        %5983 = vmatpush1.bf16.msra.mxu0 %v5628
        %5984 = vmatprep.subr.bf16.mxu0 0
        %5985 = vmatpush1.bf16.msra.mxu0 %v5627
        %5986 = vmatprep.subr.bf16.mxu0 0
        %5987 = vmatpush1.bf16.msra.mxu0 %v5626
        %5988 = vmatprep.subr.bf16.mxu0 0
        %5989 = vmatpush1.bf16.msra.mxu0 %v5625
        %5990 = vmatprep.subr.bf16.mxu0 0
        %5991 = vmatpush1.bf16.msra.mxu0 %v5624
        %5992 = vmatprep.subr.bf16.mxu0 0
        %5993 = vmatpush2.bf16.msra.mxu0 %v5639
        %5994 = vmatprep.subr.bf16.mxu0 0
        %5995 = vmatpush2.bf16.msra.mxu0 %v5638
        %5996 = vmatprep.subr.bf16.mxu0 0
        %5997 = vmatpush2.bf16.msra.mxu0 %v5637
        %5998 = vmatprep.subr.bf16.mxu0 0
        %5999 = vmatpush2.bf16.msra.mxu0 %v5636
        %6000 = vmatprep.subr.bf16.mxu0 0
        %6001 = vmatpush2.bf16.msra.mxu0 %v5635
        %6002 = vmatprep.subr.bf16.mxu0 0
        %6003 = vmatpush2.bf16.msra.mxu0 %v5634
        %6004 = vmatprep.subr.bf16.mxu0 0
        %6005 = vmatpush2.bf16.msra.mxu0 %v5633
        %6006 = vmatprep.subr.bf16.mxu0 0
        %6007 = vmatpush2.bf16.msra.mxu0 %v5632
        %6008 = vmatprep.mubr.bf16.mxu0 %v4778
        %6009 = vmatmul.mubr.bf16.gmra.mxu0 %v4777
        %v6010 = vpop.f32.mrf.mxu0
        %v6011 = vadd.f32 %v5971, %v6010
        %v6012 = vpop.f32.mrf.mxu0
        %v6013 = vpop.f32.mrf.mxu0
        %v6014 = vpop.f32.mrf.mxu0
        %6015 = vdwg.mxu0
        %6016 = vmatprep.subr.bf16.mxu0 0
        %6017 = vmatpush1.bf16.msra.mxu0 %v5647
        %6018 = vmatprep.subr.bf16.mxu0 0
        %6019 = vmatpush1.bf16.msra.mxu0 %v5646
        %6020 = vmatprep.subr.bf16.mxu0 0
        %6021 = vmatpush1.bf16.msra.mxu0 %v5645
        %6022 = vmatprep.subr.bf16.mxu0 0
        %6023 = vmatpush1.bf16.msra.mxu0 %v5644
        %6024 = vmatprep.subr.bf16.mxu0 0
        %6025 = vmatpush1.bf16.msra.mxu0 %v5643
        %6026 = vmatprep.subr.bf16.mxu0 0
        %6027 = vmatpush1.bf16.msra.mxu0 %v5642
        %6028 = vmatprep.subr.bf16.mxu0 0
        %6029 = vmatpush1.bf16.msra.mxu0 %v5641
        %6030 = vmatprep.subr.bf16.mxu0 0
        %6031 = vmatpush1.bf16.msra.mxu0 %v5640
        %6032 = vmatprep.subr.bf16.mxu0 0
        %6033 = vmatpush2.bf16.msra.mxu0 %v5655
        %6034 = vmatprep.subr.bf16.mxu0 0
        %6035 = vmatpush2.bf16.msra.mxu0 %v5654
        %6036 = vmatprep.subr.bf16.mxu0 0
        %6037 = vmatpush2.bf16.msra.mxu0 %v5653
        %6038 = vmatprep.subr.bf16.mxu0 0
        %6039 = vmatpush2.bf16.msra.mxu0 %v5652
        %6040 = vmatprep.subr.bf16.mxu0 0
        %6041 = vmatpush2.bf16.msra.mxu0 %v5651
        %6042 = vmatprep.subr.bf16.mxu0 0
        %6043 = vmatpush2.bf16.msra.mxu0 %v5650
        %6044 = vmatprep.subr.bf16.mxu0 0
        %6045 = vmatpush2.bf16.msra.mxu0 %v5649
        %6046 = vmatprep.subr.bf16.mxu0 0
        %6047 = vmatpush2.bf16.msra.mxu0 %v5648
        %6048 = vmatprep.mubr.bf16.mxu0 %v4780
        %6049 = vmatmul.mubr.bf16.gmra.mxu0 %v4779
        %v6050 = vpop.f32.mrf.mxu0
        %v6051 = vadd.f32 %v6011, %v6050
        %v6052 = vpop.f32.mrf.mxu0
        %v6053 = vpop.f32.mrf.mxu0
        %v6054 = vpop.f32.mrf.mxu0
        %6055 = vdwg.mxu0
        %6056 = vmatprep.subr.bf16.mxu0 0
        %6057 = vmatpush1.bf16.msra.mxu0 %v5663
        %6058 = vmatprep.subr.bf16.mxu0 0
        %6059 = vmatpush1.bf16.msra.mxu0 %v5662
        %6060 = vmatprep.subr.bf16.mxu0 0
        %6061 = vmatpush1.bf16.msra.mxu0 %v5661
        %6062 = vmatprep.subr.bf16.mxu0 0
        %6063 = vmatpush1.bf16.msra.mxu0 %v5660
        %6064 = vmatprep.subr.bf16.mxu0 0
        %6065 = vmatpush1.bf16.msra.mxu0 %v5659
        %6066 = vmatprep.subr.bf16.mxu0 0
        %6067 = vmatpush1.bf16.msra.mxu0 %v5658
        %6068 = vmatprep.subr.bf16.mxu0 0
        %6069 = vmatpush1.bf16.msra.mxu0 %v5657
        %6070 = vmatprep.subr.bf16.mxu0 0
        %6071 = vmatpush1.bf16.msra.mxu0 %v5656
        %6072 = vmatprep.subr.bf16.mxu0 0
        %6073 = vmatpush2.bf16.msra.mxu0 %v5671
        %6074 = vmatprep.subr.bf16.mxu0 0
        %6075 = vmatpush2.bf16.msra.mxu0 %v5670
        %6076 = vmatprep.subr.bf16.mxu0 0
        %6077 = vmatpush2.bf16.msra.mxu0 %v5669
        %6078 = vmatprep.subr.bf16.mxu0 0
        %6079 = vmatpush2.bf16.msra.mxu0 %v5668
        %6080 = vmatprep.subr.bf16.mxu0 0
        %6081 = vmatpush2.bf16.msra.mxu0 %v5667
        %6082 = vmatprep.subr.bf16.mxu0 0
        %6083 = vmatpush2.bf16.msra.mxu0 %v5666
        %6084 = vmatprep.subr.bf16.mxu0 0
        %6085 = vmatpush2.bf16.msra.mxu0 %v5665
        %6086 = vmatprep.subr.bf16.mxu0 0
        %6087 = vmatpush2.bf16.msra.mxu0 %v5664
        %6088 = vmatprep.mubr.bf16.mxu0 %v4782
        %6089 = vmatmul.mubr.bf16.gmra.mxu0 %v4781
        %v6090 = vpop.f32.mrf.mxu0
        %v6091 = vadd.f32 %v6051, %v6090
        %v6092 = vpop.f32.mrf.mxu0
        %v6093 = vpop.f32.mrf.mxu0
        %v6094 = vpop.f32.mrf.mxu0
        %6095 = vdwg.mxu0
        %6096 = vmatprep.subr.bf16.mxu0 0
        %6097 = vmatpush1.bf16.msra.mxu0 %v5679
        %6098 = vmatprep.subr.bf16.mxu0 0
        %6099 = vmatpush1.bf16.msra.mxu0 %v5678
        %6100 = vmatprep.subr.bf16.mxu0 0
        %6101 = vmatpush1.bf16.msra.mxu0 %v5677
        %6102 = vmatprep.subr.bf16.mxu0 0
        %6103 = vmatpush1.bf16.msra.mxu0 %v5676
        %6104 = vmatprep.subr.bf16.mxu0 0
        %6105 = vmatpush1.bf16.msra.mxu0 %v5675
        %6106 = vmatprep.subr.bf16.mxu0 0
        %6107 = vmatpush1.bf16.msra.mxu0 %v5674
        %6108 = vmatprep.subr.bf16.mxu0 0
        %6109 = vmatpush1.bf16.msra.mxu0 %v5673
        %6110 = vmatprep.subr.bf16.mxu0 0
        %6111 = vmatpush1.bf16.msra.mxu0 %v5672
        %6112 = vmatprep.subr.bf16.mxu0 0
        %6113 = vmatpush2.bf16.msra.mxu0 %v5687
        %6114 = vmatprep.subr.bf16.mxu0 0
        %6115 = vmatpush2.bf16.msra.mxu0 %v5686
        %6116 = vmatprep.subr.bf16.mxu0 0
        %6117 = vmatpush2.bf16.msra.mxu0 %v5685
        %6118 = vmatprep.subr.bf16.mxu0 0
        %6119 = vmatpush2.bf16.msra.mxu0 %v5684
        %6120 = vmatprep.subr.bf16.mxu0 0
        %6121 = vmatpush2.bf16.msra.mxu0 %v5683
        %6122 = vmatprep.subr.bf16.mxu0 0
        %6123 = vmatpush2.bf16.msra.mxu0 %v5682
        %6124 = vmatprep.subr.bf16.mxu0 0
        %6125 = vmatpush2.bf16.msra.mxu0 %v5681
        %6126 = vmatprep.subr.bf16.mxu0 0
        %6127 = vmatpush2.bf16.msra.mxu0 %v5680
        %6128 = vmatprep.mubr.bf16.mxu0 %v4784
        %6129 = vmatmul.mubr.bf16.gmra.mxu0 %v4783
        %v6130 = vpop.f32.mrf.mxu0
        %v6131 = vadd.f32 %v6091, %v6130
        %v6132 = vpop.f32.mrf.mxu0
        %v6133 = vpop.f32.mrf.mxu0
        %v6134 = vpop.f32.mrf.mxu0
        %6135 = vdwg.mxu0
        %v6136 = vadd.f32 %v6131, %v4144
        %v6137 = vld [vmem:[%s24] sm:$0x1]
        %v6138 = vld [vmem:[%s25] sm:$0x1]
        %v6139 = vsel %vm882, %v6136, 0.0
        %6140 = vadd.xlane.f32.xlu0 %v6139
        %v6141 = vpop.xlane.xlu0 %6140
        %v6142 = vmul.f32 %v6141, %v1472
        %v6143 = vsub.f32 %v6136, %v6142
        %v6144 = vmul.f32 %v6143, %v6143
        %v6145 = vsel %vm882, %v6144, 0.0
        %6146 = vadd.xlane.f32.xlu0 %v6145
        %v6147 = vpop.xlane.xlu0 %6146
        %v6148 = vmul.f32 %v6147, %v1472
        %v6149 = vadd.f32 %v6148, 1e-05
        %v6150 = vrsqrt.pop %v6149
        %v6151 = vmul.f32 %v6143, %v6150
        %v6153 = vlaneseq
        %v6154 = vshrl.u32 %v6153, 7
        %v6155 = vsub.s32 0, %v6154
        %v6156 = vrot.slane %v6137, %v6155
        %v6158 = vmul.f32 %v6151, %v6156
        %v6160 = vlaneseq
        %v6161 = vshrl.u32 %v6160, 7
        %v6162 = vsub.s32 0, %v6161
        %v6163 = vrot.slane %v6138, %v6162
        %v6165 = vadd.f32 %v6158, %v6163
        %v6166 = vpack.c.bf16 %v6165, %v6165
        %v6167 = vld [vmem:[%s26] sm:$0xf]
        %v6168 = vld [vmem:[%s26 + $0x4] sm:$0xf]
        %v6169 = vld [vmem:[%s26 + $0x8] sm:$0xf]
        %v6170 = vld [vmem:[%s26 + $0xc] sm:$0xf]
        %v6171 = vld [vmem:[%s27] sm:$0x1]
        %v6173 = vlaneseq
        %v6174 = vshrl.u32 %v6173, 7
        %v6175 = vsub.s32 0, %v6174
        %v6176 = vrot.slane %v6171, %v6175
        %v6182 = vunpack.c.l.b16 %v6167
        %v6183 = vunpack.c.l.b16 %v6168
        %v6184 = vunpack.c.l.b16 %v6169
        %v6185 = vunpack.c.l.b16 %v6170
        %v6186 = vpack.c.b16 %v6183, %v6182
        %v6187 = vpack.c.b16 %v6185, %v6184
        %v6191 = vsel %vm882, %v6166, 0
        %6193 = vmatprep.subr.bf16.mxu0 0
        %6194 = vmatpush1.bf16.msra.mxu0 0
        %6195 = vmatprep.subr.bf16.mxu0 0
        %6196 = vmatpush1.bf16.msra.mxu0 0
        %6197 = vmatprep.subr.bf16.mxu0 0
        %6198 = vmatpush1.bf16.msra.mxu0 0
        %6199 = vmatprep.subr.bf16.mxu0 0
        %6200 = vmatpush1.bf16.msra.mxu0 0
        %6201 = vmatprep.subr.bf16.mxu0 0
        %6202 = vmatpush1.bf16.msra.mxu0 0
        %6203 = vmatprep.subr.bf16.mxu0 0
        %6204 = vmatpush1.bf16.msra.mxu0 0
        %6205 = vmatprep.subr.bf16.mxu0 0
        %6206 = vmatpush1.bf16.msra.mxu0 %v6187
        %6207 = vmatprep.subr.bf16.mxu0 0
        %6208 = vmatpush1.bf16.msra.mxu0 %v6186
        %6209 = vmatprep.subr.bf16.mxu0 0
        %6210 = vmatpush2.bf16.msra.mxu0 0
        %6211 = vmatprep.subr.bf16.mxu0 0
        %6212 = vmatpush2.bf16.msra.mxu0 0
        %6213 = vmatprep.subr.bf16.mxu0 0
        %6214 = vmatpush2.bf16.msra.mxu0 0
        %6215 = vmatprep.subr.bf16.mxu0 0
        %6216 = vmatpush2.bf16.msra.mxu0 0
        %6217 = vmatprep.subr.bf16.mxu0 0
        %6218 = vmatpush2.bf16.msra.mxu0 0
        %6219 = vmatprep.subr.bf16.mxu0 0
        %6220 = vmatpush2.bf16.msra.mxu0 0
        %6221 = vmatprep.subr.bf16.mxu0 0
        %6222 = vmatpush2.bf16.msra.mxu0 0
        %6223 = vmatprep.subr.bf16.mxu0 0
        %6224 = vmatpush2.bf16.msra.mxu0 0
        %6225 = vmatprep.mubr.bf16.mxu0 0
        %6226 = vmatmul.mubr.bf16.gmra.mxu0 %v6191
        %v6227 = vpop.f32.mrf.mxu0
        %v6228 = vadd.f32 %v6176, %v6227
        %v6229 = vpop.f32.mrf.mxu0
        %v6230 = vpop.f32.mrf.mxu0
        %v6231 = vpop.f32.mrf.mxu0
        %6232 = vdwg.mxu0
        %6233 = vst.msk [vmem:[%s847] sm:$0xff] %vm1395, %v6228
        %s6234 = sand.u32 %s648, 1
        %s6235 = scalar_lea.sflag [#allocation3], %s6234
        %s6236 = sand.u32 %s648, 1
        %s6237 = smul.addr %s6236, 8
        %s6238 = scalar_lea.vmem [#allocation2], %s6237
        // Predicated region
        $region133: #{tpu_custom_call.1} parent=131 // pred_check
          %p6239 = pneg %p658
        $region134: #{tpu_custom_call.1} parent=131 // pred_check_branch
          %6241 = sbr.rel (%p6239) target = $region136
        $region135: #{tpu_custom_call.1} parent=131 // pred_region
          %s6243 = ssub.s32 128, 128
          %6244 = vsyncadd %s6235, %s6243
          %s6245 = smul.addr %s42, 128
          %s6246 = scalar_lea.hbm %s28, %s6245
          %s6248 = sshll.u32 %s6238, 4
          %s6249 = int_to_ptr.vmem [resolvable:$true] %s6248
          %6251 = dma.vmem_to_hbm [thread:$0]  %s6249, 128, %s6246, %s6235
        $region136: #{tpu_custom_call.1} parent=131 // pred_fallthru
          _
      $region132: #{tpu_custom_call.1} parent=5 // pred_fallthru
        _
      %p6252 = scmp.le.s32.totalorder 2, %s37
      // Predicated region
      $region137: #{tpu_custom_call.1} parent=5 // pred_check
        %p6253 = pneg %p6252
      $region138: #{tpu_custom_call.1} parent=5 // pred_check_branch
        %6255 = sbr.rel (%p6253) target = $region140
      $region139: #{tpu_custom_call.1} parent=5 // pred_region
        %s6256 = ssub.s32 %s37, 2
        // Predicated region
        $region141: #{tpu_custom_call.1} parent=139 // pred_check
          %p6257 = pneg %p664
        $region142: #{tpu_custom_call.1} parent=139 // pred_check_branch
          %6259 = sbr.rel (%p6257) target = $region144
        $region143: #{tpu_custom_call.1} parent=139 // pred_region
          %s6260 = sand.u32 %s649, 1
          %s6261 = scalar_lea.sflag [#allocation3], %s6260
          %s6262 = sand.u32 %s649, 1
          %s6263 = smul.addr %s6262, 8
          %s6264 = scalar_lea.vmem [#allocation2], %s6263
          %6265 = dma.done %s6261, 128
        $region144: #{tpu_custom_call.1} parent=139 // pred_fallthru
          _
      $region140: #{tpu_custom_call.1} parent=5 // pred_fallthru
        _
    $region6: #{tpu_custom_call.1} parent=1 // loop_footer
      %s41 = sadd.s32 1, %s37
    $region7: #{tpu_custom_call.1} parent=1 // loop_footer_branch
      %36 = sbr.rel target = $region3
    $region8: #{tpu_custom_call.1} parent=1 // loop_exit
      _
    %6266 = vsyncpa [#allocation3], 1
    %s6267 = scalar_lea.sflag [#allocation3], 1
    %6268 = vsyncpa %s6267, 1

</llo_original>
